<compile_context>
chip_gen: v6e
topology: v6e:2x2x1
jax: 0.10.0
libtpu: 0.0.40
codegen_flags: <defaults>
</compile_context>

<pallas_src>
import numpy as np

import jax
import jax.numpy as jnp
from jax.experimental import pallas as pl
from jax.experimental.pallas import tpu as pltpu


# --------------------------- canvas geometry ------------------------------- #
# "Canvas" = flattened spatial map with a FIXED row stride, stored on lanes.
#   stage 1 (28x28 input, valid regions 28->26->24): row stride 28, length 1024
#   stage 2 (after 2x2 pool, 12->10->8->6->6):       row stride 14, length 256
_W1, _L1 = 28, 1024
_W2, _L2 = 14, 256
_PAD = 128                     # zero pad on both sides of the scratch canvas
_SCR = _PAD + _L1 + _PAD       # scratch canvas length (lane-aligned)


def _pool_matrix():
    """(L1, L2) 0/1 matrix: stride-2 downsample of the 28-wide canvas onto a
    14-wide canvas (rows/cols 0..11 valid); invalid output cells become 0."""
    d = np.zeros((_L1, _L2), np.float32)
    for r in range(12):
        for c in range(12):
            d[2 * r * _W1 + 2 * c, r * _W2 + c] = 1.0
    return d


def _mask_6x6():
    """(1, L2) mask of the valid 6x6 region on the 14-wide canvas."""
    m = np.zeros((1, _L2), np.float32)
    for r in range(6):
        m[0, r * _W2:r * _W2 + 6] = 1.0
    return m


_POOL_MAT = _pool_matrix()
_MASK66 = _mask_6x6()


# ------------------------------ Pallas kernel ------------------------------ #

def _model11_kernel(x_ref, w0_ref, w1_ref, wt_ref, w2_ref, w3_ref, w4_ref,
                    w5_ref, w6_ref, pool_ref, mask_ref, bns_ref, bnb_ref,
                    o_ref, scr_ref):
    f32 = jnp.float32
    bn_scale = bns_ref[...]                       # (6, 20, 1), channel-padded
    bn_bias = bnb_ref[...]                        # (6, 20, 1)

    # Zero the scratch once per image; the never-written front pad supplies the
    # zeros that conv5 (padding=1) reads at negative offsets.
    scr_ref[...] = jnp.zeros((20, _SCR), f32)

    def conv3x3(canvas, w_ref, cin, width, length, pad):
        """3x3 conv as 9 shifted-accumulate lane-dense matmuls.

        canvas: (cin, length) value; returns (cout, length).  Valid cells of the
        output are exact; cells outside the valid region are don't-care.
        """
        w = w_ref[...]                            # (9, cout, cin)
        cout = w.shape[1]
        scr_ref[0:cin, _PAD:_PAD + length] = canvas
        acc = jnp.zeros((cout, length), f32)
        for ki in range(3):
            for kj in range(3):
                off = (ki - pad) * width + (kj - pad)
                src = scr_ref[0:cin, _PAD + off:_PAD + off + length]
                tap = w[ki * 3 + kj]              # (cout, cin)
                if cin == 1:                      # conv0: skip degenerate K=1 matmul
                    acc = acc + tap * src
                else:
                    acc = acc + jnp.dot(tap, src, preferred_element_type=f32)
        return acc

    def relu_bn(a, idx, cout):
        s = bn_scale[idx, 0:cout, :]              # (cout, 1)
        b = bn_bias[idx, 0:cout, :]
        return jnp.maximum(a, 0.0) * s + b

    x = x_ref[0]                                                      # (1, L1)
    a0 = relu_bn(conv3x3(x,  w0_ref, 1,  _W1, _L1, 0), 0, 10)         # (10, L1)
    a1 = relu_bn(conv3x3(a0, w1_ref, 10, _W1, _L1, 0), 1, 20)         # (20, L1)

    # trans1: 1x1 conv (20 -> 10), then MaxPool2d(2,2) repacked onto the
    # 14-wide canvas via the constant selection matmul.
    t1 = jnp.dot(wt_ref[...], a1, preferred_element_type=f32)         # (10, L1)
    scr_ref[0:10, _PAD:_PAD + _L1] = t1
    h = t1
    for off in (1, _W1, _W1 + 1):                                     # other 3 pool taps
        h = jnp.maximum(h, scr_ref[0:10, _PAD + off:_PAD + off + _L1])
    p = jnp.dot(h, pool_ref[...], preferred_element_type=f32)         # (10, L2)

    a2 = relu_bn(conv3x3(p,  w2_ref, 10, _W2, _L2, 0), 2, 20)         # (20, L2)
    a3 = relu_bn(conv3x3(a2, w3_ref, 20, _W2, _L2, 0), 3, 10)         # (10, L2)
    a4 = relu_bn(conv3x3(a3, w4_ref, 10, _W2, _L2, 0), 4, 10)         # (10, L2)

    mask = mask_ref[...]                                              # (1, L2)
    # conv5 has padding=1: zero everything outside the valid 6x6 region first so
    # the shifted reads see true zero padding.
    a5 = relu_bn(conv3x3(a4 * mask, w5_ref, 10, _W2, _L2, 1), 5, 10)  # (10, L2)

    # AvgPool2d(6) and the 1x1 conv6 are both linear and commute: apply conv6 on
    # the full canvas (lane-dense matmul), then do the masked average.
    z = jnp.dot(w6_ref[...], a5, preferred_element_type=f32)          # (10, L2)
    logits = jnp.sum(z * (mask * (1.0 / 36.0)), axis=1, keepdims=True)  # (10, 1)

    # log_softmax fused into the epilogue (numerically stable).
    m = jnp.max(logits, axis=0, keepdims=True)
    s = logits - m
    lse = jnp.log(jnp.sum(jnp.exp(s), axis=0, keepdims=True))
    o_ref[0] = (s - lse).astype(o_ref.dtype)


# ------------------------------ host wrappers ------------------------------ #

def _taps(w_hwio):
    """(kh, kw, cin, cout) HWIO conv weight -> (kh*kw, cout, cin) tap matrices."""
    kh, kw, cin, cout = w_hwio.shape
    return jnp.transpose(w_hwio, (0, 1, 3, 2)).reshape(kh * kw, cout, cin)


def _bn_fold(bn):
    """Inference-mode BatchNorm -> per-channel (scale, bias) applied after ReLU."""
    scale = bn["gamma"] * jax.lax.rsqrt(bn["var"] + 1e-5)
    bias = bn["beta"] - bn["mean"] * scale
    return scale, bias


def _const_spec(shape):
    return pl.BlockSpec(shape, lambda b: (0,) * len(shape))


@jax.jit
def model_forward(x_nchw, params):
    """Model_11 forward pass (inference) via a single fused Pallas kernel."""
    B = x_nchw.shape[0]
    assert x_nchw.shape[1:] == (1, 28, 28), x_nchw.shape

    x = x_nchw.astype(jnp.float32).reshape(B, 1, 28 * 28)
    x = jnp.pad(x, ((0, 0), (0, 0), (0, _L1 - 28 * 28)))              # (B, 1, L1)

    w0 = _taps(params["conv0"])                                       # (9, 10, 1)
    w1 = _taps(params["conv1"])                                       # (9, 20, 10)
    w2 = _taps(params["conv2"])                                       # (9, 20, 10)
    w3 = _taps(params["conv3"])                                       # (9, 10, 20)
    w4 = _taps(params["conv4"])                                       # (9, 10, 10)
    w5 = _taps(params["conv5"])                                       # (9, 10, 10)
    wt = params["trans1"].reshape(20, 10).T                           # (10, 20)
    w6 = params["conv6"].reshape(10, 10).T                            # (10, 10)

    scales, biases = [], []
    for name in ("bn0", "bn1", "bn2", "bn3", "bn4", "bn5"):
        s, b = _bn_fold(params[name])
        pad = 20 - s.shape[0]
        scales.append(jnp.pad(s, (0, pad)))
        biases.append(jnp.pad(b, (0, pad)))
    bn_scale = jnp.stack(scales).reshape(6, 20, 1)
    bn_bias = jnp.stack(biases).reshape(6, 20, 1)

    pool_mat = jnp.asarray(_POOL_MAT)                                 # (L1, L2)
    mask66 = jnp.asarray(_MASK66)                                     # (1, L2)

    operands = (x, w0, w1, wt, w2, w3, w4, w5, w6, pool_mat, mask66,
                bn_scale, bn_bias)
    in_specs = [pl.BlockSpec((1, 1, _L1), lambda b: (b, 0, 0))]
    in_specs += [_const_spec(op.shape) for op in operands[1:]]

    out = pl.pallas_call(
        _model11_kernel,
        out_shape=jax.ShapeDtypeStruct((B, 10, 1), jnp.float32),
        grid=(B,),
        in_specs=in_specs,
        out_specs=pl.BlockSpec((1, 10, 1), lambda b: (b, 0, 0)),
        scratch_shapes=[pltpu.VMEM((20, _SCR), jnp.float32)],
        compiler_params=pltpu.CompilerParams(
            dimension_semantics=("parallel",)),      # batch across v7x's 2 TCs
    )(*operands)
    return out.reshape(B, 10)                                         # == x.view(-1, 10)


# ------------------------------ parameters --------------------------------- #

def init_params(key):
    conv_shapes = {                       # HWIO
        "conv0": (3, 3, 1, 10), "conv1": (3, 3, 10, 20), "trans1": (1, 1, 20, 10),
        "conv2": (3, 3, 10, 20), "conv3": (3, 3, 20, 10), "conv4": (3, 3, 10, 10),
        "conv5": (3, 3, 10, 10), "conv6": (1, 1, 10, 10),
    }
    bn_channels = {"bn0": 10, "bn1": 20, "bn2": 20, "bn3": 10, "bn4": 10, "bn5": 10}
    params = {}
    for name, shp in conv_shapes.items():
        key, sub = jax.random.split(key)
        fan_in = shp[0] * shp[1] * shp[2]
        params[name] = jax.random.normal(sub, shp, jnp.float32) * (2.0 / fan_in) ** 0.5
    for name, c in bn_channels.items():
        key, k1, k2, k3, k4 = jax.random.split(key, 5)
        params[name] = {
            "gamma": 1.0 + 0.1 * jax.random.normal(k1, (c,), jnp.float32),
            "beta": 0.1 * jax.random.normal(k2, (c,), jnp.float32),
            "mean": 0.1 * jax.random.normal(k3, (c,), jnp.float32),
            "var": 1.0 + 0.2 * jax.random.uniform(k4, (c,), jnp.float32),
        }
    return params


# ------------------------- pure-JAX reference ------------------------------ #

def ref_forward(x_nchw, params):
    """Pure-JAX reference (lax convs / reduce_window) for correctness checking."""
    x = jnp.transpose(x_nchw, (0, 2, 3, 1)).astype(jnp.float32)       # NHWC
    dn = ("NHWC", "HWIO", "NHWC")

    def conv(x, w, padding="VALID"):
        return jax.lax.conv_general_dilated(x, w, (1, 1), padding,
                                            dimension_numbers=dn)

    def bn(x, name):
        s, b = _bn_fold(params[name])
        return x * s + b

    x = bn(jnp.maximum(conv(x, params["conv0"]), 0.0), "bn0")
    x = bn(jnp.maximum(conv(x, params["conv1"]), 0.0), "bn1")
    x = conv(x, params["trans1"])
    x = jax.lax.reduce_window(x, -jnp.inf, jax.lax.max,
                              (1, 2, 2, 1), (1, 2, 2, 1), "VALID")
    x = bn(jnp.maximum(conv(x, params["conv2"]), 0.0), "bn2")
    x = bn(jnp.maximum(conv(x, params["conv3"]), 0.0), "bn3")
    x = bn(jnp.maximum(conv(x, params["conv4"]), 0.0), "bn4")
    x = bn(jnp.maximum(conv(x, params["conv5"], ((1, 1), (1, 1))), 0.0), "bn5")
    x = jnp.mean(x, axis=(1, 2), keepdims=True)                       # AvgPool2d(6)
    x = conv(x, params["conv6"])
    x = x.reshape(-1, 10)
    return jax.nn.log_softmax(x, axis=-1)


if __name__ == "__main__":
    key = jax.random.PRNGKey(0)
    pkey, xkey = jax.random.split(key)
    params = init_params(pkey)
    # 28x28 input is what the architecture implies (AvgPool(6) -> 1x1 spatial).
    x = jax.random.normal(xkey, (2, 1, 28, 28), jnp.float32)          # NCHW

    out = jax.block_until_ready(model_forward(x, params))
    assert out.shape == (2, 10), out.shape

    ref = jax.block_until_ready(ref_forward(x, params))
    err = float(jnp.max(jnp.abs(out - ref)))
    assert jnp.allclose(out, ref, atol=1e-3, rtol=1e-3), err

    print("KERNEL_OK")
</pallas_src>

<mosaic_0001>
module attributes {stable_mosaic.version = 11 : i64} {
  func.func @_model11_kernel(%arg0: i32, %arg1: memref<1x1x1024xf32, #tpu.memory_space<vmem>>, %arg2: memref<9x10x1xf32, #tpu.memory_space<vmem>>, %arg3: memref<9x20x10xf32, #tpu.memory_space<vmem>>, %arg4: memref<10x20xf32, #tpu.memory_space<vmem>>, %arg5: memref<9x20x10xf32, #tpu.memory_space<vmem>>, %arg6: memref<9x10x20xf32, #tpu.memory_space<vmem>>, %arg7: memref<9x10x10xf32, #tpu.memory_space<vmem>>, %arg8: memref<9x10x10xf32, #tpu.memory_space<vmem>>, %arg9: memref<10x10xf32, #tpu.memory_space<vmem>>, %arg10: memref<1024x256xf32, #tpu.memory_space<vmem>>, %arg11: memref<1x256xf32, #tpu.memory_space<vmem>>, %arg12: memref<6x20x1xf32, #tpu.memory_space<vmem>>, %arg13: memref<6x20x1xf32, #tpu.memory_space<vmem>>, %arg14: memref<1x10x1xf32, #tpu.memory_space<vmem>>, %arg15: memref<20x1280xf32, #tpu.memory_space<vmem>>) attributes {dimension_semantics = [#tpu.dimension_semantics<parallel>], iteration_bounds = array<i64: 2>, scalar_prefetch = 0 : i64, scratch_operands = 1 : i64, tpu.core_type = #tpu.core_type<tc>, window_params = [{transform_indices = @transform_0, window_bounds = array<i64: 1, 1, 1024>}, {pipeline_mode = #tpu.pipeline_mode<synchronous>, transform_indices = @transform_1, window_bounds = array<i64: 9, 10, 1>}, {pipeline_mode = #tpu.pipeline_mode<synchronous>, transform_indices = @transform_2, window_bounds = array<i64: 9, 20, 10>}, {pipeline_mode = #tpu.pipeline_mode<synchronous>, transform_indices = @transform_3, window_bounds = array<i64: 10, 20>}, {pipeline_mode = #tpu.pipeline_mode<synchronous>, transform_indices = @transform_4, window_bounds = array<i64: 9, 20, 10>}, {pipeline_mode = #tpu.pipeline_mode<synchronous>, transform_indices = @transform_5, window_bounds = array<i64: 9, 10, 20>}, {pipeline_mode = #tpu.pipeline_mode<synchronous>, transform_indices = @transform_6, window_bounds = array<i64: 9, 10, 10>}, {pipeline_mode = #tpu.pipeline_mode<synchronous>, transform_indices = @transform_7, window_bounds = array<i64: 9, 10, 10>}, {pipeline_mode = #tpu.pipeline_mode<synchronous>, transform_indices = @transform_8, window_bounds = array<i64: 10, 10>}, {pipeline_mode = #tpu.pipeline_mode<synchronous>, transform_indices = @transform_9, window_bounds = array<i64: 1024, 256>}, {pipeline_mode = #tpu.pipeline_mode<synchronous>, transform_indices = @transform_10, window_bounds = array<i64: 1, 256>}, {pipeline_mode = #tpu.pipeline_mode<synchronous>, transform_indices = @transform_11, window_bounds = array<i64: 6, 20, 1>}, {pipeline_mode = #tpu.pipeline_mode<synchronous>, transform_indices = @transform_12, window_bounds = array<i64: 6, 20, 1>}, {transform_indices = @transform_13, window_bounds = array<i64: 1, 10, 1>}]} {
    %c0 = arith.constant 0 : index
    %c0_0 = arith.constant 0 : index
    %c0_1 = arith.constant 0 : index
    %0 = vector.load %arg12[%c0, %c0_0, %c0_1] : memref<6x20x1xf32, #tpu.memory_space<vmem>>, vector<6x20x1xf32>
    %c0_2 = arith.constant 0 : index
    %c0_3 = arith.constant 0 : index
    %c0_4 = arith.constant 0 : index
    %1 = vector.load %arg13[%c0_2, %c0_3, %c0_4] : memref<6x20x1xf32, #tpu.memory_space<vmem>>, vector<6x20x1xf32>
    %cst = arith.constant 0.000000e+00 : f32
    %2 = vector.broadcast %cst : f32 to vector<20x1280xf32>
    %c0_5 = arith.constant 0 : index
    %c0_6 = arith.constant 0 : index
    %3 = vector.load %arg15[%c0_5, %c0_6] : memref<20x1280xf32, #tpu.memory_space<vmem>>, vector<20x1280xf32>
    tpu.vector_store %arg15[%c0_5, %c0_6], %2 {strides = array<i32>} : memref<20x1280xf32, #tpu.memory_space<vmem>>, vector<20x1280xf32>,
    %c0_7 = arith.constant 0 : index
    %c0_8 = arith.constant 0 : index
    %c0_9 = arith.constant 0 : index
    %4 = vector.load %arg1[%c0_7, %c0_8, %c0_9] : memref<1x1x1024xf32, #tpu.memory_space<vmem>>, vector<1x1x1024xf32>
    %5 = vector.shape_cast %4 : vector<1x1x1024xf32> to vector<1x1024xf32>
    %c0_10 = arith.constant 0 : index
    %c0_11 = arith.constant 0 : index
    %c0_12 = arith.constant 0 : index
    %6 = vector.load %arg2[%c0_10, %c0_11, %c0_12] : memref<9x10x1xf32, #tpu.memory_space<vmem>>, vector<9x10x1xf32>
    %c0_13 = arith.constant 0 : index
    %c128 = arith.constant 128 : index
    %7 = vector.load %arg15[%c0_13, %c128] : memref<20x1280xf32, #tpu.memory_space<vmem>>, vector<1x1024xf32>
    tpu.vector_store %arg15[%c0_13, %c128], %5 {strides = array<i32>} : memref<20x1280xf32, #tpu.memory_space<vmem>>, vector<1x1024xf32>,
    %cst_14 = arith.constant 0.000000e+00 : f32
    %8 = vector.broadcast %cst_14 : f32 to vector<10x1024xf32>
    %c0_15 = arith.constant 0 : index
    %c128_16 = arith.constant 128 : index
    %9 = vector.load %arg15[%c0_15, %c128_16] : memref<20x1280xf32, #tpu.memory_space<vmem>>, vector<1x1024xf32>
    %10 = vector.extract_strided_slice %6 {offsets = [0, 0, 0], sizes = [1, 10, 1], strides = [1, 1, 1]} : vector<9x10x1xf32> to vector<1x10x1xf32>
    %11 = vector.shape_cast %10 : vector<1x10x1xf32> to vector<10x1xf32>
    %12 = vector.broadcast %11 : vector<10x1xf32> to vector<10x1024xf32>
    %13 = vector.broadcast %9 : vector<1x1024xf32> to vector<10x1024xf32>
    %14 = arith.mulf %12, %13 : vector<10x1024xf32>
    %15 = arith.addf %8, %14 : vector<10x1024xf32>
    %c0_17 = arith.constant 0 : index
    %c129 = arith.constant 129 : index
    %16 = vector.load %arg15[%c0_17, %c129] : memref<20x1280xf32, #tpu.memory_space<vmem>>, vector<1x1024xf32>
    %17 = vector.extract_strided_slice %6 {offsets = [1, 0, 0], sizes = [1, 10, 1], strides = [1, 1, 1]} : vector<9x10x1xf32> to vector<1x10x1xf32>
    %18 = vector.shape_cast %17 : vector<1x10x1xf32> to vector<10x1xf32>
    %19 = vector.broadcast %18 : vector<10x1xf32> to vector<10x1024xf32>
    %20 = vector.broadcast %16 : vector<1x1024xf32> to vector<10x1024xf32>
    %21 = arith.mulf %19, %20 : vector<10x1024xf32>
    %22 = arith.addf %15, %21 : vector<10x1024xf32>
    %c0_18 = arith.constant 0 : index
    %c130 = arith.constant 130 : index
    %23 = vector.load %arg15[%c0_18, %c130] : memref<20x1280xf32, #tpu.memory_space<vmem>>, vector<1x1024xf32>
    %24 = vector.extract_strided_slice %6 {offsets = [2, 0, 0], sizes = [1, 10, 1], strides = [1, 1, 1]} : vector<9x10x1xf32> to vector<1x10x1xf32>
    %25 = vector.shape_cast %24 : vector<1x10x1xf32> to vector<10x1xf32>
    %26 = vector.broadcast %25 : vector<10x1xf32> to vector<10x1024xf32>
    %27 = vector.broadcast %23 : vector<1x1024xf32> to vector<10x1024xf32>
    %28 = arith.mulf %26, %27 : vector<10x1024xf32>
    %29 = arith.addf %22, %28 : vector<10x1024xf32>
    %c0_19 = arith.constant 0 : index
    %c156 = arith.constant 156 : index
    %30 = vector.load %arg15[%c0_19, %c156] : memref<20x1280xf32, #tpu.memory_space<vmem>>, vector<1x1024xf32>
    %31 = vector.extract_strided_slice %6 {offsets = [3, 0, 0], sizes = [1, 10, 1], strides = [1, 1, 1]} : vector<9x10x1xf32> to vector<1x10x1xf32>
    %32 = vector.shape_cast %31 : vector<1x10x1xf32> to vector<10x1xf32>
    %33 = vector.broadcast %32 : vector<10x1xf32> to vector<10x1024xf32>
    %34 = vector.broadcast %30 : vector<1x1024xf32> to vector<10x1024xf32>
    %35 = arith.mulf %33, %34 : vector<10x1024xf32>
    %36 = arith.addf %29, %35 : vector<10x1024xf32>
    %c0_20 = arith.constant 0 : index
    %c157 = arith.constant 157 : index
    %37 = vector.load %arg15[%c0_20, %c157] : memref<20x1280xf32, #tpu.memory_space<vmem>>, vector<1x1024xf32>
    %38 = vector.extract_strided_slice %6 {offsets = [4, 0, 0], sizes = [1, 10, 1], strides = [1, 1, 1]} : vector<9x10x1xf32> to vector<1x10x1xf32>
    %39 = vector.shape_cast %38 : vector<1x10x1xf32> to vector<10x1xf32>
    %40 = vector.broadcast %39 : vector<10x1xf32> to vector<10x1024xf32>
    %41 = vector.broadcast %37 : vector<1x1024xf32> to vector<10x1024xf32>
    %42 = arith.mulf %40, %41 : vector<10x1024xf32>
    %43 = arith.addf %36, %42 : vector<10x1024xf32>
    %c0_21 = arith.constant 0 : index
    %c158 = arith.constant 158 : index
    %44 = vector.load %arg15[%c0_21, %c158] : memref<20x1280xf32, #tpu.memory_space<vmem>>, vector<1x1024xf32>
    %45 = vector.extract_strided_slice %6 {offsets = [5, 0, 0], sizes = [1, 10, 1], strides = [1, 1, 1]} : vector<9x10x1xf32> to vector<1x10x1xf32>
    %46 = vector.shape_cast %45 : vector<1x10x1xf32> to vector<10x1xf32>
    %47 = vector.broadcast %46 : vector<10x1xf32> to vector<10x1024xf32>
    %48 = vector.broadcast %44 : vector<1x1024xf32> to vector<10x1024xf32>
    %49 = arith.mulf %47, %48 : vector<10x1024xf32>
    %50 = arith.addf %43, %49 : vector<10x1024xf32>
    %c0_22 = arith.constant 0 : index
    %c184 = arith.constant 184 : index
    %51 = vector.load %arg15[%c0_22, %c184] : memref<20x1280xf32, #tpu.memory_space<vmem>>, vector<1x1024xf32>
    %52 = vector.extract_strided_slice %6 {offsets = [6, 0, 0], sizes = [1, 10, 1], strides = [1, 1, 1]} : vector<9x10x1xf32> to vector<1x10x1xf32>
    %53 = vector.shape_cast %52 : vector<1x10x1xf32> to vector<10x1xf32>
    %54 = vector.broadcast %53 : vector<10x1xf32> to vector<10x1024xf32>
    %55 = vector.broadcast %51 : vector<1x1024xf32> to vector<10x1024xf32>
    %56 = arith.mulf %54, %55 : vector<10x1024xf32>
    %57 = arith.addf %50, %56 : vector<10x1024xf32>
    %c0_23 = arith.constant 0 : index
    %c185 = arith.constant 185 : index
    %58 = vector.load %arg15[%c0_23, %c185] : memref<20x1280xf32, #tpu.memory_space<vmem>>, vector<1x1024xf32>
    %59 = vector.extract_strided_slice %6 {offsets = [7, 0, 0], sizes = [1, 10, 1], strides = [1, 1, 1]} : vector<9x10x1xf32> to vector<1x10x1xf32>
    %60 = vector.shape_cast %59 : vector<1x10x1xf32> to vector<10x1xf32>
    %61 = vector.broadcast %60 : vector<10x1xf32> to vector<10x1024xf32>
    %62 = vector.broadcast %58 : vector<1x1024xf32> to vector<10x1024xf32>
    %63 = arith.mulf %61, %62 : vector<10x1024xf32>
    %64 = arith.addf %57, %63 : vector<10x1024xf32>
    %c0_24 = arith.constant 0 : index
    %c186 = arith.constant 186 : index
    %65 = vector.load %arg15[%c0_24, %c186] : memref<20x1280xf32, #tpu.memory_space<vmem>>, vector<1x1024xf32>
    %66 = vector.extract_strided_slice %6 {offsets = [8, 0, 0], sizes = [1, 10, 1], strides = [1, 1, 1]} : vector<9x10x1xf32> to vector<1x10x1xf32>
    %67 = vector.shape_cast %66 : vector<1x10x1xf32> to vector<10x1xf32>
    %68 = vector.broadcast %67 : vector<10x1xf32> to vector<10x1024xf32>
    %69 = vector.broadcast %65 : vector<1x1024xf32> to vector<10x1024xf32>
    %70 = arith.mulf %68, %69 : vector<10x1024xf32>
    %71 = arith.addf %64, %70 : vector<10x1024xf32>
    %72 = vector.extract_strided_slice %0 {offsets = [0, 0, 0], sizes = [1, 10, 1], strides = [1, 1, 1]} : vector<6x20x1xf32> to vector<1x10x1xf32>
    %73 = vector.shape_cast %72 : vector<1x10x1xf32> to vector<10x1xf32>
    %74 = vector.extract_strided_slice %1 {offsets = [0, 0, 0], sizes = [1, 10, 1], strides = [1, 1, 1]} : vector<6x20x1xf32> to vector<1x10x1xf32>
    %75 = vector.shape_cast %74 : vector<1x10x1xf32> to vector<10x1xf32>
    %cst_25 = arith.constant 0.000000e+00 : f32
    %76 = vector.broadcast %cst_25 : f32 to vector<10x1024xf32>
    %77 = arith.maximumf %71, %76 : vector<10x1024xf32>
    %78 = vector.broadcast %73 : vector<10x1xf32> to vector<10x1024xf32>
    %79 = arith.mulf %77, %78 : vector<10x1024xf32>
    %80 = vector.broadcast %75 : vector<10x1xf32> to vector<10x1024xf32>
    %81 = arith.addf %79, %80 : vector<10x1024xf32>
    %c0_26 = arith.constant 0 : index
    %c0_27 = arith.constant 0 : index
    %c0_28 = arith.constant 0 : index
    %82 = vector.load %arg3[%c0_26, %c0_27, %c0_28] : memref<9x20x10xf32, #tpu.memory_space<vmem>>, vector<9x20x10xf32>
    %c0_29 = arith.constant 0 : index
    %c128_30 = arith.constant 128 : index
    %83 = vector.load %arg15[%c0_29, %c128_30] : memref<20x1280xf32, #tpu.memory_space<vmem>>, vector<10x1024xf32>
    tpu.vector_store %arg15[%c0_29, %c128_30], %81 {strides = array<i32>} : memref<20x1280xf32, #tpu.memory_space<vmem>>, vector<10x1024xf32>,
    %cst_31 = arith.constant 0.000000e+00 : f32
    %84 = vector.broadcast %cst_31 : f32 to vector<20x1024xf32>
    %c0_32 = arith.constant 0 : index
    %c128_33 = arith.constant 128 : index
    %85 = vector.load %arg15[%c0_32, %c128_33] : memref<20x1280xf32, #tpu.memory_space<vmem>>, vector<10x1024xf32>
    %86 = vector.extract_strided_slice %82 {offsets = [0, 0, 0], sizes = [1, 20, 10], strides = [1, 1, 1]} : vector<9x20x10xf32> to vector<1x20x10xf32>
    %87 = vector.shape_cast %86 : vector<1x20x10xf32> to vector<20x10xf32>
    %cst_34 = arith.constant dense<0.000000e+00> : vector<20x1024xf32>
    %88 = tpu.matmul %87, %85, %cst_34 {dimension_numbers = #tpu.dot_dimension_numbers<[1], [0], [0], [1], [0, 0, 1, 1], [], []>} : vector<20x10xf32>, vector<10x1024xf32>, vector<20x1024xf32> -> vector<20x1024xf32>
    %89 = arith.addf %84, %88 : vector<20x1024xf32>
    %c0_35 = arith.constant 0 : index
    %c129_36 = arith.constant 129 : index
    %90 = vector.load %arg15[%c0_35, %c129_36] : memref<20x1280xf32, #tpu.memory_space<vmem>>, vector<10x1024xf32>
    %91 = vector.extract_strided_slice %82 {offsets = [1, 0, 0], sizes = [1, 20, 10], strides = [1, 1, 1]} : vector<9x20x10xf32> to vector<1x20x10xf32>
    %92 = vector.shape_cast %91 : vector<1x20x10xf32> to vector<20x10xf32>
    %cst_37 = arith.constant dense<0.000000e+00> : vector<20x1024xf32>
    %93 = tpu.matmul %92, %90, %cst_37 {dimension_numbers = #tpu.dot_dimension_numbers<[1], [0], [0], [1], [0, 0, 1, 1], [], []>} : vector<20x10xf32>, vector<10x1024xf32>, vector<20x1024xf32> -> vector<20x1024xf32>
    %94 = arith.addf %89, %93 : vector<20x1024xf32>
    %c0_38 = arith.constant 0 : index
    %c130_39 = arith.constant 130 : index
    %95 = vector.load %arg15[%c0_38, %c130_39] : memref<20x1280xf32, #tpu.memory_space<vmem>>, vector<10x1024xf32>
    %96 = vector.extract_strided_slice %82 {offsets = [2, 0, 0], sizes = [1, 20, 10], strides = [1, 1, 1]} : vector<9x20x10xf32> to vector<1x20x10xf32>
    %97 = vector.shape_cast %96 : vector<1x20x10xf32> to vector<20x10xf32>
    %cst_40 = arith.constant dense<0.000000e+00> : vector<20x1024xf32>
    %98 = tpu.matmul %97, %95, %cst_40 {dimension_numbers = #tpu.dot_dimension_numbers<[1], [0], [0], [1], [0, 0, 1, 1], [], []>} : vector<20x10xf32>, vector<10x1024xf32>, vector<20x1024xf32> -> vector<20x1024xf32>
    %99 = arith.addf %94, %98 : vector<20x1024xf32>
    %c0_41 = arith.constant 0 : index
    %c156_42 = arith.constant 156 : index
    %100 = vector.load %arg15[%c0_41, %c156_42] : memref<20x1280xf32, #tpu.memory_space<vmem>>, vector<10x1024xf32>
    %101 = vector.extract_strided_slice %82 {offsets = [3, 0, 0], sizes = [1, 20, 10], strides = [1, 1, 1]} : vector<9x20x10xf32> to vector<1x20x10xf32>
    %102 = vector.shape_cast %101 : vector<1x20x10xf32> to vector<20x10xf32>
    %cst_43 = arith.constant dense<0.000000e+00> : vector<20x1024xf32>
    %103 = tpu.matmul %102, %100, %cst_43 {dimension_numbers = #tpu.dot_dimension_numbers<[1], [0], [0], [1], [0, 0, 1, 1], [], []>} : vector<20x10xf32>, vector<10x1024xf32>, vector<20x1024xf32> -> vector<20x1024xf32>
    %104 = arith.addf %99, %103 : vector<20x1024xf32>
    %c0_44 = arith.constant 0 : index
    %c157_45 = arith.constant 157 : index
    %105 = vector.load %arg15[%c0_44, %c157_45] : memref<20x1280xf32, #tpu.memory_space<vmem>>, vector<10x1024xf32>
    %106 = vector.extract_strided_slice %82 {offsets = [4, 0, 0], sizes = [1, 20, 10], strides = [1, 1, 1]} : vector<9x20x10xf32> to vector<1x20x10xf32>
    %107 = vector.shape_cast %106 : vector<1x20x10xf32> to vector<20x10xf32>
    %cst_46 = arith.constant dense<0.000000e+00> : vector<20x1024xf32>
    %108 = tpu.matmul %107, %105, %cst_46 {dimension_numbers = #tpu.dot_dimension_numbers<[1], [0], [0], [1], [0, 0, 1, 1], [], []>} : vector<20x10xf32>, vector<10x1024xf32>, vector<20x1024xf32> -> vector<20x1024xf32>
    %109 = arith.addf %104, %108 : vector<20x1024xf32>
    %c0_47 = arith.constant 0 : index
    %c158_48 = arith.constant 158 : index
    %110 = vector.load %arg15[%c0_47, %c158_48] : memref<20x1280xf32, #tpu.memory_space<vmem>>, vector<10x1024xf32>
    %111 = vector.extract_strided_slice %82 {offsets = [5, 0, 0], sizes = [1, 20, 10], strides = [1, 1, 1]} : vector<9x20x10xf32> to vector<1x20x10xf32>
    %112 = vector.shape_cast %111 : vector<1x20x10xf32> to vector<20x10xf32>
    %cst_49 = arith.constant dense<0.000000e+00> : vector<20x1024xf32>
    %113 = tpu.matmul %112, %110, %cst_49 {dimension_numbers = #tpu.dot_dimension_numbers<[1], [0], [0], [1], [0, 0, 1, 1], [], []>} : vector<20x10xf32>, vector<10x1024xf32>, vector<20x1024xf32> -> vector<20x1024xf32>
    %114 = arith.addf %109, %113 : vector<20x1024xf32>
    %c0_50 = arith.constant 0 : index
    %c184_51 = arith.constant 184 : index
    %115 = vector.load %arg15[%c0_50, %c184_51] : memref<20x1280xf32, #tpu.memory_space<vmem>>, vector<10x1024xf32>
    %116 = vector.extract_strided_slice %82 {offsets = [6, 0, 0], sizes = [1, 20, 10], strides = [1, 1, 1]} : vector<9x20x10xf32> to vector<1x20x10xf32>
    %117 = vector.shape_cast %116 : vector<1x20x10xf32> to vector<20x10xf32>
    %cst_52 = arith.constant dense<0.000000e+00> : vector<20x1024xf32>
    %118 = tpu.matmul %117, %115, %cst_52 {dimension_numbers = #tpu.dot_dimension_numbers<[1], [0], [0], [1], [0, 0, 1, 1], [], []>} : vector<20x10xf32>, vector<10x1024xf32>, vector<20x1024xf32> -> vector<20x1024xf32>
    %119 = arith.addf %114, %118 : vector<20x1024xf32>
    %c0_53 = arith.constant 0 : index
    %c185_54 = arith.constant 185 : index
    %120 = vector.load %arg15[%c0_53, %c185_54] : memref<20x1280xf32, #tpu.memory_space<vmem>>, vector<10x1024xf32>
    %121 = vector.extract_strided_slice %82 {offsets = [7, 0, 0], sizes = [1, 20, 10], strides = [1, 1, 1]} : vector<9x20x10xf32> to vector<1x20x10xf32>
    %122 = vector.shape_cast %121 : vector<1x20x10xf32> to vector<20x10xf32>
    %cst_55 = arith.constant dense<0.000000e+00> : vector<20x1024xf32>
    %123 = tpu.matmul %122, %120, %cst_55 {dimension_numbers = #tpu.dot_dimension_numbers<[1], [0], [0], [1], [0, 0, 1, 1], [], []>} : vector<20x10xf32>, vector<10x1024xf32>, vector<20x1024xf32> -> vector<20x1024xf32>
    %124 = arith.addf %119, %123 : vector<20x1024xf32>
    %c0_56 = arith.constant 0 : index
    %c186_57 = arith.constant 186 : index
    %125 = vector.load %arg15[%c0_56, %c186_57] : memref<20x1280xf32, #tpu.memory_space<vmem>>, vector<10x1024xf32>
    %126 = vector.extract_strided_slice %82 {offsets = [8, 0, 0], sizes = [1, 20, 10], strides = [1, 1, 1]} : vector<9x20x10xf32> to vector<1x20x10xf32>
    %127 = vector.shape_cast %126 : vector<1x20x10xf32> to vector<20x10xf32>
    %cst_58 = arith.constant dense<0.000000e+00> : vector<20x1024xf32>
    %128 = tpu.matmul %127, %125, %cst_58 {dimension_numbers = #tpu.dot_dimension_numbers<[1], [0], [0], [1], [0, 0, 1, 1], [], []>} : vector<20x10xf32>, vector<10x1024xf32>, vector<20x1024xf32> -> vector<20x1024xf32>
    %129 = arith.addf %124, %128 : vector<20x1024xf32>
    %130 = vector.extract_strided_slice %0 {offsets = [1, 0, 0], sizes = [1, 20, 1], strides = [1, 1, 1]} : vector<6x20x1xf32> to vector<1x20x1xf32>
    %131 = vector.shape_cast %130 : vector<1x20x1xf32> to vector<20x1xf32>
    %132 = vector.extract_strided_slice %1 {offsets = [1, 0, 0], sizes = [1, 20, 1], strides = [1, 1, 1]} : vector<6x20x1xf32> to vector<1x20x1xf32>
    %133 = vector.shape_cast %132 : vector<1x20x1xf32> to vector<20x1xf32>
    %cst_59 = arith.constant 0.000000e+00 : f32
    %134 = vector.broadcast %cst_59 : f32 to vector<20x1024xf32>
    %135 = arith.maximumf %129, %134 : vector<20x1024xf32>
    %136 = vector.broadcast %131 : vector<20x1xf32> to vector<20x1024xf32>
    %137 = arith.mulf %135, %136 : vector<20x1024xf32>
    %138 = vector.broadcast %133 : vector<20x1xf32> to vector<20x1024xf32>
    %139 = arith.addf %137, %138 : vector<20x1024xf32>
    %c0_60 = arith.constant 0 : index
    %c0_61 = arith.constant 0 : index
    %140 = vector.load %arg4[%c0_60, %c0_61] : memref<10x20xf32, #tpu.memory_space<vmem>>, vector<10x20xf32>
    %cst_62 = arith.constant dense<0.000000e+00> : vector<10x1024xf32>
    %141 = tpu.matmul %140, %139, %cst_62 {dimension_numbers = #tpu.dot_dimension_numbers<[1], [0], [0], [1], [0, 0, 1, 1], [], []>} : vector<10x20xf32>, vector<20x1024xf32>, vector<10x1024xf32> -> vector<10x1024xf32>
    %c0_63 = arith.constant 0 : index
    %c128_64 = arith.constant 128 : index
    %142 = vector.load %arg15[%c0_63, %c128_64] : memref<20x1280xf32, #tpu.memory_space<vmem>>, vector<10x1024xf32>
    tpu.vector_store %arg15[%c0_63, %c128_64], %141 {strides = array<i32>} : memref<20x1280xf32, #tpu.memory_space<vmem>>, vector<10x1024xf32>,
    %c0_65 = arith.constant 0 : index
    %c129_66 = arith.constant 129 : index
    %143 = vector.load %arg15[%c0_65, %c129_66] : memref<20x1280xf32, #tpu.memory_space<vmem>>, vector<10x1024xf32>
    %144 = arith.maximumf %141, %143 : vector<10x1024xf32>
    %c0_67 = arith.constant 0 : index
    %c156_68 = arith.constant 156 : index
    %145 = vector.load %arg15[%c0_67, %c156_68] : memref<20x1280xf32, #tpu.memory_space<vmem>>, vector<10x1024xf32>
    %146 = arith.maximumf %144, %145 : vector<10x1024xf32>
    %c0_69 = arith.constant 0 : index
    %c157_70 = arith.constant 157 : index
    %147 = vector.load %arg15[%c0_69, %c157_70] : memref<20x1280xf32, #tpu.memory_space<vmem>>, vector<10x1024xf32>
    %148 = arith.maximumf %146, %147 : vector<10x1024xf32>
    %c0_71 = arith.constant 0 : index
    %c0_72 = arith.constant 0 : index
    %149 = vector.load %arg10[%c0_71, %c0_72] : memref<1024x256xf32, #tpu.memory_space<vmem>>, vector<1024x256xf32>
    %cst_73 = arith.constant dense<0.000000e+00> : vector<10x256xf32>
    %150 = tpu.matmul %148, %149, %cst_73 {dimension_numbers = #tpu.dot_dimension_numbers<[1], [0], [0], [1], [0, 0, 1, 1], [], []>} : vector<10x1024xf32>, vector<1024x256xf32>, vector<10x256xf32> -> vector<10x256xf32>
    %c0_74 = arith.constant 0 : index
    %c0_75 = arith.constant 0 : index
    %c0_76 = arith.constant 0 : index
    %151 = vector.load %arg5[%c0_74, %c0_75, %c0_76] : memref<9x20x10xf32, #tpu.memory_space<vmem>>, vector<9x20x10xf32>
    %c0_77 = arith.constant 0 : index
    %c128_78 = arith.constant 128 : index
    %152 = vector.load %arg15[%c0_77, %c128_78] : memref<20x1280xf32, #tpu.memory_space<vmem>>, vector<10x256xf32>
    tpu.vector_store %arg15[%c0_77, %c128_78], %150 {strides = array<i32>} : memref<20x1280xf32, #tpu.memory_space<vmem>>, vector<10x256xf32>,
    %cst_79 = arith.constant 0.000000e+00 : f32
    %153 = vector.broadcast %cst_79 : f32 to vector<20x256xf32>
    %c0_80 = arith.constant 0 : index
    %c128_81 = arith.constant 128 : index
    %154 = vector.load %arg15[%c0_80, %c128_81] : memref<20x1280xf32, #tpu.memory_space<vmem>>, vector<10x256xf32>
    %155 = vector.extract_strided_slice %151 {offsets = [0, 0, 0], sizes = [1, 20, 10], strides = [1, 1, 1]} : vector<9x20x10xf32> to vector<1x20x10xf32>
    %156 = vector.shape_cast %155 : vector<1x20x10xf32> to vector<20x10xf32>
    %cst_82 = arith.constant dense<0.000000e+00> : vector<20x256xf32>
    %157 = tpu.matmul %156, %154, %cst_82 {dimension_numbers = #tpu.dot_dimension_numbers<[1], [0], [0], [1], [0, 0, 1, 1], [], []>} : vector<20x10xf32>, vector<10x256xf32>, vector<20x256xf32> -> vector<20x256xf32>
    %158 = arith.addf %153, %157 : vector<20x256xf32>
    %c0_83 = arith.constant 0 : index
    %c129_84 = arith.constant 129 : index
    %159 = vector.load %arg15[%c0_83, %c129_84] : memref<20x1280xf32, #tpu.memory_space<vmem>>, vector<10x256xf32>
    %160 = vector.extract_strided_slice %151 {offsets = [1, 0, 0], sizes = [1, 20, 10], strides = [1, 1, 1]} : vector<9x20x10xf32> to vector<1x20x10xf32>
    %161 = vector.shape_cast %160 : vector<1x20x10xf32> to vector<20x10xf32>
    %cst_85 = arith.constant dense<0.000000e+00> : vector<20x256xf32>
    %162 = tpu.matmul %161, %159, %cst_85 {dimension_numbers = #tpu.dot_dimension_numbers<[1], [0], [0], [1], [0, 0, 1, 1], [], []>} : vector<20x10xf32>, vector<10x256xf32>, vector<20x256xf32> -> vector<20x256xf32>
    %163 = arith.addf %158, %162 : vector<20x256xf32>
    %c0_86 = arith.constant 0 : index
    %c130_87 = arith.constant 130 : index
    %164 = vector.load %arg15[%c0_86, %c130_87] : memref<20x1280xf32, #tpu.memory_space<vmem>>, vector<10x256xf32>
    %165 = vector.extract_strided_slice %151 {offsets = [2, 0, 0], sizes = [1, 20, 10], strides = [1, 1, 1]} : vector<9x20x10xf32> to vector<1x20x10xf32>
    %166 = vector.shape_cast %165 : vector<1x20x10xf32> to vector<20x10xf32>
    %cst_88 = arith.constant dense<0.000000e+00> : vector<20x256xf32>
    %167 = tpu.matmul %166, %164, %cst_88 {dimension_numbers = #tpu.dot_dimension_numbers<[1], [0], [0], [1], [0, 0, 1, 1], [], []>} : vector<20x10xf32>, vector<10x256xf32>, vector<20x256xf32> -> vector<20x256xf32>
    %168 = arith.addf %163, %167 : vector<20x256xf32>
    %c0_89 = arith.constant 0 : index
    %c142 = arith.constant 142 : index
    %169 = vector.load %arg15[%c0_89, %c142] : memref<20x1280xf32, #tpu.memory_space<vmem>>, vector<10x256xf32>
    %170 = vector.extract_strided_slice %151 {offsets = [3, 0, 0], sizes = [1, 20, 10], strides = [1, 1, 1]} : vector<9x20x10xf32> to vector<1x20x10xf32>
    %171 = vector.shape_cast %170 : vector<1x20x10xf32> to vector<20x10xf32>
    %cst_90 = arith.constant dense<0.000000e+00> : vector<20x256xf32>
    %172 = tpu.matmul %171, %169, %cst_90 {dimension_numbers = #tpu.dot_dimension_numbers<[1], [0], [0], [1], [0, 0, 1, 1], [], []>} : vector<20x10xf32>, vector<10x256xf32>, vector<20x256xf32> -> vector<20x256xf32>
    %173 = arith.addf %168, %172 : vector<20x256xf32>
    %c0_91 = arith.constant 0 : index
    %c143 = arith.constant 143 : index
    %174 = vector.load %arg15[%c0_91, %c143] : memref<20x1280xf32, #tpu.memory_space<vmem>>, vector<10x256xf32>
    %175 = vector.extract_strided_slice %151 {offsets = [4, 0, 0], sizes = [1, 20, 10], strides = [1, 1, 1]} : vector<9x20x10xf32> to vector<1x20x10xf32>
    %176 = vector.shape_cast %175 : vector<1x20x10xf32> to vector<20x10xf32>
    %cst_92 = arith.constant dense<0.000000e+00> : vector<20x256xf32>
    %177 = tpu.matmul %176, %174, %cst_92 {dimension_numbers = #tpu.dot_dimension_numbers<[1], [0], [0], [1], [0, 0, 1, 1], [], []>} : vector<20x10xf32>, vector<10x256xf32>, vector<20x256xf32> -> vector<20x256xf32>
    %178 = arith.addf %173, %177 : vector<20x256xf32>
    %c0_93 = arith.constant 0 : index
    %c144 = arith.constant 144 : index
    %179 = vector.load %arg15[%c0_93, %c144] : memref<20x1280xf32, #tpu.memory_space<vmem>>, vector<10x256xf32>
    %180 = vector.extract_strided_slice %151 {offsets = [5, 0, 0], sizes = [1, 20, 10], strides = [1, 1, 1]} : vector<9x20x10xf32> to vector<1x20x10xf32>
    %181 = vector.shape_cast %180 : vector<1x20x10xf32> to vector<20x10xf32>
    %cst_94 = arith.constant dense<0.000000e+00> : vector<20x256xf32>
    %182 = tpu.matmul %181, %179, %cst_94 {dimension_numbers = #tpu.dot_dimension_numbers<[1], [0], [0], [1], [0, 0, 1, 1], [], []>} : vector<20x10xf32>, vector<10x256xf32>, vector<20x256xf32> -> vector<20x256xf32>
    %183 = arith.addf %178, %182 : vector<20x256xf32>
    %c0_95 = arith.constant 0 : index
    %c156_96 = arith.constant 156 : index
    %184 = vector.load %arg15[%c0_95, %c156_96] : memref<20x1280xf32, #tpu.memory_space<vmem>>, vector<10x256xf32>
    %185 = vector.extract_strided_slice %151 {offsets = [6, 0, 0], sizes = [1, 20, 10], strides = [1, 1, 1]} : vector<9x20x10xf32> to vector<1x20x10xf32>
    %186 = vector.shape_cast %185 : vector<1x20x10xf32> to vector<20x10xf32>
    %cst_97 = arith.constant dense<0.000000e+00> : vector<20x256xf32>
    %187 = tpu.matmul %186, %184, %cst_97 {dimension_numbers = #tpu.dot_dimension_numbers<[1], [0], [0], [1], [0, 0, 1, 1], [], []>} : vector<20x10xf32>, vector<10x256xf32>, vector<20x256xf32> -> vector<20x256xf32>
    %188 = arith.addf %183, %187 : vector<20x256xf32>
    %c0_98 = arith.constant 0 : index
    %c157_99 = arith.constant 157 : index
    %189 = vector.load %arg15[%c0_98, %c157_99] : memref<20x1280xf32, #tpu.memory_space<vmem>>, vector<10x256xf32>
    %190 = vector.extract_strided_slice %151 {offsets = [7, 0, 0], sizes = [1, 20, 10], strides = [1, 1, 1]} : vector<9x20x10xf32> to vector<1x20x10xf32>
    %191 = vector.shape_cast %190 : vector<1x20x10xf32> to vector<20x10xf32>
    %cst_100 = arith.constant dense<0.000000e+00> : vector<20x256xf32>
    %192 = tpu.matmul %191, %189, %cst_100 {dimension_numbers = #tpu.dot_dimension_numbers<[1], [0], [0], [1], [0, 0, 1, 1], [], []>} : vector<20x10xf32>, vector<10x256xf32>, vector<20x256xf32> -> vector<20x256xf32>
    %193 = arith.addf %188, %192 : vector<20x256xf32>
    %c0_101 = arith.constant 0 : index
    %c158_102 = arith.constant 158 : index
    %194 = vector.load %arg15[%c0_101, %c158_102] : memref<20x1280xf32, #tpu.memory_space<vmem>>, vector<10x256xf32>
    %195 = vector.extract_strided_slice %151 {offsets = [8, 0, 0], sizes = [1, 20, 10], strides = [1, 1, 1]} : vector<9x20x10xf32> to vector<1x20x10xf32>
    %196 = vector.shape_cast %195 : vector<1x20x10xf32> to vector<20x10xf32>
    %cst_103 = arith.constant dense<0.000000e+00> : vector<20x256xf32>
    %197 = tpu.matmul %196, %194, %cst_103 {dimension_numbers = #tpu.dot_dimension_numbers<[1], [0], [0], [1], [0, 0, 1, 1], [], []>} : vector<20x10xf32>, vector<10x256xf32>, vector<20x256xf32> -> vector<20x256xf32>
    %198 = arith.addf %193, %197 : vector<20x256xf32>
    %199 = vector.extract_strided_slice %0 {offsets = [2, 0, 0], sizes = [1, 20, 1], strides = [1, 1, 1]} : vector<6x20x1xf32> to vector<1x20x1xf32>
    %200 = vector.shape_cast %199 : vector<1x20x1xf32> to vector<20x1xf32>
    %201 = vector.extract_strided_slice %1 {offsets = [2, 0, 0], sizes = [1, 20, 1], strides = [1, 1, 1]} : vector<6x20x1xf32> to vector<1x20x1xf32>
    %202 = vector.shape_cast %201 : vector<1x20x1xf32> to vector<20x1xf32>
    %cst_104 = arith.constant 0.000000e+00 : f32
    %203 = vector.broadcast %cst_104 : f32 to vector<20x256xf32>
    %204 = arith.maximumf %198, %203 : vector<20x256xf32>
    %205 = vector.broadcast %200 : vector<20x1xf32> to vector<20x256xf32>
    %206 = arith.mulf %204, %205 : vector<20x256xf32>
    %207 = vector.broadcast %202 : vector<20x1xf32> to vector<20x256xf32>
    %208 = arith.addf %206, %207 : vector<20x256xf32>
    %c0_105 = arith.constant 0 : index
    %c0_106 = arith.constant 0 : index
    %c0_107 = arith.constant 0 : index
    %209 = vector.load %arg6[%c0_105, %c0_106, %c0_107] : memref<9x10x20xf32, #tpu.memory_space<vmem>>, vector<9x10x20xf32>
    %c0_108 = arith.constant 0 : index
    %c128_109 = arith.constant 128 : index
    %210 = vector.load %arg15[%c0_108, %c128_109] : memref<20x1280xf32, #tpu.memory_space<vmem>>, vector<20x256xf32>
    tpu.vector_store %arg15[%c0_108, %c128_109], %208 {strides = array<i32>} : memref<20x1280xf32, #tpu.memory_space<vmem>>, vector<20x256xf32>,
    %cst_110 = arith.constant 0.000000e+00 : f32
    %211 = vector.broadcast %cst_110 : f32 to vector<10x256xf32>
    %c0_111 = arith.constant 0 : index
    %c128_112 = arith.constant 128 : index
    %212 = vector.load %arg15[%c0_111, %c128_112] : memref<20x1280xf32, #tpu.memory_space<vmem>>, vector<20x256xf32>
    %213 = vector.extract_strided_slice %209 {offsets = [0, 0, 0], sizes = [1, 10, 20], strides = [1, 1, 1]} : vector<9x10x20xf32> to vector<1x10x20xf32>
    %214 = vector.shape_cast %213 : vector<1x10x20xf32> to vector<10x20xf32>
    %cst_113 = arith.constant dense<0.000000e+00> : vector<10x256xf32>
    %215 = tpu.matmul %214, %212, %cst_113 {dimension_numbers = #tpu.dot_dimension_numbers<[1], [0], [0], [1], [0, 0, 1, 1], [], []>} : vector<10x20xf32>, vector<20x256xf32>, vector<10x256xf32> -> vector<10x256xf32>
    %216 = arith.addf %211, %215 : vector<10x256xf32>
    %c0_114 = arith.constant 0 : index
    %c129_115 = arith.constant 129 : index
    %217 = vector.load %arg15[%c0_114, %c129_115] : memref<20x1280xf32, #tpu.memory_space<vmem>>, vector<20x256xf32>
    %218 = vector.extract_strided_slice %209 {offsets = [1, 0, 0], sizes = [1, 10, 20], strides = [1, 1, 1]} : vector<9x10x20xf32> to vector<1x10x20xf32>
    %219 = vector.shape_cast %218 : vector<1x10x20xf32> to vector<10x20xf32>
    %cst_116 = arith.constant dense<0.000000e+00> : vector<10x256xf32>
    %220 = tpu.matmul %219, %217, %cst_116 {dimension_numbers = #tpu.dot_dimension_numbers<[1], [0], [0], [1], [0, 0, 1, 1], [], []>} : vector<10x20xf32>, vector<20x256xf32>, vector<10x256xf32> -> vector<10x256xf32>
    %221 = arith.addf %216, %220 : vector<10x256xf32>
    %c0_117 = arith.constant 0 : index
    %c130_118 = arith.constant 130 : index
    %222 = vector.load %arg15[%c0_117, %c130_118] : memref<20x1280xf32, #tpu.memory_space<vmem>>, vector<20x256xf32>
    %223 = vector.extract_strided_slice %209 {offsets = [2, 0, 0], sizes = [1, 10, 20], strides = [1, 1, 1]} : vector<9x10x20xf32> to vector<1x10x20xf32>
    %224 = vector.shape_cast %223 : vector<1x10x20xf32> to vector<10x20xf32>
    %cst_119 = arith.constant dense<0.000000e+00> : vector<10x256xf32>
    %225 = tpu.matmul %224, %222, %cst_119 {dimension_numbers = #tpu.dot_dimension_numbers<[1], [0], [0], [1], [0, 0, 1, 1], [], []>} : vector<10x20xf32>, vector<20x256xf32>, vector<10x256xf32> -> vector<10x256xf32>
    %226 = arith.addf %221, %225 : vector<10x256xf32>
    %c0_120 = arith.constant 0 : index
    %c142_121 = arith.constant 142 : index
    %227 = vector.load %arg15[%c0_120, %c142_121] : memref<20x1280xf32, #tpu.memory_space<vmem>>, vector<20x256xf32>
    %228 = vector.extract_strided_slice %209 {offsets = [3, 0, 0], sizes = [1, 10, 20], strides = [1, 1, 1]} : vector<9x10x20xf32> to vector<1x10x20xf32>
    %229 = vector.shape_cast %228 : vector<1x10x20xf32> to vector<10x20xf32>
    %cst_122 = arith.constant dense<0.000000e+00> : vector<10x256xf32>
    %230 = tpu.matmul %229, %227, %cst_122 {dimension_numbers = #tpu.dot_dimension_numbers<[1], [0], [0], [1], [0, 0, 1, 1], [], []>} : vector<10x20xf32>, vector<20x256xf32>, vector<10x256xf32> -> vector<10x256xf32>
    %231 = arith.addf %226, %230 : vector<10x256xf32>
    %c0_123 = arith.constant 0 : index
    %c143_124 = arith.constant 143 : index
    %232 = vector.load %arg15[%c0_123, %c143_124] : memref<20x1280xf32, #tpu.memory_space<vmem>>, vector<20x256xf32>
    %233 = vector.extract_strided_slice %209 {offsets = [4, 0, 0], sizes = [1, 10, 20], strides = [1, 1, 1]} : vector<9x10x20xf32> to vector<1x10x20xf32>
    %234 = vector.shape_cast %233 : vector<1x10x20xf32> to vector<10x20xf32>
    %cst_125 = arith.constant dense<0.000000e+00> : vector<10x256xf32>
    %235 = tpu.matmul %234, %232, %cst_125 {dimension_numbers = #tpu.dot_dimension_numbers<[1], [0], [0], [1], [0, 0, 1, 1], [], []>} : vector<10x20xf32>, vector<20x256xf32>, vector<10x256xf32> -> vector<10x256xf32>
    %236 = arith.addf %231, %235 : vector<10x256xf32>
    %c0_126 = arith.constant 0 : index
    %c144_127 = arith.constant 144 : index
    %237 = vector.load %arg15[%c0_126, %c144_127] : memref<20x1280xf32, #tpu.memory_space<vmem>>, vector<20x256xf32>
    %238 = vector.extract_strided_slice %209 {offsets = [5, 0, 0], sizes = [1, 10, 20], strides = [1, 1, 1]} : vector<9x10x20xf32> to vector<1x10x20xf32>
    %239 = vector.shape_cast %238 : vector<1x10x20xf32> to vector<10x20xf32>
    %cst_128 = arith.constant dense<0.000000e+00> : vector<10x256xf32>
    %240 = tpu.matmul %239, %237, %cst_128 {dimension_numbers = #tpu.dot_dimension_numbers<[1], [0], [0], [1], [0, 0, 1, 1], [], []>} : vector<10x20xf32>, vector<20x256xf32>, vector<10x256xf32> -> vector<10x256xf32>
    %241 = arith.addf %236, %240 : vector<10x256xf32>
    %c0_129 = arith.constant 0 : index
    %c156_130 = arith.constant 156 : index
    %242 = vector.load %arg15[%c0_129, %c156_130] : memref<20x1280xf32, #tpu.memory_space<vmem>>, vector<20x256xf32>
    %243 = vector.extract_strided_slice %209 {offsets = [6, 0, 0], sizes = [1, 10, 20], strides = [1, 1, 1]} : vector<9x10x20xf32> to vector<1x10x20xf32>
    %244 = vector.shape_cast %243 : vector<1x10x20xf32> to vector<10x20xf32>
    %cst_131 = arith.constant dense<0.000000e+00> : vector<10x256xf32>
    %245 = tpu.matmul %244, %242, %cst_131 {dimension_numbers = #tpu.dot_dimension_numbers<[1], [0], [0], [1], [0, 0, 1, 1], [], []>} : vector<10x20xf32>, vector<20x256xf32>, vector<10x256xf32> -> vector<10x256xf32>
    %246 = arith.addf %241, %245 : vector<10x256xf32>
    %c0_132 = arith.constant 0 : index
    %c157_133 = arith.constant 157 : index
    %247 = vector.load %arg15[%c0_132, %c157_133] : memref<20x1280xf32, #tpu.memory_space<vmem>>, vector<20x256xf32>
    %248 = vector.extract_strided_slice %209 {offsets = [7, 0, 0], sizes = [1, 10, 20], strides = [1, 1, 1]} : vector<9x10x20xf32> to vector<1x10x20xf32>
    %249 = vector.shape_cast %248 : vector<1x10x20xf32> to vector<10x20xf32>
    %cst_134 = arith.constant dense<0.000000e+00> : vector<10x256xf32>
    %250 = tpu.matmul %249, %247, %cst_134 {dimension_numbers = #tpu.dot_dimension_numbers<[1], [0], [0], [1], [0, 0, 1, 1], [], []>} : vector<10x20xf32>, vector<20x256xf32>, vector<10x256xf32> -> vector<10x256xf32>
    %251 = arith.addf %246, %250 : vector<10x256xf32>
    %c0_135 = arith.constant 0 : index
    %c158_136 = arith.constant 158 : index
    %252 = vector.load %arg15[%c0_135, %c158_136] : memref<20x1280xf32, #tpu.memory_space<vmem>>, vector<20x256xf32>
    %253 = vector.extract_strided_slice %209 {offsets = [8, 0, 0], sizes = [1, 10, 20], strides = [1, 1, 1]} : vector<9x10x20xf32> to vector<1x10x20xf32>
    %254 = vector.shape_cast %253 : vector<1x10x20xf32> to vector<10x20xf32>
    %cst_137 = arith.constant dense<0.000000e+00> : vector<10x256xf32>
    %255 = tpu.matmul %254, %252, %cst_137 {dimension_numbers = #tpu.dot_dimension_numbers<[1], [0], [0], [1], [0, 0, 1, 1], [], []>} : vector<10x20xf32>, vector<20x256xf32>, vector<10x256xf32> -> vector<10x256xf32>
    %256 = arith.addf %251, %255 : vector<10x256xf32>
    %257 = vector.extract_strided_slice %0 {offsets = [3, 0, 0], sizes = [1, 10, 1], strides = [1, 1, 1]} : vector<6x20x1xf32> to vector<1x10x1xf32>
    %258 = vector.shape_cast %257 : vector<1x10x1xf32> to vector<10x1xf32>
    %259 = vector.extract_strided_slice %1 {offsets = [3, 0, 0], sizes = [1, 10, 1], strides = [1, 1, 1]} : vector<6x20x1xf32> to vector<1x10x1xf32>
    %260 = vector.shape_cast %259 : vector<1x10x1xf32> to vector<10x1xf32>
    %cst_138 = arith.constant 0.000000e+00 : f32
    %261 = vector.broadcast %cst_138 : f32 to vector<10x256xf32>
    %262 = arith.maximumf %256, %261 : vector<10x256xf32>
    %263 = vector.broadcast %258 : vector<10x1xf32> to vector<10x256xf32>
    %264 = arith.mulf %262, %263 : vector<10x256xf32>
    %265 = vector.broadcast %260 : vector<10x1xf32> to vector<10x256xf32>
    %266 = arith.addf %264, %265 : vector<10x256xf32>
    %c0_139 = arith.constant 0 : index
    %c0_140 = arith.constant 0 : index
    %c0_141 = arith.constant 0 : index
    %267 = vector.load %arg7[%c0_139, %c0_140, %c0_141] : memref<9x10x10xf32, #tpu.memory_space<vmem>>, vector<9x10x10xf32>
    %c0_142 = arith.constant 0 : index
    %c128_143 = arith.constant 128 : index
    %268 = vector.load %arg15[%c0_142, %c128_143] : memref<20x1280xf32, #tpu.memory_space<vmem>>, vector<10x256xf32>
    tpu.vector_store %arg15[%c0_142, %c128_143], %266 {strides = array<i32>} : memref<20x1280xf32, #tpu.memory_space<vmem>>, vector<10x256xf32>,
    %cst_144 = arith.constant 0.000000e+00 : f32
    %269 = vector.broadcast %cst_144 : f32 to vector<10x256xf32>
    %c0_145 = arith.constant 0 : index
    %c128_146 = arith.constant 128 : index
    %270 = vector.load %arg15[%c0_145, %c128_146] : memref<20x1280xf32, #tpu.memory_space<vmem>>, vector<10x256xf32>
    %271 = vector.extract_strided_slice %267 {offsets = [0, 0, 0], sizes = [1, 10, 10], strides = [1, 1, 1]} : vector<9x10x10xf32> to vector<1x10x10xf32>
    %272 = vector.shape_cast %271 : vector<1x10x10xf32> to vector<10x10xf32>
    %cst_147 = arith.constant dense<0.000000e+00> : vector<10x256xf32>
    %273 = tpu.matmul %272, %270, %cst_147 {dimension_numbers = #tpu.dot_dimension_numbers<[1], [0], [0], [1], [0, 0, 1, 1], [], []>} : vector<10x10xf32>, vector<10x256xf32>, vector<10x256xf32> -> vector<10x256xf32>
    %274 = arith.addf %269, %273 : vector<10x256xf32>
    %c0_148 = arith.constant 0 : index
    %c129_149 = arith.constant 129 : index
    %275 = vector.load %arg15[%c0_148, %c129_149] : memref<20x1280xf32, #tpu.memory_space<vmem>>, vector<10x256xf32>
    %276 = vector.extract_strided_slice %267 {offsets = [1, 0, 0], sizes = [1, 10, 10], strides = [1, 1, 1]} : vector<9x10x10xf32> to vector<1x10x10xf32>
    %277 = vector.shape_cast %276 : vector<1x10x10xf32> to vector<10x10xf32>
    %cst_150 = arith.constant dense<0.000000e+00> : vector<10x256xf32>
    %278 = tpu.matmul %277, %275, %cst_150 {dimension_numbers = #tpu.dot_dimension_numbers<[1], [0], [0], [1], [0, 0, 1, 1], [], []>} : vector<10x10xf32>, vector<10x256xf32>, vector<10x256xf32> -> vector<10x256xf32>
    %279 = arith.addf %274, %278 : vector<10x256xf32>
    %c0_151 = arith.constant 0 : index
    %c130_152 = arith.constant 130 : index
    %280 = vector.load %arg15[%c0_151, %c130_152] : memref<20x1280xf32, #tpu.memory_space<vmem>>, vector<10x256xf32>
    %281 = vector.extract_strided_slice %267 {offsets = [2, 0, 0], sizes = [1, 10, 10], strides = [1, 1, 1]} : vector<9x10x10xf32> to vector<1x10x10xf32>
    %282 = vector.shape_cast %281 : vector<1x10x10xf32> to vector<10x10xf32>
    %cst_153 = arith.constant dense<0.000000e+00> : vector<10x256xf32>
    %283 = tpu.matmul %282, %280, %cst_153 {dimension_numbers = #tpu.dot_dimension_numbers<[1], [0], [0], [1], [0, 0, 1, 1], [], []>} : vector<10x10xf32>, vector<10x256xf32>, vector<10x256xf32> -> vector<10x256xf32>
    %284 = arith.addf %279, %283 : vector<10x256xf32>
    %c0_154 = arith.constant 0 : index
    %c142_155 = arith.constant 142 : index
    %285 = vector.load %arg15[%c0_154, %c142_155] : memref<20x1280xf32, #tpu.memory_space<vmem>>, vector<10x256xf32>
    %286 = vector.extract_strided_slice %267 {offsets = [3, 0, 0], sizes = [1, 10, 10], strides = [1, 1, 1]} : vector<9x10x10xf32> to vector<1x10x10xf32>
    %287 = vector.shape_cast %286 : vector<1x10x10xf32> to vector<10x10xf32>
    %cst_156 = arith.constant dense<0.000000e+00> : vector<10x256xf32>
    %288 = tpu.matmul %287, %285, %cst_156 {dimension_numbers = #tpu.dot_dimension_numbers<[1], [0], [0], [1], [0, 0, 1, 1], [], []>} : vector<10x10xf32>, vector<10x256xf32>, vector<10x256xf32> -> vector<10x256xf32>
    %289 = arith.addf %284, %288 : vector<10x256xf32>
    %c0_157 = arith.constant 0 : index
    %c143_158 = arith.constant 143 : index
    %290 = vector.load %arg15[%c0_157, %c143_158] : memref<20x1280xf32, #tpu.memory_space<vmem>>, vector<10x256xf32>
    %291 = vector.extract_strided_slice %267 {offsets = [4, 0, 0], sizes = [1, 10, 10], strides = [1, 1, 1]} : vector<9x10x10xf32> to vector<1x10x10xf32>
    %292 = vector.shape_cast %291 : vector<1x10x10xf32> to vector<10x10xf32>
    %cst_159 = arith.constant dense<0.000000e+00> : vector<10x256xf32>
    %293 = tpu.matmul %292, %290, %cst_159 {dimension_numbers = #tpu.dot_dimension_numbers<[1], [0], [0], [1], [0, 0, 1, 1], [], []>} : vector<10x10xf32>, vector<10x256xf32>, vector<10x256xf32> -> vector<10x256xf32>
    %294 = arith.addf %289, %293 : vector<10x256xf32>
    %c0_160 = arith.constant 0 : index
    %c144_161 = arith.constant 144 : index
    %295 = vector.load %arg15[%c0_160, %c144_161] : memref<20x1280xf32, #tpu.memory_space<vmem>>, vector<10x256xf32>
    %296 = vector.extract_strided_slice %267 {offsets = [5, 0, 0], sizes = [1, 10, 10], strides = [1, 1, 1]} : vector<9x10x10xf32> to vector<1x10x10xf32>
    %297 = vector.shape_cast %296 : vector<1x10x10xf32> to vector<10x10xf32>
    %cst_162 = arith.constant dense<0.000000e+00> : vector<10x256xf32>
    %298 = tpu.matmul %297, %295, %cst_162 {dimension_numbers = #tpu.dot_dimension_numbers<[1], [0], [0], [1], [0, 0, 1, 1], [], []>} : vector<10x10xf32>, vector<10x256xf32>, vector<10x256xf32> -> vector<10x256xf32>
    %299 = arith.addf %294, %298 : vector<10x256xf32>
    %c0_163 = arith.constant 0 : index
    %c156_164 = arith.constant 156 : index
    %300 = vector.load %arg15[%c0_163, %c156_164] : memref<20x1280xf32, #tpu.memory_space<vmem>>, vector<10x256xf32>
    %301 = vector.extract_strided_slice %267 {offsets = [6, 0, 0], sizes = [1, 10, 10], strides = [1, 1, 1]} : vector<9x10x10xf32> to vector<1x10x10xf32>
    %302 = vector.shape_cast %301 : vector<1x10x10xf32> to vector<10x10xf32>
    %cst_165 = arith.constant dense<0.000000e+00> : vector<10x256xf32>
    %303 = tpu.matmul %302, %300, %cst_165 {dimension_numbers = #tpu.dot_dimension_numbers<[1], [0], [0], [1], [0, 0, 1, 1], [], []>} : vector<10x10xf32>, vector<10x256xf32>, vector<10x256xf32> -> vector<10x256xf32>
    %304 = arith.addf %299, %303 : vector<10x256xf32>
    %c0_166 = arith.constant 0 : index
    %c157_167 = arith.constant 157 : index
    %305 = vector.load %arg15[%c0_166, %c157_167] : memref<20x1280xf32, #tpu.memory_space<vmem>>, vector<10x256xf32>
    %306 = vector.extract_strided_slice %267 {offsets = [7, 0, 0], sizes = [1, 10, 10], strides = [1, 1, 1]} : vector<9x10x10xf32> to vector<1x10x10xf32>
    %307 = vector.shape_cast %306 : vector<1x10x10xf32> to vector<10x10xf32>
    %cst_168 = arith.constant dense<0.000000e+00> : vector<10x256xf32>
    %308 = tpu.matmul %307, %305, %cst_168 {dimension_numbers = #tpu.dot_dimension_numbers<[1], [0], [0], [1], [0, 0, 1, 1], [], []>} : vector<10x10xf32>, vector<10x256xf32>, vector<10x256xf32> -> vector<10x256xf32>
    %309 = arith.addf %304, %308 : vector<10x256xf32>
    %c0_169 = arith.constant 0 : index
    %c158_170 = arith.constant 158 : index
    %310 = vector.load %arg15[%c0_169, %c158_170] : memref<20x1280xf32, #tpu.memory_space<vmem>>, vector<10x256xf32>
    %311 = vector.extract_strided_slice %267 {offsets = [8, 0, 0], sizes = [1, 10, 10], strides = [1, 1, 1]} : vector<9x10x10xf32> to vector<1x10x10xf32>
    %312 = vector.shape_cast %311 : vector<1x10x10xf32> to vector<10x10xf32>
    %cst_171 = arith.constant dense<0.000000e+00> : vector<10x256xf32>
    %313 = tpu.matmul %312, %310, %cst_171 {dimension_numbers = #tpu.dot_dimension_numbers<[1], [0], [0], [1], [0, 0, 1, 1], [], []>} : vector<10x10xf32>, vector<10x256xf32>, vector<10x256xf32> -> vector<10x256xf32>
    %314 = arith.addf %309, %313 : vector<10x256xf32>
    %315 = vector.extract_strided_slice %0 {offsets = [4, 0, 0], sizes = [1, 10, 1], strides = [1, 1, 1]} : vector<6x20x1xf32> to vector<1x10x1xf32>
    %316 = vector.shape_cast %315 : vector<1x10x1xf32> to vector<10x1xf32>
    %317 = vector.extract_strided_slice %1 {offsets = [4, 0, 0], sizes = [1, 10, 1], strides = [1, 1, 1]} : vector<6x20x1xf32> to vector<1x10x1xf32>
    %318 = vector.shape_cast %317 : vector<1x10x1xf32> to vector<10x1xf32>
    %cst_172 = arith.constant 0.000000e+00 : f32
    %319 = vector.broadcast %cst_172 : f32 to vector<10x256xf32>
    %320 = arith.maximumf %314, %319 : vector<10x256xf32>
    %321 = vector.broadcast %316 : vector<10x1xf32> to vector<10x256xf32>
    %322 = arith.mulf %320, %321 : vector<10x256xf32>
    %323 = vector.broadcast %318 : vector<10x1xf32> to vector<10x256xf32>
    %324 = arith.addf %322, %323 : vector<10x256xf32>
    %c0_173 = arith.constant 0 : index
    %c0_174 = arith.constant 0 : index
    %325 = vector.load %arg11[%c0_173, %c0_174] : memref<1x256xf32, #tpu.memory_space<vmem>>, vector<1x256xf32>
    %326 = vector.broadcast %325 : vector<1x256xf32> to vector<10x256xf32>
    %327 = arith.mulf %324, %326 : vector<10x256xf32>
    %c0_175 = arith.constant 0 : index
    %c0_176 = arith.constant 0 : index
    %c0_177 = arith.constant 0 : index
    %328 = vector.load %arg8[%c0_175, %c0_176, %c0_177] : memref<9x10x10xf32, #tpu.memory_space<vmem>>, vector<9x10x10xf32>
    %c0_178 = arith.constant 0 : index
    %c128_179 = arith.constant 128 : index
    %329 = vector.load %arg15[%c0_178, %c128_179] : memref<20x1280xf32, #tpu.memory_space<vmem>>, vector<10x256xf32>
    tpu.vector_store %arg15[%c0_178, %c128_179], %327 {strides = array<i32>} : memref<20x1280xf32, #tpu.memory_space<vmem>>, vector<10x256xf32>,
    %cst_180 = arith.constant 0.000000e+00 : f32
    %330 = vector.broadcast %cst_180 : f32 to vector<10x256xf32>
    %c0_181 = arith.constant 0 : index
    %c113 = arith.constant 113 : index
    %331 = vector.load %arg15[%c0_181, %c113] : memref<20x1280xf32, #tpu.memory_space<vmem>>, vector<10x256xf32>
    %332 = vector.extract_strided_slice %328 {offsets = [0, 0, 0], sizes = [1, 10, 10], strides = [1, 1, 1]} : vector<9x10x10xf32> to vector<1x10x10xf32>
    %333 = vector.shape_cast %332 : vector<1x10x10xf32> to vector<10x10xf32>
    %cst_182 = arith.constant dense<0.000000e+00> : vector<10x256xf32>
    %334 = tpu.matmul %333, %331, %cst_182 {dimension_numbers = #tpu.dot_dimension_numbers<[1], [0], [0], [1], [0, 0, 1, 1], [], []>} : vector<10x10xf32>, vector<10x256xf32>, vector<10x256xf32> -> vector<10x256xf32>
    %335 = arith.addf %330, %334 : vector<10x256xf32>
    %c0_183 = arith.constant 0 : index
    %c114 = arith.constant 114 : index
    %336 = vector.load %arg15[%c0_183, %c114] : memref<20x1280xf32, #tpu.memory_space<vmem>>, vector<10x256xf32>
    %337 = vector.extract_strided_slice %328 {offsets = [1, 0, 0], sizes = [1, 10, 10], strides = [1, 1, 1]} : vector<9x10x10xf32> to vector<1x10x10xf32>
    %338 = vector.shape_cast %337 : vector<1x10x10xf32> to vector<10x10xf32>
    %cst_184 = arith.constant dense<0.000000e+00> : vector<10x256xf32>
    %339 = tpu.matmul %338, %336, %cst_184 {dimension_numbers = #tpu.dot_dimension_numbers<[1], [0], [0], [1], [0, 0, 1, 1], [], []>} : vector<10x10xf32>, vector<10x256xf32>, vector<10x256xf32> -> vector<10x256xf32>
    %340 = arith.addf %335, %339 : vector<10x256xf32>
    %c0_185 = arith.constant 0 : index
    %c115 = arith.constant 115 : index
    %341 = vector.load %arg15[%c0_185, %c115] : memref<20x1280xf32, #tpu.memory_space<vmem>>, vector<10x256xf32>
    %342 = vector.extract_strided_slice %328 {offsets = [2, 0, 0], sizes = [1, 10, 10], strides = [1, 1, 1]} : vector<9x10x10xf32> to vector<1x10x10xf32>
    %343 = vector.shape_cast %342 : vector<1x10x10xf32> to vector<10x10xf32>
    %cst_186 = arith.constant dense<0.000000e+00> : vector<10x256xf32>
    %344 = tpu.matmul %343, %341, %cst_186 {dimension_numbers = #tpu.dot_dimension_numbers<[1], [0], [0], [1], [0, 0, 1, 1], [], []>} : vector<10x10xf32>, vector<10x256xf32>, vector<10x256xf32> -> vector<10x256xf32>
    %345 = arith.addf %340, %344 : vector<10x256xf32>
    %c0_187 = arith.constant 0 : index
    %c127 = arith.constant 127 : index
    %346 = vector.load %arg15[%c0_187, %c127] : memref<20x1280xf32, #tpu.memory_space<vmem>>, vector<10x256xf32>
    %347 = vector.extract_strided_slice %328 {offsets = [3, 0, 0], sizes = [1, 10, 10], strides = [1, 1, 1]} : vector<9x10x10xf32> to vector<1x10x10xf32>
    %348 = vector.shape_cast %347 : vector<1x10x10xf32> to vector<10x10xf32>
    %cst_188 = arith.constant dense<0.000000e+00> : vector<10x256xf32>
    %349 = tpu.matmul %348, %346, %cst_188 {dimension_numbers = #tpu.dot_dimension_numbers<[1], [0], [0], [1], [0, 0, 1, 1], [], []>} : vector<10x10xf32>, vector<10x256xf32>, vector<10x256xf32> -> vector<10x256xf32>
    %350 = arith.addf %345, %349 : vector<10x256xf32>
    %c0_189 = arith.constant 0 : index
    %c128_190 = arith.constant 128 : index
    %351 = vector.load %arg15[%c0_189, %c128_190] : memref<20x1280xf32, #tpu.memory_space<vmem>>, vector<10x256xf32>
    %352 = vector.extract_strided_slice %328 {offsets = [4, 0, 0], sizes = [1, 10, 10], strides = [1, 1, 1]} : vector<9x10x10xf32> to vector<1x10x10xf32>
    %353 = vector.shape_cast %352 : vector<1x10x10xf32> to vector<10x10xf32>
    %cst_191 = arith.constant dense<0.000000e+00> : vector<10x256xf32>
    %354 = tpu.matmul %353, %351, %cst_191 {dimension_numbers = #tpu.dot_dimension_numbers<[1], [0], [0], [1], [0, 0, 1, 1], [], []>} : vector<10x10xf32>, vector<10x256xf32>, vector<10x256xf32> -> vector<10x256xf32>
    %355 = arith.addf %350, %354 : vector<10x256xf32>
    %c0_192 = arith.constant 0 : index
    %c129_193 = arith.constant 129 : index
    %356 = vector.load %arg15[%c0_192, %c129_193] : memref<20x1280xf32, #tpu.memory_space<vmem>>, vector<10x256xf32>
    %357 = vector.extract_strided_slice %328 {offsets = [5, 0, 0], sizes = [1, 10, 10], strides = [1, 1, 1]} : vector<9x10x10xf32> to vector<1x10x10xf32>
    %358 = vector.shape_cast %357 : vector<1x10x10xf32> to vector<10x10xf32>
    %cst_194 = arith.constant dense<0.000000e+00> : vector<10x256xf32>
    %359 = tpu.matmul %358, %356, %cst_194 {dimension_numbers = #tpu.dot_dimension_numbers<[1], [0], [0], [1], [0, 0, 1, 1], [], []>} : vector<10x10xf32>, vector<10x256xf32>, vector<10x256xf32> -> vector<10x256xf32>
    %360 = arith.addf %355, %359 : vector<10x256xf32>
    %c0_195 = arith.constant 0 : index
    %c141 = arith.constant 141 : index
    %361 = vector.load %arg15[%c0_195, %c141] : memref<20x1280xf32, #tpu.memory_space<vmem>>, vector<10x256xf32>
    %362 = vector.extract_strided_slice %328 {offsets = [6, 0, 0], sizes = [1, 10, 10], strides = [1, 1, 1]} : vector<9x10x10xf32> to vector<1x10x10xf32>
    %363 = vector.shape_cast %362 : vector<1x10x10xf32> to vector<10x10xf32>
    %cst_196 = arith.constant dense<0.000000e+00> : vector<10x256xf32>
    %364 = tpu.matmul %363, %361, %cst_196 {dimension_numbers = #tpu.dot_dimension_numbers<[1], [0], [0], [1], [0, 0, 1, 1], [], []>} : vector<10x10xf32>, vector<10x256xf32>, vector<10x256xf32> -> vector<10x256xf32>
    %365 = arith.addf %360, %364 : vector<10x256xf32>
    %c0_197 = arith.constant 0 : index
    %c142_198 = arith.constant 142 : index
    %366 = vector.load %arg15[%c0_197, %c142_198] : memref<20x1280xf32, #tpu.memory_space<vmem>>, vector<10x256xf32>
    %367 = vector.extract_strided_slice %328 {offsets = [7, 0, 0], sizes = [1, 10, 10], strides = [1, 1, 1]} : vector<9x10x10xf32> to vector<1x10x10xf32>
    %368 = vector.shape_cast %367 : vector<1x10x10xf32> to vector<10x10xf32>
    %cst_199 = arith.constant dense<0.000000e+00> : vector<10x256xf32>
    %369 = tpu.matmul %368, %366, %cst_199 {dimension_numbers = #tpu.dot_dimension_numbers<[1], [0], [0], [1], [0, 0, 1, 1], [], []>} : vector<10x10xf32>, vector<10x256xf32>, vector<10x256xf32> -> vector<10x256xf32>
    %370 = arith.addf %365, %369 : vector<10x256xf32>
    %c0_200 = arith.constant 0 : index
    %c143_201 = arith.constant 143 : index
    %371 = vector.load %arg15[%c0_200, %c143_201] : memref<20x1280xf32, #tpu.memory_space<vmem>>, vector<10x256xf32>
    %372 = vector.extract_strided_slice %328 {offsets = [8, 0, 0], sizes = [1, 10, 10], strides = [1, 1, 1]} : vector<9x10x10xf32> to vector<1x10x10xf32>
    %373 = vector.shape_cast %372 : vector<1x10x10xf32> to vector<10x10xf32>
    %cst_202 = arith.constant dense<0.000000e+00> : vector<10x256xf32>
    %374 = tpu.matmul %373, %371, %cst_202 {dimension_numbers = #tpu.dot_dimension_numbers<[1], [0], [0], [1], [0, 0, 1, 1], [], []>} : vector<10x10xf32>, vector<10x256xf32>, vector<10x256xf32> -> vector<10x256xf32>
    %375 = arith.addf %370, %374 : vector<10x256xf32>
    %376 = vector.extract_strided_slice %0 {offsets = [5, 0, 0], sizes = [1, 10, 1], strides = [1, 1, 1]} : vector<6x20x1xf32> to vector<1x10x1xf32>
    %377 = vector.shape_cast %376 : vector<1x10x1xf32> to vector<10x1xf32>
    %378 = vector.extract_strided_slice %1 {offsets = [5, 0, 0], sizes = [1, 10, 1], strides = [1, 1, 1]} : vector<6x20x1xf32> to vector<1x10x1xf32>
    %379 = vector.shape_cast %378 : vector<1x10x1xf32> to vector<10x1xf32>
    %cst_203 = arith.constant 0.000000e+00 : f32
    %380 = vector.broadcast %cst_203 : f32 to vector<10x256xf32>
    %381 = arith.maximumf %375, %380 : vector<10x256xf32>
    %382 = vector.broadcast %377 : vector<10x1xf32> to vector<10x256xf32>
    %383 = arith.mulf %381, %382 : vector<10x256xf32>
    %384 = vector.broadcast %379 : vector<10x1xf32> to vector<10x256xf32>
    %385 = arith.addf %383, %384 : vector<10x256xf32>
    %c0_204 = arith.constant 0 : index
    %c0_205 = arith.constant 0 : index
    %386 = vector.load %arg9[%c0_204, %c0_205] : memref<10x10xf32, #tpu.memory_space<vmem>>, vector<10x10xf32>
    %cst_206 = arith.constant dense<0.000000e+00> : vector<10x256xf32>
    %387 = tpu.matmul %386, %385, %cst_206 {dimension_numbers = #tpu.dot_dimension_numbers<[1], [0], [0], [1], [0, 0, 1, 1], [], []>} : vector<10x10xf32>, vector<10x256xf32>, vector<10x256xf32> -> vector<10x256xf32>
    %cst_207 = arith.constant 0.027777778 : f32
    %388 = vector.broadcast %cst_207 : f32 to vector<1x256xf32>
    %389 = arith.mulf %325, %388 : vector<1x256xf32>
    %390 = vector.broadcast %389 : vector<1x256xf32> to vector<10x256xf32>
    %391 = arith.mulf %387, %390 : vector<10x256xf32>
    %cst_208 = arith.constant dense<0.000000e+00> : vector<10xf32>
    %392 = vector.multi_reduction <add>, %391, %cst_208 [1] : vector<10x256xf32> to vector<10xf32>
    %393 = vector.shape_cast %392 : vector<10xf32> to vector<10x1xf32>
    %cst_209 = arith.constant dense<0xFF800000> : vector<1xf32>
    %394 = vector.multi_reduction <maximumf>, %393, %cst_209 [0] : vector<10x1xf32> to vector<1xf32>
    %395 = vector.shape_cast %394 : vector<1xf32> to vector<1x1xf32>
    %396 = vector.broadcast %395 : vector<1x1xf32> to vector<10x1xf32>
    %397 = arith.subf %393, %396 : vector<10x1xf32>
    %398 = math.exp %397 : vector<10x1xf32>
    %cst_210 = arith.constant dense<0.000000e+00> : vector<1xf32>
    %399 = vector.multi_reduction <add>, %398, %cst_210 [0] : vector<10x1xf32> to vector<1xf32>
    %400 = vector.shape_cast %399 : vector<1xf32> to vector<1x1xf32>
    %401 = math.log %400 : vector<1x1xf32>
    %402 = vector.broadcast %401 : vector<1x1xf32> to vector<10x1xf32>
    %403 = arith.subf %397, %402 : vector<10x1xf32>
    %c0_211 = arith.constant 0 : index
    %c0_212 = arith.constant 0 : index
    %c0_213 = arith.constant 0 : index
    %404 = vector.load %arg14[%c0_211, %c0_212, %c0_213] : memref<1x10x1xf32, #tpu.memory_space<vmem>>, vector<1x10x1xf32>
    %405 = vector.shape_cast %404 : vector<1x10x1xf32> to vector<10x1xf32>
    %406 = vector.shape_cast %403 : vector<10x1xf32> to vector<1x10x1xf32>
    tpu.vector_store %arg14[%c0_211, %c0_212, %c0_213], %406 {strides = array<i32>} : memref<1x10x1xf32, #tpu.memory_space<vmem>>, vector<1x10x1xf32>,
    return
  }
  func.func @transform_0(%arg0: i32) -> (i32, i32, i32) {
    %c0_i32 = arith.constant 0 : i32
    %c0_i32_0 = arith.constant 0 : i32
    %c0_i32_1 = arith.constant 0 : i32
    return %arg0, %c0_i32, %c0_i32_0 : i32, i32, i32
  }
  func.func @transform_1(%arg0: i32) -> (i32, i32, i32) {
    %c0_i32 = arith.constant 0 : i32
    %c0_i32_0 = arith.constant 0 : i32
    %c0_i32_1 = arith.constant 0 : i32
    %c0_i32_2 = arith.constant 0 : i32
    return %c0_i32, %c0_i32_0, %c0_i32_1 : i32, i32, i32
  }
  func.func @transform_2(%arg0: i32) -> (i32, i32, i32) {
    %c0_i32 = arith.constant 0 : i32
    %c0_i32_0 = arith.constant 0 : i32
    %c0_i32_1 = arith.constant 0 : i32
    %c0_i32_2 = arith.constant 0 : i32
    return %c0_i32, %c0_i32_0, %c0_i32_1 : i32, i32, i32
  }
  func.func @transform_3(%arg0: i32) -> (i32, i32) {
    %c0_i32 = arith.constant 0 : i32
    %c0_i32_0 = arith.constant 0 : i32
    %c0_i32_1 = arith.constant 0 : i32
    return %c0_i32, %c0_i32_0 : i32, i32
  }
  func.func @transform_4(%arg0: i32) -> (i32, i32, i32) {
    %c0_i32 = arith.constant 0 : i32
    %c0_i32_0 = arith.constant 0 : i32
    %c0_i32_1 = arith.constant 0 : i32
    %c0_i32_2 = arith.constant 0 : i32
    return %c0_i32, %c0_i32_0, %c0_i32_1 : i32, i32, i32
  }
  func.func @transform_5(%arg0: i32) -> (i32, i32, i32) {
    %c0_i32 = arith.constant 0 : i32
    %c0_i32_0 = arith.constant 0 : i32
    %c0_i32_1 = arith.constant 0 : i32
    %c0_i32_2 = arith.constant 0 : i32
    return %c0_i32, %c0_i32_0, %c0_i32_1 : i32, i32, i32
  }
  func.func @transform_6(%arg0: i32) -> (i32, i32, i32) {
    %c0_i32 = arith.constant 0 : i32
    %c0_i32_0 = arith.constant 0 : i32
    %c0_i32_1 = arith.constant 0 : i32
    %c0_i32_2 = arith.constant 0 : i32
    return %c0_i32, %c0_i32_0, %c0_i32_1 : i32, i32, i32
  }
  func.func @transform_7(%arg0: i32) -> (i32, i32, i32) {
    %c0_i32 = arith.constant 0 : i32
    %c0_i32_0 = arith.constant 0 : i32
    %c0_i32_1 = arith.constant 0 : i32
    %c0_i32_2 = arith.constant 0 : i32
    return %c0_i32, %c0_i32_0, %c0_i32_1 : i32, i32, i32
  }
  func.func @transform_8(%arg0: i32) -> (i32, i32) {
    %c0_i32 = arith.constant 0 : i32
    %c0_i32_0 = arith.constant 0 : i32
    %c0_i32_1 = arith.constant 0 : i32
    return %c0_i32, %c0_i32_0 : i32, i32
  }
  func.func @transform_9(%arg0: i32) -> (i32, i32) {
    %c0_i32 = arith.constant 0 : i32
    %c0_i32_0 = arith.constant 0 : i32
    %c0_i32_1 = arith.constant 0 : i32
    return %c0_i32, %c0_i32_0 : i32, i32
  }
  func.func @transform_10(%arg0: i32) -> (i32, i32) {
    %c0_i32 = arith.constant 0 : i32
    %c0_i32_0 = arith.constant 0 : i32
    %c0_i32_1 = arith.constant 0 : i32
    return %c0_i32, %c0_i32_0 : i32, i32
  }
  func.func @transform_11(%arg0: i32) -> (i32, i32, i32) {
    %c0_i32 = arith.constant 0 : i32
    %c0_i32_0 = arith.constant 0 : i32
    %c0_i32_1 = arith.constant 0 : i32
    %c0_i32_2 = arith.constant 0 : i32
    return %c0_i32, %c0_i32_0, %c0_i32_1 : i32, i32, i32
  }
  func.func @transform_12(%arg0: i32) -> (i32, i32, i32) {
    %c0_i32 = arith.constant 0 : i32
    %c0_i32_0 = arith.constant 0 : i32
    %c0_i32_1 = arith.constant 0 : i32
    %c0_i32_2 = arith.constant 0 : i32
    return %c0_i32, %c0_i32_0, %c0_i32_1 : i32, i32, i32
  }
  func.func @transform_13(%arg0: i32) -> (i32, i32, i32) {
    %c0_i32 = arith.constant 0 : i32
    %c0_i32_0 = arith.constant 0 : i32
    %c0_i32_1 = arith.constant 0 : i32
    return %arg0, %c0_i32, %c0_i32_0 : i32, i32, i32
  }
}

</mosaic_0001>

<llo_original>
// kernel: model_forward.1
$region0: #{model_forward.1}
  #allocation0 [shape = 'u32[]', space=smem, size = 0x4, offset = 0x4, fixed_abs, tag = 'smem constant byte address 0x4 - core index']
  #allocation1 [shape = 'u32[144,128]{1,0:T(1,128)}', space=vmem, size = 0x12000, scoped, tag = 'internal scratch']
  #allocation2 [shape = 'f32[20,1280]{1,0:T(8,128)}', space=vmem, size = 0x1e000, scoped, tag = 'scratch operand']
  %s0 = inlined_call_operand.vmem [shape: f32[2,1,1024], index: 0, kind: input, shape index: {}]
  %s1 = inlined_call_operand.vmem [shape: f32[9,10,1], index: 1, kind: input, shape index: {}]
  %s2 = inlined_call_operand.vmem [shape: f32[9,20,10], index: 2, kind: input, shape index: {}]
  %s3 = inlined_call_operand.vmem [shape: f32[10,20], index: 3, kind: input, shape index: {}]
  %s4 = inlined_call_operand.vmem [shape: f32[9,20,10], index: 4, kind: input, shape index: {}]
  %s5 = inlined_call_operand.vmem [shape: f32[9,10,20], index: 5, kind: input, shape index: {}]
  %s6 = inlined_call_operand.vmem [shape: f32[9,10,10], index: 6, kind: input, shape index: {}]
  %s7 = inlined_call_operand.vmem [shape: f32[9,10,10], index: 7, kind: input, shape index: {}]
  %s8 = inlined_call_operand.vmem [shape: f32[10,10], index: 8, kind: input, shape index: {}]
  %s9 = inlined_call_operand.vmem [shape: f32[1024,256], index: 9, kind: input, shape index: {}]
  %s10 = inlined_call_operand.vmem [shape: f32[1,256], index: 10, kind: input, shape index: {}]
  %s11 = inlined_call_operand.vmem [shape: f32[6,20,1], index: 11, kind: input, shape index: {}]
  %s12 = inlined_call_operand.vmem [shape: f32[6,20,1], index: 12, kind: input, shape index: {}]
  %s13 = inlined_call_operand.vmem [shape: f32[2,10,1], index: 13, kind: output, shape index: {}]
  %s14 = sld [smem:[#allocation0]]
  $region85: #{model_forward.1} parent=0
    _
  %s16 = ssub.s32 1, %s14
  %s17 = scalar_select 0, %s16, %s14
  loop: start=0, step=1, limit=4
  $region2: #{model_forward.1} parent=0 // loop_pre_header
    _
  $region3: #{model_forward.1} parent=0 // loop_header
    %s19 = sphi 0, %s23
    %p20 = scmp.ge.s32.totalorder %s19, 4
    %s29 = sphi 0, %s31
    %s32 = sphi 0, %s29
    %s33 = sphi 0, %s32
    %s49 = sphi 0, %s33
    %s53 = sphi 0, %s53
    %s55 = sphi 0, %s53
    %s56 = sphi 0, %s55
    %s70 = sphi 0, %s56
    %s74 = sphi 0, %s74
    %s76 = sphi 0, %s74
    %s77 = sphi 0, %s76
    %s91 = sphi 0, %s77
    %s95 = sphi 0, %s95
    %s97 = sphi 0, %s95
    %s98 = sphi 0, %s97
    %s112 = sphi 0, %s98
    %s116 = sphi 0, %s116
    %s118 = sphi 0, %s116
    %s119 = sphi 0, %s118
    %s133 = sphi 0, %s119
    %s137 = sphi 0, %s137
    %s139 = sphi 0, %s137
    %s140 = sphi 0, %s139
    %s154 = sphi 0, %s140
    %s158 = sphi 0, %s158
    %s160 = sphi 0, %s158
    %s161 = sphi 0, %s160
    %s175 = sphi 0, %s161
    %s179 = sphi 0, %s179
    %s181 = sphi 0, %s179
    %s182 = sphi 0, %s181
    %s196 = sphi 0, %s182
    %s200 = sphi 0, %s200
    %s202 = sphi 0, %s200
    %s203 = sphi 0, %s202
    %s217 = sphi 0, %s203
    %s221 = sphi 0, %s221
    %s223 = sphi 0, %s221
    %s224 = sphi 0, %s223
    %s238 = sphi 0, %s224
    %s242 = sphi 0, %s242
    %s244 = sphi 0, %s242
    %s245 = sphi 0, %s244
    %s259 = sphi 0, %s245
    %s263 = sphi 0, %s263
    %s265 = sphi 0, %s263
    %s266 = sphi 0, %s265
    %s280 = sphi 0, %s266
    %s284 = sphi 0, %s284
    %s286 = sphi 0, %s284
    %s287 = sphi 0, %s286
    %s301 = sphi 0, %s287
    %s307 = sphi 0, %s309
    %s310 = sphi 0, %s307
    %s311 = sphi 0, %s310
    %s327 = sphi 0, %s311
  $region4: #{model_forward.1} parent=0 // loop_header_branch
    %22 = sbr.rel (%p20) target = $region8
  $region5: #{model_forward.1} parent=0 // loop_body
    %s24 = ssub.s32 %s19, 1
    %s25 = ssub.s32 %s19, 2
    %s26 = sadd.s32 %s19, 1
    %s27 = ssub.s32 %s19, %s26
    %p28 = scmp.eq.s32.totalorder %s27, 0
    %s30 = sadd.s32 %s29, 1
    %s31 = scalar_select %p28, %s29, %s30
    %p34 = pneg %p28
    %p35 = scmp.eq.s32.totalorder %s19, 1
    %p36 = por %p34, %p35
    %p37 = scmp.ne.s32.totalorder %s29, %s32
    %p38 = scmp.eq.s32.totalorder %s19, 0
    %p39 = por %p37, %p38
    %p40 = scmp.ne.s32.totalorder %s29, %s32
    %p41 = scmp.eq.s32.totalorder %s24, 1
    %p42 = por %p40, %p41
    %p43 = scmp.ne.s32.totalorder %s32, %s33
    %p44 = scmp.eq.s32.totalorder %s24, 0
    %p45 = por %p43, %p44
    %p46 = scmp.ne.s32.totalorder %s32, %s33
    %p47 = scmp.eq.s32.totalorder %s25, 1
    %p48 = por %p46, %p47
    %p50 = scmp.ne.s32.totalorder %s33, %s49
    %p51 = scmp.eq.s32.totalorder %s25, 0
    %p52 = por %p50, %p51
    %s54 = sadd.s32 %s53, 1
    %p57 = scmp.eq.s32.totalorder %s19, 1
    %p58 = scmp.ne.s32.totalorder %s53, %s55
    %p59 = scmp.eq.s32.totalorder %s19, 0
    %p60 = por %p58, %p59
    %p61 = scmp.ne.s32.totalorder %s53, %s55
    %p62 = scmp.eq.s32.totalorder %s24, 1
    %p63 = por %p61, %p62
    %p64 = scmp.ne.s32.totalorder %s55, %s56
    %p65 = scmp.eq.s32.totalorder %s24, 0
    %p66 = por %p64, %p65
    %p67 = scmp.ne.s32.totalorder %s55, %s56
    %p68 = scmp.eq.s32.totalorder %s25, 1
    %p69 = por %p67, %p68
    %p71 = scmp.ne.s32.totalorder %s56, %s70
    %p72 = scmp.eq.s32.totalorder %s25, 0
    %p73 = por %p71, %p72
    %s75 = sadd.s32 %s74, 1
    %p78 = scmp.eq.s32.totalorder %s19, 1
    %p79 = scmp.ne.s32.totalorder %s74, %s76
    %p80 = scmp.eq.s32.totalorder %s19, 0
    %p81 = por %p79, %p80
    %p82 = scmp.ne.s32.totalorder %s74, %s76
    %p83 = scmp.eq.s32.totalorder %s24, 1
    %p84 = por %p82, %p83
    %p85 = scmp.ne.s32.totalorder %s76, %s77
    %p86 = scmp.eq.s32.totalorder %s24, 0
    %p87 = por %p85, %p86
    %p88 = scmp.ne.s32.totalorder %s76, %s77
    %p89 = scmp.eq.s32.totalorder %s25, 1
    %p90 = por %p88, %p89
    %p92 = scmp.ne.s32.totalorder %s77, %s91
    %p93 = scmp.eq.s32.totalorder %s25, 0
    %p94 = por %p92, %p93
    %s96 = sadd.s32 %s95, 1
    %p99 = scmp.eq.s32.totalorder %s19, 1
    %p100 = scmp.ne.s32.totalorder %s95, %s97
    %p101 = scmp.eq.s32.totalorder %s19, 0
    %p102 = por %p100, %p101
    %p103 = scmp.ne.s32.totalorder %s95, %s97
    %p104 = scmp.eq.s32.totalorder %s24, 1
    %p105 = por %p103, %p104
    %p106 = scmp.ne.s32.totalorder %s97, %s98
    %p107 = scmp.eq.s32.totalorder %s24, 0
    %p108 = por %p106, %p107
    %p109 = scmp.ne.s32.totalorder %s97, %s98
    %p110 = scmp.eq.s32.totalorder %s25, 1
    %p111 = por %p109, %p110
    %p113 = scmp.ne.s32.totalorder %s98, %s112
    %p114 = scmp.eq.s32.totalorder %s25, 0
    %p115 = por %p113, %p114
    %s117 = sadd.s32 %s116, 1
    %p120 = scmp.eq.s32.totalorder %s19, 1
    %p121 = scmp.ne.s32.totalorder %s116, %s118
    %p122 = scmp.eq.s32.totalorder %s19, 0
    %p123 = por %p121, %p122
    %p124 = scmp.ne.s32.totalorder %s116, %s118
    %p125 = scmp.eq.s32.totalorder %s24, 1
    %p126 = por %p124, %p125
    %p127 = scmp.ne.s32.totalorder %s118, %s119
    %p128 = scmp.eq.s32.totalorder %s24, 0
    %p129 = por %p127, %p128
    %p130 = scmp.ne.s32.totalorder %s118, %s119
    %p131 = scmp.eq.s32.totalorder %s25, 1
    %p132 = por %p130, %p131
    %p134 = scmp.ne.s32.totalorder %s119, %s133
    %p135 = scmp.eq.s32.totalorder %s25, 0
    %p136 = por %p134, %p135
    %s138 = sadd.s32 %s137, 1
    %p141 = scmp.eq.s32.totalorder %s19, 1
    %p142 = scmp.ne.s32.totalorder %s137, %s139
    %p143 = scmp.eq.s32.totalorder %s19, 0
    %p144 = por %p142, %p143
    %p145 = scmp.ne.s32.totalorder %s137, %s139
    %p146 = scmp.eq.s32.totalorder %s24, 1
    %p147 = por %p145, %p146
    %p148 = scmp.ne.s32.totalorder %s139, %s140
    %p149 = scmp.eq.s32.totalorder %s24, 0
    %p150 = por %p148, %p149
    %p151 = scmp.ne.s32.totalorder %s139, %s140
    %p152 = scmp.eq.s32.totalorder %s25, 1
    %p153 = por %p151, %p152
    %p155 = scmp.ne.s32.totalorder %s140, %s154
    %p156 = scmp.eq.s32.totalorder %s25, 0
    %p157 = por %p155, %p156
    %s159 = sadd.s32 %s158, 1
    %p162 = scmp.eq.s32.totalorder %s19, 1
    %p163 = scmp.ne.s32.totalorder %s158, %s160
    %p164 = scmp.eq.s32.totalorder %s19, 0
    %p165 = por %p163, %p164
    %p166 = scmp.ne.s32.totalorder %s158, %s160
    %p167 = scmp.eq.s32.totalorder %s24, 1
    %p168 = por %p166, %p167
    %p169 = scmp.ne.s32.totalorder %s160, %s161
    %p170 = scmp.eq.s32.totalorder %s24, 0
    %p171 = por %p169, %p170
    %p172 = scmp.ne.s32.totalorder %s160, %s161
    %p173 = scmp.eq.s32.totalorder %s25, 1
    %p174 = por %p172, %p173
    %p176 = scmp.ne.s32.totalorder %s161, %s175
    %p177 = scmp.eq.s32.totalorder %s25, 0
    %p178 = por %p176, %p177
    %s180 = sadd.s32 %s179, 1
    %p183 = scmp.eq.s32.totalorder %s19, 1
    %p184 = scmp.ne.s32.totalorder %s179, %s181
    %p185 = scmp.eq.s32.totalorder %s19, 0
    %p186 = por %p184, %p185
    %p187 = scmp.ne.s32.totalorder %s179, %s181
    %p188 = scmp.eq.s32.totalorder %s24, 1
    %p189 = por %p187, %p188
    %p190 = scmp.ne.s32.totalorder %s181, %s182
    %p191 = scmp.eq.s32.totalorder %s24, 0
    %p192 = por %p190, %p191
    %p193 = scmp.ne.s32.totalorder %s181, %s182
    %p194 = scmp.eq.s32.totalorder %s25, 1
    %p195 = por %p193, %p194
    %p197 = scmp.ne.s32.totalorder %s182, %s196
    %p198 = scmp.eq.s32.totalorder %s25, 0
    %p199 = por %p197, %p198
    %s201 = sadd.s32 %s200, 1
    %p204 = scmp.eq.s32.totalorder %s19, 1
    %p205 = scmp.ne.s32.totalorder %s200, %s202
    %p206 = scmp.eq.s32.totalorder %s19, 0
    %p207 = por %p205, %p206
    %p208 = scmp.ne.s32.totalorder %s200, %s202
    %p209 = scmp.eq.s32.totalorder %s24, 1
    %p210 = por %p208, %p209
    %p211 = scmp.ne.s32.totalorder %s202, %s203
    %p212 = scmp.eq.s32.totalorder %s24, 0
    %p213 = por %p211, %p212
    %p214 = scmp.ne.s32.totalorder %s202, %s203
    %p215 = scmp.eq.s32.totalorder %s25, 1
    %p216 = por %p214, %p215
    %p218 = scmp.ne.s32.totalorder %s203, %s217
    %p219 = scmp.eq.s32.totalorder %s25, 0
    %p220 = por %p218, %p219
    %s222 = sadd.s32 %s221, 1
    %p225 = scmp.eq.s32.totalorder %s19, 1
    %p226 = scmp.ne.s32.totalorder %s221, %s223
    %p227 = scmp.eq.s32.totalorder %s19, 0
    %p228 = por %p226, %p227
    %p229 = scmp.ne.s32.totalorder %s221, %s223
    %p230 = scmp.eq.s32.totalorder %s24, 1
    %p231 = por %p229, %p230
    %p232 = scmp.ne.s32.totalorder %s223, %s224
    %p233 = scmp.eq.s32.totalorder %s24, 0
    %p234 = por %p232, %p233
    %p235 = scmp.ne.s32.totalorder %s223, %s224
    %p236 = scmp.eq.s32.totalorder %s25, 1
    %p237 = por %p235, %p236
    %p239 = scmp.ne.s32.totalorder %s224, %s238
    %p240 = scmp.eq.s32.totalorder %s25, 0
    %p241 = por %p239, %p240
    %s243 = sadd.s32 %s242, 1
    %p246 = scmp.eq.s32.totalorder %s19, 1
    %p247 = scmp.ne.s32.totalorder %s242, %s244
    %p248 = scmp.eq.s32.totalorder %s19, 0
    %p249 = por %p247, %p248
    %p250 = scmp.ne.s32.totalorder %s242, %s244
    %p251 = scmp.eq.s32.totalorder %s24, 1
    %p252 = por %p250, %p251
    %p253 = scmp.ne.s32.totalorder %s244, %s245
    %p254 = scmp.eq.s32.totalorder %s24, 0
    %p255 = por %p253, %p254
    %p256 = scmp.ne.s32.totalorder %s244, %s245
    %p257 = scmp.eq.s32.totalorder %s25, 1
    %p258 = por %p256, %p257
    %p260 = scmp.ne.s32.totalorder %s245, %s259
    %p261 = scmp.eq.s32.totalorder %s25, 0
    %p262 = por %p260, %p261
    %s264 = sadd.s32 %s263, 1
    %p267 = scmp.eq.s32.totalorder %s19, 1
    %p268 = scmp.ne.s32.totalorder %s263, %s265
    %p269 = scmp.eq.s32.totalorder %s19, 0
    %p270 = por %p268, %p269
    %p271 = scmp.ne.s32.totalorder %s263, %s265
    %p272 = scmp.eq.s32.totalorder %s24, 1
    %p273 = por %p271, %p272
    %p274 = scmp.ne.s32.totalorder %s265, %s266
    %p275 = scmp.eq.s32.totalorder %s24, 0
    %p276 = por %p274, %p275
    %p277 = scmp.ne.s32.totalorder %s265, %s266
    %p278 = scmp.eq.s32.totalorder %s25, 1
    %p279 = por %p277, %p278
    %p281 = scmp.ne.s32.totalorder %s266, %s280
    %p282 = scmp.eq.s32.totalorder %s25, 0
    %p283 = por %p281, %p282
    %s285 = sadd.s32 %s284, 1
    %p288 = scmp.eq.s32.totalorder %s19, 1
    %p289 = scmp.ne.s32.totalorder %s284, %s286
    %p290 = scmp.eq.s32.totalorder %s19, 0
    %p291 = por %p289, %p290
    %p292 = scmp.ne.s32.totalorder %s284, %s286
    %p293 = scmp.eq.s32.totalorder %s24, 1
    %p294 = por %p292, %p293
    %p295 = scmp.ne.s32.totalorder %s286, %s287
    %p296 = scmp.eq.s32.totalorder %s24, 0
    %p297 = por %p295, %p296
    %p298 = scmp.ne.s32.totalorder %s286, %s287
    %p299 = scmp.eq.s32.totalorder %s25, 1
    %p300 = por %p298, %p299
    %p302 = scmp.ne.s32.totalorder %s287, %s301
    %p303 = scmp.eq.s32.totalorder %s25, 0
    %p304 = por %p302, %p303
    %s305 = ssub.s32 %s19, %s26
    %p306 = scmp.eq.s32.totalorder %s305, 0
    %s308 = sadd.s32 %s307, 1
    %s309 = scalar_select %p306, %s307, %s308
    %p312 = pneg %p306
    %p313 = scmp.eq.s32.totalorder %s19, 1
    %p314 = por %p312, %p313
    %p315 = scmp.ne.s32.totalorder %s307, %s310
    %p316 = scmp.eq.s32.totalorder %s19, 0
    %p317 = por %p315, %p316
    %p318 = scmp.ne.s32.totalorder %s307, %s310
    %p319 = scmp.eq.s32.totalorder %s24, 1
    %p320 = por %p318, %p319
    %p321 = scmp.ne.s32.totalorder %s310, %s311
    %p322 = scmp.eq.s32.totalorder %s24, 0
    %p323 = por %p321, %p322
    %p324 = scmp.ne.s32.totalorder %s310, %s311
    %p325 = scmp.eq.s32.totalorder %s25, 1
    %p326 = por %p324, %p325
    %p328 = scmp.ne.s32.totalorder %s311, %s327
    %p329 = scmp.eq.s32.totalorder %s25, 0
    %p330 = por %p328, %p329
    %p331 = scmp.le.s32.totalorder 1, %s19
    %p332 = scmp.lt.s32.totalorder %s19, 3
    %p333 = pnand %p331, %p332
    %p334 = pneg %p333
    // Predicated region
    $region9: #{model_forward.1} parent=5 // pred_check
      _
    $region10: #{model_forward.1} parent=5 // pred_check_branch
      %336 = sbr.rel (%p333) target = $region12
    $region11: #{model_forward.1} parent=5 // pred_region
      %s337 = ssub.s32 %s19, 1
      // Predicated region
      $region13: #{model_forward.1} parent=11 // pred_check
        %p338 = pneg %p66
      $region14: #{model_forward.1} parent=11 // pred_check_branch
        %340 = sbr.rel (%p338) target = $region16
      $region15: #{model_forward.1} parent=11 // pred_region
        _
      $region16: #{model_forward.1} parent=11 // pred_fallthru
        _
      // Predicated region
      $region17: #{model_forward.1} parent=11 // pred_check
        %p341 = pneg %p87
      $region18: #{model_forward.1} parent=11 // pred_check_branch
        %343 = sbr.rel (%p341) target = $region20
      $region19: #{model_forward.1} parent=11 // pred_region
        _
      $region20: #{model_forward.1} parent=11 // pred_fallthru
        _
      // Predicated region
      $region21: #{model_forward.1} parent=11 // pred_check
        %p344 = pneg %p108
      $region22: #{model_forward.1} parent=11 // pred_check_branch
        %346 = sbr.rel (%p344) target = $region24
      $region23: #{model_forward.1} parent=11 // pred_region
        _
      $region24: #{model_forward.1} parent=11 // pred_fallthru
        _
      // Predicated region
      $region25: #{model_forward.1} parent=11 // pred_check
        %p347 = pneg %p129
      $region26: #{model_forward.1} parent=11 // pred_check_branch
        %349 = sbr.rel (%p347) target = $region28
      $region27: #{model_forward.1} parent=11 // pred_region
        _
      $region28: #{model_forward.1} parent=11 // pred_fallthru
        _
      // Predicated region
      $region29: #{model_forward.1} parent=11 // pred_check
        %p350 = pneg %p150
      $region30: #{model_forward.1} parent=11 // pred_check_branch
        %352 = sbr.rel (%p350) target = $region32
      $region31: #{model_forward.1} parent=11 // pred_region
        _
      $region32: #{model_forward.1} parent=11 // pred_fallthru
        _
      // Predicated region
      $region33: #{model_forward.1} parent=11 // pred_check
        %p353 = pneg %p171
      $region34: #{model_forward.1} parent=11 // pred_check_branch
        %355 = sbr.rel (%p353) target = $region36
      $region35: #{model_forward.1} parent=11 // pred_region
        _
      $region36: #{model_forward.1} parent=11 // pred_fallthru
        _
      // Predicated region
      $region37: #{model_forward.1} parent=11 // pred_check
        %p356 = pneg %p192
      $region38: #{model_forward.1} parent=11 // pred_check_branch
        %358 = sbr.rel (%p356) target = $region40
      $region39: #{model_forward.1} parent=11 // pred_region
        _
      $region40: #{model_forward.1} parent=11 // pred_fallthru
        _
      // Predicated region
      $region41: #{model_forward.1} parent=11 // pred_check
        %p359 = pneg %p213
      $region42: #{model_forward.1} parent=11 // pred_check_branch
        %361 = sbr.rel (%p359) target = $region44
      $region43: #{model_forward.1} parent=11 // pred_region
        _
      $region44: #{model_forward.1} parent=11 // pred_fallthru
        _
      // Predicated region
      $region45: #{model_forward.1} parent=11 // pred_check
        %p362 = pneg %p234
      $region46: #{model_forward.1} parent=11 // pred_check_branch
        %364 = sbr.rel (%p362) target = $region48
      $region47: #{model_forward.1} parent=11 // pred_region
        _
      $region48: #{model_forward.1} parent=11 // pred_fallthru
        _
      // Predicated region
      $region49: #{model_forward.1} parent=11 // pred_check
        %p365 = pneg %p255
      $region50: #{model_forward.1} parent=11 // pred_check_branch
        %367 = sbr.rel (%p365) target = $region52
      $region51: #{model_forward.1} parent=11 // pred_region
        _
      $region52: #{model_forward.1} parent=11 // pred_fallthru
        _
      // Predicated region
      $region53: #{model_forward.1} parent=11 // pred_check
        %p368 = pneg %p276
      $region54: #{model_forward.1} parent=11 // pred_check_branch
        %370 = sbr.rel (%p368) target = $region56
      $region55: #{model_forward.1} parent=11 // pred_region
        _
      $region56: #{model_forward.1} parent=11 // pred_fallthru
        _
      // Predicated region
      $region57: #{model_forward.1} parent=11 // pred_check
        %p371 = pneg %p297
      $region58: #{model_forward.1} parent=11 // pred_check_branch
        %373 = sbr.rel (%p371) target = $region60
      $region59: #{model_forward.1} parent=11 // pred_region
        _
      $region60: #{model_forward.1} parent=11 // pred_fallthru
        _
    $region12: #{model_forward.1} parent=5 // pred_fallthru
      _
    %p374 = scmp.lt.s32.totalorder %s19, 2
    // Predicated region
    $region61: #{model_forward.1} parent=5 // pred_check
      %p375 = pneg %p374
    $region62: #{model_forward.1} parent=5 // pred_check_branch
      %377 = sbr.rel (%p375) target = $region64
    $region63: #{model_forward.1} parent=5 // pred_region
      // Predicated region
      $region65: #{model_forward.1} parent=63 // pred_check
        %p378 = pneg %p39
      $region66: #{model_forward.1} parent=63 // pred_check_branch
        %380 = sbr.rel (%p378) target = $region68
      $region67: #{model_forward.1} parent=63 // pred_region
        %p381 = scmp.lt.s32.totalorder %s19, 1
        %s382 = scalar_select %p381, %s19, 1
        %s383 = smul.addr %s382, 8
        %s384 = scalar_lea.vmem %s0, %s383
      $region68: #{model_forward.1} parent=63 // pred_fallthru
        _
    $region64: #{model_forward.1} parent=5 // pred_fallthru
      _
    %p385 = scmp.le.s32.totalorder 1, %s19
    %p386 = scmp.lt.s32.totalorder %s19, 3
    %p387 = pnand %p385, %p386
    %p388 = pneg %p387
    // Predicated region
    $region69: #{model_forward.1} parent=5 // pred_check
      _
    $region70: #{model_forward.1} parent=5 // pred_check_branch
      %390 = sbr.rel (%p387) target = $region72
    $region71: #{model_forward.1} parent=5 // pred_region
      %s391 = ssub.s32 %s19, 1
      %p392 = scmp.lt.s32.totalorder %s24, 1
      %s393 = scalar_select %p392, %s24, 1
      %s394 = smul.addr %s393, 8
      %s395 = scalar_lea.vmem %s0, %s394
      %p396 = pneg %p45
      %p397 = pneg %p42
      %p398 = pneg %p66
      %p399 = pneg %p63
      %p400 = pneg %p87
      %p401 = pneg %p84
      %p402 = pneg %p108
      %p403 = pneg %p105
      %p404 = pneg %p129
      %p405 = pneg %p126
      %p406 = pneg %p150
      %p407 = pneg %p147
      %p408 = pneg %p171
      %p409 = pneg %p168
      %p410 = pneg %p192
      %p411 = pneg %p189
      %p412 = pneg %p213
      %p413 = pneg %p210
      %p414 = pneg %p234
      %p415 = pneg %p231
      %p416 = pneg %p255
      %p417 = pneg %p252
      %p418 = pneg %p276
      %p419 = pneg %p273
      %p420 = pneg %p297
      %p421 = pneg %p294
      %p422 = pneg %p323
      %p423 = pneg %p320
      %p424 = scmp.lt.s32.totalorder %s24, 1
      %s425 = scalar_select %p424, %s24, 1
      %s426 = smul.addr %s425, 2
      %s427 = smul.addr %s426, 8
      %s428 = scalar_lea.vmem %s13, %s427
      %p429 = scmp.lt.s32.totalorder %s24, 1
      %s430 = scalar_select %p429, %s24, 1
      %s431 = smul.addr %s430, 8
      %s432 = scalar_lea.vmem %s0, %s431
      %p433 = scmp.lt.s32.totalorder %s24, 1
      %s434 = scalar_select %p433, %s24, 1
      %s435 = smul.addr %s434, 2
      %s436 = smul.addr %s435, 8
      %s437 = scalar_lea.vmem %s13, %s436
      %v438 = vld [vmem:[%s11] sm:$0xff]
      %v439 = vld [vmem:[%s11 + $0x8] sm:$0xff]
      %v440 = vld [vmem:[%s11 + $0x18] sm:$0xff]
      %v441 = vld [vmem:[%s11 + $0x20] sm:$0xff]
      %v442 = vld [vmem:[%s11 + $0x28] sm:$0xf]
      %v443 = vld [vmem:[%s11 + $0x30] sm:$0xff]
      %v444 = vld [vmem:[%s11 + $0x38] sm:$0xff]
      %v445 = vld [vmem:[%s11 + $0x40] sm:$0xf]
      %v446 = vld [vmem:[%s11 + $0x48] sm:$0xff]
      %v447 = vld [vmem:[%s11 + $0x50] sm:$0xff]
      %v448 = vld [vmem:[%s11 + $0x60] sm:$0xff]
      %v449 = vld [vmem:[%s11 + $0x68] sm:$0xff]
      %v450 = vld [vmem:[%s11 + $0x78] sm:$0xff]
      %v451 = vld [vmem:[%s11 + $0x80] sm:$0xff]
      %v452 = vld [vmem:[%s12] sm:$0xff]
      %v453 = vld [vmem:[%s12 + $0x8] sm:$0xff]
      %v454 = vld [vmem:[%s12 + $0x18] sm:$0xff]
      %v455 = vld [vmem:[%s12 + $0x20] sm:$0xff]
      %v456 = vld [vmem:[%s12 + $0x28] sm:$0xf]
      %v457 = vld [vmem:[%s12 + $0x30] sm:$0xff]
      %v458 = vld [vmem:[%s12 + $0x38] sm:$0xff]
      %v459 = vld [vmem:[%s12 + $0x40] sm:$0xf]
      %v460 = vld [vmem:[%s12 + $0x48] sm:$0xff]
      %v461 = vld [vmem:[%s12 + $0x50] sm:$0xff]
      %v462 = vld [vmem:[%s12 + $0x60] sm:$0xff]
      %v463 = vld [vmem:[%s12 + $0x68] sm:$0xff]
      %v464 = vld [vmem:[%s12 + $0x78] sm:$0xff]
      %v465 = vld [vmem:[%s12 + $0x80] sm:$0xff]
      %466 = vst [vmem:[#allocation2] sm:$0xff] 0.0
      %467 = vst [vmem:[#allocation2 + $0x8] sm:$0xff] 0.0
      %468 = vst [vmem:[#allocation2 + $0x10] sm:$0xff] 0.0
      %469 = vst [vmem:[#allocation2 + $0x18] sm:$0xff] 0.0
      %470 = vst [vmem:[#allocation2 + $0x20] sm:$0xff] 0.0
      %471 = vst [vmem:[#allocation2 + $0x28] sm:$0xff] 0.0
      %472 = vst [vmem:[#allocation2 + $0x30] sm:$0xff] 0.0
      %473 = vst [vmem:[#allocation2 + $0x38] sm:$0xff] 0.0
      %474 = vst [vmem:[#allocation2 + $0x40] sm:$0xff] 0.0
      %475 = vst [vmem:[#allocation2 + $0x48] sm:$0xff] 0.0
      %476 = vst [vmem:[#allocation2 + $0x50] sm:$0xff] 0.0
      %477 = vst [vmem:[#allocation2 + $0x58] sm:$0xff] 0.0
      %478 = vst [vmem:[#allocation2 + $0x60] sm:$0xff] 0.0
      %479 = vst [vmem:[#allocation2 + $0x68] sm:$0xff] 0.0
      %480 = vst [vmem:[#allocation2 + $0x70] sm:$0xff] 0.0
      %481 = vst [vmem:[#allocation2 + $0x78] sm:$0xff] 0.0
      %482 = vst [vmem:[#allocation2 + $0x80] sm:$0xff] 0.0
      %483 = vst [vmem:[#allocation2 + $0x88] sm:$0xff] 0.0
      %484 = vst [vmem:[#allocation2 + $0x90] sm:$0xff] 0.0
      %485 = vst [vmem:[#allocation2 + $0x98] sm:$0xff] 0.0
      %486 = vst [vmem:[#allocation2 + $0xa0] sm:$0xf] 0.0
      %487 = vst [vmem:[#allocation2 + $0xa8] sm:$0xf] 0.0
      %488 = vst [vmem:[#allocation2 + $0xb0] sm:$0xf] 0.0
      %489 = vst [vmem:[#allocation2 + $0xb8] sm:$0xf] 0.0
      %490 = vst [vmem:[#allocation2 + $0xc0] sm:$0xf] 0.0
      %491 = vst [vmem:[#allocation2 + $0xc8] sm:$0xf] 0.0
      %492 = vst [vmem:[#allocation2 + $0xd0] sm:$0xf] 0.0
      %493 = vst [vmem:[#allocation2 + $0xd8] sm:$0xf] 0.0
      %494 = vst [vmem:[#allocation2 + $0xe0] sm:$0xf] 0.0
      %495 = vst [vmem:[#allocation2 + $0xe8] sm:$0xf] 0.0
      %v496 = vld [vmem:[%s432] sm:$0xff]
      %v497 = vld [vmem:[%s1] sm:$0xff]
      %v498 = vld [vmem:[%s1 + $0x8] sm:$0x3]
      %v499 = vld [vmem:[%s1 + $0x10] sm:$0xff]
      %v500 = vld [vmem:[%s1 + $0x18] sm:$0x3]
      %v501 = vld [vmem:[%s1 + $0x20] sm:$0xff]
      %v502 = vld [vmem:[%s1 + $0x28] sm:$0x3]
      %v503 = vld [vmem:[%s1 + $0x30] sm:$0xff]
      %v504 = vld [vmem:[%s1 + $0x38] sm:$0x3]
      %v505 = vld [vmem:[%s1 + $0x40] sm:$0xff]
      %v506 = vld [vmem:[%s1 + $0x48] sm:$0x3]
      %v507 = vld [vmem:[%s1 + $0x50] sm:$0xff]
      %v508 = vld [vmem:[%s1 + $0x58] sm:$0x3]
      %v509 = vld [vmem:[%s1 + $0x60] sm:$0xff]
      %v510 = vld [vmem:[%s1 + $0x68] sm:$0x3]
      %v511 = vld [vmem:[%s1 + $0x70] sm:$0xff]
      %v512 = vld [vmem:[%s1 + $0x78] sm:$0x3]
      %v513 = vld [vmem:[%s1 + $0x80] sm:$0xff]
      %v514 = vld [vmem:[%s1 + $0x88] sm:$0x3]
      %s515 = scalar_lea.vmem [#allocation2], 8
      %516 = vst [vmem:[%s515] ss:$8 sm:$0xf] %v496
      %517 = vst [vmem:[%s515] ss:$8 sm:$0xf0] %v496
      %v518 = vld [vmem:[%s515] ss:$8 sm:$0xf]
      %v519 = vld [vmem:[%s515] ss:$8 sm:$0xf0]
      %v520 = vor.u32 %v518, %v519
      %522 = vset.pattern.permute.xlu0 0
      %523 = vperm.xlu0 %522, %v497
      %v524 = vpop.permute.xlu0 %523
      %527 = vset.pattern.permute.xlu0 0
      %528 = vperm.xlu0 %527, %v498
      %v529 = vpop.permute.xlu0 %528
      %v532 = vlaneseq
      %v533 = vshrl.u32 %v532, 7
      %v534 = vsub.s32 0, %v533
      %v535 = vrot.slane %v520, %v534
      %v536 = vlaneseq
      %v537 = vshrl.u32 %v536, 7
      %v538 = vsub.s32 1, %v537
      %v539 = vrot.slane %v520, %v538
      %v540 = vlaneseq
      %v541 = vshrl.u32 %v540, 7
      %v542 = vsub.s32 2, %v541
      %v543 = vrot.slane %v520, %v542
      %v544 = vlaneseq
      %v545 = vshrl.u32 %v544, 7
      %v546 = vsub.s32 3, %v545
      %v547 = vrot.slane %v520, %v546
      %v548 = vlaneseq
      %v549 = vshrl.u32 %v548, 7
      %v550 = vsub.s32 4, %v549
      %v551 = vrot.slane %v520, %v550
      %v552 = vlaneseq
      %v553 = vshrl.u32 %v552, 7
      %v554 = vsub.s32 5, %v553
      %v555 = vrot.slane %v520, %v554
      %v556 = vlaneseq
      %v557 = vshrl.u32 %v556, 7
      %v558 = vsub.s32 6, %v557
      %v559 = vrot.slane %v520, %v558
      %v560 = vlaneseq
      %v561 = vshrl.u32 %v560, 7
      %v562 = vsub.s32 7, %v561
      %v563 = vrot.slane %v520, %v562
      %v572 = vmul.f32 %v524, %v535
      %v573 = vmul.f32 %v524, %v539
      %v574 = vmul.f32 %v524, %v543
      %v575 = vmul.f32 %v524, %v547
      %v576 = vmul.f32 %v524, %v551
      %v577 = vmul.f32 %v524, %v555
      %v578 = vmul.f32 %v524, %v559
      %v579 = vmul.f32 %v524, %v563
      %v580 = vmul.f32 %v529, %v535
      %v581 = vmul.f32 %v529, %v539
      %v582 = vmul.f32 %v529, %v543
      %v583 = vmul.f32 %v529, %v547
      %v584 = vmul.f32 %v529, %v551
      %v585 = vmul.f32 %v529, %v555
      %v586 = vmul.f32 %v529, %v559
      %v587 = vmul.f32 %v529, %v563
      %v588 = vadd.f32 %v572, 0.0
      %v589 = vadd.f32 %v573, 0.0
      %v590 = vadd.f32 %v574, 0.0
      %v591 = vadd.f32 %v575, 0.0
      %v592 = vadd.f32 %v576, 0.0
      %v593 = vadd.f32 %v577, 0.0
      %v594 = vadd.f32 %v578, 0.0
      %v595 = vadd.f32 %v579, 0.0
      %v596 = vadd.f32 %v580, 0.0
      %v597 = vadd.f32 %v581, 0.0
      %v598 = vadd.f32 %v582, 0.0
      %v599 = vadd.f32 %v583, 0.0
      %v600 = vadd.f32 %v584, 0.0
      %v601 = vadd.f32 %v585, 0.0
      %v602 = vadd.f32 %v586, 0.0
      %v603 = vadd.f32 %v587, 0.0
      %v604 = vld [vmem:[%s515] ss:$8 sm:$0xf]
      %v605 = vld [vmem:[%s515] ss:$8 sm:$0xf0]
      %v606 = vor.u32 %v604, %v605
      %s607 = scalar_lea.vmem [#allocation2], 72
      %v608 = vld [vmem:[%s607] ss:$8 sm:$0x1]
      %610 = vset.pattern.permute.xlu0 0
      %611 = vperm.xlu0 %610, %v499
      %v612 = vpop.permute.xlu0 %611
      %615 = vset.pattern.permute.xlu0 0
      %616 = vperm.xlu0 %615, %v500
      %v617 = vpop.permute.xlu0 %616
      %v621 = vlaneseq
      %v622 = vshrl.u32 %v621, 7
      %v623 = vsub.s32 0, %v622
      %v624 = vrot.slane %v606, %v623
      %v625 = vlaneseq
      %v626 = vshrl.u32 %v625, 7
      %v627 = vsub.s32 1, %v626
      %v628 = vrot.slane %v606, %v627
      %v629 = vlaneseq
      %v630 = vshrl.u32 %v629, 7
      %v631 = vsub.s32 2, %v630
      %v632 = vrot.slane %v606, %v631
      %v633 = vlaneseq
      %v634 = vshrl.u32 %v633, 7
      %v635 = vsub.s32 3, %v634
      %v636 = vrot.slane %v606, %v635
      %v637 = vlaneseq
      %v638 = vshrl.u32 %v637, 7
      %v639 = vsub.s32 4, %v638
      %v640 = vrot.slane %v606, %v639
      %v641 = vlaneseq
      %v642 = vshrl.u32 %v641, 7
      %v643 = vsub.s32 5, %v642
      %v644 = vrot.slane %v606, %v643
      %v645 = vlaneseq
      %v646 = vshrl.u32 %v645, 7
      %v647 = vsub.s32 6, %v646
      %v648 = vrot.slane %v606, %v647
      %v649 = vlaneseq
      %v650 = vshrl.u32 %v649, 7
      %v651 = vsub.s32 7, %v650
      %v652 = vrot.slane %v606, %v651
      %v653 = vlaneseq
      %v654 = vshrl.u32 %v653, 7
      %v655 = vsub.s32 0, %v654
      %v656 = vrot.slane %v608, %v655
      %v666 = vmul.f32 %v612, %v624
      %v667 = vmul.f32 %v612, %v628
      %v668 = vmul.f32 %v612, %v632
      %v669 = vmul.f32 %v612, %v636
      %v670 = vmul.f32 %v612, %v640
      %v671 = vmul.f32 %v612, %v644
      %v672 = vmul.f32 %v612, %v648
      %v673 = vmul.f32 %v612, %v652
      %v674 = vmul.f32 %v612, %v656
      %v675 = vmul.f32 %v617, %v624
      %v676 = vmul.f32 %v617, %v628
      %v677 = vmul.f32 %v617, %v632
      %v678 = vmul.f32 %v617, %v636
      %v679 = vmul.f32 %v617, %v640
      %v680 = vmul.f32 %v617, %v644
      %v681 = vmul.f32 %v617, %v648
      %v682 = vmul.f32 %v617, %v652
      %v683 = vmul.f32 %v617, %v656
      %702 = vrot.lane.b32.xlu0 %v666, 127
      %v703 = vpop.permute.xlu0 %702
      %704 = vrot.lane.b32.xlu0 %v667, 127
      %v705 = vpop.permute.xlu0 %704
      %706 = vrot.lane.b32.xlu0 %v668, 127
      %v707 = vpop.permute.xlu0 %706
      %708 = vrot.lane.b32.xlu0 %v669, 127
      %v709 = vpop.permute.xlu0 %708
      %710 = vrot.lane.b32.xlu0 %v670, 127
      %v711 = vpop.permute.xlu0 %710
      %712 = vrot.lane.b32.xlu0 %v671, 127
      %v713 = vpop.permute.xlu0 %712
      %714 = vrot.lane.b32.xlu0 %v672, 127
      %v715 = vpop.permute.xlu0 %714
      %716 = vrot.lane.b32.xlu0 %v673, 127
      %v717 = vpop.permute.xlu0 %716
      %718 = vrot.lane.b32.xlu0 %v674, 127
      %v719 = vpop.permute.xlu0 %718
      %720 = vrot.lane.b32.xlu0 %v675, 127
      %v721 = vpop.permute.xlu0 %720
      %722 = vrot.lane.b32.xlu0 %v676, 127
      %v723 = vpop.permute.xlu0 %722
      %724 = vrot.lane.b32.xlu0 %v677, 127
      %v725 = vpop.permute.xlu0 %724
      %726 = vrot.lane.b32.xlu0 %v678, 127
      %v727 = vpop.permute.xlu0 %726
      %728 = vrot.lane.b32.xlu0 %v679, 127
      %v729 = vpop.permute.xlu0 %728
      %730 = vrot.lane.b32.xlu0 %v680, 127
      %v731 = vpop.permute.xlu0 %730
      %732 = vrot.lane.b32.xlu0 %v681, 127
      %v733 = vpop.permute.xlu0 %732
      %734 = vrot.lane.b32.xlu0 %v682, 127
      %v735 = vpop.permute.xlu0 %734
      %736 = vrot.lane.b32.xlu0 %v683, 127
      %v737 = vpop.permute.xlu0 %736
      %vm738 = vcmask 1039360
      %v739 = vsel %vm738, %v703, %v705
      %v740 = vsel %vm738, %v705, %v707
      %v741 = vsel %vm738, %v707, %v709
      %v742 = vsel %vm738, %v709, %v711
      %v743 = vsel %vm738, %v711, %v713
      %v744 = vsel %vm738, %v713, %v715
      %v745 = vsel %vm738, %v715, %v717
      %v746 = vsel %vm738, %v717, %v719
      %v747 = vsel %vm738, %v721, %v723
      %v748 = vsel %vm738, %v723, %v725
      %v749 = vsel %vm738, %v725, %v727
      %v750 = vsel %vm738, %v727, %v729
      %v751 = vsel %vm738, %v729, %v731
      %v752 = vsel %vm738, %v731, %v733
      %v753 = vsel %vm738, %v733, %v735
      %v754 = vsel %vm738, %v735, %v737
      %v771 = vadd.f32 %v588, %v739
      %v772 = vadd.f32 %v589, %v740
      %v773 = vadd.f32 %v590, %v741
      %v774 = vadd.f32 %v591, %v742
      %v775 = vadd.f32 %v592, %v743
      %v776 = vadd.f32 %v593, %v744
      %v777 = vadd.f32 %v594, %v745
      %v778 = vadd.f32 %v595, %v746
      %v779 = vadd.f32 %v596, %v747
      %v780 = vadd.f32 %v597, %v748
      %v781 = vadd.f32 %v598, %v749
      %v782 = vadd.f32 %v599, %v750
      %v783 = vadd.f32 %v600, %v751
      %v784 = vadd.f32 %v601, %v752
      %v785 = vadd.f32 %v602, %v753
      %v786 = vadd.f32 %v603, %v754
      %788 = vset.pattern.permute.xlu0 0
      %789 = vperm.xlu0 %788, %v501
      %v790 = vpop.permute.xlu0 %789
      %793 = vset.pattern.permute.xlu0 0
      %794 = vperm.xlu0 %793, %v502
      %v795 = vpop.permute.xlu0 %794
      %v797 = vmul.f32 %v790, %v624
      %v798 = vmul.f32 %v790, %v628
      %v799 = vmul.f32 %v790, %v632
      %v800 = vmul.f32 %v790, %v636
      %v801 = vmul.f32 %v790, %v640
      %v802 = vmul.f32 %v790, %v644
      %v803 = vmul.f32 %v790, %v648
      %v804 = vmul.f32 %v790, %v652
      %v805 = vmul.f32 %v790, %v656
      %v806 = vmul.f32 %v795, %v624
      %v807 = vmul.f32 %v795, %v628
      %v808 = vmul.f32 %v795, %v632
      %v809 = vmul.f32 %v795, %v636
      %v810 = vmul.f32 %v795, %v640
      %v811 = vmul.f32 %v795, %v644
      %v812 = vmul.f32 %v795, %v648
      %v813 = vmul.f32 %v795, %v652
      %v814 = vmul.f32 %v795, %v656
      %833 = vrot.lane.b32.xlu0 %v797, 126
      %v834 = vpop.permute.xlu0 %833
      %835 = vrot.lane.b32.xlu0 %v798, 126
      %v836 = vpop.permute.xlu0 %835
      %837 = vrot.lane.b32.xlu0 %v799, 126
      %v838 = vpop.permute.xlu0 %837
      %839 = vrot.lane.b32.xlu0 %v800, 126
      %v840 = vpop.permute.xlu0 %839
      %841 = vrot.lane.b32.xlu0 %v801, 126
      %v842 = vpop.permute.xlu0 %841
      %843 = vrot.lane.b32.xlu0 %v802, 126
      %v844 = vpop.permute.xlu0 %843
      %845 = vrot.lane.b32.xlu0 %v803, 126
      %v846 = vpop.permute.xlu0 %845
      %847 = vrot.lane.b32.xlu0 %v804, 126
      %v848 = vpop.permute.xlu0 %847
      %849 = vrot.lane.b32.xlu0 %v805, 126
      %v850 = vpop.permute.xlu0 %849
      %851 = vrot.lane.b32.xlu0 %v806, 126
      %v852 = vpop.permute.xlu0 %851
      %853 = vrot.lane.b32.xlu0 %v807, 126
      %v854 = vpop.permute.xlu0 %853
      %855 = vrot.lane.b32.xlu0 %v808, 126
      %v856 = vpop.permute.xlu0 %855
      %857 = vrot.lane.b32.xlu0 %v809, 126
      %v858 = vpop.permute.xlu0 %857
      %859 = vrot.lane.b32.xlu0 %v810, 126
      %v860 = vpop.permute.xlu0 %859
      %861 = vrot.lane.b32.xlu0 %v811, 126
      %v862 = vpop.permute.xlu0 %861
      %863 = vrot.lane.b32.xlu0 %v812, 126
      %v864 = vpop.permute.xlu0 %863
      %865 = vrot.lane.b32.xlu0 %v813, 126
      %v866 = vpop.permute.xlu0 %865
      %867 = vrot.lane.b32.xlu0 %v814, 126
      %v868 = vpop.permute.xlu0 %867
      %vm869 = vcmask 1031168
      %v870 = vsel %vm869, %v834, %v836
      %v871 = vsel %vm869, %v836, %v838
      %v872 = vsel %vm869, %v838, %v840
      %v873 = vsel %vm869, %v840, %v842
      %v874 = vsel %vm869, %v842, %v844
      %v875 = vsel %vm869, %v844, %v846
      %v876 = vsel %vm869, %v846, %v848
      %v877 = vsel %vm869, %v848, %v850
      %v878 = vsel %vm869, %v852, %v854
      %v879 = vsel %vm869, %v854, %v856
      %v880 = vsel %vm869, %v856, %v858
      %v881 = vsel %vm869, %v858, %v860
      %v882 = vsel %vm869, %v860, %v862
      %v883 = vsel %vm869, %v862, %v864
      %v884 = vsel %vm869, %v864, %v866
      %v885 = vsel %vm869, %v866, %v868
      %v902 = vadd.f32 %v771, %v870
      %v903 = vadd.f32 %v772, %v871
      %v904 = vadd.f32 %v773, %v872
      %v905 = vadd.f32 %v774, %v873
      %v906 = vadd.f32 %v775, %v874
      %v907 = vadd.f32 %v776, %v875
      %v908 = vadd.f32 %v777, %v876
      %v909 = vadd.f32 %v778, %v877
      %v910 = vadd.f32 %v779, %v878
      %v911 = vadd.f32 %v780, %v879
      %v912 = vadd.f32 %v781, %v880
      %v913 = vadd.f32 %v782, %v881
      %v914 = vadd.f32 %v783, %v882
      %v915 = vadd.f32 %v784, %v883
      %v916 = vadd.f32 %v785, %v884
      %v917 = vadd.f32 %v786, %v885
      %919 = vset.pattern.permute.xlu0 0
      %920 = vperm.xlu0 %919, %v503
      %v921 = vpop.permute.xlu0 %920
      %924 = vset.pattern.permute.xlu0 0
      %925 = vperm.xlu0 %924, %v504
      %v926 = vpop.permute.xlu0 %925
      %v928 = vmul.f32 %v921, %v624
      %v929 = vmul.f32 %v921, %v628
      %v930 = vmul.f32 %v921, %v632
      %v931 = vmul.f32 %v921, %v636
      %v932 = vmul.f32 %v921, %v640
      %v933 = vmul.f32 %v921, %v644
      %v934 = vmul.f32 %v921, %v648
      %v935 = vmul.f32 %v921, %v652
      %v936 = vmul.f32 %v921, %v656
      %v937 = vmul.f32 %v926, %v624
      %v938 = vmul.f32 %v926, %v628
      %v939 = vmul.f32 %v926, %v632
      %v940 = vmul.f32 %v926, %v636
      %v941 = vmul.f32 %v926, %v640
      %v942 = vmul.f32 %v926, %v644
      %v943 = vmul.f32 %v926, %v648
      %v944 = vmul.f32 %v926, %v652
      %v945 = vmul.f32 %v926, %v656
      %964 = vrot.lane.b32.xlu0 %v928, 100
      %v965 = vpop.permute.xlu0 %964
      %966 = vrot.lane.b32.xlu0 %v929, 100
      %v967 = vpop.permute.xlu0 %966
      %968 = vrot.lane.b32.xlu0 %v930, 100
      %v969 = vpop.permute.xlu0 %968
      %970 = vrot.lane.b32.xlu0 %v931, 100
      %v971 = vpop.permute.xlu0 %970
      %972 = vrot.lane.b32.xlu0 %v932, 100
      %v973 = vpop.permute.xlu0 %972
      %974 = vrot.lane.b32.xlu0 %v933, 100
      %v975 = vpop.permute.xlu0 %974
      %976 = vrot.lane.b32.xlu0 %v934, 100
      %v977 = vpop.permute.xlu0 %976
      %978 = vrot.lane.b32.xlu0 %v935, 100
      %v979 = vpop.permute.xlu0 %978
      %980 = vrot.lane.b32.xlu0 %v936, 100
      %v981 = vpop.permute.xlu0 %980
      %982 = vrot.lane.b32.xlu0 %v937, 100
      %v983 = vpop.permute.xlu0 %982
      %984 = vrot.lane.b32.xlu0 %v938, 100
      %v985 = vpop.permute.xlu0 %984
      %986 = vrot.lane.b32.xlu0 %v939, 100
      %v987 = vpop.permute.xlu0 %986
      %988 = vrot.lane.b32.xlu0 %v940, 100
      %v989 = vpop.permute.xlu0 %988
      %990 = vrot.lane.b32.xlu0 %v941, 100
      %v991 = vpop.permute.xlu0 %990
      %992 = vrot.lane.b32.xlu0 %v942, 100
      %v993 = vpop.permute.xlu0 %992
      %994 = vrot.lane.b32.xlu0 %v943, 100
      %v995 = vpop.permute.xlu0 %994
      %996 = vrot.lane.b32.xlu0 %v944, 100
      %v997 = vpop.permute.xlu0 %996
      %998 = vrot.lane.b32.xlu0 %v945, 100
      %v999 = vpop.permute.xlu0 %998
      %vm1000 = vcmask 818176
      %v1001 = vsel %vm1000, %v965, %v967
      %v1002 = vsel %vm1000, %v967, %v969
      %v1003 = vsel %vm1000, %v969, %v971
      %v1004 = vsel %vm1000, %v971, %v973
      %v1005 = vsel %vm1000, %v973, %v975
      %v1006 = vsel %vm1000, %v975, %v977
      %v1007 = vsel %vm1000, %v977, %v979
      %v1008 = vsel %vm1000, %v979, %v981
      %v1009 = vsel %vm1000, %v983, %v985
      %v1010 = vsel %vm1000, %v985, %v987
      %v1011 = vsel %vm1000, %v987, %v989
      %v1012 = vsel %vm1000, %v989, %v991
      %v1013 = vsel %vm1000, %v991, %v993
      %v1014 = vsel %vm1000, %v993, %v995
      %v1015 = vsel %vm1000, %v995, %v997
      %v1016 = vsel %vm1000, %v997, %v999
      %v1033 = vadd.f32 %v902, %v1001
      %v1034 = vadd.f32 %v903, %v1002
      %v1035 = vadd.f32 %v904, %v1003
      %v1036 = vadd.f32 %v905, %v1004
      %v1037 = vadd.f32 %v906, %v1005
      %v1038 = vadd.f32 %v907, %v1006
      %v1039 = vadd.f32 %v908, %v1007
      %v1040 = vadd.f32 %v909, %v1008
      %v1041 = vadd.f32 %v910, %v1009
      %v1042 = vadd.f32 %v911, %v1010
      %v1043 = vadd.f32 %v912, %v1011
      %v1044 = vadd.f32 %v913, %v1012
      %v1045 = vadd.f32 %v914, %v1013
      %v1046 = vadd.f32 %v915, %v1014
      %v1047 = vadd.f32 %v916, %v1015
      %v1048 = vadd.f32 %v917, %v1016
      %1050 = vset.pattern.permute.xlu0 0
      %1051 = vperm.xlu0 %1050, %v505
      %v1052 = vpop.permute.xlu0 %1051
      %1055 = vset.pattern.permute.xlu0 0
      %1056 = vperm.xlu0 %1055, %v506
      %v1057 = vpop.permute.xlu0 %1056
      %v1059 = vmul.f32 %v1052, %v624
      %v1060 = vmul.f32 %v1052, %v628
      %v1061 = vmul.f32 %v1052, %v632
      %v1062 = vmul.f32 %v1052, %v636
      %v1063 = vmul.f32 %v1052, %v640
      %v1064 = vmul.f32 %v1052, %v644
      %v1065 = vmul.f32 %v1052, %v648
      %v1066 = vmul.f32 %v1052, %v652
      %v1067 = vmul.f32 %v1052, %v656
      %v1068 = vmul.f32 %v1057, %v624
      %v1069 = vmul.f32 %v1057, %v628
      %v1070 = vmul.f32 %v1057, %v632
      %v1071 = vmul.f32 %v1057, %v636
      %v1072 = vmul.f32 %v1057, %v640
      %v1073 = vmul.f32 %v1057, %v644
      %v1074 = vmul.f32 %v1057, %v648
      %v1075 = vmul.f32 %v1057, %v652
      %v1076 = vmul.f32 %v1057, %v656
      %1095 = vrot.lane.b32.xlu0 %v1059, 99
      %v1096 = vpop.permute.xlu0 %1095
      %1097 = vrot.lane.b32.xlu0 %v1060, 99
      %v1098 = vpop.permute.xlu0 %1097
      %1099 = vrot.lane.b32.xlu0 %v1061, 99
      %v1100 = vpop.permute.xlu0 %1099
      %1101 = vrot.lane.b32.xlu0 %v1062, 99
      %v1102 = vpop.permute.xlu0 %1101
      %1103 = vrot.lane.b32.xlu0 %v1063, 99
      %v1104 = vpop.permute.xlu0 %1103
      %1105 = vrot.lane.b32.xlu0 %v1064, 99
      %v1106 = vpop.permute.xlu0 %1105
      %1107 = vrot.lane.b32.xlu0 %v1065, 99
      %v1108 = vpop.permute.xlu0 %1107
      %1109 = vrot.lane.b32.xlu0 %v1066, 99
      %v1110 = vpop.permute.xlu0 %1109
      %1111 = vrot.lane.b32.xlu0 %v1067, 99
      %v1112 = vpop.permute.xlu0 %1111
      %1113 = vrot.lane.b32.xlu0 %v1068, 99
      %v1114 = vpop.permute.xlu0 %1113
      %1115 = vrot.lane.b32.xlu0 %v1069, 99
      %v1116 = vpop.permute.xlu0 %1115
      %1117 = vrot.lane.b32.xlu0 %v1070, 99
      %v1118 = vpop.permute.xlu0 %1117
      %1119 = vrot.lane.b32.xlu0 %v1071, 99
      %v1120 = vpop.permute.xlu0 %1119
      %1121 = vrot.lane.b32.xlu0 %v1072, 99
      %v1122 = vpop.permute.xlu0 %1121
      %1123 = vrot.lane.b32.xlu0 %v1073, 99
      %v1124 = vpop.permute.xlu0 %1123
      %1125 = vrot.lane.b32.xlu0 %v1074, 99
      %v1126 = vpop.permute.xlu0 %1125
      %1127 = vrot.lane.b32.xlu0 %v1075, 99
      %v1128 = vpop.permute.xlu0 %1127
      %1129 = vrot.lane.b32.xlu0 %v1076, 99
      %v1130 = vpop.permute.xlu0 %1129
      %vm1131 = vcmask 809984
      %v1132 = vsel %vm1131, %v1096, %v1098
      %v1133 = vsel %vm1131, %v1098, %v1100
      %v1134 = vsel %vm1131, %v1100, %v1102
      %v1135 = vsel %vm1131, %v1102, %v1104
      %v1136 = vsel %vm1131, %v1104, %v1106
      %v1137 = vsel %vm1131, %v1106, %v1108
      %v1138 = vsel %vm1131, %v1108, %v1110
      %v1139 = vsel %vm1131, %v1110, %v1112
      %v1140 = vsel %vm1131, %v1114, %v1116
      %v1141 = vsel %vm1131, %v1116, %v1118
      %v1142 = vsel %vm1131, %v1118, %v1120
      %v1143 = vsel %vm1131, %v1120, %v1122
      %v1144 = vsel %vm1131, %v1122, %v1124
      %v1145 = vsel %vm1131, %v1124, %v1126
      %v1146 = vsel %vm1131, %v1126, %v1128
      %v1147 = vsel %vm1131, %v1128, %v1130
      %v1164 = vadd.f32 %v1033, %v1132
      %v1165 = vadd.f32 %v1034, %v1133
      %v1166 = vadd.f32 %v1035, %v1134
      %v1167 = vadd.f32 %v1036, %v1135
      %v1168 = vadd.f32 %v1037, %v1136
      %v1169 = vadd.f32 %v1038, %v1137
      %v1170 = vadd.f32 %v1039, %v1138
      %v1171 = vadd.f32 %v1040, %v1139
      %v1172 = vadd.f32 %v1041, %v1140
      %v1173 = vadd.f32 %v1042, %v1141
      %v1174 = vadd.f32 %v1043, %v1142
      %v1175 = vadd.f32 %v1044, %v1143
      %v1176 = vadd.f32 %v1045, %v1144
      %v1177 = vadd.f32 %v1046, %v1145
      %v1178 = vadd.f32 %v1047, %v1146
      %v1179 = vadd.f32 %v1048, %v1147
      %1181 = vset.pattern.permute.xlu0 0
      %1182 = vperm.xlu0 %1181, %v507
      %v1183 = vpop.permute.xlu0 %1182
      %1186 = vset.pattern.permute.xlu0 0
      %1187 = vperm.xlu0 %1186, %v508
      %v1188 = vpop.permute.xlu0 %1187
      %v1190 = vmul.f32 %v1183, %v624
      %v1191 = vmul.f32 %v1183, %v628
      %v1192 = vmul.f32 %v1183, %v632
      %v1193 = vmul.f32 %v1183, %v636
      %v1194 = vmul.f32 %v1183, %v640
      %v1195 = vmul.f32 %v1183, %v644
      %v1196 = vmul.f32 %v1183, %v648
      %v1197 = vmul.f32 %v1183, %v652
      %v1198 = vmul.f32 %v1183, %v656
      %v1199 = vmul.f32 %v1188, %v624
      %v1200 = vmul.f32 %v1188, %v628
      %v1201 = vmul.f32 %v1188, %v632
      %v1202 = vmul.f32 %v1188, %v636
      %v1203 = vmul.f32 %v1188, %v640
      %v1204 = vmul.f32 %v1188, %v644
      %v1205 = vmul.f32 %v1188, %v648
      %v1206 = vmul.f32 %v1188, %v652
      %v1207 = vmul.f32 %v1188, %v656
      %1226 = vrot.lane.b32.xlu0 %v1190, 98
      %v1227 = vpop.permute.xlu0 %1226
      %1228 = vrot.lane.b32.xlu0 %v1191, 98
      %v1229 = vpop.permute.xlu0 %1228
      %1230 = vrot.lane.b32.xlu0 %v1192, 98
      %v1231 = vpop.permute.xlu0 %1230
      %1232 = vrot.lane.b32.xlu0 %v1193, 98
      %v1233 = vpop.permute.xlu0 %1232
      %1234 = vrot.lane.b32.xlu0 %v1194, 98
      %v1235 = vpop.permute.xlu0 %1234
      %1236 = vrot.lane.b32.xlu0 %v1195, 98
      %v1237 = vpop.permute.xlu0 %1236
      %1238 = vrot.lane.b32.xlu0 %v1196, 98
      %v1239 = vpop.permute.xlu0 %1238
      %1240 = vrot.lane.b32.xlu0 %v1197, 98
      %v1241 = vpop.permute.xlu0 %1240
      %1242 = vrot.lane.b32.xlu0 %v1198, 98
      %v1243 = vpop.permute.xlu0 %1242
      %1244 = vrot.lane.b32.xlu0 %v1199, 98
      %v1245 = vpop.permute.xlu0 %1244
      %1246 = vrot.lane.b32.xlu0 %v1200, 98
      %v1247 = vpop.permute.xlu0 %1246
      %1248 = vrot.lane.b32.xlu0 %v1201, 98
      %v1249 = vpop.permute.xlu0 %1248
      %1250 = vrot.lane.b32.xlu0 %v1202, 98
      %v1251 = vpop.permute.xlu0 %1250
      %1252 = vrot.lane.b32.xlu0 %v1203, 98
      %v1253 = vpop.permute.xlu0 %1252
      %1254 = vrot.lane.b32.xlu0 %v1204, 98
      %v1255 = vpop.permute.xlu0 %1254
      %1256 = vrot.lane.b32.xlu0 %v1205, 98
      %v1257 = vpop.permute.xlu0 %1256
      %1258 = vrot.lane.b32.xlu0 %v1206, 98
      %v1259 = vpop.permute.xlu0 %1258
      %1260 = vrot.lane.b32.xlu0 %v1207, 98
      %v1261 = vpop.permute.xlu0 %1260
      %vm1262 = vcmask 801792
      %v1263 = vsel %vm1262, %v1227, %v1229
      %v1264 = vsel %vm1262, %v1229, %v1231
      %v1265 = vsel %vm1262, %v1231, %v1233
      %v1266 = vsel %vm1262, %v1233, %v1235
      %v1267 = vsel %vm1262, %v1235, %v1237
      %v1268 = vsel %vm1262, %v1237, %v1239
      %v1269 = vsel %vm1262, %v1239, %v1241
      %v1270 = vsel %vm1262, %v1241, %v1243
      %v1271 = vsel %vm1262, %v1245, %v1247
      %v1272 = vsel %vm1262, %v1247, %v1249
      %v1273 = vsel %vm1262, %v1249, %v1251
      %v1274 = vsel %vm1262, %v1251, %v1253
      %v1275 = vsel %vm1262, %v1253, %v1255
      %v1276 = vsel %vm1262, %v1255, %v1257
      %v1277 = vsel %vm1262, %v1257, %v1259
      %v1278 = vsel %vm1262, %v1259, %v1261
      %v1295 = vadd.f32 %v1164, %v1263
      %v1296 = vadd.f32 %v1165, %v1264
      %v1297 = vadd.f32 %v1166, %v1265
      %v1298 = vadd.f32 %v1167, %v1266
      %v1299 = vadd.f32 %v1168, %v1267
      %v1300 = vadd.f32 %v1169, %v1268
      %v1301 = vadd.f32 %v1170, %v1269
      %v1302 = vadd.f32 %v1171, %v1270
      %v1303 = vadd.f32 %v1172, %v1271
      %v1304 = vadd.f32 %v1173, %v1272
      %v1305 = vadd.f32 %v1174, %v1273
      %v1306 = vadd.f32 %v1175, %v1274
      %v1307 = vadd.f32 %v1176, %v1275
      %v1308 = vadd.f32 %v1177, %v1276
      %v1309 = vadd.f32 %v1178, %v1277
      %v1310 = vadd.f32 %v1179, %v1278
      %1312 = vset.pattern.permute.xlu0 0
      %1313 = vperm.xlu0 %1312, %v509
      %v1314 = vpop.permute.xlu0 %1313
      %1317 = vset.pattern.permute.xlu0 0
      %1318 = vperm.xlu0 %1317, %v510
      %v1319 = vpop.permute.xlu0 %1318
      %v1321 = vmul.f32 %v1314, %v624
      %v1322 = vmul.f32 %v1314, %v628
      %v1323 = vmul.f32 %v1314, %v632
      %v1324 = vmul.f32 %v1314, %v636
      %v1325 = vmul.f32 %v1314, %v640
      %v1326 = vmul.f32 %v1314, %v644
      %v1327 = vmul.f32 %v1314, %v648
      %v1328 = vmul.f32 %v1314, %v652
      %v1329 = vmul.f32 %v1314, %v656
      %v1330 = vmul.f32 %v1319, %v624
      %v1331 = vmul.f32 %v1319, %v628
      %v1332 = vmul.f32 %v1319, %v632
      %v1333 = vmul.f32 %v1319, %v636
      %v1334 = vmul.f32 %v1319, %v640
      %v1335 = vmul.f32 %v1319, %v644
      %v1336 = vmul.f32 %v1319, %v648
      %v1337 = vmul.f32 %v1319, %v652
      %v1338 = vmul.f32 %v1319, %v656
      %1357 = vrot.lane.b32.xlu0 %v1321, 72
      %v1358 = vpop.permute.xlu0 %1357
      %1359 = vrot.lane.b32.xlu0 %v1322, 72
      %v1360 = vpop.permute.xlu0 %1359
      %1361 = vrot.lane.b32.xlu0 %v1323, 72
      %v1362 = vpop.permute.xlu0 %1361
      %1363 = vrot.lane.b32.xlu0 %v1324, 72
      %v1364 = vpop.permute.xlu0 %1363
      %1365 = vrot.lane.b32.xlu0 %v1325, 72
      %v1366 = vpop.permute.xlu0 %1365
      %1367 = vrot.lane.b32.xlu0 %v1326, 72
      %v1368 = vpop.permute.xlu0 %1367
      %1369 = vrot.lane.b32.xlu0 %v1327, 72
      %v1370 = vpop.permute.xlu0 %1369
      %1371 = vrot.lane.b32.xlu0 %v1328, 72
      %v1372 = vpop.permute.xlu0 %1371
      %1373 = vrot.lane.b32.xlu0 %v1329, 72
      %v1374 = vpop.permute.xlu0 %1373
      %1375 = vrot.lane.b32.xlu0 %v1330, 72
      %v1376 = vpop.permute.xlu0 %1375
      %1377 = vrot.lane.b32.xlu0 %v1331, 72
      %v1378 = vpop.permute.xlu0 %1377
      %1379 = vrot.lane.b32.xlu0 %v1332, 72
      %v1380 = vpop.permute.xlu0 %1379
      %1381 = vrot.lane.b32.xlu0 %v1333, 72
      %v1382 = vpop.permute.xlu0 %1381
      %1383 = vrot.lane.b32.xlu0 %v1334, 72
      %v1384 = vpop.permute.xlu0 %1383
      %1385 = vrot.lane.b32.xlu0 %v1335, 72
      %v1386 = vpop.permute.xlu0 %1385
      %1387 = vrot.lane.b32.xlu0 %v1336, 72
      %v1388 = vpop.permute.xlu0 %1387
      %1389 = vrot.lane.b32.xlu0 %v1337, 72
      %v1390 = vpop.permute.xlu0 %1389
      %1391 = vrot.lane.b32.xlu0 %v1338, 72
      %v1392 = vpop.permute.xlu0 %1391
      %vm1393 = vcmask 588800
      %v1394 = vsel %vm1393, %v1358, %v1360
      %v1395 = vsel %vm1393, %v1360, %v1362
      %v1396 = vsel %vm1393, %v1362, %v1364
      %v1397 = vsel %vm1393, %v1364, %v1366
      %v1398 = vsel %vm1393, %v1366, %v1368
      %v1399 = vsel %vm1393, %v1368, %v1370
      %v1400 = vsel %vm1393, %v1370, %v1372
      %v1401 = vsel %vm1393, %v1372, %v1374
      %v1402 = vsel %vm1393, %v1376, %v1378
      %v1403 = vsel %vm1393, %v1378, %v1380
      %v1404 = vsel %vm1393, %v1380, %v1382
      %v1405 = vsel %vm1393, %v1382, %v1384
      %v1406 = vsel %vm1393, %v1384, %v1386
      %v1407 = vsel %vm1393, %v1386, %v1388
      %v1408 = vsel %vm1393, %v1388, %v1390
      %v1409 = vsel %vm1393, %v1390, %v1392
      %v1426 = vadd.f32 %v1295, %v1394
      %v1427 = vadd.f32 %v1296, %v1395
      %v1428 = vadd.f32 %v1297, %v1396
      %v1429 = vadd.f32 %v1298, %v1397
      %v1430 = vadd.f32 %v1299, %v1398
      %v1431 = vadd.f32 %v1300, %v1399
      %v1432 = vadd.f32 %v1301, %v1400
      %v1433 = vadd.f32 %v1302, %v1401
      %v1434 = vadd.f32 %v1303, %v1402
      %v1435 = vadd.f32 %v1304, %v1403
      %v1436 = vadd.f32 %v1305, %v1404
      %v1437 = vadd.f32 %v1306, %v1405
      %v1438 = vadd.f32 %v1307, %v1406
      %v1439 = vadd.f32 %v1308, %v1407
      %v1440 = vadd.f32 %v1309, %v1408
      %v1441 = vadd.f32 %v1310, %v1409
      %1443 = vset.pattern.permute.xlu0 0
      %1444 = vperm.xlu0 %1443, %v511
      %v1445 = vpop.permute.xlu0 %1444
      %1448 = vset.pattern.permute.xlu0 0
      %1449 = vperm.xlu0 %1448, %v512
      %v1450 = vpop.permute.xlu0 %1449
      %v1452 = vmul.f32 %v1445, %v624
      %v1453 = vmul.f32 %v1445, %v628
      %v1454 = vmul.f32 %v1445, %v632
      %v1455 = vmul.f32 %v1445, %v636
      %v1456 = vmul.f32 %v1445, %v640
      %v1457 = vmul.f32 %v1445, %v644
      %v1458 = vmul.f32 %v1445, %v648
      %v1459 = vmul.f32 %v1445, %v652
      %v1460 = vmul.f32 %v1445, %v656
      %v1461 = vmul.f32 %v1450, %v624
      %v1462 = vmul.f32 %v1450, %v628
      %v1463 = vmul.f32 %v1450, %v632
      %v1464 = vmul.f32 %v1450, %v636
      %v1465 = vmul.f32 %v1450, %v640
      %v1466 = vmul.f32 %v1450, %v644
      %v1467 = vmul.f32 %v1450, %v648
      %v1468 = vmul.f32 %v1450, %v652
      %v1469 = vmul.f32 %v1450, %v656
      %1488 = vrot.lane.b32.xlu0 %v1452, 71
      %v1489 = vpop.permute.xlu0 %1488
      %1490 = vrot.lane.b32.xlu0 %v1453, 71
      %v1491 = vpop.permute.xlu0 %1490
      %1492 = vrot.lane.b32.xlu0 %v1454, 71
      %v1493 = vpop.permute.xlu0 %1492
      %1494 = vrot.lane.b32.xlu0 %v1455, 71
      %v1495 = vpop.permute.xlu0 %1494
      %1496 = vrot.lane.b32.xlu0 %v1456, 71
      %v1497 = vpop.permute.xlu0 %1496
      %1498 = vrot.lane.b32.xlu0 %v1457, 71
      %v1499 = vpop.permute.xlu0 %1498
      %1500 = vrot.lane.b32.xlu0 %v1458, 71
      %v1501 = vpop.permute.xlu0 %1500
      %1502 = vrot.lane.b32.xlu0 %v1459, 71
      %v1503 = vpop.permute.xlu0 %1502
      %1504 = vrot.lane.b32.xlu0 %v1460, 71
      %v1505 = vpop.permute.xlu0 %1504
      %1506 = vrot.lane.b32.xlu0 %v1461, 71
      %v1507 = vpop.permute.xlu0 %1506
      %1508 = vrot.lane.b32.xlu0 %v1462, 71
      %v1509 = vpop.permute.xlu0 %1508
      %1510 = vrot.lane.b32.xlu0 %v1463, 71
      %v1511 = vpop.permute.xlu0 %1510
      %1512 = vrot.lane.b32.xlu0 %v1464, 71
      %v1513 = vpop.permute.xlu0 %1512
      %1514 = vrot.lane.b32.xlu0 %v1465, 71
      %v1515 = vpop.permute.xlu0 %1514
      %1516 = vrot.lane.b32.xlu0 %v1466, 71
      %v1517 = vpop.permute.xlu0 %1516
      %1518 = vrot.lane.b32.xlu0 %v1467, 71
      %v1519 = vpop.permute.xlu0 %1518
      %1520 = vrot.lane.b32.xlu0 %v1468, 71
      %v1521 = vpop.permute.xlu0 %1520
      %1522 = vrot.lane.b32.xlu0 %v1469, 71
      %v1523 = vpop.permute.xlu0 %1522
      %vm1524 = vcmask 580608
      %v1525 = vsel %vm1524, %v1489, %v1491
      %v1526 = vsel %vm1524, %v1491, %v1493
      %v1527 = vsel %vm1524, %v1493, %v1495
      %v1528 = vsel %vm1524, %v1495, %v1497
      %v1529 = vsel %vm1524, %v1497, %v1499
      %v1530 = vsel %vm1524, %v1499, %v1501
      %v1531 = vsel %vm1524, %v1501, %v1503
      %v1532 = vsel %vm1524, %v1503, %v1505
      %v1533 = vsel %vm1524, %v1507, %v1509
      %v1534 = vsel %vm1524, %v1509, %v1511
      %v1535 = vsel %vm1524, %v1511, %v1513
      %v1536 = vsel %vm1524, %v1513, %v1515
      %v1537 = vsel %vm1524, %v1515, %v1517
      %v1538 = vsel %vm1524, %v1517, %v1519
      %v1539 = vsel %vm1524, %v1519, %v1521
      %v1540 = vsel %vm1524, %v1521, %v1523
      %v1557 = vadd.f32 %v1426, %v1525
      %v1558 = vadd.f32 %v1427, %v1526
      %v1559 = vadd.f32 %v1428, %v1527
      %v1560 = vadd.f32 %v1429, %v1528
      %v1561 = vadd.f32 %v1430, %v1529
      %v1562 = vadd.f32 %v1431, %v1530
      %v1563 = vadd.f32 %v1432, %v1531
      %v1564 = vadd.f32 %v1433, %v1532
      %v1565 = vadd.f32 %v1434, %v1533
      %v1566 = vadd.f32 %v1435, %v1534
      %v1567 = vadd.f32 %v1436, %v1535
      %v1568 = vadd.f32 %v1437, %v1536
      %v1569 = vadd.f32 %v1438, %v1537
      %v1570 = vadd.f32 %v1439, %v1538
      %v1571 = vadd.f32 %v1440, %v1539
      %v1572 = vadd.f32 %v1441, %v1540
      %1574 = vset.pattern.permute.xlu0 0
      %1575 = vperm.xlu0 %1574, %v513
      %v1576 = vpop.permute.xlu0 %1575
      %1579 = vset.pattern.permute.xlu0 0
      %1580 = vperm.xlu0 %1579, %v514
      %v1581 = vpop.permute.xlu0 %1580
      %v1583 = vmul.f32 %v1576, %v624
      %v1584 = vmul.f32 %v1576, %v628
      %v1585 = vmul.f32 %v1576, %v632
      %v1586 = vmul.f32 %v1576, %v636
      %v1587 = vmul.f32 %v1576, %v640
      %v1588 = vmul.f32 %v1576, %v644
      %v1589 = vmul.f32 %v1576, %v648
      %v1590 = vmul.f32 %v1576, %v652
      %v1591 = vmul.f32 %v1576, %v656
      %v1592 = vmul.f32 %v1581, %v624
      %v1593 = vmul.f32 %v1581, %v628
      %v1594 = vmul.f32 %v1581, %v632
      %v1595 = vmul.f32 %v1581, %v636
      %v1596 = vmul.f32 %v1581, %v640
      %v1597 = vmul.f32 %v1581, %v644
      %v1598 = vmul.f32 %v1581, %v648
      %v1599 = vmul.f32 %v1581, %v652
      %v1600 = vmul.f32 %v1581, %v656
      %1619 = vrot.lane.b32.xlu0 %v1583, 70
      %v1620 = vpop.permute.xlu0 %1619
      %1621 = vrot.lane.b32.xlu0 %v1584, 70
      %v1622 = vpop.permute.xlu0 %1621
      %1623 = vrot.lane.b32.xlu0 %v1585, 70
      %v1624 = vpop.permute.xlu0 %1623
      %1625 = vrot.lane.b32.xlu0 %v1586, 70
      %v1626 = vpop.permute.xlu0 %1625
      %1627 = vrot.lane.b32.xlu0 %v1587, 70
      %v1628 = vpop.permute.xlu0 %1627
      %1629 = vrot.lane.b32.xlu0 %v1588, 70
      %v1630 = vpop.permute.xlu0 %1629
      %1631 = vrot.lane.b32.xlu0 %v1589, 70
      %v1632 = vpop.permute.xlu0 %1631
      %1633 = vrot.lane.b32.xlu0 %v1590, 70
      %v1634 = vpop.permute.xlu0 %1633
      %1635 = vrot.lane.b32.xlu0 %v1591, 70
      %v1636 = vpop.permute.xlu0 %1635
      %1637 = vrot.lane.b32.xlu0 %v1592, 70
      %v1638 = vpop.permute.xlu0 %1637
      %1639 = vrot.lane.b32.xlu0 %v1593, 70
      %v1640 = vpop.permute.xlu0 %1639
      %1641 = vrot.lane.b32.xlu0 %v1594, 70
      %v1642 = vpop.permute.xlu0 %1641
      %1643 = vrot.lane.b32.xlu0 %v1595, 70
      %v1644 = vpop.permute.xlu0 %1643
      %1645 = vrot.lane.b32.xlu0 %v1596, 70
      %v1646 = vpop.permute.xlu0 %1645
      %1647 = vrot.lane.b32.xlu0 %v1597, 70
      %v1648 = vpop.permute.xlu0 %1647
      %1649 = vrot.lane.b32.xlu0 %v1598, 70
      %v1650 = vpop.permute.xlu0 %1649
      %1651 = vrot.lane.b32.xlu0 %v1599, 70
      %v1652 = vpop.permute.xlu0 %1651
      %1653 = vrot.lane.b32.xlu0 %v1600, 70
      %v1654 = vpop.permute.xlu0 %1653
      %vm1655 = vcmask 572416
      %v1656 = vsel %vm1655, %v1620, %v1622
      %v1657 = vsel %vm1655, %v1622, %v1624
      %v1658 = vsel %vm1655, %v1624, %v1626
      %v1659 = vsel %vm1655, %v1626, %v1628
      %v1660 = vsel %vm1655, %v1628, %v1630
      %v1661 = vsel %vm1655, %v1630, %v1632
      %v1662 = vsel %vm1655, %v1632, %v1634
      %v1663 = vsel %vm1655, %v1634, %v1636
      %v1664 = vsel %vm1655, %v1638, %v1640
      %v1665 = vsel %vm1655, %v1640, %v1642
      %v1666 = vsel %vm1655, %v1642, %v1644
      %v1667 = vsel %vm1655, %v1644, %v1646
      %v1668 = vsel %vm1655, %v1646, %v1648
      %v1669 = vsel %vm1655, %v1648, %v1650
      %v1670 = vsel %vm1655, %v1650, %v1652
      %v1671 = vsel %vm1655, %v1652, %v1654
      %v1688 = vadd.f32 %v1557, %v1656
      %v1689 = vadd.f32 %v1558, %v1657
      %v1690 = vadd.f32 %v1559, %v1658
      %v1691 = vadd.f32 %v1560, %v1659
      %v1692 = vadd.f32 %v1561, %v1660
      %v1693 = vadd.f32 %v1562, %v1661
      %v1694 = vadd.f32 %v1563, %v1662
      %v1695 = vadd.f32 %v1564, %v1663
      %v1696 = vadd.f32 %v1565, %v1664
      %v1697 = vadd.f32 %v1566, %v1665
      %v1698 = vadd.f32 %v1567, %v1666
      %v1699 = vadd.f32 %v1568, %v1667
      %v1700 = vadd.f32 %v1569, %v1668
      %v1701 = vadd.f32 %v1570, %v1669
      %v1702 = vadd.f32 %v1571, %v1670
      %v1703 = vadd.f32 %v1572, %v1671
      %v1704 = vmax.f32 %v1688, 0.0
      %v1705 = vmax.f32 %v1689, 0.0
      %v1706 = vmax.f32 %v1690, 0.0
      %v1707 = vmax.f32 %v1691, 0.0
      %v1708 = vmax.f32 %v1692, 0.0
      %v1709 = vmax.f32 %v1693, 0.0
      %v1710 = vmax.f32 %v1694, 0.0
      %v1711 = vmax.f32 %v1695, 0.0
      %v1712 = vmax.f32 %v1696, 0.0
      %v1713 = vmax.f32 %v1697, 0.0
      %v1714 = vmax.f32 %v1698, 0.0
      %v1715 = vmax.f32 %v1699, 0.0
      %v1716 = vmax.f32 %v1700, 0.0
      %v1717 = vmax.f32 %v1701, 0.0
      %v1718 = vmax.f32 %v1702, 0.0
      %v1719 = vmax.f32 %v1703, 0.0
      %1721 = vset.pattern.permute.xlu0 0
      %1722 = vperm.xlu0 %1721, %v438
      %v1723 = vpop.permute.xlu0 %1722
      %1726 = vset.pattern.permute.xlu0 0
      %1727 = vperm.xlu0 %1726, %v439
      %v1728 = vpop.permute.xlu0 %1727
      %v1730 = vmul.f32 %v1704, %v1723
      %v1731 = vmul.f32 %v1705, %v1723
      %v1732 = vmul.f32 %v1706, %v1723
      %v1733 = vmul.f32 %v1707, %v1723
      %v1734 = vmul.f32 %v1708, %v1723
      %v1735 = vmul.f32 %v1709, %v1723
      %v1736 = vmul.f32 %v1710, %v1723
      %v1737 = vmul.f32 %v1711, %v1723
      %v1738 = vmul.f32 %v1712, %v1728
      %v1739 = vmul.f32 %v1713, %v1728
      %v1740 = vmul.f32 %v1714, %v1728
      %v1741 = vmul.f32 %v1715, %v1728
      %v1742 = vmul.f32 %v1716, %v1728
      %v1743 = vmul.f32 %v1717, %v1728
      %v1744 = vmul.f32 %v1718, %v1728
      %v1745 = vmul.f32 %v1719, %v1728
      %1747 = vset.pattern.permute.xlu0 0
      %1748 = vperm.xlu0 %1747, %v452
      %v1749 = vpop.permute.xlu0 %1748
      %1752 = vset.pattern.permute.xlu0 0
      %1753 = vperm.xlu0 %1752, %v453
      %v1754 = vpop.permute.xlu0 %1753
      %v1756 = vadd.f32 %v1730, %v1749
      %v1757 = vadd.f32 %v1731, %v1749
      %v1758 = vadd.f32 %v1732, %v1749
      %v1759 = vadd.f32 %v1733, %v1749
      %v1760 = vadd.f32 %v1734, %v1749
      %v1761 = vadd.f32 %v1735, %v1749
      %v1762 = vadd.f32 %v1736, %v1749
      %v1763 = vadd.f32 %v1737, %v1749
      %v1764 = vadd.f32 %v1738, %v1754
      %v1765 = vadd.f32 %v1739, %v1754
      %v1766 = vadd.f32 %v1740, %v1754
      %v1767 = vadd.f32 %v1741, %v1754
      %v1768 = vadd.f32 %v1742, %v1754
      %v1769 = vadd.f32 %v1743, %v1754
      %v1770 = vadd.f32 %v1744, %v1754
      %v1771 = vadd.f32 %v1745, %v1754
      %v1772 = vld [vmem:[%s2] sm:$0xff]
      %v1773 = vld [vmem:[%s2 + $0x8] sm:$0xff]
      %v1774 = vld [vmem:[%s2 + $0x10] sm:$0xf]
      %v1775 = vld [vmem:[%s2 + $0x18] sm:$0xff]
      %v1776 = vld [vmem:[%s2 + $0x20] sm:$0xff]
      %v1777 = vld [vmem:[%s2 + $0x28] sm:$0xf]
      %v1778 = vld [vmem:[%s2 + $0x30] sm:$0xff]
      %v1779 = vld [vmem:[%s2 + $0x38] sm:$0xff]
      %v1780 = vld [vmem:[%s2 + $0x40] sm:$0xf]
      %v1781 = vld [vmem:[%s2 + $0x48] sm:$0xff]
      %v1782 = vld [vmem:[%s2 + $0x50] sm:$0xff]
      %v1783 = vld [vmem:[%s2 + $0x58] sm:$0xf]
      %v1784 = vld [vmem:[%s2 + $0x60] sm:$0xff]
      %v1785 = vld [vmem:[%s2 + $0x68] sm:$0xff]
      %v1786 = vld [vmem:[%s2 + $0x70] sm:$0xf]
      %v1787 = vld [vmem:[%s2 + $0x78] sm:$0xff]
      %v1788 = vld [vmem:[%s2 + $0x80] sm:$0xff]
      %v1789 = vld [vmem:[%s2 + $0x88] sm:$0xf]
      %v1790 = vld [vmem:[%s2 + $0x90] sm:$0xff]
      %v1791 = vld [vmem:[%s2 + $0x98] sm:$0xff]
      %v1792 = vld [vmem:[%s2 + $0xa0] sm:$0xf]
      %v1793 = vld [vmem:[%s2 + $0xa8] sm:$0xff]
      %v1794 = vld [vmem:[%s2 + $0xb0] sm:$0xff]
      %v1795 = vld [vmem:[%s2 + $0xb8] sm:$0xf]
      %v1796 = vld [vmem:[%s2 + $0xc0] sm:$0xff]
      %v1797 = vld [vmem:[%s2 + $0xc8] sm:$0xff]
      %v1798 = vld [vmem:[%s2 + $0xd0] sm:$0xf]
      %1799 = vst [vmem:[#allocation2 + $0x8] sm:$0xff] %v1756
      %1800 = vst [vmem:[#allocation2 + $0x10] sm:$0xff] %v1757
      %1801 = vst [vmem:[#allocation2 + $0x18] sm:$0xff] %v1758
      %1802 = vst [vmem:[#allocation2 + $0x20] sm:$0xff] %v1759
      %1803 = vst [vmem:[#allocation2 + $0x28] sm:$0xff] %v1760
      %1804 = vst [vmem:[#allocation2 + $0x30] sm:$0xff] %v1761
      %1805 = vst [vmem:[#allocation2 + $0x38] sm:$0xff] %v1762
      %1806 = vst [vmem:[#allocation2 + $0x40] sm:$0xff] %v1763
      %1807 = vst [vmem:[#allocation2 + $0x58] sm:$0x3] %v1764
      %1808 = vst [vmem:[#allocation2 + $0x60] sm:$0x3] %v1765
      %1809 = vst [vmem:[#allocation2 + $0x68] sm:$0x3] %v1766
      %1810 = vst [vmem:[#allocation2 + $0x70] sm:$0x3] %v1767
      %1811 = vst [vmem:[#allocation2 + $0x78] sm:$0x3] %v1768
      %1812 = vst [vmem:[#allocation2 + $0x80] sm:$0x3] %v1769
      %1813 = vst [vmem:[#allocation2 + $0x88] sm:$0x3] %v1770
      %1814 = vst [vmem:[#allocation2 + $0x90] sm:$0x3] %v1771
      %v1815 = vld [vmem:[#allocation2 + $0x8] sm:$0xff]
      %v1816 = vld [vmem:[#allocation2 + $0x10] sm:$0xff]
      %v1817 = vld [vmem:[#allocation2 + $0x18] sm:$0xff]
      %v1818 = vld [vmem:[#allocation2 + $0x20] sm:$0xff]
      %v1819 = vld [vmem:[#allocation2 + $0x28] sm:$0xff]
      %v1820 = vld [vmem:[#allocation2 + $0x30] sm:$0xff]
      %v1821 = vld [vmem:[#allocation2 + $0x38] sm:$0xff]
      %v1822 = vld [vmem:[#allocation2 + $0x40] sm:$0xff]
      %v1823 = vld [vmem:[#allocation2 + $0x58] sm:$0x3]
      %v1824 = vld [vmem:[#allocation2 + $0x60] sm:$0x3]
      %v1825 = vld [vmem:[#allocation2 + $0x68] sm:$0x3]
      %v1826 = vld [vmem:[#allocation2 + $0x70] sm:$0x3]
      %v1827 = vld [vmem:[#allocation2 + $0x78] sm:$0x3]
      %v1828 = vld [vmem:[#allocation2 + $0x80] sm:$0x3]
      %v1829 = vld [vmem:[#allocation2 + $0x88] sm:$0x3]
      %v1830 = vld [vmem:[#allocation2 + $0x90] sm:$0x3]
      %v1831 = vld [vmem:[#allocation2 + $0x48] sm:$0xff]
      %v1832 = vld [vmem:[#allocation2 + $0x98] sm:$0x3]
      %1851 = vrot.lane.b32.xlu0 %v1815, 127
      %v1852 = vpop.permute.xlu0 %1851
      %1853 = vrot.lane.b32.xlu0 %v1816, 127
      %v1854 = vpop.permute.xlu0 %1853
      %1855 = vrot.lane.b32.xlu0 %v1817, 127
      %v1856 = vpop.permute.xlu0 %1855
      %1857 = vrot.lane.b32.xlu0 %v1818, 127
      %v1858 = vpop.permute.xlu0 %1857
      %1859 = vrot.lane.b32.xlu0 %v1819, 127
      %v1860 = vpop.permute.xlu0 %1859
      %1861 = vrot.lane.b32.xlu0 %v1820, 127
      %v1862 = vpop.permute.xlu0 %1861
      %1863 = vrot.lane.b32.xlu0 %v1821, 127
      %v1864 = vpop.permute.xlu0 %1863
      %1865 = vrot.lane.b32.xlu0 %v1822, 127
      %v1866 = vpop.permute.xlu0 %1865
      %1867 = vrot.lane.b32.xlu0 %v1831, 127
      %v1868 = vpop.permute.xlu0 %1867
      %1869 = vrot.lane.b32.xlu0 %v1823, 127
      %v1870 = vpop.permute.xlu0 %1869
      %1871 = vrot.lane.b32.xlu0 %v1824, 127
      %v1872 = vpop.permute.xlu0 %1871
      %1873 = vrot.lane.b32.xlu0 %v1825, 127
      %v1874 = vpop.permute.xlu0 %1873
      %1875 = vrot.lane.b32.xlu0 %v1826, 127
      %v1876 = vpop.permute.xlu0 %1875
      %1877 = vrot.lane.b32.xlu0 %v1827, 127
      %v1878 = vpop.permute.xlu0 %1877
      %1879 = vrot.lane.b32.xlu0 %v1828, 127
      %v1880 = vpop.permute.xlu0 %1879
      %1881 = vrot.lane.b32.xlu0 %v1829, 127
      %v1882 = vpop.permute.xlu0 %1881
      %1883 = vrot.lane.b32.xlu0 %v1830, 127
      %v1884 = vpop.permute.xlu0 %1883
      %1885 = vrot.lane.b32.xlu0 %v1832, 127
      %v1886 = vpop.permute.xlu0 %1885
      %v1887 = vsel %vm738, %v1852, %v1854
      %v1888 = vsel %vm738, %v1854, %v1856
      %v1889 = vsel %vm738, %v1856, %v1858
      %v1890 = vsel %vm738, %v1858, %v1860
      %v1891 = vsel %vm738, %v1860, %v1862
      %v1892 = vsel %vm738, %v1862, %v1864
      %v1893 = vsel %vm738, %v1864, %v1866
      %v1894 = vsel %vm738, %v1866, %v1868
      %v1895 = vsel %vm738, %v1870, %v1872
      %v1896 = vsel %vm738, %v1872, %v1874
      %v1897 = vsel %vm738, %v1874, %v1876
      %v1898 = vsel %vm738, %v1876, %v1878
      %v1899 = vsel %vm738, %v1878, %v1880
      %v1900 = vsel %vm738, %v1880, %v1882
      %v1901 = vsel %vm738, %v1882, %v1884
      %v1902 = vsel %vm738, %v1884, %v1886
      %vm1911 = vcmask 80896
      %v1913 = vsel %vm1911, %v1775, 0
      %v1916 = vsel %vm1911, %v1776, 0
      %v1919 = vsel %vm1911, %v1777, 0
      %vm1921 = vcmask 1041408
      %v1922 = vsel %vm1921, %v1895, 0
      %v1924 = vsel %vm1921, %v1896, 0
      %v1926 = vsel %vm1921, %v1897, 0
      %v1928 = vsel %vm1921, %v1898, 0
      %v1930 = vsel %vm1921, %v1899, 0
      %v1932 = vsel %vm1921, %v1900, 0
      %v1934 = vsel %vm1921, %v1901, 0
      %v1936 = vsel %vm1921, %v1902, 0
      %1938 = vmatprep.subr.mxu0 0.0
      %1939 = vmatpush1.msra.mxu0 0.0
      %1940 = vmatprep.subr.mxu0 0.0
      %1941 = vmatpush1.msra.mxu0 0.0
      %1942 = vmatprep.subr.mxu0 0.0
      %1943 = vmatpush1.msra.mxu0 0.0
      %1944 = vmatprep.subr.mxu0 0.0
      %1945 = vmatpush1.msra.mxu0 0.0
      %1946 = vmatprep.subr.mxu0 0.0
      %1947 = vmatpush1.msra.mxu0 0.0
      %1948 = vmatprep.subr.mxu0 0.0
      %1949 = vmatpush1.msra.mxu0 0.0
      %1950 = vmatprep.subr.mxu0 0.0
      %1951 = vmatpush1.msra.mxu0 0.0
      %1952 = vmatprep.subr.mxu0 0.0
      %1953 = vmatpush1.msra.mxu0 0.0
      %1954 = vmatprep.subr.mxu0 0.0
      %1955 = vmatpush1.msra.mxu0 0.0
      %1956 = vmatprep.subr.mxu0 0.0
      %1957 = vmatpush1.msra.mxu0 0.0
      %1958 = vmatprep.subr.mxu0 0.0
      %1959 = vmatpush1.msra.mxu0 0.0
      %1960 = vmatprep.subr.mxu0 0.0
      %1961 = vmatpush1.msra.mxu0 0.0
      %1962 = vmatprep.subr.mxu0 0.0
      %1963 = vmatpush1.msra.mxu0 0.0
      %1964 = vmatprep.subr.mxu0 0.0
      %1965 = vmatpush1.msra.mxu0 0.0
      %1966 = vmatprep.subr.mxu0 %v1924
      %1967 = vmatpush1.msra.mxu0 %v1922
      %1968 = vmatprep.subr.mxu0 %v1888
      %1969 = vmatpush1.msra.mxu0 %v1887
      %1970 = vmatprep.subr.mxu0 0.0
      %1971 = vmatpush2.msra.mxu0 0.0
      %1972 = vmatprep.subr.mxu0 0.0
      %1973 = vmatpush2.msra.mxu0 0.0
      %1974 = vmatprep.subr.mxu0 0.0
      %1975 = vmatpush2.msra.mxu0 0.0
      %1976 = vmatprep.subr.mxu0 0.0
      %1977 = vmatpush2.msra.mxu0 0.0
      %1978 = vmatprep.subr.mxu0 0.0
      %1979 = vmatpush2.msra.mxu0 0.0
      %1980 = vmatprep.subr.mxu0 0.0
      %1981 = vmatpush2.msra.mxu0 0.0
      %1982 = vmatprep.subr.mxu0 0.0
      %1983 = vmatpush2.msra.mxu0 0.0
      %1984 = vmatprep.subr.mxu0 0.0
      %1985 = vmatpush2.msra.mxu0 0.0
      %1986 = vmatprep.subr.mxu0 0.0
      %1987 = vmatpush2.msra.mxu0 0.0
      %1988 = vmatprep.subr.mxu0 0.0
      %1989 = vmatpush2.msra.mxu0 0.0
      %1990 = vmatprep.subr.mxu0 0.0
      %1991 = vmatpush2.msra.mxu0 0.0
      %1992 = vmatprep.subr.mxu0 0.0
      %1993 = vmatpush2.msra.mxu0 0.0
      %1994 = vmatprep.subr.mxu0 0.0
      %1995 = vmatpush2.msra.mxu0 0.0
      %1996 = vmatprep.subr.mxu0 0.0
      %1997 = vmatpush2.msra.mxu0 0.0
      %1998 = vmatprep.subr.mxu0 0.0
      %1999 = vmatpush2.msra.mxu0 0.0
      %2000 = vmatprep.subr.mxu0 0.0
      %2001 = vmatpush2.msra.mxu0 0.0
      %2002 = vmatprep.mubr.f32.mxu0 0.0
      %2003 = vmatmul.mubr.f32.gmra.mxu0 %v1913
      %v2004 = vpop.f32.mrf.mxu0
      %v2005 = vadd.f32 0.0, %v2004
      %v2006 = vpop.f32.mrf.mxu0
      %v2007 = vadd.f32 0.0, %v2006
      %2008 = vmatprep.mubr.f32.mxu0 0.0
      %2009 = vmatmul.mubr.f32.gmra.mxu0 %v1916
      %v2010 = vpop.f32.mrf.mxu0
      %v2011 = vadd.f32 0.0, %v2010
      %v2012 = vpop.f32.mrf.mxu0
      %v2013 = vadd.f32 0.0, %v2012
      %2014 = vmatprep.mubr.f32.mxu0 0.0
      %2015 = vmatmul.mubr.f32.gmra.mxu0 %v1919
      %v2016 = vpop.f32.mrf.mxu0
      %v2017 = vadd.f32 0.0, %v2016
      %v2018 = vpop.f32.mrf.mxu0
      %v2019 = vadd.f32 0.0, %v2018
      %2020 = vdwg.mxu0
      %2021 = vmatprep.subr.mxu0 0.0
      %2022 = vmatpush1.msra.mxu0 0.0
      %2023 = vmatprep.subr.mxu0 0.0
      %2024 = vmatpush1.msra.mxu0 0.0
      %2025 = vmatprep.subr.mxu0 0.0
      %2026 = vmatpush1.msra.mxu0 0.0
      %2027 = vmatprep.subr.mxu0 0.0
      %2028 = vmatpush1.msra.mxu0 0.0
      %2029 = vmatprep.subr.mxu0 0.0
      %2030 = vmatpush1.msra.mxu0 0.0
      %2031 = vmatprep.subr.mxu0 0.0
      %2032 = vmatpush1.msra.mxu0 0.0
      %2033 = vmatprep.subr.mxu0 0.0
      %2034 = vmatpush1.msra.mxu0 0.0
      %2035 = vmatprep.subr.mxu0 0.0
      %2036 = vmatpush1.msra.mxu0 0.0
      %2037 = vmatprep.subr.mxu0 0.0
      %2038 = vmatpush1.msra.mxu0 0.0
      %2039 = vmatprep.subr.mxu0 0.0
      %2040 = vmatpush1.msra.mxu0 0.0
      %2041 = vmatprep.subr.mxu0 0.0
      %2042 = vmatpush1.msra.mxu0 0.0
      %2043 = vmatprep.subr.mxu0 0.0
      %2044 = vmatpush1.msra.mxu0 0.0
      %2045 = vmatprep.subr.mxu0 0.0
      %2046 = vmatpush1.msra.mxu0 0.0
      %2047 = vmatprep.subr.mxu0 0.0
      %2048 = vmatpush1.msra.mxu0 0.0
      %2049 = vmatprep.subr.mxu0 %v1928
      %2050 = vmatpush1.msra.mxu0 %v1926
      %2051 = vmatprep.subr.mxu0 %v1890
      %2052 = vmatpush1.msra.mxu0 %v1889
      %2053 = vmatprep.subr.mxu0 0.0
      %2054 = vmatpush2.msra.mxu0 0.0
      %2055 = vmatprep.subr.mxu0 0.0
      %2056 = vmatpush2.msra.mxu0 0.0
      %2057 = vmatprep.subr.mxu0 0.0
      %2058 = vmatpush2.msra.mxu0 0.0
      %2059 = vmatprep.subr.mxu0 0.0
      %2060 = vmatpush2.msra.mxu0 0.0
      %2061 = vmatprep.subr.mxu0 0.0
      %2062 = vmatpush2.msra.mxu0 0.0
      %2063 = vmatprep.subr.mxu0 0.0
      %2064 = vmatpush2.msra.mxu0 0.0
      %2065 = vmatprep.subr.mxu0 0.0
      %2066 = vmatpush2.msra.mxu0 0.0
      %2067 = vmatprep.subr.mxu0 0.0
      %2068 = vmatpush2.msra.mxu0 0.0
      %2069 = vmatprep.subr.mxu0 0.0
      %2070 = vmatpush2.msra.mxu0 0.0
      %2071 = vmatprep.subr.mxu0 0.0
      %2072 = vmatpush2.msra.mxu0 0.0
      %2073 = vmatprep.subr.mxu0 0.0
      %2074 = vmatpush2.msra.mxu0 0.0
      %2075 = vmatprep.subr.mxu0 0.0
      %2076 = vmatpush2.msra.mxu0 0.0
      %2077 = vmatprep.subr.mxu0 0.0
      %2078 = vmatpush2.msra.mxu0 0.0
      %2079 = vmatprep.subr.mxu0 0.0
      %2080 = vmatpush2.msra.mxu0 0.0
      %2081 = vmatprep.subr.mxu0 0.0
      %2082 = vmatpush2.msra.mxu0 0.0
      %2083 = vmatprep.subr.mxu0 0.0
      %2084 = vmatpush2.msra.mxu0 0.0
      %2085 = vmatprep.mubr.f32.mxu0 0.0
      %2086 = vmatmul.mubr.f32.gmra.mxu0 %v1913
      %v2087 = vpop.f32.mrf.mxu0
      %v2088 = vadd.f32 0.0, %v2087
      %v2089 = vpop.f32.mrf.mxu0
      %v2090 = vadd.f32 0.0, %v2089
      %2091 = vmatprep.mubr.f32.mxu0 0.0
      %2092 = vmatmul.mubr.f32.gmra.mxu0 %v1916
      %v2093 = vpop.f32.mrf.mxu0
      %v2094 = vadd.f32 0.0, %v2093
      %v2095 = vpop.f32.mrf.mxu0
      %v2096 = vadd.f32 0.0, %v2095
      %2097 = vmatprep.mubr.f32.mxu0 0.0
      %2098 = vmatmul.mubr.f32.gmra.mxu0 %v1919
      %v2099 = vpop.f32.mrf.mxu0
      %v2100 = vadd.f32 0.0, %v2099
      %v2101 = vpop.f32.mrf.mxu0
      %v2102 = vadd.f32 0.0, %v2101
      %2103 = vdwg.mxu0
      %2104 = vmatprep.subr.mxu0 0.0
      %2105 = vmatpush1.msra.mxu0 0.0
      %2106 = vmatprep.subr.mxu0 0.0
      %2107 = vmatpush1.msra.mxu0 0.0
      %2108 = vmatprep.subr.mxu0 0.0
      %2109 = vmatpush1.msra.mxu0 0.0
      %2110 = vmatprep.subr.mxu0 0.0
      %2111 = vmatpush1.msra.mxu0 0.0
      %2112 = vmatprep.subr.mxu0 0.0
      %2113 = vmatpush1.msra.mxu0 0.0
      %2114 = vmatprep.subr.mxu0 0.0
      %2115 = vmatpush1.msra.mxu0 0.0
      %2116 = vmatprep.subr.mxu0 0.0
      %2117 = vmatpush1.msra.mxu0 0.0
      %2118 = vmatprep.subr.mxu0 0.0
      %2119 = vmatpush1.msra.mxu0 0.0
      %2120 = vmatprep.subr.mxu0 0.0
      %2121 = vmatpush1.msra.mxu0 0.0
      %2122 = vmatprep.subr.mxu0 0.0
      %2123 = vmatpush1.msra.mxu0 0.0
      %2124 = vmatprep.subr.mxu0 0.0
      %2125 = vmatpush1.msra.mxu0 0.0
      %2126 = vmatprep.subr.mxu0 0.0
      %2127 = vmatpush1.msra.mxu0 0.0
      %2128 = vmatprep.subr.mxu0 0.0
      %2129 = vmatpush1.msra.mxu0 0.0
      %2130 = vmatprep.subr.mxu0 0.0
      %2131 = vmatpush1.msra.mxu0 0.0
      %2132 = vmatprep.subr.mxu0 %v1932
      %2133 = vmatpush1.msra.mxu0 %v1930
      %2134 = vmatprep.subr.mxu0 %v1892
      %2135 = vmatpush1.msra.mxu0 %v1891
      %2136 = vmatprep.subr.mxu0 0.0
      %2137 = vmatpush2.msra.mxu0 0.0
      %2138 = vmatprep.subr.mxu0 0.0
      %2139 = vmatpush2.msra.mxu0 0.0
      %2140 = vmatprep.subr.mxu0 0.0
      %2141 = vmatpush2.msra.mxu0 0.0
      %2142 = vmatprep.subr.mxu0 0.0
      %2143 = vmatpush2.msra.mxu0 0.0
      %2144 = vmatprep.subr.mxu0 0.0
      %2145 = vmatpush2.msra.mxu0 0.0
      %2146 = vmatprep.subr.mxu0 0.0
      %2147 = vmatpush2.msra.mxu0 0.0
      %2148 = vmatprep.subr.mxu0 0.0
      %2149 = vmatpush2.msra.mxu0 0.0
      %2150 = vmatprep.subr.mxu0 0.0
      %2151 = vmatpush2.msra.mxu0 0.0
      %2152 = vmatprep.subr.mxu0 0.0
      %2153 = vmatpush2.msra.mxu0 0.0
      %2154 = vmatprep.subr.mxu0 0.0
      %2155 = vmatpush2.msra.mxu0 0.0
      %2156 = vmatprep.subr.mxu0 0.0
      %2157 = vmatpush2.msra.mxu0 0.0
      %2158 = vmatprep.subr.mxu0 0.0
      %2159 = vmatpush2.msra.mxu0 0.0
      %2160 = vmatprep.subr.mxu0 0.0
      %2161 = vmatpush2.msra.mxu0 0.0
      %2162 = vmatprep.subr.mxu0 0.0
      %2163 = vmatpush2.msra.mxu0 0.0
      %2164 = vmatprep.subr.mxu0 0.0
      %2165 = vmatpush2.msra.mxu0 0.0
      %2166 = vmatprep.subr.mxu0 0.0
      %2167 = vmatpush2.msra.mxu0 0.0
      %2168 = vmatprep.mubr.f32.mxu0 0.0
      %2169 = vmatmul.mubr.f32.gmra.mxu0 %v1913
      %v2170 = vpop.f32.mrf.mxu0
      %v2171 = vadd.f32 0.0, %v2170
      %v2172 = vpop.f32.mrf.mxu0
      %v2173 = vadd.f32 0.0, %v2172
      %2174 = vmatprep.mubr.f32.mxu0 0.0
      %2175 = vmatmul.mubr.f32.gmra.mxu0 %v1916
      %v2176 = vpop.f32.mrf.mxu0
      %v2177 = vadd.f32 0.0, %v2176
      %v2178 = vpop.f32.mrf.mxu0
      %v2179 = vadd.f32 0.0, %v2178
      %2180 = vmatprep.mubr.f32.mxu0 0.0
      %2181 = vmatmul.mubr.f32.gmra.mxu0 %v1919
      %v2182 = vpop.f32.mrf.mxu0
      %v2183 = vadd.f32 0.0, %v2182
      %v2184 = vpop.f32.mrf.mxu0
      %v2185 = vadd.f32 0.0, %v2184
      %2186 = vdwg.mxu0
      %2187 = vmatprep.subr.mxu0 0.0
      %2188 = vmatpush1.msra.mxu0 0.0
      %2189 = vmatprep.subr.mxu0 0.0
      %2190 = vmatpush1.msra.mxu0 0.0
      %2191 = vmatprep.subr.mxu0 0.0
      %2192 = vmatpush1.msra.mxu0 0.0
      %2193 = vmatprep.subr.mxu0 0.0
      %2194 = vmatpush1.msra.mxu0 0.0
      %2195 = vmatprep.subr.mxu0 0.0
      %2196 = vmatpush1.msra.mxu0 0.0
      %2197 = vmatprep.subr.mxu0 0.0
      %2198 = vmatpush1.msra.mxu0 0.0
      %2199 = vmatprep.subr.mxu0 0.0
      %2200 = vmatpush1.msra.mxu0 0.0
      %2201 = vmatprep.subr.mxu0 0.0
      %2202 = vmatpush1.msra.mxu0 0.0
      %2203 = vmatprep.subr.mxu0 0.0
      %2204 = vmatpush1.msra.mxu0 0.0
      %2205 = vmatprep.subr.mxu0 0.0
      %2206 = vmatpush1.msra.mxu0 0.0
      %2207 = vmatprep.subr.mxu0 0.0
      %2208 = vmatpush1.msra.mxu0 0.0
      %2209 = vmatprep.subr.mxu0 0.0
      %2210 = vmatpush1.msra.mxu0 0.0
      %2211 = vmatprep.subr.mxu0 0.0
      %2212 = vmatpush1.msra.mxu0 0.0
      %2213 = vmatprep.subr.mxu0 0.0
      %2214 = vmatpush1.msra.mxu0 0.0
      %2215 = vmatprep.subr.mxu0 %v1936
      %2216 = vmatpush1.msra.mxu0 %v1934
      %2217 = vmatprep.subr.mxu0 %v1894
      %2218 = vmatpush1.msra.mxu0 %v1893
      %2219 = vmatprep.subr.mxu0 0.0
      %2220 = vmatpush2.msra.mxu0 0.0
      %2221 = vmatprep.subr.mxu0 0.0
      %2222 = vmatpush2.msra.mxu0 0.0
      %2223 = vmatprep.subr.mxu0 0.0
      %2224 = vmatpush2.msra.mxu0 0.0
      %2225 = vmatprep.subr.mxu0 0.0
      %2226 = vmatpush2.msra.mxu0 0.0
      %2227 = vmatprep.subr.mxu0 0.0
      %2228 = vmatpush2.msra.mxu0 0.0
      %2229 = vmatprep.subr.mxu0 0.0
      %2230 = vmatpush2.msra.mxu0 0.0
      %2231 = vmatprep.subr.mxu0 0.0
      %2232 = vmatpush2.msra.mxu0 0.0
      %2233 = vmatprep.subr.mxu0 0.0
      %2234 = vmatpush2.msra.mxu0 0.0
      %2235 = vmatprep.subr.mxu0 0.0
      %2236 = vmatpush2.msra.mxu0 0.0
      %2237 = vmatprep.subr.mxu0 0.0
      %2238 = vmatpush2.msra.mxu0 0.0
      %2239 = vmatprep.subr.mxu0 0.0
      %2240 = vmatpush2.msra.mxu0 0.0
      %2241 = vmatprep.subr.mxu0 0.0
      %2242 = vmatpush2.msra.mxu0 0.0
      %2243 = vmatprep.subr.mxu0 0.0
      %2244 = vmatpush2.msra.mxu0 0.0
      %2245 = vmatprep.subr.mxu0 0.0
      %2246 = vmatpush2.msra.mxu0 0.0
      %2247 = vmatprep.subr.mxu0 0.0
      %2248 = vmatpush2.msra.mxu0 0.0
      %2249 = vmatprep.subr.mxu0 0.0
      %2250 = vmatpush2.msra.mxu0 0.0
      %2251 = vmatprep.mubr.f32.mxu0 0.0
      %2252 = vmatmul.mubr.f32.gmra.mxu0 %v1913
      %v2253 = vpop.f32.mrf.mxu0
      %v2254 = vadd.f32 0.0, %v2253
      %v2255 = vpop.f32.mrf.mxu0
      %v2256 = vadd.f32 0.0, %v2255
      %2257 = vmatprep.mubr.f32.mxu0 0.0
      %2258 = vmatmul.mubr.f32.gmra.mxu0 %v1916
      %v2259 = vpop.f32.mrf.mxu0
      %v2260 = vadd.f32 0.0, %v2259
      %v2261 = vpop.f32.mrf.mxu0
      %v2262 = vadd.f32 0.0, %v2261
      %2263 = vmatprep.mubr.f32.mxu0 0.0
      %2264 = vmatmul.mubr.f32.gmra.mxu0 %v1919
      %v2265 = vpop.f32.mrf.mxu0
      %v2266 = vadd.f32 0.0, %v2265
      %v2267 = vpop.f32.mrf.mxu0
      %v2268 = vadd.f32 0.0, %v2267
      %2269 = vdwg.mxu0
      %v2271 = vsel %vm1911, %v1772, 0
      %v2274 = vsel %vm1911, %v1773, 0
      %v2277 = vsel %vm1911, %v1774, 0
      %v2279 = vsel %vm1921, %v1823, 0
      %v2281 = vsel %vm1921, %v1824, 0
      %v2283 = vsel %vm1921, %v1825, 0
      %v2285 = vsel %vm1921, %v1826, 0
      %v2287 = vsel %vm1921, %v1827, 0
      %v2289 = vsel %vm1921, %v1828, 0
      %v2291 = vsel %vm1921, %v1829, 0
      %v2293 = vsel %vm1921, %v1830, 0
      %2295 = vmatprep.subr.mxu0 0.0
      %2296 = vmatpush1.msra.mxu0 0.0
      %2297 = vmatprep.subr.mxu0 0.0
      %2298 = vmatpush1.msra.mxu0 0.0
      %2299 = vmatprep.subr.mxu0 0.0
      %2300 = vmatpush1.msra.mxu0 0.0
      %2301 = vmatprep.subr.mxu0 0.0
      %2302 = vmatpush1.msra.mxu0 0.0
      %2303 = vmatprep.subr.mxu0 0.0
      %2304 = vmatpush1.msra.mxu0 0.0
      %2305 = vmatprep.subr.mxu0 0.0
      %2306 = vmatpush1.msra.mxu0 0.0
      %2307 = vmatprep.subr.mxu0 0.0
      %2308 = vmatpush1.msra.mxu0 0.0
      %2309 = vmatprep.subr.mxu0 0.0
      %2310 = vmatpush1.msra.mxu0 0.0
      %2311 = vmatprep.subr.mxu0 0.0
      %2312 = vmatpush1.msra.mxu0 0.0
      %2313 = vmatprep.subr.mxu0 0.0
      %2314 = vmatpush1.msra.mxu0 0.0
      %2315 = vmatprep.subr.mxu0 0.0
      %2316 = vmatpush1.msra.mxu0 0.0
      %2317 = vmatprep.subr.mxu0 0.0
      %2318 = vmatpush1.msra.mxu0 0.0
      %2319 = vmatprep.subr.mxu0 0.0
      %2320 = vmatpush1.msra.mxu0 0.0
      %2321 = vmatprep.subr.mxu0 0.0
      %2322 = vmatpush1.msra.mxu0 0.0
      %2323 = vmatprep.subr.mxu0 %v2281
      %2324 = vmatpush1.msra.mxu0 %v2279
      %2325 = vmatprep.subr.mxu0 %v1816
      %2326 = vmatpush1.msra.mxu0 %v1815
      %2327 = vmatprep.subr.mxu0 0.0
      %2328 = vmatpush2.msra.mxu0 0.0
      %2329 = vmatprep.subr.mxu0 0.0
      %2330 = vmatpush2.msra.mxu0 0.0
      %2331 = vmatprep.subr.mxu0 0.0
      %2332 = vmatpush2.msra.mxu0 0.0
      %2333 = vmatprep.subr.mxu0 0.0
      %2334 = vmatpush2.msra.mxu0 0.0
      %2335 = vmatprep.subr.mxu0 0.0
      %2336 = vmatpush2.msra.mxu0 0.0
      %2337 = vmatprep.subr.mxu0 0.0
      %2338 = vmatpush2.msra.mxu0 0.0
      %2339 = vmatprep.subr.mxu0 0.0
      %2340 = vmatpush2.msra.mxu0 0.0
      %2341 = vmatprep.subr.mxu0 0.0
      %2342 = vmatpush2.msra.mxu0 0.0
      %2343 = vmatprep.subr.mxu0 0.0
      %2344 = vmatpush2.msra.mxu0 0.0
      %2345 = vmatprep.subr.mxu0 0.0
      %2346 = vmatpush2.msra.mxu0 0.0
      %2347 = vmatprep.subr.mxu0 0.0
      %2348 = vmatpush2.msra.mxu0 0.0
      %2349 = vmatprep.subr.mxu0 0.0
      %2350 = vmatpush2.msra.mxu0 0.0
      %2351 = vmatprep.subr.mxu0 0.0
      %2352 = vmatpush2.msra.mxu0 0.0
      %2353 = vmatprep.subr.mxu0 0.0
      %2354 = vmatpush2.msra.mxu0 0.0
      %2355 = vmatprep.subr.mxu0 0.0
      %2356 = vmatpush2.msra.mxu0 0.0
      %2357 = vmatprep.subr.mxu0 0.0
      %2358 = vmatpush2.msra.mxu0 0.0
      %2359 = vmatprep.mubr.f32.mxu0 0.0
      %2360 = vmatmul.mubr.f32.gmra.mxu0 %v2271
      %v2361 = vpop.f32.mrf.mxu0
      %v2362 = vadd.f32 %v2005, %v2361
      %v2363 = vpop.f32.mrf.mxu0
      %v2364 = vadd.f32 %v2007, %v2363
      %2365 = vmatprep.mubr.f32.mxu0 0.0
      %2366 = vmatmul.mubr.f32.gmra.mxu0 %v2274
      %v2367 = vpop.f32.mrf.mxu0
      %v2368 = vadd.f32 %v2011, %v2367
      %v2369 = vpop.f32.mrf.mxu0
      %v2370 = vadd.f32 %v2013, %v2369
      %2371 = vmatprep.mubr.f32.mxu0 0.0
      %2372 = vmatmul.mubr.f32.gmra.mxu0 %v2277
      %v2373 = vpop.f32.mrf.mxu0
      %v2374 = vadd.f32 %v2017, %v2373
      %v2375 = vpop.f32.mrf.mxu0
      %v2376 = vadd.f32 %v2019, %v2375
      %2377 = vdwg.mxu0
      %2378 = vmatprep.subr.mxu0 0.0
      %2379 = vmatpush1.msra.mxu0 0.0
      %2380 = vmatprep.subr.mxu0 0.0
      %2381 = vmatpush1.msra.mxu0 0.0
      %2382 = vmatprep.subr.mxu0 0.0
      %2383 = vmatpush1.msra.mxu0 0.0
      %2384 = vmatprep.subr.mxu0 0.0
      %2385 = vmatpush1.msra.mxu0 0.0
      %2386 = vmatprep.subr.mxu0 0.0
      %2387 = vmatpush1.msra.mxu0 0.0
      %2388 = vmatprep.subr.mxu0 0.0
      %2389 = vmatpush1.msra.mxu0 0.0
      %2390 = vmatprep.subr.mxu0 0.0
      %2391 = vmatpush1.msra.mxu0 0.0
      %2392 = vmatprep.subr.mxu0 0.0
      %2393 = vmatpush1.msra.mxu0 0.0
      %2394 = vmatprep.subr.mxu0 0.0
      %2395 = vmatpush1.msra.mxu0 0.0
      %2396 = vmatprep.subr.mxu0 0.0
      %2397 = vmatpush1.msra.mxu0 0.0
      %2398 = vmatprep.subr.mxu0 0.0
      %2399 = vmatpush1.msra.mxu0 0.0
      %2400 = vmatprep.subr.mxu0 0.0
      %2401 = vmatpush1.msra.mxu0 0.0
      %2402 = vmatprep.subr.mxu0 0.0
      %2403 = vmatpush1.msra.mxu0 0.0
      %2404 = vmatprep.subr.mxu0 0.0
      %2405 = vmatpush1.msra.mxu0 0.0
      %2406 = vmatprep.subr.mxu0 %v2285
      %2407 = vmatpush1.msra.mxu0 %v2283
      %2408 = vmatprep.subr.mxu0 %v1818
      %2409 = vmatpush1.msra.mxu0 %v1817
      %2410 = vmatprep.subr.mxu0 0.0
      %2411 = vmatpush2.msra.mxu0 0.0
      %2412 = vmatprep.subr.mxu0 0.0
      %2413 = vmatpush2.msra.mxu0 0.0
      %2414 = vmatprep.subr.mxu0 0.0
      %2415 = vmatpush2.msra.mxu0 0.0
      %2416 = vmatprep.subr.mxu0 0.0
      %2417 = vmatpush2.msra.mxu0 0.0
      %2418 = vmatprep.subr.mxu0 0.0
      %2419 = vmatpush2.msra.mxu0 0.0
      %2420 = vmatprep.subr.mxu0 0.0
      %2421 = vmatpush2.msra.mxu0 0.0
      %2422 = vmatprep.subr.mxu0 0.0
      %2423 = vmatpush2.msra.mxu0 0.0
      %2424 = vmatprep.subr.mxu0 0.0
      %2425 = vmatpush2.msra.mxu0 0.0
      %2426 = vmatprep.subr.mxu0 0.0
      %2427 = vmatpush2.msra.mxu0 0.0
      %2428 = vmatprep.subr.mxu0 0.0
      %2429 = vmatpush2.msra.mxu0 0.0
      %2430 = vmatprep.subr.mxu0 0.0
      %2431 = vmatpush2.msra.mxu0 0.0
      %2432 = vmatprep.subr.mxu0 0.0
      %2433 = vmatpush2.msra.mxu0 0.0
      %2434 = vmatprep.subr.mxu0 0.0
      %2435 = vmatpush2.msra.mxu0 0.0
      %2436 = vmatprep.subr.mxu0 0.0
      %2437 = vmatpush2.msra.mxu0 0.0
      %2438 = vmatprep.subr.mxu0 0.0
      %2439 = vmatpush2.msra.mxu0 0.0
      %2440 = vmatprep.subr.mxu0 0.0
      %2441 = vmatpush2.msra.mxu0 0.0
      %2442 = vmatprep.mubr.f32.mxu0 0.0
      %2443 = vmatmul.mubr.f32.gmra.mxu0 %v2271
      %v2444 = vpop.f32.mrf.mxu0
      %v2445 = vadd.f32 %v2088, %v2444
      %v2446 = vpop.f32.mrf.mxu0
      %v2447 = vadd.f32 %v2090, %v2446
      %2448 = vmatprep.mubr.f32.mxu0 0.0
      %2449 = vmatmul.mubr.f32.gmra.mxu0 %v2274
      %v2450 = vpop.f32.mrf.mxu0
      %v2451 = vadd.f32 %v2094, %v2450
      %v2452 = vpop.f32.mrf.mxu0
      %v2453 = vadd.f32 %v2096, %v2452
      %2454 = vmatprep.mubr.f32.mxu0 0.0
      %2455 = vmatmul.mubr.f32.gmra.mxu0 %v2277
      %v2456 = vpop.f32.mrf.mxu0
      %v2457 = vadd.f32 %v2100, %v2456
      %v2458 = vpop.f32.mrf.mxu0
      %v2459 = vadd.f32 %v2102, %v2458
      %2460 = vdwg.mxu0
      %2461 = vmatprep.subr.mxu0 0.0
      %2462 = vmatpush1.msra.mxu0 0.0
      %2463 = vmatprep.subr.mxu0 0.0
      %2464 = vmatpush1.msra.mxu0 0.0
      %2465 = vmatprep.subr.mxu0 0.0
      %2466 = vmatpush1.msra.mxu0 0.0
      %2467 = vmatprep.subr.mxu0 0.0
      %2468 = vmatpush1.msra.mxu0 0.0
      %2469 = vmatprep.subr.mxu0 0.0
      %2470 = vmatpush1.msra.mxu0 0.0
      %2471 = vmatprep.subr.mxu0 0.0
      %2472 = vmatpush1.msra.mxu0 0.0
      %2473 = vmatprep.subr.mxu0 0.0
      %2474 = vmatpush1.msra.mxu0 0.0
      %2475 = vmatprep.subr.mxu0 0.0
      %2476 = vmatpush1.msra.mxu0 0.0
      %2477 = vmatprep.subr.mxu0 0.0
      %2478 = vmatpush1.msra.mxu0 0.0
      %2479 = vmatprep.subr.mxu0 0.0
      %2480 = vmatpush1.msra.mxu0 0.0
      %2481 = vmatprep.subr.mxu0 0.0
      %2482 = vmatpush1.msra.mxu0 0.0
      %2483 = vmatprep.subr.mxu0 0.0
      %2484 = vmatpush1.msra.mxu0 0.0
      %2485 = vmatprep.subr.mxu0 0.0
      %2486 = vmatpush1.msra.mxu0 0.0
      %2487 = vmatprep.subr.mxu0 0.0
      %2488 = vmatpush1.msra.mxu0 0.0
      %2489 = vmatprep.subr.mxu0 %v2289
      %2490 = vmatpush1.msra.mxu0 %v2287
      %2491 = vmatprep.subr.mxu0 %v1820
      %2492 = vmatpush1.msra.mxu0 %v1819
      %2493 = vmatprep.subr.mxu0 0.0
      %2494 = vmatpush2.msra.mxu0 0.0
      %2495 = vmatprep.subr.mxu0 0.0
      %2496 = vmatpush2.msra.mxu0 0.0
      %2497 = vmatprep.subr.mxu0 0.0
      %2498 = vmatpush2.msra.mxu0 0.0
      %2499 = vmatprep.subr.mxu0 0.0
      %2500 = vmatpush2.msra.mxu0 0.0
      %2501 = vmatprep.subr.mxu0 0.0
      %2502 = vmatpush2.msra.mxu0 0.0
      %2503 = vmatprep.subr.mxu0 0.0
      %2504 = vmatpush2.msra.mxu0 0.0
      %2505 = vmatprep.subr.mxu0 0.0
      %2506 = vmatpush2.msra.mxu0 0.0
      %2507 = vmatprep.subr.mxu0 0.0
      %2508 = vmatpush2.msra.mxu0 0.0
      %2509 = vmatprep.subr.mxu0 0.0
      %2510 = vmatpush2.msra.mxu0 0.0
      %2511 = vmatprep.subr.mxu0 0.0
      %2512 = vmatpush2.msra.mxu0 0.0
      %2513 = vmatprep.subr.mxu0 0.0
      %2514 = vmatpush2.msra.mxu0 0.0
      %2515 = vmatprep.subr.mxu0 0.0
      %2516 = vmatpush2.msra.mxu0 0.0
      %2517 = vmatprep.subr.mxu0 0.0
      %2518 = vmatpush2.msra.mxu0 0.0
      %2519 = vmatprep.subr.mxu0 0.0
      %2520 = vmatpush2.msra.mxu0 0.0
      %2521 = vmatprep.subr.mxu0 0.0
      %2522 = vmatpush2.msra.mxu0 0.0
      %2523 = vmatprep.subr.mxu0 0.0
      %2524 = vmatpush2.msra.mxu0 0.0
      %2525 = vmatprep.mubr.f32.mxu0 0.0
      %2526 = vmatmul.mubr.f32.gmra.mxu0 %v2271
      %v2527 = vpop.f32.mrf.mxu0
      %v2528 = vadd.f32 %v2171, %v2527
      %v2529 = vpop.f32.mrf.mxu0
      %v2530 = vadd.f32 %v2173, %v2529
      %2531 = vmatprep.mubr.f32.mxu0 0.0
      %2532 = vmatmul.mubr.f32.gmra.mxu0 %v2274
      %v2533 = vpop.f32.mrf.mxu0
      %v2534 = vadd.f32 %v2177, %v2533
      %v2535 = vpop.f32.mrf.mxu0
      %v2536 = vadd.f32 %v2179, %v2535
      %2537 = vmatprep.mubr.f32.mxu0 0.0
      %2538 = vmatmul.mubr.f32.gmra.mxu0 %v2277
      %v2539 = vpop.f32.mrf.mxu0
      %v2540 = vadd.f32 %v2183, %v2539
      %v2541 = vpop.f32.mrf.mxu0
      %v2542 = vadd.f32 %v2185, %v2541
      %2543 = vdwg.mxu0
      %2544 = vmatprep.subr.mxu0 0.0
      %2545 = vmatpush1.msra.mxu0 0.0
      %2546 = vmatprep.subr.mxu0 0.0
      %2547 = vmatpush1.msra.mxu0 0.0
      %2548 = vmatprep.subr.mxu0 0.0
      %2549 = vmatpush1.msra.mxu0 0.0
      %2550 = vmatprep.subr.mxu0 0.0
      %2551 = vmatpush1.msra.mxu0 0.0
      %2552 = vmatprep.subr.mxu0 0.0
      %2553 = vmatpush1.msra.mxu0 0.0
      %2554 = vmatprep.subr.mxu0 0.0
      %2555 = vmatpush1.msra.mxu0 0.0
      %2556 = vmatprep.subr.mxu0 0.0
      %2557 = vmatpush1.msra.mxu0 0.0
      %2558 = vmatprep.subr.mxu0 0.0
      %2559 = vmatpush1.msra.mxu0 0.0
      %2560 = vmatprep.subr.mxu0 0.0
      %2561 = vmatpush1.msra.mxu0 0.0
      %2562 = vmatprep.subr.mxu0 0.0
      %2563 = vmatpush1.msra.mxu0 0.0
      %2564 = vmatprep.subr.mxu0 0.0
      %2565 = vmatpush1.msra.mxu0 0.0
      %2566 = vmatprep.subr.mxu0 0.0
      %2567 = vmatpush1.msra.mxu0 0.0
      %2568 = vmatprep.subr.mxu0 0.0
      %2569 = vmatpush1.msra.mxu0 0.0
      %2570 = vmatprep.subr.mxu0 0.0
      %2571 = vmatpush1.msra.mxu0 0.0
      %2572 = vmatprep.subr.mxu0 %v2293
      %2573 = vmatpush1.msra.mxu0 %v2291
      %2574 = vmatprep.subr.mxu0 %v1822
      %2575 = vmatpush1.msra.mxu0 %v1821
      %2576 = vmatprep.subr.mxu0 0.0
      %2577 = vmatpush2.msra.mxu0 0.0
      %2578 = vmatprep.subr.mxu0 0.0
      %2579 = vmatpush2.msra.mxu0 0.0
      %2580 = vmatprep.subr.mxu0 0.0
      %2581 = vmatpush2.msra.mxu0 0.0
      %2582 = vmatprep.subr.mxu0 0.0
      %2583 = vmatpush2.msra.mxu0 0.0
      %2584 = vmatprep.subr.mxu0 0.0
      %2585 = vmatpush2.msra.mxu0 0.0
      %2586 = vmatprep.subr.mxu0 0.0
      %2587 = vmatpush2.msra.mxu0 0.0
      %2588 = vmatprep.subr.mxu0 0.0
      %2589 = vmatpush2.msra.mxu0 0.0
      %2590 = vmatprep.subr.mxu0 0.0
      %2591 = vmatpush2.msra.mxu0 0.0
      %2592 = vmatprep.subr.mxu0 0.0
      %2593 = vmatpush2.msra.mxu0 0.0
      %2594 = vmatprep.subr.mxu0 0.0
      %2595 = vmatpush2.msra.mxu0 0.0
      %2596 = vmatprep.subr.mxu0 0.0
      %2597 = vmatpush2.msra.mxu0 0.0
      %2598 = vmatprep.subr.mxu0 0.0
      %2599 = vmatpush2.msra.mxu0 0.0
      %2600 = vmatprep.subr.mxu0 0.0
      %2601 = vmatpush2.msra.mxu0 0.0
      %2602 = vmatprep.subr.mxu0 0.0
      %2603 = vmatpush2.msra.mxu0 0.0
      %2604 = vmatprep.subr.mxu0 0.0
      %2605 = vmatpush2.msra.mxu0 0.0
      %2606 = vmatprep.subr.mxu0 0.0
      %2607 = vmatpush2.msra.mxu0 0.0
      %2608 = vmatprep.mubr.f32.mxu0 0.0
      %2609 = vmatmul.mubr.f32.gmra.mxu0 %v2271
      %v2610 = vpop.f32.mrf.mxu0
      %v2611 = vadd.f32 %v2254, %v2610
      %v2612 = vpop.f32.mrf.mxu0
      %v2613 = vadd.f32 %v2256, %v2612
      %2614 = vmatprep.mubr.f32.mxu0 0.0
      %2615 = vmatmul.mubr.f32.gmra.mxu0 %v2274
      %v2616 = vpop.f32.mrf.mxu0
      %v2617 = vadd.f32 %v2260, %v2616
      %v2618 = vpop.f32.mrf.mxu0
      %v2619 = vadd.f32 %v2262, %v2618
      %2620 = vmatprep.mubr.f32.mxu0 0.0
      %2621 = vmatmul.mubr.f32.gmra.mxu0 %v2277
      %v2622 = vpop.f32.mrf.mxu0
      %v2623 = vadd.f32 %v2266, %v2622
      %v2624 = vpop.f32.mrf.mxu0
      %v2625 = vadd.f32 %v2268, %v2624
      %2626 = vdwg.mxu0
      %2627 = vrot.lane.b32.xlu0 %v1815, 126
      %v2628 = vpop.permute.xlu0 %2627
      %2629 = vrot.lane.b32.xlu0 %v1816, 126
      %v2630 = vpop.permute.xlu0 %2629
      %2631 = vrot.lane.b32.xlu0 %v1817, 126
      %v2632 = vpop.permute.xlu0 %2631
      %2633 = vrot.lane.b32.xlu0 %v1818, 126
      %v2634 = vpop.permute.xlu0 %2633
      %2635 = vrot.lane.b32.xlu0 %v1819, 126
      %v2636 = vpop.permute.xlu0 %2635
      %2637 = vrot.lane.b32.xlu0 %v1820, 126
      %v2638 = vpop.permute.xlu0 %2637
      %2639 = vrot.lane.b32.xlu0 %v1821, 126
      %v2640 = vpop.permute.xlu0 %2639
      %2641 = vrot.lane.b32.xlu0 %v1822, 126
      %v2642 = vpop.permute.xlu0 %2641
      %2643 = vrot.lane.b32.xlu0 %v1831, 126
      %v2644 = vpop.permute.xlu0 %2643
      %2645 = vrot.lane.b32.xlu0 %v1823, 126
      %v2646 = vpop.permute.xlu0 %2645
      %2647 = vrot.lane.b32.xlu0 %v1824, 126
      %v2648 = vpop.permute.xlu0 %2647
      %2649 = vrot.lane.b32.xlu0 %v1825, 126
      %v2650 = vpop.permute.xlu0 %2649
      %2651 = vrot.lane.b32.xlu0 %v1826, 126
      %v2652 = vpop.permute.xlu0 %2651
      %2653 = vrot.lane.b32.xlu0 %v1827, 126
      %v2654 = vpop.permute.xlu0 %2653
      %2655 = vrot.lane.b32.xlu0 %v1828, 126
      %v2656 = vpop.permute.xlu0 %2655
      %2657 = vrot.lane.b32.xlu0 %v1829, 126
      %v2658 = vpop.permute.xlu0 %2657
      %2659 = vrot.lane.b32.xlu0 %v1830, 126
      %v2660 = vpop.permute.xlu0 %2659
      %2661 = vrot.lane.b32.xlu0 %v1832, 126
      %v2662 = vpop.permute.xlu0 %2661
      %v2663 = vsel %vm869, %v2628, %v2630
      %v2664 = vsel %vm869, %v2630, %v2632
      %v2665 = vsel %vm869, %v2632, %v2634
      %v2666 = vsel %vm869, %v2634, %v2636
      %v2667 = vsel %vm869, %v2636, %v2638
      %v2668 = vsel %vm869, %v2638, %v2640
      %v2669 = vsel %vm869, %v2640, %v2642
      %v2670 = vsel %vm869, %v2642, %v2644
      %v2671 = vsel %vm869, %v2646, %v2648
      %v2672 = vsel %vm869, %v2648, %v2650
      %v2673 = vsel %vm869, %v2650, %v2652
      %v2674 = vsel %vm869, %v2652, %v2654
      %v2675 = vsel %vm869, %v2654, %v2656
      %v2676 = vsel %vm869, %v2656, %v2658
      %v2677 = vsel %vm869, %v2658, %v2660
      %v2678 = vsel %vm869, %v2660, %v2662
      %v2688 = vsel %vm1911, %v1778, 0
      %v2691 = vsel %vm1911, %v1779, 0
      %v2694 = vsel %vm1911, %v1780, 0
      %v2696 = vsel %vm1921, %v2671, 0
      %v2698 = vsel %vm1921, %v2672, 0
      %v2700 = vsel %vm1921, %v2673, 0
      %v2702 = vsel %vm1921, %v2674, 0
      %v2704 = vsel %vm1921, %v2675, 0
      %v2706 = vsel %vm1921, %v2676, 0
      %v2708 = vsel %vm1921, %v2677, 0
      %v2710 = vsel %vm1921, %v2678, 0
      %2712 = vmatprep.subr.mxu0 0.0
      %2713 = vmatpush1.msra.mxu0 0.0
      %2714 = vmatprep.subr.mxu0 0.0
      %2715 = vmatpush1.msra.mxu0 0.0
      %2716 = vmatprep.subr.mxu0 0.0
      %2717 = vmatpush1.msra.mxu0 0.0
      %2718 = vmatprep.subr.mxu0 0.0
      %2719 = vmatpush1.msra.mxu0 0.0
      %2720 = vmatprep.subr.mxu0 0.0
      %2721 = vmatpush1.msra.mxu0 0.0
      %2722 = vmatprep.subr.mxu0 0.0
      %2723 = vmatpush1.msra.mxu0 0.0
      %2724 = vmatprep.subr.mxu0 0.0
      %2725 = vmatpush1.msra.mxu0 0.0
      %2726 = vmatprep.subr.mxu0 0.0
      %2727 = vmatpush1.msra.mxu0 0.0
      %2728 = vmatprep.subr.mxu0 0.0
      %2729 = vmatpush1.msra.mxu0 0.0
      %2730 = vmatprep.subr.mxu0 0.0
      %2731 = vmatpush1.msra.mxu0 0.0
      %2732 = vmatprep.subr.mxu0 0.0
      %2733 = vmatpush1.msra.mxu0 0.0
      %2734 = vmatprep.subr.mxu0 0.0
      %2735 = vmatpush1.msra.mxu0 0.0
      %2736 = vmatprep.subr.mxu0 0.0
      %2737 = vmatpush1.msra.mxu0 0.0
      %2738 = vmatprep.subr.mxu0 0.0
      %2739 = vmatpush1.msra.mxu0 0.0
      %2740 = vmatprep.subr.mxu0 %v2698
      %2741 = vmatpush1.msra.mxu0 %v2696
      %2742 = vmatprep.subr.mxu0 %v2664
      %2743 = vmatpush1.msra.mxu0 %v2663
      %2744 = vmatprep.subr.mxu0 0.0
      %2745 = vmatpush2.msra.mxu0 0.0
      %2746 = vmatprep.subr.mxu0 0.0
      %2747 = vmatpush2.msra.mxu0 0.0
      %2748 = vmatprep.subr.mxu0 0.0
      %2749 = vmatpush2.msra.mxu0 0.0
      %2750 = vmatprep.subr.mxu0 0.0
      %2751 = vmatpush2.msra.mxu0 0.0
      %2752 = vmatprep.subr.mxu0 0.0
      %2753 = vmatpush2.msra.mxu0 0.0
      %2754 = vmatprep.subr.mxu0 0.0
      %2755 = vmatpush2.msra.mxu0 0.0
      %2756 = vmatprep.subr.mxu0 0.0
      %2757 = vmatpush2.msra.mxu0 0.0
      %2758 = vmatprep.subr.mxu0 0.0
      %2759 = vmatpush2.msra.mxu0 0.0
      %2760 = vmatprep.subr.mxu0 0.0
      %2761 = vmatpush2.msra.mxu0 0.0
      %2762 = vmatprep.subr.mxu0 0.0
      %2763 = vmatpush2.msra.mxu0 0.0
      %2764 = vmatprep.subr.mxu0 0.0
      %2765 = vmatpush2.msra.mxu0 0.0
      %2766 = vmatprep.subr.mxu0 0.0
      %2767 = vmatpush2.msra.mxu0 0.0
      %2768 = vmatprep.subr.mxu0 0.0
      %2769 = vmatpush2.msra.mxu0 0.0
      %2770 = vmatprep.subr.mxu0 0.0
      %2771 = vmatpush2.msra.mxu0 0.0
      %2772 = vmatprep.subr.mxu0 0.0
      %2773 = vmatpush2.msra.mxu0 0.0
      %2774 = vmatprep.subr.mxu0 0.0
      %2775 = vmatpush2.msra.mxu0 0.0
      %2776 = vmatprep.mubr.f32.mxu0 0.0
      %2777 = vmatmul.mubr.f32.gmra.mxu0 %v2688
      %v2778 = vpop.f32.mrf.mxu0
      %v2779 = vadd.f32 0.0, %v2778
      %v2780 = vpop.f32.mrf.mxu0
      %v2781 = vadd.f32 0.0, %v2780
      %2782 = vmatprep.mubr.f32.mxu0 0.0
      %2783 = vmatmul.mubr.f32.gmra.mxu0 %v2691
      %v2784 = vpop.f32.mrf.mxu0
      %v2785 = vadd.f32 0.0, %v2784
      %v2786 = vpop.f32.mrf.mxu0
      %v2787 = vadd.f32 0.0, %v2786
      %2788 = vmatprep.mubr.f32.mxu0 0.0
      %2789 = vmatmul.mubr.f32.gmra.mxu0 %v2694
      %v2790 = vpop.f32.mrf.mxu0
      %v2791 = vadd.f32 0.0, %v2790
      %v2792 = vpop.f32.mrf.mxu0
      %v2793 = vadd.f32 0.0, %v2792
      %2794 = vdwg.mxu0
      %2795 = vmatprep.subr.mxu0 0.0
      %2796 = vmatpush1.msra.mxu0 0.0
      %2797 = vmatprep.subr.mxu0 0.0
      %2798 = vmatpush1.msra.mxu0 0.0
      %2799 = vmatprep.subr.mxu0 0.0
      %2800 = vmatpush1.msra.mxu0 0.0
      %2801 = vmatprep.subr.mxu0 0.0
      %2802 = vmatpush1.msra.mxu0 0.0
      %2803 = vmatprep.subr.mxu0 0.0
      %2804 = vmatpush1.msra.mxu0 0.0
      %2805 = vmatprep.subr.mxu0 0.0
      %2806 = vmatpush1.msra.mxu0 0.0
      %2807 = vmatprep.subr.mxu0 0.0
      %2808 = vmatpush1.msra.mxu0 0.0
      %2809 = vmatprep.subr.mxu0 0.0
      %2810 = vmatpush1.msra.mxu0 0.0
      %2811 = vmatprep.subr.mxu0 0.0
      %2812 = vmatpush1.msra.mxu0 0.0
      %2813 = vmatprep.subr.mxu0 0.0
      %2814 = vmatpush1.msra.mxu0 0.0
      %2815 = vmatprep.subr.mxu0 0.0
      %2816 = vmatpush1.msra.mxu0 0.0
      %2817 = vmatprep.subr.mxu0 0.0
      %2818 = vmatpush1.msra.mxu0 0.0
      %2819 = vmatprep.subr.mxu0 0.0
      %2820 = vmatpush1.msra.mxu0 0.0
      %2821 = vmatprep.subr.mxu0 0.0
      %2822 = vmatpush1.msra.mxu0 0.0
      %2823 = vmatprep.subr.mxu0 %v2702
      %2824 = vmatpush1.msra.mxu0 %v2700
      %2825 = vmatprep.subr.mxu0 %v2666
      %2826 = vmatpush1.msra.mxu0 %v2665
      %2827 = vmatprep.subr.mxu0 0.0
      %2828 = vmatpush2.msra.mxu0 0.0
      %2829 = vmatprep.subr.mxu0 0.0
      %2830 = vmatpush2.msra.mxu0 0.0
      %2831 = vmatprep.subr.mxu0 0.0
      %2832 = vmatpush2.msra.mxu0 0.0
      %2833 = vmatprep.subr.mxu0 0.0
      %2834 = vmatpush2.msra.mxu0 0.0
      %2835 = vmatprep.subr.mxu0 0.0
      %2836 = vmatpush2.msra.mxu0 0.0
      %2837 = vmatprep.subr.mxu0 0.0
      %2838 = vmatpush2.msra.mxu0 0.0
      %2839 = vmatprep.subr.mxu0 0.0
      %2840 = vmatpush2.msra.mxu0 0.0
      %2841 = vmatprep.subr.mxu0 0.0
      %2842 = vmatpush2.msra.mxu0 0.0
      %2843 = vmatprep.subr.mxu0 0.0
      %2844 = vmatpush2.msra.mxu0 0.0
      %2845 = vmatprep.subr.mxu0 0.0
      %2846 = vmatpush2.msra.mxu0 0.0
      %2847 = vmatprep.subr.mxu0 0.0
      %2848 = vmatpush2.msra.mxu0 0.0
      %2849 = vmatprep.subr.mxu0 0.0
      %2850 = vmatpush2.msra.mxu0 0.0
      %2851 = vmatprep.subr.mxu0 0.0
      %2852 = vmatpush2.msra.mxu0 0.0
      %2853 = vmatprep.subr.mxu0 0.0
      %2854 = vmatpush2.msra.mxu0 0.0
      %2855 = vmatprep.subr.mxu0 0.0
      %2856 = vmatpush2.msra.mxu0 0.0
      %2857 = vmatprep.subr.mxu0 0.0
      %2858 = vmatpush2.msra.mxu0 0.0
      %2859 = vmatprep.mubr.f32.mxu0 0.0
      %2860 = vmatmul.mubr.f32.gmra.mxu0 %v2688
      %v2861 = vpop.f32.mrf.mxu0
      %v2862 = vadd.f32 0.0, %v2861
      %v2863 = vpop.f32.mrf.mxu0
      %v2864 = vadd.f32 0.0, %v2863
      %2865 = vmatprep.mubr.f32.mxu0 0.0
      %2866 = vmatmul.mubr.f32.gmra.mxu0 %v2691
      %v2867 = vpop.f32.mrf.mxu0
      %v2868 = vadd.f32 0.0, %v2867
      %v2869 = vpop.f32.mrf.mxu0
      %v2870 = vadd.f32 0.0, %v2869
      %2871 = vmatprep.mubr.f32.mxu0 0.0
      %2872 = vmatmul.mubr.f32.gmra.mxu0 %v2694
      %v2873 = vpop.f32.mrf.mxu0
      %v2874 = vadd.f32 0.0, %v2873
      %v2875 = vpop.f32.mrf.mxu0
      %v2876 = vadd.f32 0.0, %v2875
      %2877 = vdwg.mxu0
      %2878 = vmatprep.subr.mxu0 0.0
      %2879 = vmatpush1.msra.mxu0 0.0
      %2880 = vmatprep.subr.mxu0 0.0
      %2881 = vmatpush1.msra.mxu0 0.0
      %2882 = vmatprep.subr.mxu0 0.0
      %2883 = vmatpush1.msra.mxu0 0.0
      %2884 = vmatprep.subr.mxu0 0.0
      %2885 = vmatpush1.msra.mxu0 0.0
      %2886 = vmatprep.subr.mxu0 0.0
      %2887 = vmatpush1.msra.mxu0 0.0
      %2888 = vmatprep.subr.mxu0 0.0
      %2889 = vmatpush1.msra.mxu0 0.0
      %2890 = vmatprep.subr.mxu0 0.0
      %2891 = vmatpush1.msra.mxu0 0.0
      %2892 = vmatprep.subr.mxu0 0.0
      %2893 = vmatpush1.msra.mxu0 0.0
      %2894 = vmatprep.subr.mxu0 0.0
      %2895 = vmatpush1.msra.mxu0 0.0
      %2896 = vmatprep.subr.mxu0 0.0
      %2897 = vmatpush1.msra.mxu0 0.0
      %2898 = vmatprep.subr.mxu0 0.0
      %2899 = vmatpush1.msra.mxu0 0.0
      %2900 = vmatprep.subr.mxu0 0.0
      %2901 = vmatpush1.msra.mxu0 0.0
      %2902 = vmatprep.subr.mxu0 0.0
      %2903 = vmatpush1.msra.mxu0 0.0
      %2904 = vmatprep.subr.mxu0 0.0
      %2905 = vmatpush1.msra.mxu0 0.0
      %2906 = vmatprep.subr.mxu0 %v2706
      %2907 = vmatpush1.msra.mxu0 %v2704
      %2908 = vmatprep.subr.mxu0 %v2668
      %2909 = vmatpush1.msra.mxu0 %v2667
      %2910 = vmatprep.subr.mxu0 0.0
      %2911 = vmatpush2.msra.mxu0 0.0
      %2912 = vmatprep.subr.mxu0 0.0
      %2913 = vmatpush2.msra.mxu0 0.0
      %2914 = vmatprep.subr.mxu0 0.0
      %2915 = vmatpush2.msra.mxu0 0.0
      %2916 = vmatprep.subr.mxu0 0.0
      %2917 = vmatpush2.msra.mxu0 0.0
      %2918 = vmatprep.subr.mxu0 0.0
      %2919 = vmatpush2.msra.mxu0 0.0
      %2920 = vmatprep.subr.mxu0 0.0
      %2921 = vmatpush2.msra.mxu0 0.0
      %2922 = vmatprep.subr.mxu0 0.0
      %2923 = vmatpush2.msra.mxu0 0.0
      %2924 = vmatprep.subr.mxu0 0.0
      %2925 = vmatpush2.msra.mxu0 0.0
      %2926 = vmatprep.subr.mxu0 0.0
      %2927 = vmatpush2.msra.mxu0 0.0
      %2928 = vmatprep.subr.mxu0 0.0
      %2929 = vmatpush2.msra.mxu0 0.0
      %2930 = vmatprep.subr.mxu0 0.0
      %2931 = vmatpush2.msra.mxu0 0.0
      %2932 = vmatprep.subr.mxu0 0.0
      %2933 = vmatpush2.msra.mxu0 0.0
      %2934 = vmatprep.subr.mxu0 0.0
      %2935 = vmatpush2.msra.mxu0 0.0
      %2936 = vmatprep.subr.mxu0 0.0
      %2937 = vmatpush2.msra.mxu0 0.0
      %2938 = vmatprep.subr.mxu0 0.0
      %2939 = vmatpush2.msra.mxu0 0.0
      %2940 = vmatprep.subr.mxu0 0.0
      %2941 = vmatpush2.msra.mxu0 0.0
      %2942 = vmatprep.mubr.f32.mxu0 0.0
      %2943 = vmatmul.mubr.f32.gmra.mxu0 %v2688
      %v2944 = vpop.f32.mrf.mxu0
      %v2945 = vadd.f32 0.0, %v2944
      %v2946 = vpop.f32.mrf.mxu0
      %v2947 = vadd.f32 0.0, %v2946
      %2948 = vmatprep.mubr.f32.mxu0 0.0
      %2949 = vmatmul.mubr.f32.gmra.mxu0 %v2691
      %v2950 = vpop.f32.mrf.mxu0
      %v2951 = vadd.f32 0.0, %v2950
      %v2952 = vpop.f32.mrf.mxu0
      %v2953 = vadd.f32 0.0, %v2952
      %2954 = vmatprep.mubr.f32.mxu0 0.0
      %2955 = vmatmul.mubr.f32.gmra.mxu0 %v2694
      %v2956 = vpop.f32.mrf.mxu0
      %v2957 = vadd.f32 0.0, %v2956
      %v2958 = vpop.f32.mrf.mxu0
      %v2959 = vadd.f32 0.0, %v2958
      %2960 = vdwg.mxu0
      %2961 = vmatprep.subr.mxu0 0.0
      %2962 = vmatpush1.msra.mxu0 0.0
      %2963 = vmatprep.subr.mxu0 0.0
      %2964 = vmatpush1.msra.mxu0 0.0
      %2965 = vmatprep.subr.mxu0 0.0
      %2966 = vmatpush1.msra.mxu0 0.0
      %2967 = vmatprep.subr.mxu0 0.0
      %2968 = vmatpush1.msra.mxu0 0.0
      %2969 = vmatprep.subr.mxu0 0.0
      %2970 = vmatpush1.msra.mxu0 0.0
      %2971 = vmatprep.subr.mxu0 0.0
      %2972 = vmatpush1.msra.mxu0 0.0
      %2973 = vmatprep.subr.mxu0 0.0
      %2974 = vmatpush1.msra.mxu0 0.0
      %2975 = vmatprep.subr.mxu0 0.0
      %2976 = vmatpush1.msra.mxu0 0.0
      %2977 = vmatprep.subr.mxu0 0.0
      %2978 = vmatpush1.msra.mxu0 0.0
      %2979 = vmatprep.subr.mxu0 0.0
      %2980 = vmatpush1.msra.mxu0 0.0
      %2981 = vmatprep.subr.mxu0 0.0
      %2982 = vmatpush1.msra.mxu0 0.0
      %2983 = vmatprep.subr.mxu0 0.0
      %2984 = vmatpush1.msra.mxu0 0.0
      %2985 = vmatprep.subr.mxu0 0.0
      %2986 = vmatpush1.msra.mxu0 0.0
      %2987 = vmatprep.subr.mxu0 0.0
      %2988 = vmatpush1.msra.mxu0 0.0
      %2989 = vmatprep.subr.mxu0 %v2710
      %2990 = vmatpush1.msra.mxu0 %v2708
      %2991 = vmatprep.subr.mxu0 %v2670
      %2992 = vmatpush1.msra.mxu0 %v2669
      %2993 = vmatprep.subr.mxu0 0.0
      %2994 = vmatpush2.msra.mxu0 0.0
      %2995 = vmatprep.subr.mxu0 0.0
      %2996 = vmatpush2.msra.mxu0 0.0
      %2997 = vmatprep.subr.mxu0 0.0
      %2998 = vmatpush2.msra.mxu0 0.0
      %2999 = vmatprep.subr.mxu0 0.0
      %3000 = vmatpush2.msra.mxu0 0.0
      %3001 = vmatprep.subr.mxu0 0.0
      %3002 = vmatpush2.msra.mxu0 0.0
      %3003 = vmatprep.subr.mxu0 0.0
      %3004 = vmatpush2.msra.mxu0 0.0
      %3005 = vmatprep.subr.mxu0 0.0
      %3006 = vmatpush2.msra.mxu0 0.0
      %3007 = vmatprep.subr.mxu0 0.0
      %3008 = vmatpush2.msra.mxu0 0.0
      %3009 = vmatprep.subr.mxu0 0.0
      %3010 = vmatpush2.msra.mxu0 0.0
      %3011 = vmatprep.subr.mxu0 0.0
      %3012 = vmatpush2.msra.mxu0 0.0
      %3013 = vmatprep.subr.mxu0 0.0
      %3014 = vmatpush2.msra.mxu0 0.0
      %3015 = vmatprep.subr.mxu0 0.0
      %3016 = vmatpush2.msra.mxu0 0.0
      %3017 = vmatprep.subr.mxu0 0.0
      %3018 = vmatpush2.msra.mxu0 0.0
      %3019 = vmatprep.subr.mxu0 0.0
      %3020 = vmatpush2.msra.mxu0 0.0
      %3021 = vmatprep.subr.mxu0 0.0
      %3022 = vmatpush2.msra.mxu0 0.0
      %3023 = vmatprep.subr.mxu0 0.0
      %3024 = vmatpush2.msra.mxu0 0.0
      %3025 = vmatprep.mubr.f32.mxu0 0.0
      %3026 = vmatmul.mubr.f32.gmra.mxu0 %v2688
      %v3027 = vpop.f32.mrf.mxu0
      %v3028 = vadd.f32 0.0, %v3027
      %v3029 = vpop.f32.mrf.mxu0
      %v3030 = vadd.f32 0.0, %v3029
      %3031 = vmatprep.mubr.f32.mxu0 0.0
      %3032 = vmatmul.mubr.f32.gmra.mxu0 %v2691
      %v3033 = vpop.f32.mrf.mxu0
      %v3034 = vadd.f32 0.0, %v3033
      %v3035 = vpop.f32.mrf.mxu0
      %v3036 = vadd.f32 0.0, %v3035
      %3037 = vmatprep.mubr.f32.mxu0 0.0
      %3038 = vmatmul.mubr.f32.gmra.mxu0 %v2694
      %v3039 = vpop.f32.mrf.mxu0
      %v3040 = vadd.f32 0.0, %v3039
      %v3041 = vpop.f32.mrf.mxu0
      %v3042 = vadd.f32 0.0, %v3041
      %3043 = vdwg.mxu0
      %v3044 = vadd.f32 %v2362, %v2779
      %v3045 = vadd.f32 %v2364, %v2781
      %v3046 = vadd.f32 %v2445, %v2862
      %v3047 = vadd.f32 %v2447, %v2864
      %v3048 = vadd.f32 %v2528, %v2945
      %v3049 = vadd.f32 %v2530, %v2947
      %v3050 = vadd.f32 %v2611, %v3028
      %v3051 = vadd.f32 %v2613, %v3030
      %v3052 = vadd.f32 %v2368, %v2785
      %v3053 = vadd.f32 %v2370, %v2787
      %v3054 = vadd.f32 %v2451, %v2868
      %v3055 = vadd.f32 %v2453, %v2870
      %v3056 = vadd.f32 %v2534, %v2951
      %v3057 = vadd.f32 %v2536, %v2953
      %v3058 = vadd.f32 %v2617, %v3034
      %v3059 = vadd.f32 %v2619, %v3036
      %v3060 = vadd.f32 %v2374, %v2791
      %v3061 = vadd.f32 %v2376, %v2793
      %v3062 = vadd.f32 %v2457, %v2874
      %v3063 = vadd.f32 %v2459, %v2876
      %v3064 = vadd.f32 %v2540, %v2957
      %v3065 = vadd.f32 %v2542, %v2959
      %v3066 = vadd.f32 %v2623, %v3040
      %v3067 = vadd.f32 %v2625, %v3042
      %3068 = vrot.lane.b32.xlu0 %v1815, 100
      %v3069 = vpop.permute.xlu0 %3068
      %3070 = vrot.lane.b32.xlu0 %v1816, 100
      %v3071 = vpop.permute.xlu0 %3070
      %3072 = vrot.lane.b32.xlu0 %v1817, 100
      %v3073 = vpop.permute.xlu0 %3072
      %3074 = vrot.lane.b32.xlu0 %v1818, 100
      %v3075 = vpop.permute.xlu0 %3074
      %3076 = vrot.lane.b32.xlu0 %v1819, 100
      %v3077 = vpop.permute.xlu0 %3076
      %3078 = vrot.lane.b32.xlu0 %v1820, 100
      %v3079 = vpop.permute.xlu0 %3078
      %3080 = vrot.lane.b32.xlu0 %v1821, 100
      %v3081 = vpop.permute.xlu0 %3080
      %3082 = vrot.lane.b32.xlu0 %v1822, 100
      %v3083 = vpop.permute.xlu0 %3082
      %3084 = vrot.lane.b32.xlu0 %v1831, 100
      %v3085 = vpop.permute.xlu0 %3084
      %3086 = vrot.lane.b32.xlu0 %v1823, 100
      %v3087 = vpop.permute.xlu0 %3086
      %3088 = vrot.lane.b32.xlu0 %v1824, 100
      %v3089 = vpop.permute.xlu0 %3088
      %3090 = vrot.lane.b32.xlu0 %v1825, 100
      %v3091 = vpop.permute.xlu0 %3090
      %3092 = vrot.lane.b32.xlu0 %v1826, 100
      %v3093 = vpop.permute.xlu0 %3092
      %3094 = vrot.lane.b32.xlu0 %v1827, 100
      %v3095 = vpop.permute.xlu0 %3094
      %3096 = vrot.lane.b32.xlu0 %v1828, 100
      %v3097 = vpop.permute.xlu0 %3096
      %3098 = vrot.lane.b32.xlu0 %v1829, 100
      %v3099 = vpop.permute.xlu0 %3098
      %3100 = vrot.lane.b32.xlu0 %v1830, 100
      %v3101 = vpop.permute.xlu0 %3100
      %3102 = vrot.lane.b32.xlu0 %v1832, 100
      %v3103 = vpop.permute.xlu0 %3102
      %v3104 = vsel %vm1000, %v3069, %v3071
      %v3105 = vsel %vm1000, %v3071, %v3073
      %v3106 = vsel %vm1000, %v3073, %v3075
      %v3107 = vsel %vm1000, %v3075, %v3077
      %v3108 = vsel %vm1000, %v3077, %v3079
      %v3109 = vsel %vm1000, %v3079, %v3081
      %v3110 = vsel %vm1000, %v3081, %v3083
      %v3111 = vsel %vm1000, %v3083, %v3085
      %v3112 = vsel %vm1000, %v3087, %v3089
      %v3113 = vsel %vm1000, %v3089, %v3091
      %v3114 = vsel %vm1000, %v3091, %v3093
      %v3115 = vsel %vm1000, %v3093, %v3095
      %v3116 = vsel %vm1000, %v3095, %v3097
      %v3117 = vsel %vm1000, %v3097, %v3099
      %v3118 = vsel %vm1000, %v3099, %v3101
      %v3119 = vsel %vm1000, %v3101, %v3103
      %v3129 = vsel %vm1911, %v1781, 0
      %v3132 = vsel %vm1911, %v1782, 0
      %v3135 = vsel %vm1911, %v1783, 0
      %v3137 = vsel %vm1921, %v3112, 0
      %v3139 = vsel %vm1921, %v3113, 0
      %v3141 = vsel %vm1921, %v3114, 0
      %v3143 = vsel %vm1921, %v3115, 0
      %v3145 = vsel %vm1921, %v3116, 0
      %v3147 = vsel %vm1921, %v3117, 0
      %v3149 = vsel %vm1921, %v3118, 0
      %v3151 = vsel %vm1921, %v3119, 0
      %3153 = vmatprep.subr.mxu0 0.0
      %3154 = vmatpush1.msra.mxu0 0.0
      %3155 = vmatprep.subr.mxu0 0.0
      %3156 = vmatpush1.msra.mxu0 0.0
      %3157 = vmatprep.subr.mxu0 0.0
      %3158 = vmatpush1.msra.mxu0 0.0
      %3159 = vmatprep.subr.mxu0 0.0
      %3160 = vmatpush1.msra.mxu0 0.0
      %3161 = vmatprep.subr.mxu0 0.0
      %3162 = vmatpush1.msra.mxu0 0.0
      %3163 = vmatprep.subr.mxu0 0.0
      %3164 = vmatpush1.msra.mxu0 0.0
      %3165 = vmatprep.subr.mxu0 0.0
      %3166 = vmatpush1.msra.mxu0 0.0
      %3167 = vmatprep.subr.mxu0 0.0
      %3168 = vmatpush1.msra.mxu0 0.0
      %3169 = vmatprep.subr.mxu0 0.0
      %3170 = vmatpush1.msra.mxu0 0.0
      %3171 = vmatprep.subr.mxu0 0.0
      %3172 = vmatpush1.msra.mxu0 0.0
      %3173 = vmatprep.subr.mxu0 0.0
      %3174 = vmatpush1.msra.mxu0 0.0
      %3175 = vmatprep.subr.mxu0 0.0
      %3176 = vmatpush1.msra.mxu0 0.0
      %3177 = vmatprep.subr.mxu0 0.0
      %3178 = vmatpush1.msra.mxu0 0.0
      %3179 = vmatprep.subr.mxu0 0.0
      %3180 = vmatpush1.msra.mxu0 0.0
      %3181 = vmatprep.subr.mxu0 %v3139
      %3182 = vmatpush1.msra.mxu0 %v3137
      %3183 = vmatprep.subr.mxu0 %v3105
      %3184 = vmatpush1.msra.mxu0 %v3104
      %3185 = vmatprep.subr.mxu0 0.0
      %3186 = vmatpush2.msra.mxu0 0.0
      %3187 = vmatprep.subr.mxu0 0.0
      %3188 = vmatpush2.msra.mxu0 0.0
      %3189 = vmatprep.subr.mxu0 0.0
      %3190 = vmatpush2.msra.mxu0 0.0
      %3191 = vmatprep.subr.mxu0 0.0
      %3192 = vmatpush2.msra.mxu0 0.0
      %3193 = vmatprep.subr.mxu0 0.0
      %3194 = vmatpush2.msra.mxu0 0.0
      %3195 = vmatprep.subr.mxu0 0.0
      %3196 = vmatpush2.msra.mxu0 0.0
      %3197 = vmatprep.subr.mxu0 0.0
      %3198 = vmatpush2.msra.mxu0 0.0
      %3199 = vmatprep.subr.mxu0 0.0
      %3200 = vmatpush2.msra.mxu0 0.0
      %3201 = vmatprep.subr.mxu0 0.0
      %3202 = vmatpush2.msra.mxu0 0.0
      %3203 = vmatprep.subr.mxu0 0.0
      %3204 = vmatpush2.msra.mxu0 0.0
      %3205 = vmatprep.subr.mxu0 0.0
      %3206 = vmatpush2.msra.mxu0 0.0
      %3207 = vmatprep.subr.mxu0 0.0
      %3208 = vmatpush2.msra.mxu0 0.0
      %3209 = vmatprep.subr.mxu0 0.0
      %3210 = vmatpush2.msra.mxu0 0.0
      %3211 = vmatprep.subr.mxu0 0.0
      %3212 = vmatpush2.msra.mxu0 0.0
      %3213 = vmatprep.subr.mxu0 0.0
      %3214 = vmatpush2.msra.mxu0 0.0
      %3215 = vmatprep.subr.mxu0 0.0
      %3216 = vmatpush2.msra.mxu0 0.0
      %3217 = vmatprep.mubr.f32.mxu0 0.0
      %3218 = vmatmul.mubr.f32.gmra.mxu0 %v3129
      %v3219 = vpop.f32.mrf.mxu0
      %v3220 = vadd.f32 0.0, %v3219
      %v3221 = vpop.f32.mrf.mxu0
      %v3222 = vadd.f32 0.0, %v3221
      %3223 = vmatprep.mubr.f32.mxu0 0.0
      %3224 = vmatmul.mubr.f32.gmra.mxu0 %v3132
      %v3225 = vpop.f32.mrf.mxu0
      %v3226 = vadd.f32 0.0, %v3225
      %v3227 = vpop.f32.mrf.mxu0
      %v3228 = vadd.f32 0.0, %v3227
      %3229 = vmatprep.mubr.f32.mxu0 0.0
      %3230 = vmatmul.mubr.f32.gmra.mxu0 %v3135
      %v3231 = vpop.f32.mrf.mxu0
      %v3232 = vadd.f32 0.0, %v3231
      %v3233 = vpop.f32.mrf.mxu0
      %v3234 = vadd.f32 0.0, %v3233
      %3235 = vdwg.mxu0
      %3236 = vmatprep.subr.mxu0 0.0
      %3237 = vmatpush1.msra.mxu0 0.0
      %3238 = vmatprep.subr.mxu0 0.0
      %3239 = vmatpush1.msra.mxu0 0.0
      %3240 = vmatprep.subr.mxu0 0.0
      %3241 = vmatpush1.msra.mxu0 0.0
      %3242 = vmatprep.subr.mxu0 0.0
      %3243 = vmatpush1.msra.mxu0 0.0
      %3244 = vmatprep.subr.mxu0 0.0
      %3245 = vmatpush1.msra.mxu0 0.0
      %3246 = vmatprep.subr.mxu0 0.0
      %3247 = vmatpush1.msra.mxu0 0.0
      %3248 = vmatprep.subr.mxu0 0.0
      %3249 = vmatpush1.msra.mxu0 0.0
      %3250 = vmatprep.subr.mxu0 0.0
      %3251 = vmatpush1.msra.mxu0 0.0
      %3252 = vmatprep.subr.mxu0 0.0
      %3253 = vmatpush1.msra.mxu0 0.0
      %3254 = vmatprep.subr.mxu0 0.0
      %3255 = vmatpush1.msra.mxu0 0.0
      %3256 = vmatprep.subr.mxu0 0.0
      %3257 = vmatpush1.msra.mxu0 0.0
      %3258 = vmatprep.subr.mxu0 0.0
      %3259 = vmatpush1.msra.mxu0 0.0
      %3260 = vmatprep.subr.mxu0 0.0
      %3261 = vmatpush1.msra.mxu0 0.0
      %3262 = vmatprep.subr.mxu0 0.0
      %3263 = vmatpush1.msra.mxu0 0.0
      %3264 = vmatprep.subr.mxu0 %v3143
      %3265 = vmatpush1.msra.mxu0 %v3141
      %3266 = vmatprep.subr.mxu0 %v3107
      %3267 = vmatpush1.msra.mxu0 %v3106
      %3268 = vmatprep.subr.mxu0 0.0
      %3269 = vmatpush2.msra.mxu0 0.0
      %3270 = vmatprep.subr.mxu0 0.0
      %3271 = vmatpush2.msra.mxu0 0.0
      %3272 = vmatprep.subr.mxu0 0.0
      %3273 = vmatpush2.msra.mxu0 0.0
      %3274 = vmatprep.subr.mxu0 0.0
      %3275 = vmatpush2.msra.mxu0 0.0
      %3276 = vmatprep.subr.mxu0 0.0
      %3277 = vmatpush2.msra.mxu0 0.0
      %3278 = vmatprep.subr.mxu0 0.0
      %3279 = vmatpush2.msra.mxu0 0.0
      %3280 = vmatprep.subr.mxu0 0.0
      %3281 = vmatpush2.msra.mxu0 0.0
      %3282 = vmatprep.subr.mxu0 0.0
      %3283 = vmatpush2.msra.mxu0 0.0
      %3284 = vmatprep.subr.mxu0 0.0
      %3285 = vmatpush2.msra.mxu0 0.0
      %3286 = vmatprep.subr.mxu0 0.0
      %3287 = vmatpush2.msra.mxu0 0.0
      %3288 = vmatprep.subr.mxu0 0.0
      %3289 = vmatpush2.msra.mxu0 0.0
      %3290 = vmatprep.subr.mxu0 0.0
      %3291 = vmatpush2.msra.mxu0 0.0
      %3292 = vmatprep.subr.mxu0 0.0
      %3293 = vmatpush2.msra.mxu0 0.0
      %3294 = vmatprep.subr.mxu0 0.0
      %3295 = vmatpush2.msra.mxu0 0.0
      %3296 = vmatprep.subr.mxu0 0.0
      %3297 = vmatpush2.msra.mxu0 0.0
      %3298 = vmatprep.subr.mxu0 0.0
      %3299 = vmatpush2.msra.mxu0 0.0
      %3300 = vmatprep.mubr.f32.mxu0 0.0
      %3301 = vmatmul.mubr.f32.gmra.mxu0 %v3129
      %v3302 = vpop.f32.mrf.mxu0
      %v3303 = vadd.f32 0.0, %v3302
      %v3304 = vpop.f32.mrf.mxu0
      %v3305 = vadd.f32 0.0, %v3304
      %3306 = vmatprep.mubr.f32.mxu0 0.0
      %3307 = vmatmul.mubr.f32.gmra.mxu0 %v3132
      %v3308 = vpop.f32.mrf.mxu0
      %v3309 = vadd.f32 0.0, %v3308
      %v3310 = vpop.f32.mrf.mxu0
      %v3311 = vadd.f32 0.0, %v3310
      %3312 = vmatprep.mubr.f32.mxu0 0.0
      %3313 = vmatmul.mubr.f32.gmra.mxu0 %v3135
      %v3314 = vpop.f32.mrf.mxu0
      %v3315 = vadd.f32 0.0, %v3314
      %v3316 = vpop.f32.mrf.mxu0
      %v3317 = vadd.f32 0.0, %v3316
      %3318 = vdwg.mxu0
      %3319 = vmatprep.subr.mxu0 0.0
      %3320 = vmatpush1.msra.mxu0 0.0
      %3321 = vmatprep.subr.mxu0 0.0
      %3322 = vmatpush1.msra.mxu0 0.0
      %3323 = vmatprep.subr.mxu0 0.0
      %3324 = vmatpush1.msra.mxu0 0.0
      %3325 = vmatprep.subr.mxu0 0.0
      %3326 = vmatpush1.msra.mxu0 0.0
      %3327 = vmatprep.subr.mxu0 0.0
      %3328 = vmatpush1.msra.mxu0 0.0
      %3329 = vmatprep.subr.mxu0 0.0
      %3330 = vmatpush1.msra.mxu0 0.0
      %3331 = vmatprep.subr.mxu0 0.0
      %3332 = vmatpush1.msra.mxu0 0.0
      %3333 = vmatprep.subr.mxu0 0.0
      %3334 = vmatpush1.msra.mxu0 0.0
      %3335 = vmatprep.subr.mxu0 0.0
      %3336 = vmatpush1.msra.mxu0 0.0
      %3337 = vmatprep.subr.mxu0 0.0
      %3338 = vmatpush1.msra.mxu0 0.0
      %3339 = vmatprep.subr.mxu0 0.0
      %3340 = vmatpush1.msra.mxu0 0.0
      %3341 = vmatprep.subr.mxu0 0.0
      %3342 = vmatpush1.msra.mxu0 0.0
      %3343 = vmatprep.subr.mxu0 0.0
      %3344 = vmatpush1.msra.mxu0 0.0
      %3345 = vmatprep.subr.mxu0 0.0
      %3346 = vmatpush1.msra.mxu0 0.0
      %3347 = vmatprep.subr.mxu0 %v3147
      %3348 = vmatpush1.msra.mxu0 %v3145
      %3349 = vmatprep.subr.mxu0 %v3109
      %3350 = vmatpush1.msra.mxu0 %v3108
      %3351 = vmatprep.subr.mxu0 0.0
      %3352 = vmatpush2.msra.mxu0 0.0
      %3353 = vmatprep.subr.mxu0 0.0
      %3354 = vmatpush2.msra.mxu0 0.0
      %3355 = vmatprep.subr.mxu0 0.0
      %3356 = vmatpush2.msra.mxu0 0.0
      %3357 = vmatprep.subr.mxu0 0.0
      %3358 = vmatpush2.msra.mxu0 0.0
      %3359 = vmatprep.subr.mxu0 0.0
      %3360 = vmatpush2.msra.mxu0 0.0
      %3361 = vmatprep.subr.mxu0 0.0
      %3362 = vmatpush2.msra.mxu0 0.0
      %3363 = vmatprep.subr.mxu0 0.0
      %3364 = vmatpush2.msra.mxu0 0.0
      %3365 = vmatprep.subr.mxu0 0.0
      %3366 = vmatpush2.msra.mxu0 0.0
      %3367 = vmatprep.subr.mxu0 0.0
      %3368 = vmatpush2.msra.mxu0 0.0
      %3369 = vmatprep.subr.mxu0 0.0
      %3370 = vmatpush2.msra.mxu0 0.0
      %3371 = vmatprep.subr.mxu0 0.0
      %3372 = vmatpush2.msra.mxu0 0.0
      %3373 = vmatprep.subr.mxu0 0.0
      %3374 = vmatpush2.msra.mxu0 0.0
      %3375 = vmatprep.subr.mxu0 0.0
      %3376 = vmatpush2.msra.mxu0 0.0
      %3377 = vmatprep.subr.mxu0 0.0
      %3378 = vmatpush2.msra.mxu0 0.0
      %3379 = vmatprep.subr.mxu0 0.0
      %3380 = vmatpush2.msra.mxu0 0.0
      %3381 = vmatprep.subr.mxu0 0.0
      %3382 = vmatpush2.msra.mxu0 0.0
      %3383 = vmatprep.mubr.f32.mxu0 0.0
      %3384 = vmatmul.mubr.f32.gmra.mxu0 %v3129
      %v3385 = vpop.f32.mrf.mxu0
      %v3386 = vadd.f32 0.0, %v3385
      %v3387 = vpop.f32.mrf.mxu0
      %v3388 = vadd.f32 0.0, %v3387
      %3389 = vmatprep.mubr.f32.mxu0 0.0
      %3390 = vmatmul.mubr.f32.gmra.mxu0 %v3132
      %v3391 = vpop.f32.mrf.mxu0
      %v3392 = vadd.f32 0.0, %v3391
      %v3393 = vpop.f32.mrf.mxu0
      %v3394 = vadd.f32 0.0, %v3393
      %3395 = vmatprep.mubr.f32.mxu0 0.0
      %3396 = vmatmul.mubr.f32.gmra.mxu0 %v3135
      %v3397 = vpop.f32.mrf.mxu0
      %v3398 = vadd.f32 0.0, %v3397
      %v3399 = vpop.f32.mrf.mxu0
      %v3400 = vadd.f32 0.0, %v3399
      %3401 = vdwg.mxu0
      %3402 = vmatprep.subr.mxu0 0.0
      %3403 = vmatpush1.msra.mxu0 0.0
      %3404 = vmatprep.subr.mxu0 0.0
      %3405 = vmatpush1.msra.mxu0 0.0
      %3406 = vmatprep.subr.mxu0 0.0
      %3407 = vmatpush1.msra.mxu0 0.0
      %3408 = vmatprep.subr.mxu0 0.0
      %3409 = vmatpush1.msra.mxu0 0.0
      %3410 = vmatprep.subr.mxu0 0.0
      %3411 = vmatpush1.msra.mxu0 0.0
      %3412 = vmatprep.subr.mxu0 0.0
      %3413 = vmatpush1.msra.mxu0 0.0
      %3414 = vmatprep.subr.mxu0 0.0
      %3415 = vmatpush1.msra.mxu0 0.0
      %3416 = vmatprep.subr.mxu0 0.0
      %3417 = vmatpush1.msra.mxu0 0.0
      %3418 = vmatprep.subr.mxu0 0.0
      %3419 = vmatpush1.msra.mxu0 0.0
      %3420 = vmatprep.subr.mxu0 0.0
      %3421 = vmatpush1.msra.mxu0 0.0
      %3422 = vmatprep.subr.mxu0 0.0
      %3423 = vmatpush1.msra.mxu0 0.0
      %3424 = vmatprep.subr.mxu0 0.0
      %3425 = vmatpush1.msra.mxu0 0.0
      %3426 = vmatprep.subr.mxu0 0.0
      %3427 = vmatpush1.msra.mxu0 0.0
      %3428 = vmatprep.subr.mxu0 0.0
      %3429 = vmatpush1.msra.mxu0 0.0
      %3430 = vmatprep.subr.mxu0 %v3151
      %3431 = vmatpush1.msra.mxu0 %v3149
      %3432 = vmatprep.subr.mxu0 %v3111
      %3433 = vmatpush1.msra.mxu0 %v3110
      %3434 = vmatprep.subr.mxu0 0.0
      %3435 = vmatpush2.msra.mxu0 0.0
      %3436 = vmatprep.subr.mxu0 0.0
      %3437 = vmatpush2.msra.mxu0 0.0
      %3438 = vmatprep.subr.mxu0 0.0
      %3439 = vmatpush2.msra.mxu0 0.0
      %3440 = vmatprep.subr.mxu0 0.0
      %3441 = vmatpush2.msra.mxu0 0.0
      %3442 = vmatprep.subr.mxu0 0.0
      %3443 = vmatpush2.msra.mxu0 0.0
      %3444 = vmatprep.subr.mxu0 0.0
      %3445 = vmatpush2.msra.mxu0 0.0
      %3446 = vmatprep.subr.mxu0 0.0
      %3447 = vmatpush2.msra.mxu0 0.0
      %3448 = vmatprep.subr.mxu0 0.0
      %3449 = vmatpush2.msra.mxu0 0.0
      %3450 = vmatprep.subr.mxu0 0.0
      %3451 = vmatpush2.msra.mxu0 0.0
      %3452 = vmatprep.subr.mxu0 0.0
      %3453 = vmatpush2.msra.mxu0 0.0
      %3454 = vmatprep.subr.mxu0 0.0
      %3455 = vmatpush2.msra.mxu0 0.0
      %3456 = vmatprep.subr.mxu0 0.0
      %3457 = vmatpush2.msra.mxu0 0.0
      %3458 = vmatprep.subr.mxu0 0.0
      %3459 = vmatpush2.msra.mxu0 0.0
      %3460 = vmatprep.subr.mxu0 0.0
      %3461 = vmatpush2.msra.mxu0 0.0
      %3462 = vmatprep.subr.mxu0 0.0
      %3463 = vmatpush2.msra.mxu0 0.0
      %3464 = vmatprep.subr.mxu0 0.0
      %3465 = vmatpush2.msra.mxu0 0.0
      %3466 = vmatprep.mubr.f32.mxu0 0.0
      %3467 = vmatmul.mubr.f32.gmra.mxu0 %v3129
      %v3468 = vpop.f32.mrf.mxu0
      %v3469 = vadd.f32 0.0, %v3468
      %v3470 = vpop.f32.mrf.mxu0
      %v3471 = vadd.f32 0.0, %v3470
      %3472 = vmatprep.mubr.f32.mxu0 0.0
      %3473 = vmatmul.mubr.f32.gmra.mxu0 %v3132
      %v3474 = vpop.f32.mrf.mxu0
      %v3475 = vadd.f32 0.0, %v3474
      %v3476 = vpop.f32.mrf.mxu0
      %v3477 = vadd.f32 0.0, %v3476
      %3478 = vmatprep.mubr.f32.mxu0 0.0
      %3479 = vmatmul.mubr.f32.gmra.mxu0 %v3135
      %v3480 = vpop.f32.mrf.mxu0
      %v3481 = vadd.f32 0.0, %v3480
      %v3482 = vpop.f32.mrf.mxu0
      %v3483 = vadd.f32 0.0, %v3482
      %3484 = vdwg.mxu0
      %v3485 = vadd.f32 %v3044, %v3220
      %v3486 = vadd.f32 %v3045, %v3222
      %v3487 = vadd.f32 %v3046, %v3303
      %v3488 = vadd.f32 %v3047, %v3305
      %v3489 = vadd.f32 %v3048, %v3386
      %v3490 = vadd.f32 %v3049, %v3388
      %v3491 = vadd.f32 %v3050, %v3469
      %v3492 = vadd.f32 %v3051, %v3471
      %v3493 = vadd.f32 %v3052, %v3226
      %v3494 = vadd.f32 %v3053, %v3228
      %v3495 = vadd.f32 %v3054, %v3309
      %v3496 = vadd.f32 %v3055, %v3311
      %v3497 = vadd.f32 %v3056, %v3392
      %v3498 = vadd.f32 %v3057, %v3394
      %v3499 = vadd.f32 %v3058, %v3475
      %v3500 = vadd.f32 %v3059, %v3477
      %v3501 = vadd.f32 %v3060, %v3232
      %v3502 = vadd.f32 %v3061, %v3234
      %v3503 = vadd.f32 %v3062, %v3315
      %v3504 = vadd.f32 %v3063, %v3317
      %v3505 = vadd.f32 %v3064, %v3398
      %v3506 = vadd.f32 %v3065, %v3400
      %v3507 = vadd.f32 %v3066, %v3481
      %v3508 = vadd.f32 %v3067, %v3483
      %3509 = vrot.lane.b32.xlu0 %v1815, 99
      %v3510 = vpop.permute.xlu0 %3509
      %3511 = vrot.lane.b32.xlu0 %v1816, 99
      %v3512 = vpop.permute.xlu0 %3511
      %3513 = vrot.lane.b32.xlu0 %v1817, 99
      %v3514 = vpop.permute.xlu0 %3513
      %3515 = vrot.lane.b32.xlu0 %v1818, 99
      %v3516 = vpop.permute.xlu0 %3515
      %3517 = vrot.lane.b32.xlu0 %v1819, 99
      %v3518 = vpop.permute.xlu0 %3517
      %3519 = vrot.lane.b32.xlu0 %v1820, 99
      %v3520 = vpop.permute.xlu0 %3519
      %3521 = vrot.lane.b32.xlu0 %v1821, 99
      %v3522 = vpop.permute.xlu0 %3521
      %3523 = vrot.lane.b32.xlu0 %v1822, 99
      %v3524 = vpop.permute.xlu0 %3523
      %3525 = vrot.lane.b32.xlu0 %v1831, 99
      %v3526 = vpop.permute.xlu0 %3525
      %3527 = vrot.lane.b32.xlu0 %v1823, 99
      %v3528 = vpop.permute.xlu0 %3527
      %3529 = vrot.lane.b32.xlu0 %v1824, 99
      %v3530 = vpop.permute.xlu0 %3529
      %3531 = vrot.lane.b32.xlu0 %v1825, 99
      %v3532 = vpop.permute.xlu0 %3531
      %3533 = vrot.lane.b32.xlu0 %v1826, 99
      %v3534 = vpop.permute.xlu0 %3533
      %3535 = vrot.lane.b32.xlu0 %v1827, 99
      %v3536 = vpop.permute.xlu0 %3535
      %3537 = vrot.lane.b32.xlu0 %v1828, 99
      %v3538 = vpop.permute.xlu0 %3537
      %3539 = vrot.lane.b32.xlu0 %v1829, 99
      %v3540 = vpop.permute.xlu0 %3539
      %3541 = vrot.lane.b32.xlu0 %v1830, 99
      %v3542 = vpop.permute.xlu0 %3541
      %3543 = vrot.lane.b32.xlu0 %v1832, 99
      %v3544 = vpop.permute.xlu0 %3543
      %v3545 = vsel %vm1131, %v3510, %v3512
      %v3546 = vsel %vm1131, %v3512, %v3514
      %v3547 = vsel %vm1131, %v3514, %v3516
      %v3548 = vsel %vm1131, %v3516, %v3518
      %v3549 = vsel %vm1131, %v3518, %v3520
      %v3550 = vsel %vm1131, %v3520, %v3522
      %v3551 = vsel %vm1131, %v3522, %v3524
      %v3552 = vsel %vm1131, %v3524, %v3526
      %v3553 = vsel %vm1131, %v3528, %v3530
      %v3554 = vsel %vm1131, %v3530, %v3532
      %v3555 = vsel %vm1131, %v3532, %v3534
      %v3556 = vsel %vm1131, %v3534, %v3536
      %v3557 = vsel %vm1131, %v3536, %v3538
      %v3558 = vsel %vm1131, %v3538, %v3540
      %v3559 = vsel %vm1131, %v3540, %v3542
      %v3560 = vsel %vm1131, %v3542, %v3544
      %v3570 = vsel %vm1911, %v1784, 0
      %v3573 = vsel %vm1911, %v1785, 0
      %v3576 = vsel %vm1911, %v1786, 0
      %v3578 = vsel %vm1921, %v3553, 0
      %v3580 = vsel %vm1921, %v3554, 0
      %v3582 = vsel %vm1921, %v3555, 0
      %v3584 = vsel %vm1921, %v3556, 0
      %v3586 = vsel %vm1921, %v3557, 0
      %v3588 = vsel %vm1921, %v3558, 0
      %v3590 = vsel %vm1921, %v3559, 0
      %v3592 = vsel %vm1921, %v3560, 0
      %3594 = vmatprep.subr.mxu0 0.0
      %3595 = vmatpush1.msra.mxu0 0.0
      %3596 = vmatprep.subr.mxu0 0.0
      %3597 = vmatpush1.msra.mxu0 0.0
      %3598 = vmatprep.subr.mxu0 0.0
      %3599 = vmatpush1.msra.mxu0 0.0
      %3600 = vmatprep.subr.mxu0 0.0
      %3601 = vmatpush1.msra.mxu0 0.0
      %3602 = vmatprep.subr.mxu0 0.0
      %3603 = vmatpush1.msra.mxu0 0.0
      %3604 = vmatprep.subr.mxu0 0.0
      %3605 = vmatpush1.msra.mxu0 0.0
      %3606 = vmatprep.subr.mxu0 0.0
      %3607 = vmatpush1.msra.mxu0 0.0
      %3608 = vmatprep.subr.mxu0 0.0
      %3609 = vmatpush1.msra.mxu0 0.0
      %3610 = vmatprep.subr.mxu0 0.0
      %3611 = vmatpush1.msra.mxu0 0.0
      %3612 = vmatprep.subr.mxu0 0.0
      %3613 = vmatpush1.msra.mxu0 0.0
      %3614 = vmatprep.subr.mxu0 0.0
      %3615 = vmatpush1.msra.mxu0 0.0
      %3616 = vmatprep.subr.mxu0 0.0
      %3617 = vmatpush1.msra.mxu0 0.0
      %3618 = vmatprep.subr.mxu0 0.0
      %3619 = vmatpush1.msra.mxu0 0.0
      %3620 = vmatprep.subr.mxu0 0.0
      %3621 = vmatpush1.msra.mxu0 0.0
      %3622 = vmatprep.subr.mxu0 %v3580
      %3623 = vmatpush1.msra.mxu0 %v3578
      %3624 = vmatprep.subr.mxu0 %v3546
      %3625 = vmatpush1.msra.mxu0 %v3545
      %3626 = vmatprep.subr.mxu0 0.0
      %3627 = vmatpush2.msra.mxu0 0.0
      %3628 = vmatprep.subr.mxu0 0.0
      %3629 = vmatpush2.msra.mxu0 0.0
      %3630 = vmatprep.subr.mxu0 0.0
      %3631 = vmatpush2.msra.mxu0 0.0
      %3632 = vmatprep.subr.mxu0 0.0
      %3633 = vmatpush2.msra.mxu0 0.0
      %3634 = vmatprep.subr.mxu0 0.0
      %3635 = vmatpush2.msra.mxu0 0.0
      %3636 = vmatprep.subr.mxu0 0.0
      %3637 = vmatpush2.msra.mxu0 0.0
      %3638 = vmatprep.subr.mxu0 0.0
      %3639 = vmatpush2.msra.mxu0 0.0
      %3640 = vmatprep.subr.mxu0 0.0
      %3641 = vmatpush2.msra.mxu0 0.0
      %3642 = vmatprep.subr.mxu0 0.0
      %3643 = vmatpush2.msra.mxu0 0.0
      %3644 = vmatprep.subr.mxu0 0.0
      %3645 = vmatpush2.msra.mxu0 0.0
      %3646 = vmatprep.subr.mxu0 0.0
      %3647 = vmatpush2.msra.mxu0 0.0
      %3648 = vmatprep.subr.mxu0 0.0
      %3649 = vmatpush2.msra.mxu0 0.0
      %3650 = vmatprep.subr.mxu0 0.0
      %3651 = vmatpush2.msra.mxu0 0.0
      %3652 = vmatprep.subr.mxu0 0.0
      %3653 = vmatpush2.msra.mxu0 0.0
      %3654 = vmatprep.subr.mxu0 0.0
      %3655 = vmatpush2.msra.mxu0 0.0
      %3656 = vmatprep.subr.mxu0 0.0
      %3657 = vmatpush2.msra.mxu0 0.0
      %3658 = vmatprep.mubr.f32.mxu0 0.0
      %3659 = vmatmul.mubr.f32.gmra.mxu0 %v3570
      %v3660 = vpop.f32.mrf.mxu0
      %v3661 = vadd.f32 0.0, %v3660
      %v3662 = vpop.f32.mrf.mxu0
      %v3663 = vadd.f32 0.0, %v3662
      %3664 = vmatprep.mubr.f32.mxu0 0.0
      %3665 = vmatmul.mubr.f32.gmra.mxu0 %v3573
      %v3666 = vpop.f32.mrf.mxu0
      %v3667 = vadd.f32 0.0, %v3666
      %v3668 = vpop.f32.mrf.mxu0
      %v3669 = vadd.f32 0.0, %v3668
      %3670 = vmatprep.mubr.f32.mxu0 0.0
      %3671 = vmatmul.mubr.f32.gmra.mxu0 %v3576
      %v3672 = vpop.f32.mrf.mxu0
      %v3673 = vadd.f32 0.0, %v3672
      %v3674 = vpop.f32.mrf.mxu0
      %v3675 = vadd.f32 0.0, %v3674
      %3676 = vdwg.mxu0
      %3677 = vmatprep.subr.mxu0 0.0
      %3678 = vmatpush1.msra.mxu0 0.0
      %3679 = vmatprep.subr.mxu0 0.0
      %3680 = vmatpush1.msra.mxu0 0.0
      %3681 = vmatprep.subr.mxu0 0.0
      %3682 = vmatpush1.msra.mxu0 0.0
      %3683 = vmatprep.subr.mxu0 0.0
      %3684 = vmatpush1.msra.mxu0 0.0
      %3685 = vmatprep.subr.mxu0 0.0
      %3686 = vmatpush1.msra.mxu0 0.0
      %3687 = vmatprep.subr.mxu0 0.0
      %3688 = vmatpush1.msra.mxu0 0.0
      %3689 = vmatprep.subr.mxu0 0.0
      %3690 = vmatpush1.msra.mxu0 0.0
      %3691 = vmatprep.subr.mxu0 0.0
      %3692 = vmatpush1.msra.mxu0 0.0
      %3693 = vmatprep.subr.mxu0 0.0
      %3694 = vmatpush1.msra.mxu0 0.0
      %3695 = vmatprep.subr.mxu0 0.0
      %3696 = vmatpush1.msra.mxu0 0.0
      %3697 = vmatprep.subr.mxu0 0.0
      %3698 = vmatpush1.msra.mxu0 0.0
      %3699 = vmatprep.subr.mxu0 0.0
      %3700 = vmatpush1.msra.mxu0 0.0
      %3701 = vmatprep.subr.mxu0 0.0
      %3702 = vmatpush1.msra.mxu0 0.0
      %3703 = vmatprep.subr.mxu0 0.0
      %3704 = vmatpush1.msra.mxu0 0.0
      %3705 = vmatprep.subr.mxu0 %v3584
      %3706 = vmatpush1.msra.mxu0 %v3582
      %3707 = vmatprep.subr.mxu0 %v3548
      %3708 = vmatpush1.msra.mxu0 %v3547
      %3709 = vmatprep.subr.mxu0 0.0
      %3710 = vmatpush2.msra.mxu0 0.0
      %3711 = vmatprep.subr.mxu0 0.0
      %3712 = vmatpush2.msra.mxu0 0.0
      %3713 = vmatprep.subr.mxu0 0.0
      %3714 = vmatpush2.msra.mxu0 0.0
      %3715 = vmatprep.subr.mxu0 0.0
      %3716 = vmatpush2.msra.mxu0 0.0
      %3717 = vmatprep.subr.mxu0 0.0
      %3718 = vmatpush2.msra.mxu0 0.0
      %3719 = vmatprep.subr.mxu0 0.0
      %3720 = vmatpush2.msra.mxu0 0.0
      %3721 = vmatprep.subr.mxu0 0.0
      %3722 = vmatpush2.msra.mxu0 0.0
      %3723 = vmatprep.subr.mxu0 0.0
      %3724 = vmatpush2.msra.mxu0 0.0
      %3725 = vmatprep.subr.mxu0 0.0
      %3726 = vmatpush2.msra.mxu0 0.0
      %3727 = vmatprep.subr.mxu0 0.0
      %3728 = vmatpush2.msra.mxu0 0.0
      %3729 = vmatprep.subr.mxu0 0.0
      %3730 = vmatpush2.msra.mxu0 0.0
      %3731 = vmatprep.subr.mxu0 0.0
      %3732 = vmatpush2.msra.mxu0 0.0
      %3733 = vmatprep.subr.mxu0 0.0
      %3734 = vmatpush2.msra.mxu0 0.0
      %3735 = vmatprep.subr.mxu0 0.0
      %3736 = vmatpush2.msra.mxu0 0.0
      %3737 = vmatprep.subr.mxu0 0.0
      %3738 = vmatpush2.msra.mxu0 0.0
      %3739 = vmatprep.subr.mxu0 0.0
      %3740 = vmatpush2.msra.mxu0 0.0
      %3741 = vmatprep.mubr.f32.mxu0 0.0
      %3742 = vmatmul.mubr.f32.gmra.mxu0 %v3570
      %v3743 = vpop.f32.mrf.mxu0
      %v3744 = vadd.f32 0.0, %v3743
      %v3745 = vpop.f32.mrf.mxu0
      %v3746 = vadd.f32 0.0, %v3745
      %3747 = vmatprep.mubr.f32.mxu0 0.0
      %3748 = vmatmul.mubr.f32.gmra.mxu0 %v3573
      %v3749 = vpop.f32.mrf.mxu0
      %v3750 = vadd.f32 0.0, %v3749
      %v3751 = vpop.f32.mrf.mxu0
      %v3752 = vadd.f32 0.0, %v3751
      %3753 = vmatprep.mubr.f32.mxu0 0.0
      %3754 = vmatmul.mubr.f32.gmra.mxu0 %v3576
      %v3755 = vpop.f32.mrf.mxu0
      %v3756 = vadd.f32 0.0, %v3755
      %v3757 = vpop.f32.mrf.mxu0
      %v3758 = vadd.f32 0.0, %v3757
      %3759 = vdwg.mxu0
      %3760 = vmatprep.subr.mxu0 0.0
      %3761 = vmatpush1.msra.mxu0 0.0
      %3762 = vmatprep.subr.mxu0 0.0
      %3763 = vmatpush1.msra.mxu0 0.0
      %3764 = vmatprep.subr.mxu0 0.0
      %3765 = vmatpush1.msra.mxu0 0.0
      %3766 = vmatprep.subr.mxu0 0.0
      %3767 = vmatpush1.msra.mxu0 0.0
      %3768 = vmatprep.subr.mxu0 0.0
      %3769 = vmatpush1.msra.mxu0 0.0
      %3770 = vmatprep.subr.mxu0 0.0
      %3771 = vmatpush1.msra.mxu0 0.0
      %3772 = vmatprep.subr.mxu0 0.0
      %3773 = vmatpush1.msra.mxu0 0.0
      %3774 = vmatprep.subr.mxu0 0.0
      %3775 = vmatpush1.msra.mxu0 0.0
      %3776 = vmatprep.subr.mxu0 0.0
      %3777 = vmatpush1.msra.mxu0 0.0
      %3778 = vmatprep.subr.mxu0 0.0
      %3779 = vmatpush1.msra.mxu0 0.0
      %3780 = vmatprep.subr.mxu0 0.0
      %3781 = vmatpush1.msra.mxu0 0.0
      %3782 = vmatprep.subr.mxu0 0.0
      %3783 = vmatpush1.msra.mxu0 0.0
      %3784 = vmatprep.subr.mxu0 0.0
      %3785 = vmatpush1.msra.mxu0 0.0
      %3786 = vmatprep.subr.mxu0 0.0
      %3787 = vmatpush1.msra.mxu0 0.0
      %3788 = vmatprep.subr.mxu0 %v3588
      %3789 = vmatpush1.msra.mxu0 %v3586
      %3790 = vmatprep.subr.mxu0 %v3550
      %3791 = vmatpush1.msra.mxu0 %v3549
      %3792 = vmatprep.subr.mxu0 0.0
      %3793 = vmatpush2.msra.mxu0 0.0
      %3794 = vmatprep.subr.mxu0 0.0
      %3795 = vmatpush2.msra.mxu0 0.0
      %3796 = vmatprep.subr.mxu0 0.0
      %3797 = vmatpush2.msra.mxu0 0.0
      %3798 = vmatprep.subr.mxu0 0.0
      %3799 = vmatpush2.msra.mxu0 0.0
      %3800 = vmatprep.subr.mxu0 0.0
      %3801 = vmatpush2.msra.mxu0 0.0
      %3802 = vmatprep.subr.mxu0 0.0
      %3803 = vmatpush2.msra.mxu0 0.0
      %3804 = vmatprep.subr.mxu0 0.0
      %3805 = vmatpush2.msra.mxu0 0.0
      %3806 = vmatprep.subr.mxu0 0.0
      %3807 = vmatpush2.msra.mxu0 0.0
      %3808 = vmatprep.subr.mxu0 0.0
      %3809 = vmatpush2.msra.mxu0 0.0
      %3810 = vmatprep.subr.mxu0 0.0
      %3811 = vmatpush2.msra.mxu0 0.0
      %3812 = vmatprep.subr.mxu0 0.0
      %3813 = vmatpush2.msra.mxu0 0.0
      %3814 = vmatprep.subr.mxu0 0.0
      %3815 = vmatpush2.msra.mxu0 0.0
      %3816 = vmatprep.subr.mxu0 0.0
      %3817 = vmatpush2.msra.mxu0 0.0
      %3818 = vmatprep.subr.mxu0 0.0
      %3819 = vmatpush2.msra.mxu0 0.0
      %3820 = vmatprep.subr.mxu0 0.0
      %3821 = vmatpush2.msra.mxu0 0.0
      %3822 = vmatprep.subr.mxu0 0.0
      %3823 = vmatpush2.msra.mxu0 0.0
      %3824 = vmatprep.mubr.f32.mxu0 0.0
      %3825 = vmatmul.mubr.f32.gmra.mxu0 %v3570
      %v3826 = vpop.f32.mrf.mxu0
      %v3827 = vadd.f32 0.0, %v3826
      %v3828 = vpop.f32.mrf.mxu0
      %v3829 = vadd.f32 0.0, %v3828
      %3830 = vmatprep.mubr.f32.mxu0 0.0
      %3831 = vmatmul.mubr.f32.gmra.mxu0 %v3573
      %v3832 = vpop.f32.mrf.mxu0
      %v3833 = vadd.f32 0.0, %v3832
      %v3834 = vpop.f32.mrf.mxu0
      %v3835 = vadd.f32 0.0, %v3834
      %3836 = vmatprep.mubr.f32.mxu0 0.0
      %3837 = vmatmul.mubr.f32.gmra.mxu0 %v3576
      %v3838 = vpop.f32.mrf.mxu0
      %v3839 = vadd.f32 0.0, %v3838
      %v3840 = vpop.f32.mrf.mxu0
      %v3841 = vadd.f32 0.0, %v3840
      %3842 = vdwg.mxu0
      %3843 = vmatprep.subr.mxu0 0.0
      %3844 = vmatpush1.msra.mxu0 0.0
      %3845 = vmatprep.subr.mxu0 0.0
      %3846 = vmatpush1.msra.mxu0 0.0
      %3847 = vmatprep.subr.mxu0 0.0
      %3848 = vmatpush1.msra.mxu0 0.0
      %3849 = vmatprep.subr.mxu0 0.0
      %3850 = vmatpush1.msra.mxu0 0.0
      %3851 = vmatprep.subr.mxu0 0.0
      %3852 = vmatpush1.msra.mxu0 0.0
      %3853 = vmatprep.subr.mxu0 0.0
      %3854 = vmatpush1.msra.mxu0 0.0
      %3855 = vmatprep.subr.mxu0 0.0
      %3856 = vmatpush1.msra.mxu0 0.0
      %3857 = vmatprep.subr.mxu0 0.0
      %3858 = vmatpush1.msra.mxu0 0.0
      %3859 = vmatprep.subr.mxu0 0.0
      %3860 = vmatpush1.msra.mxu0 0.0
      %3861 = vmatprep.subr.mxu0 0.0
      %3862 = vmatpush1.msra.mxu0 0.0
      %3863 = vmatprep.subr.mxu0 0.0
      %3864 = vmatpush1.msra.mxu0 0.0
      %3865 = vmatprep.subr.mxu0 0.0
      %3866 = vmatpush1.msra.mxu0 0.0
      %3867 = vmatprep.subr.mxu0 0.0
      %3868 = vmatpush1.msra.mxu0 0.0
      %3869 = vmatprep.subr.mxu0 0.0
      %3870 = vmatpush1.msra.mxu0 0.0
      %3871 = vmatprep.subr.mxu0 %v3592
      %3872 = vmatpush1.msra.mxu0 %v3590
      %3873 = vmatprep.subr.mxu0 %v3552
      %3874 = vmatpush1.msra.mxu0 %v3551
      %3875 = vmatprep.subr.mxu0 0.0
      %3876 = vmatpush2.msra.mxu0 0.0
      %3877 = vmatprep.subr.mxu0 0.0
      %3878 = vmatpush2.msra.mxu0 0.0
      %3879 = vmatprep.subr.mxu0 0.0
      %3880 = vmatpush2.msra.mxu0 0.0
      %3881 = vmatprep.subr.mxu0 0.0
      %3882 = vmatpush2.msra.mxu0 0.0
      %3883 = vmatprep.subr.mxu0 0.0
      %3884 = vmatpush2.msra.mxu0 0.0
      %3885 = vmatprep.subr.mxu0 0.0
      %3886 = vmatpush2.msra.mxu0 0.0
      %3887 = vmatprep.subr.mxu0 0.0
      %3888 = vmatpush2.msra.mxu0 0.0
      %3889 = vmatprep.subr.mxu0 0.0
      %3890 = vmatpush2.msra.mxu0 0.0
      %3891 = vmatprep.subr.mxu0 0.0
      %3892 = vmatpush2.msra.mxu0 0.0
      %3893 = vmatprep.subr.mxu0 0.0
      %3894 = vmatpush2.msra.mxu0 0.0
      %3895 = vmatprep.subr.mxu0 0.0
      %3896 = vmatpush2.msra.mxu0 0.0
      %3897 = vmatprep.subr.mxu0 0.0
      %3898 = vmatpush2.msra.mxu0 0.0
      %3899 = vmatprep.subr.mxu0 0.0
      %3900 = vmatpush2.msra.mxu0 0.0
      %3901 = vmatprep.subr.mxu0 0.0
      %3902 = vmatpush2.msra.mxu0 0.0
      %3903 = vmatprep.subr.mxu0 0.0
      %3904 = vmatpush2.msra.mxu0 0.0
      %3905 = vmatprep.subr.mxu0 0.0
      %3906 = vmatpush2.msra.mxu0 0.0
      %3907 = vmatprep.mubr.f32.mxu0 0.0
      %3908 = vmatmul.mubr.f32.gmra.mxu0 %v3570
      %v3909 = vpop.f32.mrf.mxu0
      %v3910 = vadd.f32 0.0, %v3909
      %v3911 = vpop.f32.mrf.mxu0
      %v3912 = vadd.f32 0.0, %v3911
      %3913 = vmatprep.mubr.f32.mxu0 0.0
      %3914 = vmatmul.mubr.f32.gmra.mxu0 %v3573
      %v3915 = vpop.f32.mrf.mxu0
      %v3916 = vadd.f32 0.0, %v3915
      %v3917 = vpop.f32.mrf.mxu0
      %v3918 = vadd.f32 0.0, %v3917
      %3919 = vmatprep.mubr.f32.mxu0 0.0
      %3920 = vmatmul.mubr.f32.gmra.mxu0 %v3576
      %v3921 = vpop.f32.mrf.mxu0
      %v3922 = vadd.f32 0.0, %v3921
      %v3923 = vpop.f32.mrf.mxu0
      %v3924 = vadd.f32 0.0, %v3923
      %3925 = vdwg.mxu0
      %v3926 = vadd.f32 %v3485, %v3661
      %v3927 = vadd.f32 %v3486, %v3663
      %v3928 = vadd.f32 %v3487, %v3744
      %v3929 = vadd.f32 %v3488, %v3746
      %v3930 = vadd.f32 %v3489, %v3827
      %v3931 = vadd.f32 %v3490, %v3829
      %v3932 = vadd.f32 %v3491, %v3910
      %v3933 = vadd.f32 %v3492, %v3912
      %v3934 = vadd.f32 %v3493, %v3667
      %v3935 = vadd.f32 %v3494, %v3669
      %v3936 = vadd.f32 %v3495, %v3750
      %v3937 = vadd.f32 %v3496, %v3752
      %v3938 = vadd.f32 %v3497, %v3833
      %v3939 = vadd.f32 %v3498, %v3835
      %v3940 = vadd.f32 %v3499, %v3916
      %v3941 = vadd.f32 %v3500, %v3918
      %v3942 = vadd.f32 %v3501, %v3673
      %v3943 = vadd.f32 %v3502, %v3675
      %v3944 = vadd.f32 %v3503, %v3756
      %v3945 = vadd.f32 %v3504, %v3758
      %v3946 = vadd.f32 %v3505, %v3839
      %v3947 = vadd.f32 %v3506, %v3841
      %v3948 = vadd.f32 %v3507, %v3922
      %v3949 = vadd.f32 %v3508, %v3924
      %3950 = vrot.lane.b32.xlu0 %v1815, 98
      %v3951 = vpop.permute.xlu0 %3950
      %3952 = vrot.lane.b32.xlu0 %v1816, 98
      %v3953 = vpop.permute.xlu0 %3952
      %3954 = vrot.lane.b32.xlu0 %v1817, 98
      %v3955 = vpop.permute.xlu0 %3954
      %3956 = vrot.lane.b32.xlu0 %v1818, 98
      %v3957 = vpop.permute.xlu0 %3956
      %3958 = vrot.lane.b32.xlu0 %v1819, 98
      %v3959 = vpop.permute.xlu0 %3958
      %3960 = vrot.lane.b32.xlu0 %v1820, 98
      %v3961 = vpop.permute.xlu0 %3960
      %3962 = vrot.lane.b32.xlu0 %v1821, 98
      %v3963 = vpop.permute.xlu0 %3962
      %3964 = vrot.lane.b32.xlu0 %v1822, 98
      %v3965 = vpop.permute.xlu0 %3964
      %3966 = vrot.lane.b32.xlu0 %v1831, 98
      %v3967 = vpop.permute.xlu0 %3966
      %3968 = vrot.lane.b32.xlu0 %v1823, 98
      %v3969 = vpop.permute.xlu0 %3968
      %3970 = vrot.lane.b32.xlu0 %v1824, 98
      %v3971 = vpop.permute.xlu0 %3970
      %3972 = vrot.lane.b32.xlu0 %v1825, 98
      %v3973 = vpop.permute.xlu0 %3972
      %3974 = vrot.lane.b32.xlu0 %v1826, 98
      %v3975 = vpop.permute.xlu0 %3974
      %3976 = vrot.lane.b32.xlu0 %v1827, 98
      %v3977 = vpop.permute.xlu0 %3976
      %3978 = vrot.lane.b32.xlu0 %v1828, 98
      %v3979 = vpop.permute.xlu0 %3978
      %3980 = vrot.lane.b32.xlu0 %v1829, 98
      %v3981 = vpop.permute.xlu0 %3980
      %3982 = vrot.lane.b32.xlu0 %v1830, 98
      %v3983 = vpop.permute.xlu0 %3982
      %3984 = vrot.lane.b32.xlu0 %v1832, 98
      %v3985 = vpop.permute.xlu0 %3984
      %v3986 = vsel %vm1262, %v3951, %v3953
      %v3987 = vsel %vm1262, %v3953, %v3955
      %v3988 = vsel %vm1262, %v3955, %v3957
      %v3989 = vsel %vm1262, %v3957, %v3959
      %v3990 = vsel %vm1262, %v3959, %v3961
      %v3991 = vsel %vm1262, %v3961, %v3963
      %v3992 = vsel %vm1262, %v3963, %v3965
      %v3993 = vsel %vm1262, %v3965, %v3967
      %v3994 = vsel %vm1262, %v3969, %v3971
      %v3995 = vsel %vm1262, %v3971, %v3973
      %v3996 = vsel %vm1262, %v3973, %v3975
      %v3997 = vsel %vm1262, %v3975, %v3977
      %v3998 = vsel %vm1262, %v3977, %v3979
      %v3999 = vsel %vm1262, %v3979, %v3981
      %v4000 = vsel %vm1262, %v3981, %v3983
      %v4001 = vsel %vm1262, %v3983, %v3985
      %v4011 = vsel %vm1911, %v1787, 0
      %v4014 = vsel %vm1911, %v1788, 0
      %v4017 = vsel %vm1911, %v1789, 0
      %v4019 = vsel %vm1921, %v3994, 0
      %v4021 = vsel %vm1921, %v3995, 0
      %v4023 = vsel %vm1921, %v3996, 0
      %v4025 = vsel %vm1921, %v3997, 0
      %v4027 = vsel %vm1921, %v3998, 0
      %v4029 = vsel %vm1921, %v3999, 0
      %v4031 = vsel %vm1921, %v4000, 0
      %v4033 = vsel %vm1921, %v4001, 0
      %4035 = vmatprep.subr.mxu0 0.0
      %4036 = vmatpush1.msra.mxu0 0.0
      %4037 = vmatprep.subr.mxu0 0.0
      %4038 = vmatpush1.msra.mxu0 0.0
      %4039 = vmatprep.subr.mxu0 0.0
      %4040 = vmatpush1.msra.mxu0 0.0
      %4041 = vmatprep.subr.mxu0 0.0
      %4042 = vmatpush1.msra.mxu0 0.0
      %4043 = vmatprep.subr.mxu0 0.0
      %4044 = vmatpush1.msra.mxu0 0.0
      %4045 = vmatprep.subr.mxu0 0.0
      %4046 = vmatpush1.msra.mxu0 0.0
      %4047 = vmatprep.subr.mxu0 0.0
      %4048 = vmatpush1.msra.mxu0 0.0
      %4049 = vmatprep.subr.mxu0 0.0
      %4050 = vmatpush1.msra.mxu0 0.0
      %4051 = vmatprep.subr.mxu0 0.0
      %4052 = vmatpush1.msra.mxu0 0.0
      %4053 = vmatprep.subr.mxu0 0.0
      %4054 = vmatpush1.msra.mxu0 0.0
      %4055 = vmatprep.subr.mxu0 0.0
      %4056 = vmatpush1.msra.mxu0 0.0
      %4057 = vmatprep.subr.mxu0 0.0
      %4058 = vmatpush1.msra.mxu0 0.0
      %4059 = vmatprep.subr.mxu0 0.0
      %4060 = vmatpush1.msra.mxu0 0.0
      %4061 = vmatprep.subr.mxu0 0.0
      %4062 = vmatpush1.msra.mxu0 0.0
      %4063 = vmatprep.subr.mxu0 %v4021
      %4064 = vmatpush1.msra.mxu0 %v4019
      %4065 = vmatprep.subr.mxu0 %v3987
      %4066 = vmatpush1.msra.mxu0 %v3986
      %4067 = vmatprep.subr.mxu0 0.0
      %4068 = vmatpush2.msra.mxu0 0.0
      %4069 = vmatprep.subr.mxu0 0.0
      %4070 = vmatpush2.msra.mxu0 0.0
      %4071 = vmatprep.subr.mxu0 0.0
      %4072 = vmatpush2.msra.mxu0 0.0
      %4073 = vmatprep.subr.mxu0 0.0
      %4074 = vmatpush2.msra.mxu0 0.0
      %4075 = vmatprep.subr.mxu0 0.0
      %4076 = vmatpush2.msra.mxu0 0.0
      %4077 = vmatprep.subr.mxu0 0.0
      %4078 = vmatpush2.msra.mxu0 0.0
      %4079 = vmatprep.subr.mxu0 0.0
      %4080 = vmatpush2.msra.mxu0 0.0
      %4081 = vmatprep.subr.mxu0 0.0
      %4082 = vmatpush2.msra.mxu0 0.0
      %4083 = vmatprep.subr.mxu0 0.0
      %4084 = vmatpush2.msra.mxu0 0.0
      %4085 = vmatprep.subr.mxu0 0.0
      %4086 = vmatpush2.msra.mxu0 0.0
      %4087 = vmatprep.subr.mxu0 0.0
      %4088 = vmatpush2.msra.mxu0 0.0
      %4089 = vmatprep.subr.mxu0 0.0
      %4090 = vmatpush2.msra.mxu0 0.0
      %4091 = vmatprep.subr.mxu0 0.0
      %4092 = vmatpush2.msra.mxu0 0.0
      %4093 = vmatprep.subr.mxu0 0.0
      %4094 = vmatpush2.msra.mxu0 0.0
      %4095 = vmatprep.subr.mxu0 0.0
      %4096 = vmatpush2.msra.mxu0 0.0
      %4097 = vmatprep.subr.mxu0 0.0
      %4098 = vmatpush2.msra.mxu0 0.0
      %4099 = vmatprep.mubr.f32.mxu0 0.0
      %4100 = vmatmul.mubr.f32.gmra.mxu0 %v4011
      %v4101 = vpop.f32.mrf.mxu0
      %v4102 = vadd.f32 0.0, %v4101
      %v4103 = vpop.f32.mrf.mxu0
      %v4104 = vadd.f32 0.0, %v4103
      %4105 = vmatprep.mubr.f32.mxu0 0.0
      %4106 = vmatmul.mubr.f32.gmra.mxu0 %v4014
      %v4107 = vpop.f32.mrf.mxu0
      %v4108 = vadd.f32 0.0, %v4107
      %v4109 = vpop.f32.mrf.mxu0
      %v4110 = vadd.f32 0.0, %v4109
      %4111 = vmatprep.mubr.f32.mxu0 0.0
      %4112 = vmatmul.mubr.f32.gmra.mxu0 %v4017
      %v4113 = vpop.f32.mrf.mxu0
      %v4114 = vadd.f32 0.0, %v4113
      %v4115 = vpop.f32.mrf.mxu0
      %v4116 = vadd.f32 0.0, %v4115
      %4117 = vdwg.mxu0
      %4118 = vmatprep.subr.mxu0 0.0
      %4119 = vmatpush1.msra.mxu0 0.0
      %4120 = vmatprep.subr.mxu0 0.0
      %4121 = vmatpush1.msra.mxu0 0.0
      %4122 = vmatprep.subr.mxu0 0.0
      %4123 = vmatpush1.msra.mxu0 0.0
      %4124 = vmatprep.subr.mxu0 0.0
      %4125 = vmatpush1.msra.mxu0 0.0
      %4126 = vmatprep.subr.mxu0 0.0
      %4127 = vmatpush1.msra.mxu0 0.0
      %4128 = vmatprep.subr.mxu0 0.0
      %4129 = vmatpush1.msra.mxu0 0.0
      %4130 = vmatprep.subr.mxu0 0.0
      %4131 = vmatpush1.msra.mxu0 0.0
      %4132 = vmatprep.subr.mxu0 0.0
      %4133 = vmatpush1.msra.mxu0 0.0
      %4134 = vmatprep.subr.mxu0 0.0
      %4135 = vmatpush1.msra.mxu0 0.0
      %4136 = vmatprep.subr.mxu0 0.0
      %4137 = vmatpush1.msra.mxu0 0.0
      %4138 = vmatprep.subr.mxu0 0.0
      %4139 = vmatpush1.msra.mxu0 0.0
      %4140 = vmatprep.subr.mxu0 0.0
      %4141 = vmatpush1.msra.mxu0 0.0
      %4142 = vmatprep.subr.mxu0 0.0
      %4143 = vmatpush1.msra.mxu0 0.0
      %4144 = vmatprep.subr.mxu0 0.0
      %4145 = vmatpush1.msra.mxu0 0.0
      %4146 = vmatprep.subr.mxu0 %v4025
      %4147 = vmatpush1.msra.mxu0 %v4023
      %4148 = vmatprep.subr.mxu0 %v3989
      %4149 = vmatpush1.msra.mxu0 %v3988
      %4150 = vmatprep.subr.mxu0 0.0
      %4151 = vmatpush2.msra.mxu0 0.0
      %4152 = vmatprep.subr.mxu0 0.0
      %4153 = vmatpush2.msra.mxu0 0.0
      %4154 = vmatprep.subr.mxu0 0.0
      %4155 = vmatpush2.msra.mxu0 0.0
      %4156 = vmatprep.subr.mxu0 0.0
      %4157 = vmatpush2.msra.mxu0 0.0
      %4158 = vmatprep.subr.mxu0 0.0
      %4159 = vmatpush2.msra.mxu0 0.0
      %4160 = vmatprep.subr.mxu0 0.0
      %4161 = vmatpush2.msra.mxu0 0.0
      %4162 = vmatprep.subr.mxu0 0.0
      %4163 = vmatpush2.msra.mxu0 0.0
      %4164 = vmatprep.subr.mxu0 0.0
      %4165 = vmatpush2.msra.mxu0 0.0
      %4166 = vmatprep.subr.mxu0 0.0
      %4167 = vmatpush2.msra.mxu0 0.0
      %4168 = vmatprep.subr.mxu0 0.0
      %4169 = vmatpush2.msra.mxu0 0.0
      %4170 = vmatprep.subr.mxu0 0.0
      %4171 = vmatpush2.msra.mxu0 0.0
      %4172 = vmatprep.subr.mxu0 0.0
      %4173 = vmatpush2.msra.mxu0 0.0
      %4174 = vmatprep.subr.mxu0 0.0
      %4175 = vmatpush2.msra.mxu0 0.0
      %4176 = vmatprep.subr.mxu0 0.0
      %4177 = vmatpush2.msra.mxu0 0.0
      %4178 = vmatprep.subr.mxu0 0.0
      %4179 = vmatpush2.msra.mxu0 0.0
      %4180 = vmatprep.subr.mxu0 0.0
      %4181 = vmatpush2.msra.mxu0 0.0
      %4182 = vmatprep.mubr.f32.mxu0 0.0
      %4183 = vmatmul.mubr.f32.gmra.mxu0 %v4011
      %v4184 = vpop.f32.mrf.mxu0
      %v4185 = vadd.f32 0.0, %v4184
      %v4186 = vpop.f32.mrf.mxu0
      %v4187 = vadd.f32 0.0, %v4186
      %4188 = vmatprep.mubr.f32.mxu0 0.0
      %4189 = vmatmul.mubr.f32.gmra.mxu0 %v4014
      %v4190 = vpop.f32.mrf.mxu0
      %v4191 = vadd.f32 0.0, %v4190
      %v4192 = vpop.f32.mrf.mxu0
      %v4193 = vadd.f32 0.0, %v4192
      %4194 = vmatprep.mubr.f32.mxu0 0.0
      %4195 = vmatmul.mubr.f32.gmra.mxu0 %v4017
      %v4196 = vpop.f32.mrf.mxu0
      %v4197 = vadd.f32 0.0, %v4196
      %v4198 = vpop.f32.mrf.mxu0
      %v4199 = vadd.f32 0.0, %v4198
      %4200 = vdwg.mxu0
      %4201 = vmatprep.subr.mxu0 0.0
      %4202 = vmatpush1.msra.mxu0 0.0
      %4203 = vmatprep.subr.mxu0 0.0
      %4204 = vmatpush1.msra.mxu0 0.0
      %4205 = vmatprep.subr.mxu0 0.0
      %4206 = vmatpush1.msra.mxu0 0.0
      %4207 = vmatprep.subr.mxu0 0.0
      %4208 = vmatpush1.msra.mxu0 0.0
      %4209 = vmatprep.subr.mxu0 0.0
      %4210 = vmatpush1.msra.mxu0 0.0
      %4211 = vmatprep.subr.mxu0 0.0
      %4212 = vmatpush1.msra.mxu0 0.0
      %4213 = vmatprep.subr.mxu0 0.0
      %4214 = vmatpush1.msra.mxu0 0.0
      %4215 = vmatprep.subr.mxu0 0.0
      %4216 = vmatpush1.msra.mxu0 0.0
      %4217 = vmatprep.subr.mxu0 0.0
      %4218 = vmatpush1.msra.mxu0 0.0
      %4219 = vmatprep.subr.mxu0 0.0
      %4220 = vmatpush1.msra.mxu0 0.0
      %4221 = vmatprep.subr.mxu0 0.0
      %4222 = vmatpush1.msra.mxu0 0.0
      %4223 = vmatprep.subr.mxu0 0.0
      %4224 = vmatpush1.msra.mxu0 0.0
      %4225 = vmatprep.subr.mxu0 0.0
      %4226 = vmatpush1.msra.mxu0 0.0
      %4227 = vmatprep.subr.mxu0 0.0
      %4228 = vmatpush1.msra.mxu0 0.0
      %4229 = vmatprep.subr.mxu0 %v4029
      %4230 = vmatpush1.msra.mxu0 %v4027
      %4231 = vmatprep.subr.mxu0 %v3991
      %4232 = vmatpush1.msra.mxu0 %v3990
      %4233 = vmatprep.subr.mxu0 0.0
      %4234 = vmatpush2.msra.mxu0 0.0
      %4235 = vmatprep.subr.mxu0 0.0
      %4236 = vmatpush2.msra.mxu0 0.0
      %4237 = vmatprep.subr.mxu0 0.0
      %4238 = vmatpush2.msra.mxu0 0.0
      %4239 = vmatprep.subr.mxu0 0.0
      %4240 = vmatpush2.msra.mxu0 0.0
      %4241 = vmatprep.subr.mxu0 0.0
      %4242 = vmatpush2.msra.mxu0 0.0
      %4243 = vmatprep.subr.mxu0 0.0
      %4244 = vmatpush2.msra.mxu0 0.0
      %4245 = vmatprep.subr.mxu0 0.0
      %4246 = vmatpush2.msra.mxu0 0.0
      %4247 = vmatprep.subr.mxu0 0.0
      %4248 = vmatpush2.msra.mxu0 0.0
      %4249 = vmatprep.subr.mxu0 0.0
      %4250 = vmatpush2.msra.mxu0 0.0
      %4251 = vmatprep.subr.mxu0 0.0
      %4252 = vmatpush2.msra.mxu0 0.0
      %4253 = vmatprep.subr.mxu0 0.0
      %4254 = vmatpush2.msra.mxu0 0.0
      %4255 = vmatprep.subr.mxu0 0.0
      %4256 = vmatpush2.msra.mxu0 0.0
      %4257 = vmatprep.subr.mxu0 0.0
      %4258 = vmatpush2.msra.mxu0 0.0
      %4259 = vmatprep.subr.mxu0 0.0
      %4260 = vmatpush2.msra.mxu0 0.0
      %4261 = vmatprep.subr.mxu0 0.0
      %4262 = vmatpush2.msra.mxu0 0.0
      %4263 = vmatprep.subr.mxu0 0.0
      %4264 = vmatpush2.msra.mxu0 0.0
      %4265 = vmatprep.mubr.f32.mxu0 0.0
      %4266 = vmatmul.mubr.f32.gmra.mxu0 %v4011
      %v4267 = vpop.f32.mrf.mxu0
      %v4268 = vadd.f32 0.0, %v4267
      %v4269 = vpop.f32.mrf.mxu0
      %v4270 = vadd.f32 0.0, %v4269
      %4271 = vmatprep.mubr.f32.mxu0 0.0
      %4272 = vmatmul.mubr.f32.gmra.mxu0 %v4014
      %v4273 = vpop.f32.mrf.mxu0
      %v4274 = vadd.f32 0.0, %v4273
      %v4275 = vpop.f32.mrf.mxu0
      %v4276 = vadd.f32 0.0, %v4275
      %4277 = vmatprep.mubr.f32.mxu0 0.0
      %4278 = vmatmul.mubr.f32.gmra.mxu0 %v4017
      %v4279 = vpop.f32.mrf.mxu0
      %v4280 = vadd.f32 0.0, %v4279
      %v4281 = vpop.f32.mrf.mxu0
      %v4282 = vadd.f32 0.0, %v4281
      %4283 = vdwg.mxu0
      %4284 = vmatprep.subr.mxu0 0.0
      %4285 = vmatpush1.msra.mxu0 0.0
      %4286 = vmatprep.subr.mxu0 0.0
      %4287 = vmatpush1.msra.mxu0 0.0
      %4288 = vmatprep.subr.mxu0 0.0
      %4289 = vmatpush1.msra.mxu0 0.0
      %4290 = vmatprep.subr.mxu0 0.0
      %4291 = vmatpush1.msra.mxu0 0.0
      %4292 = vmatprep.subr.mxu0 0.0
      %4293 = vmatpush1.msra.mxu0 0.0
      %4294 = vmatprep.subr.mxu0 0.0
      %4295 = vmatpush1.msra.mxu0 0.0
      %4296 = vmatprep.subr.mxu0 0.0
      %4297 = vmatpush1.msra.mxu0 0.0
      %4298 = vmatprep.subr.mxu0 0.0
      %4299 = vmatpush1.msra.mxu0 0.0
      %4300 = vmatprep.subr.mxu0 0.0
      %4301 = vmatpush1.msra.mxu0 0.0
      %4302 = vmatprep.subr.mxu0 0.0
      %4303 = vmatpush1.msra.mxu0 0.0
      %4304 = vmatprep.subr.mxu0 0.0
      %4305 = vmatpush1.msra.mxu0 0.0
      %4306 = vmatprep.subr.mxu0 0.0
      %4307 = vmatpush1.msra.mxu0 0.0
      %4308 = vmatprep.subr.mxu0 0.0
      %4309 = vmatpush1.msra.mxu0 0.0
      %4310 = vmatprep.subr.mxu0 0.0
      %4311 = vmatpush1.msra.mxu0 0.0
      %4312 = vmatprep.subr.mxu0 %v4033
      %4313 = vmatpush1.msra.mxu0 %v4031
      %4314 = vmatprep.subr.mxu0 %v3993
      %4315 = vmatpush1.msra.mxu0 %v3992
      %4316 = vmatprep.subr.mxu0 0.0
      %4317 = vmatpush2.msra.mxu0 0.0
      %4318 = vmatprep.subr.mxu0 0.0
      %4319 = vmatpush2.msra.mxu0 0.0
      %4320 = vmatprep.subr.mxu0 0.0
      %4321 = vmatpush2.msra.mxu0 0.0
      %4322 = vmatprep.subr.mxu0 0.0
      %4323 = vmatpush2.msra.mxu0 0.0
      %4324 = vmatprep.subr.mxu0 0.0
      %4325 = vmatpush2.msra.mxu0 0.0
      %4326 = vmatprep.subr.mxu0 0.0
      %4327 = vmatpush2.msra.mxu0 0.0
      %4328 = vmatprep.subr.mxu0 0.0
      %4329 = vmatpush2.msra.mxu0 0.0
      %4330 = vmatprep.subr.mxu0 0.0
      %4331 = vmatpush2.msra.mxu0 0.0
      %4332 = vmatprep.subr.mxu0 0.0
      %4333 = vmatpush2.msra.mxu0 0.0
      %4334 = vmatprep.subr.mxu0 0.0
      %4335 = vmatpush2.msra.mxu0 0.0
      %4336 = vmatprep.subr.mxu0 0.0
      %4337 = vmatpush2.msra.mxu0 0.0
      %4338 = vmatprep.subr.mxu0 0.0
      %4339 = vmatpush2.msra.mxu0 0.0
      %4340 = vmatprep.subr.mxu0 0.0
      %4341 = vmatpush2.msra.mxu0 0.0
      %4342 = vmatprep.subr.mxu0 0.0
      %4343 = vmatpush2.msra.mxu0 0.0
      %4344 = vmatprep.subr.mxu0 0.0
      %4345 = vmatpush2.msra.mxu0 0.0
      %4346 = vmatprep.subr.mxu0 0.0
      %4347 = vmatpush2.msra.mxu0 0.0
      %4348 = vmatprep.mubr.f32.mxu0 0.0
      %4349 = vmatmul.mubr.f32.gmra.mxu0 %v4011
      %v4350 = vpop.f32.mrf.mxu0
      %v4351 = vadd.f32 0.0, %v4350
      %v4352 = vpop.f32.mrf.mxu0
      %v4353 = vadd.f32 0.0, %v4352
      %4354 = vmatprep.mubr.f32.mxu0 0.0
      %4355 = vmatmul.mubr.f32.gmra.mxu0 %v4014
      %v4356 = vpop.f32.mrf.mxu0
      %v4357 = vadd.f32 0.0, %v4356
      %v4358 = vpop.f32.mrf.mxu0
      %v4359 = vadd.f32 0.0, %v4358
      %4360 = vmatprep.mubr.f32.mxu0 0.0
      %4361 = vmatmul.mubr.f32.gmra.mxu0 %v4017
      %v4362 = vpop.f32.mrf.mxu0
      %v4363 = vadd.f32 0.0, %v4362
      %v4364 = vpop.f32.mrf.mxu0
      %v4365 = vadd.f32 0.0, %v4364
      %4366 = vdwg.mxu0
      %v4367 = vadd.f32 %v3926, %v4102
      %v4368 = vadd.f32 %v3927, %v4104
      %v4369 = vadd.f32 %v3928, %v4185
      %v4370 = vadd.f32 %v3929, %v4187
      %v4371 = vadd.f32 %v3930, %v4268
      %v4372 = vadd.f32 %v3931, %v4270
      %v4373 = vadd.f32 %v3932, %v4351
      %v4374 = vadd.f32 %v3933, %v4353
      %v4375 = vadd.f32 %v3934, %v4108
      %v4376 = vadd.f32 %v3935, %v4110
      %v4377 = vadd.f32 %v3936, %v4191
      %v4378 = vadd.f32 %v3937, %v4193
      %v4379 = vadd.f32 %v3938, %v4274
      %v4380 = vadd.f32 %v3939, %v4276
      %v4381 = vadd.f32 %v3940, %v4357
      %v4382 = vadd.f32 %v3941, %v4359
      %v4383 = vadd.f32 %v3942, %v4114
      %v4384 = vadd.f32 %v3943, %v4116
      %v4385 = vadd.f32 %v3944, %v4197
      %v4386 = vadd.f32 %v3945, %v4199
      %v4387 = vadd.f32 %v3946, %v4280
      %v4388 = vadd.f32 %v3947, %v4282
      %v4389 = vadd.f32 %v3948, %v4363
      %v4390 = vadd.f32 %v3949, %v4365
      %4391 = vrot.lane.b32.xlu0 %v1815, 72
      %v4392 = vpop.permute.xlu0 %4391
      %4393 = vrot.lane.b32.xlu0 %v1816, 72
      %v4394 = vpop.permute.xlu0 %4393
      %4395 = vrot.lane.b32.xlu0 %v1817, 72
      %v4396 = vpop.permute.xlu0 %4395
      %4397 = vrot.lane.b32.xlu0 %v1818, 72
      %v4398 = vpop.permute.xlu0 %4397
      %4399 = vrot.lane.b32.xlu0 %v1819, 72
      %v4400 = vpop.permute.xlu0 %4399
      %4401 = vrot.lane.b32.xlu0 %v1820, 72
      %v4402 = vpop.permute.xlu0 %4401
      %4403 = vrot.lane.b32.xlu0 %v1821, 72
      %v4404 = vpop.permute.xlu0 %4403
      %4405 = vrot.lane.b32.xlu0 %v1822, 72
      %v4406 = vpop.permute.xlu0 %4405
      %4407 = vrot.lane.b32.xlu0 %v1831, 72
      %v4408 = vpop.permute.xlu0 %4407
      %4409 = vrot.lane.b32.xlu0 %v1823, 72
      %v4410 = vpop.permute.xlu0 %4409
      %4411 = vrot.lane.b32.xlu0 %v1824, 72
      %v4412 = vpop.permute.xlu0 %4411
      %4413 = vrot.lane.b32.xlu0 %v1825, 72
      %v4414 = vpop.permute.xlu0 %4413
      %4415 = vrot.lane.b32.xlu0 %v1826, 72
      %v4416 = vpop.permute.xlu0 %4415
      %4417 = vrot.lane.b32.xlu0 %v1827, 72
      %v4418 = vpop.permute.xlu0 %4417
      %4419 = vrot.lane.b32.xlu0 %v1828, 72
      %v4420 = vpop.permute.xlu0 %4419
      %4421 = vrot.lane.b32.xlu0 %v1829, 72
      %v4422 = vpop.permute.xlu0 %4421
      %4423 = vrot.lane.b32.xlu0 %v1830, 72
      %v4424 = vpop.permute.xlu0 %4423
      %4425 = vrot.lane.b32.xlu0 %v1832, 72
      %v4426 = vpop.permute.xlu0 %4425
      %v4427 = vsel %vm1393, %v4392, %v4394
      %v4428 = vsel %vm1393, %v4394, %v4396
      %v4429 = vsel %vm1393, %v4396, %v4398
      %v4430 = vsel %vm1393, %v4398, %v4400
      %v4431 = vsel %vm1393, %v4400, %v4402
      %v4432 = vsel %vm1393, %v4402, %v4404
      %v4433 = vsel %vm1393, %v4404, %v4406
      %v4434 = vsel %vm1393, %v4406, %v4408
      %v4435 = vsel %vm1393, %v4410, %v4412
      %v4436 = vsel %vm1393, %v4412, %v4414
      %v4437 = vsel %vm1393, %v4414, %v4416
      %v4438 = vsel %vm1393, %v4416, %v4418
      %v4439 = vsel %vm1393, %v4418, %v4420
      %v4440 = vsel %vm1393, %v4420, %v4422
      %v4441 = vsel %vm1393, %v4422, %v4424
      %v4442 = vsel %vm1393, %v4424, %v4426
      %v4452 = vsel %vm1911, %v1790, 0
      %v4455 = vsel %vm1911, %v1791, 0
      %v4458 = vsel %vm1911, %v1792, 0
      %v4460 = vsel %vm1921, %v4435, 0
      %v4462 = vsel %vm1921, %v4436, 0
      %v4464 = vsel %vm1921, %v4437, 0
      %v4466 = vsel %vm1921, %v4438, 0
      %v4468 = vsel %vm1921, %v4439, 0
      %v4470 = vsel %vm1921, %v4440, 0
      %v4472 = vsel %vm1921, %v4441, 0
      %v4474 = vsel %vm1921, %v4442, 0
      %4476 = vmatprep.subr.mxu0 0.0
      %4477 = vmatpush1.msra.mxu0 0.0
      %4478 = vmatprep.subr.mxu0 0.0
      %4479 = vmatpush1.msra.mxu0 0.0
      %4480 = vmatprep.subr.mxu0 0.0
      %4481 = vmatpush1.msra.mxu0 0.0
      %4482 = vmatprep.subr.mxu0 0.0
      %4483 = vmatpush1.msra.mxu0 0.0
      %4484 = vmatprep.subr.mxu0 0.0
      %4485 = vmatpush1.msra.mxu0 0.0
      %4486 = vmatprep.subr.mxu0 0.0
      %4487 = vmatpush1.msra.mxu0 0.0
      %4488 = vmatprep.subr.mxu0 0.0
      %4489 = vmatpush1.msra.mxu0 0.0
      %4490 = vmatprep.subr.mxu0 0.0
      %4491 = vmatpush1.msra.mxu0 0.0
      %4492 = vmatprep.subr.mxu0 0.0
      %4493 = vmatpush1.msra.mxu0 0.0
      %4494 = vmatprep.subr.mxu0 0.0
      %4495 = vmatpush1.msra.mxu0 0.0
      %4496 = vmatprep.subr.mxu0 0.0
      %4497 = vmatpush1.msra.mxu0 0.0
      %4498 = vmatprep.subr.mxu0 0.0
      %4499 = vmatpush1.msra.mxu0 0.0
      %4500 = vmatprep.subr.mxu0 0.0
      %4501 = vmatpush1.msra.mxu0 0.0
      %4502 = vmatprep.subr.mxu0 0.0
      %4503 = vmatpush1.msra.mxu0 0.0
      %4504 = vmatprep.subr.mxu0 %v4462
      %4505 = vmatpush1.msra.mxu0 %v4460
      %4506 = vmatprep.subr.mxu0 %v4428
      %4507 = vmatpush1.msra.mxu0 %v4427
      %4508 = vmatprep.subr.mxu0 0.0
      %4509 = vmatpush2.msra.mxu0 0.0
      %4510 = vmatprep.subr.mxu0 0.0
      %4511 = vmatpush2.msra.mxu0 0.0
      %4512 = vmatprep.subr.mxu0 0.0
      %4513 = vmatpush2.msra.mxu0 0.0
      %4514 = vmatprep.subr.mxu0 0.0
      %4515 = vmatpush2.msra.mxu0 0.0
      %4516 = vmatprep.subr.mxu0 0.0
      %4517 = vmatpush2.msra.mxu0 0.0
      %4518 = vmatprep.subr.mxu0 0.0
      %4519 = vmatpush2.msra.mxu0 0.0
      %4520 = vmatprep.subr.mxu0 0.0
      %4521 = vmatpush2.msra.mxu0 0.0
      %4522 = vmatprep.subr.mxu0 0.0
      %4523 = vmatpush2.msra.mxu0 0.0
      %4524 = vmatprep.subr.mxu0 0.0
      %4525 = vmatpush2.msra.mxu0 0.0
      %4526 = vmatprep.subr.mxu0 0.0
      %4527 = vmatpush2.msra.mxu0 0.0
      %4528 = vmatprep.subr.mxu0 0.0
      %4529 = vmatpush2.msra.mxu0 0.0
      %4530 = vmatprep.subr.mxu0 0.0
      %4531 = vmatpush2.msra.mxu0 0.0
      %4532 = vmatprep.subr.mxu0 0.0
      %4533 = vmatpush2.msra.mxu0 0.0
      %4534 = vmatprep.subr.mxu0 0.0
      %4535 = vmatpush2.msra.mxu0 0.0
      %4536 = vmatprep.subr.mxu0 0.0
      %4537 = vmatpush2.msra.mxu0 0.0
      %4538 = vmatprep.subr.mxu0 0.0
      %4539 = vmatpush2.msra.mxu0 0.0
      %4540 = vmatprep.mubr.f32.mxu0 0.0
      %4541 = vmatmul.mubr.f32.gmra.mxu0 %v4452
      %v4542 = vpop.f32.mrf.mxu0
      %v4543 = vadd.f32 0.0, %v4542
      %v4544 = vpop.f32.mrf.mxu0
      %v4545 = vadd.f32 0.0, %v4544
      %4546 = vmatprep.mubr.f32.mxu0 0.0
      %4547 = vmatmul.mubr.f32.gmra.mxu0 %v4455
      %v4548 = vpop.f32.mrf.mxu0
      %v4549 = vadd.f32 0.0, %v4548
      %v4550 = vpop.f32.mrf.mxu0
      %v4551 = vadd.f32 0.0, %v4550
      %4552 = vmatprep.mubr.f32.mxu0 0.0
      %4553 = vmatmul.mubr.f32.gmra.mxu0 %v4458
      %v4554 = vpop.f32.mrf.mxu0
      %v4555 = vadd.f32 0.0, %v4554
      %v4556 = vpop.f32.mrf.mxu0
      %v4557 = vadd.f32 0.0, %v4556
      %4558 = vdwg.mxu0
      %4559 = vmatprep.subr.mxu0 0.0
      %4560 = vmatpush1.msra.mxu0 0.0
      %4561 = vmatprep.subr.mxu0 0.0
      %4562 = vmatpush1.msra.mxu0 0.0
      %4563 = vmatprep.subr.mxu0 0.0
      %4564 = vmatpush1.msra.mxu0 0.0
      %4565 = vmatprep.subr.mxu0 0.0
      %4566 = vmatpush1.msra.mxu0 0.0
      %4567 = vmatprep.subr.mxu0 0.0
      %4568 = vmatpush1.msra.mxu0 0.0
      %4569 = vmatprep.subr.mxu0 0.0
      %4570 = vmatpush1.msra.mxu0 0.0
      %4571 = vmatprep.subr.mxu0 0.0
      %4572 = vmatpush1.msra.mxu0 0.0
      %4573 = vmatprep.subr.mxu0 0.0
      %4574 = vmatpush1.msra.mxu0 0.0
      %4575 = vmatprep.subr.mxu0 0.0
      %4576 = vmatpush1.msra.mxu0 0.0
      %4577 = vmatprep.subr.mxu0 0.0
      %4578 = vmatpush1.msra.mxu0 0.0
      %4579 = vmatprep.subr.mxu0 0.0
      %4580 = vmatpush1.msra.mxu0 0.0
      %4581 = vmatprep.subr.mxu0 0.0
      %4582 = vmatpush1.msra.mxu0 0.0
      %4583 = vmatprep.subr.mxu0 0.0
      %4584 = vmatpush1.msra.mxu0 0.0
      %4585 = vmatprep.subr.mxu0 0.0
      %4586 = vmatpush1.msra.mxu0 0.0
      %4587 = vmatprep.subr.mxu0 %v4466
      %4588 = vmatpush1.msra.mxu0 %v4464
      %4589 = vmatprep.subr.mxu0 %v4430
      %4590 = vmatpush1.msra.mxu0 %v4429
      %4591 = vmatprep.subr.mxu0 0.0
      %4592 = vmatpush2.msra.mxu0 0.0
      %4593 = vmatprep.subr.mxu0 0.0
      %4594 = vmatpush2.msra.mxu0 0.0
      %4595 = vmatprep.subr.mxu0 0.0
      %4596 = vmatpush2.msra.mxu0 0.0
      %4597 = vmatprep.subr.mxu0 0.0
      %4598 = vmatpush2.msra.mxu0 0.0
      %4599 = vmatprep.subr.mxu0 0.0
      %4600 = vmatpush2.msra.mxu0 0.0
      %4601 = vmatprep.subr.mxu0 0.0
      %4602 = vmatpush2.msra.mxu0 0.0
      %4603 = vmatprep.subr.mxu0 0.0
      %4604 = vmatpush2.msra.mxu0 0.0
      %4605 = vmatprep.subr.mxu0 0.0
      %4606 = vmatpush2.msra.mxu0 0.0
      %4607 = vmatprep.subr.mxu0 0.0
      %4608 = vmatpush2.msra.mxu0 0.0
      %4609 = vmatprep.subr.mxu0 0.0
      %4610 = vmatpush2.msra.mxu0 0.0
      %4611 = vmatprep.subr.mxu0 0.0
      %4612 = vmatpush2.msra.mxu0 0.0
      %4613 = vmatprep.subr.mxu0 0.0
      %4614 = vmatpush2.msra.mxu0 0.0
      %4615 = vmatprep.subr.mxu0 0.0
      %4616 = vmatpush2.msra.mxu0 0.0
      %4617 = vmatprep.subr.mxu0 0.0
      %4618 = vmatpush2.msra.mxu0 0.0
      %4619 = vmatprep.subr.mxu0 0.0
      %4620 = vmatpush2.msra.mxu0 0.0
      %4621 = vmatprep.subr.mxu0 0.0
      %4622 = vmatpush2.msra.mxu0 0.0
      %4623 = vmatprep.mubr.f32.mxu0 0.0
      %4624 = vmatmul.mubr.f32.gmra.mxu0 %v4452
      %v4625 = vpop.f32.mrf.mxu0
      %v4626 = vadd.f32 0.0, %v4625
      %v4627 = vpop.f32.mrf.mxu0
      %v4628 = vadd.f32 0.0, %v4627
      %4629 = vmatprep.mubr.f32.mxu0 0.0
      %4630 = vmatmul.mubr.f32.gmra.mxu0 %v4455
      %v4631 = vpop.f32.mrf.mxu0
      %v4632 = vadd.f32 0.0, %v4631
      %v4633 = vpop.f32.mrf.mxu0
      %v4634 = vadd.f32 0.0, %v4633
      %4635 = vmatprep.mubr.f32.mxu0 0.0
      %4636 = vmatmul.mubr.f32.gmra.mxu0 %v4458
      %v4637 = vpop.f32.mrf.mxu0
      %v4638 = vadd.f32 0.0, %v4637
      %v4639 = vpop.f32.mrf.mxu0
      %v4640 = vadd.f32 0.0, %v4639
      %4641 = vdwg.mxu0
      %4642 = vmatprep.subr.mxu0 0.0
      %4643 = vmatpush1.msra.mxu0 0.0
      %4644 = vmatprep.subr.mxu0 0.0
      %4645 = vmatpush1.msra.mxu0 0.0
      %4646 = vmatprep.subr.mxu0 0.0
      %4647 = vmatpush1.msra.mxu0 0.0
      %4648 = vmatprep.subr.mxu0 0.0
      %4649 = vmatpush1.msra.mxu0 0.0
      %4650 = vmatprep.subr.mxu0 0.0
      %4651 = vmatpush1.msra.mxu0 0.0
      %4652 = vmatprep.subr.mxu0 0.0
      %4653 = vmatpush1.msra.mxu0 0.0
      %4654 = vmatprep.subr.mxu0 0.0
      %4655 = vmatpush1.msra.mxu0 0.0
      %4656 = vmatprep.subr.mxu0 0.0
      %4657 = vmatpush1.msra.mxu0 0.0
      %4658 = vmatprep.subr.mxu0 0.0
      %4659 = vmatpush1.msra.mxu0 0.0
      %4660 = vmatprep.subr.mxu0 0.0
      %4661 = vmatpush1.msra.mxu0 0.0
      %4662 = vmatprep.subr.mxu0 0.0
      %4663 = vmatpush1.msra.mxu0 0.0
      %4664 = vmatprep.subr.mxu0 0.0
      %4665 = vmatpush1.msra.mxu0 0.0
      %4666 = vmatprep.subr.mxu0 0.0
      %4667 = vmatpush1.msra.mxu0 0.0
      %4668 = vmatprep.subr.mxu0 0.0
      %4669 = vmatpush1.msra.mxu0 0.0
      %4670 = vmatprep.subr.mxu0 %v4470
      %4671 = vmatpush1.msra.mxu0 %v4468
      %4672 = vmatprep.subr.mxu0 %v4432
      %4673 = vmatpush1.msra.mxu0 %v4431
      %4674 = vmatprep.subr.mxu0 0.0
      %4675 = vmatpush2.msra.mxu0 0.0
      %4676 = vmatprep.subr.mxu0 0.0
      %4677 = vmatpush2.msra.mxu0 0.0
      %4678 = vmatprep.subr.mxu0 0.0
      %4679 = vmatpush2.msra.mxu0 0.0
      %4680 = vmatprep.subr.mxu0 0.0
      %4681 = vmatpush2.msra.mxu0 0.0
      %4682 = vmatprep.subr.mxu0 0.0
      %4683 = vmatpush2.msra.mxu0 0.0
      %4684 = vmatprep.subr.mxu0 0.0
      %4685 = vmatpush2.msra.mxu0 0.0
      %4686 = vmatprep.subr.mxu0 0.0
      %4687 = vmatpush2.msra.mxu0 0.0
      %4688 = vmatprep.subr.mxu0 0.0
      %4689 = vmatpush2.msra.mxu0 0.0
      %4690 = vmatprep.subr.mxu0 0.0
      %4691 = vmatpush2.msra.mxu0 0.0
      %4692 = vmatprep.subr.mxu0 0.0
      %4693 = vmatpush2.msra.mxu0 0.0
      %4694 = vmatprep.subr.mxu0 0.0
      %4695 = vmatpush2.msra.mxu0 0.0
      %4696 = vmatprep.subr.mxu0 0.0
      %4697 = vmatpush2.msra.mxu0 0.0
      %4698 = vmatprep.subr.mxu0 0.0
      %4699 = vmatpush2.msra.mxu0 0.0
      %4700 = vmatprep.subr.mxu0 0.0
      %4701 = vmatpush2.msra.mxu0 0.0
      %4702 = vmatprep.subr.mxu0 0.0
      %4703 = vmatpush2.msra.mxu0 0.0
      %4704 = vmatprep.subr.mxu0 0.0
      %4705 = vmatpush2.msra.mxu0 0.0
      %4706 = vmatprep.mubr.f32.mxu0 0.0
      %4707 = vmatmul.mubr.f32.gmra.mxu0 %v4452
      %v4708 = vpop.f32.mrf.mxu0
      %v4709 = vadd.f32 0.0, %v4708
      %v4710 = vpop.f32.mrf.mxu0
      %v4711 = vadd.f32 0.0, %v4710
      %4712 = vmatprep.mubr.f32.mxu0 0.0
      %4713 = vmatmul.mubr.f32.gmra.mxu0 %v4455
      %v4714 = vpop.f32.mrf.mxu0
      %v4715 = vadd.f32 0.0, %v4714
      %v4716 = vpop.f32.mrf.mxu0
      %v4717 = vadd.f32 0.0, %v4716
      %4718 = vmatprep.mubr.f32.mxu0 0.0
      %4719 = vmatmul.mubr.f32.gmra.mxu0 %v4458
      %v4720 = vpop.f32.mrf.mxu0
      %v4721 = vadd.f32 0.0, %v4720
      %v4722 = vpop.f32.mrf.mxu0
      %v4723 = vadd.f32 0.0, %v4722
      %4724 = vdwg.mxu0
      %4725 = vmatprep.subr.mxu0 0.0
      %4726 = vmatpush1.msra.mxu0 0.0
      %4727 = vmatprep.subr.mxu0 0.0
      %4728 = vmatpush1.msra.mxu0 0.0
      %4729 = vmatprep.subr.mxu0 0.0
      %4730 = vmatpush1.msra.mxu0 0.0
      %4731 = vmatprep.subr.mxu0 0.0
      %4732 = vmatpush1.msra.mxu0 0.0
      %4733 = vmatprep.subr.mxu0 0.0
      %4734 = vmatpush1.msra.mxu0 0.0
      %4735 = vmatprep.subr.mxu0 0.0
      %4736 = vmatpush1.msra.mxu0 0.0
      %4737 = vmatprep.subr.mxu0 0.0
      %4738 = vmatpush1.msra.mxu0 0.0
      %4739 = vmatprep.subr.mxu0 0.0
      %4740 = vmatpush1.msra.mxu0 0.0
      %4741 = vmatprep.subr.mxu0 0.0
      %4742 = vmatpush1.msra.mxu0 0.0
      %4743 = vmatprep.subr.mxu0 0.0
      %4744 = vmatpush1.msra.mxu0 0.0
      %4745 = vmatprep.subr.mxu0 0.0
      %4746 = vmatpush1.msra.mxu0 0.0
      %4747 = vmatprep.subr.mxu0 0.0
      %4748 = vmatpush1.msra.mxu0 0.0
      %4749 = vmatprep.subr.mxu0 0.0
      %4750 = vmatpush1.msra.mxu0 0.0
      %4751 = vmatprep.subr.mxu0 0.0
      %4752 = vmatpush1.msra.mxu0 0.0
      %4753 = vmatprep.subr.mxu0 %v4474
      %4754 = vmatpush1.msra.mxu0 %v4472
      %4755 = vmatprep.subr.mxu0 %v4434
      %4756 = vmatpush1.msra.mxu0 %v4433
      %4757 = vmatprep.subr.mxu0 0.0
      %4758 = vmatpush2.msra.mxu0 0.0
      %4759 = vmatprep.subr.mxu0 0.0
      %4760 = vmatpush2.msra.mxu0 0.0
      %4761 = vmatprep.subr.mxu0 0.0
      %4762 = vmatpush2.msra.mxu0 0.0
      %4763 = vmatprep.subr.mxu0 0.0
      %4764 = vmatpush2.msra.mxu0 0.0
      %4765 = vmatprep.subr.mxu0 0.0
      %4766 = vmatpush2.msra.mxu0 0.0
      %4767 = vmatprep.subr.mxu0 0.0
      %4768 = vmatpush2.msra.mxu0 0.0
      %4769 = vmatprep.subr.mxu0 0.0
      %4770 = vmatpush2.msra.mxu0 0.0
      %4771 = vmatprep.subr.mxu0 0.0
      %4772 = vmatpush2.msra.mxu0 0.0
      %4773 = vmatprep.subr.mxu0 0.0
      %4774 = vmatpush2.msra.mxu0 0.0
      %4775 = vmatprep.subr.mxu0 0.0
      %4776 = vmatpush2.msra.mxu0 0.0
      %4777 = vmatprep.subr.mxu0 0.0
      %4778 = vmatpush2.msra.mxu0 0.0
      %4779 = vmatprep.subr.mxu0 0.0
      %4780 = vmatpush2.msra.mxu0 0.0
      %4781 = vmatprep.subr.mxu0 0.0
      %4782 = vmatpush2.msra.mxu0 0.0
      %4783 = vmatprep.subr.mxu0 0.0
      %4784 = vmatpush2.msra.mxu0 0.0
      %4785 = vmatprep.subr.mxu0 0.0
      %4786 = vmatpush2.msra.mxu0 0.0
      %4787 = vmatprep.subr.mxu0 0.0
      %4788 = vmatpush2.msra.mxu0 0.0
      %4789 = vmatprep.mubr.f32.mxu0 0.0
      %4790 = vmatmul.mubr.f32.gmra.mxu0 %v4452
      %v4791 = vpop.f32.mrf.mxu0
      %v4792 = vadd.f32 0.0, %v4791
      %v4793 = vpop.f32.mrf.mxu0
      %v4794 = vadd.f32 0.0, %v4793
      %4795 = vmatprep.mubr.f32.mxu0 0.0
      %4796 = vmatmul.mubr.f32.gmra.mxu0 %v4455
      %v4797 = vpop.f32.mrf.mxu0
      %v4798 = vadd.f32 0.0, %v4797
      %v4799 = vpop.f32.mrf.mxu0
      %v4800 = vadd.f32 0.0, %v4799
      %4801 = vmatprep.mubr.f32.mxu0 0.0
      %4802 = vmatmul.mubr.f32.gmra.mxu0 %v4458
      %v4803 = vpop.f32.mrf.mxu0
      %v4804 = vadd.f32 0.0, %v4803
      %v4805 = vpop.f32.mrf.mxu0
      %v4806 = vadd.f32 0.0, %v4805
      %4807 = vdwg.mxu0
      %v4808 = vadd.f32 %v4367, %v4543
      %v4809 = vadd.f32 %v4368, %v4545
      %v4810 = vadd.f32 %v4369, %v4626
      %v4811 = vadd.f32 %v4370, %v4628
      %v4812 = vadd.f32 %v4371, %v4709
      %v4813 = vadd.f32 %v4372, %v4711
      %v4814 = vadd.f32 %v4373, %v4792
      %v4815 = vadd.f32 %v4374, %v4794
      %v4816 = vadd.f32 %v4375, %v4549
      %v4817 = vadd.f32 %v4376, %v4551
      %v4818 = vadd.f32 %v4377, %v4632
      %v4819 = vadd.f32 %v4378, %v4634
      %v4820 = vadd.f32 %v4379, %v4715
      %v4821 = vadd.f32 %v4380, %v4717
      %v4822 = vadd.f32 %v4381, %v4798
      %v4823 = vadd.f32 %v4382, %v4800
      %v4824 = vadd.f32 %v4383, %v4555
      %v4825 = vadd.f32 %v4384, %v4557
      %v4826 = vadd.f32 %v4385, %v4638
      %v4827 = vadd.f32 %v4386, %v4640
      %v4828 = vadd.f32 %v4387, %v4721
      %v4829 = vadd.f32 %v4388, %v4723
      %v4830 = vadd.f32 %v4389, %v4804
      %v4831 = vadd.f32 %v4390, %v4806
      %4832 = vrot.lane.b32.xlu0 %v1815, 71
      %v4833 = vpop.permute.xlu0 %4832
      %4834 = vrot.lane.b32.xlu0 %v1816, 71
      %v4835 = vpop.permute.xlu0 %4834
      %4836 = vrot.lane.b32.xlu0 %v1817, 71
      %v4837 = vpop.permute.xlu0 %4836
      %4838 = vrot.lane.b32.xlu0 %v1818, 71
      %v4839 = vpop.permute.xlu0 %4838
      %4840 = vrot.lane.b32.xlu0 %v1819, 71
      %v4841 = vpop.permute.xlu0 %4840
      %4842 = vrot.lane.b32.xlu0 %v1820, 71
      %v4843 = vpop.permute.xlu0 %4842
      %4844 = vrot.lane.b32.xlu0 %v1821, 71
      %v4845 = vpop.permute.xlu0 %4844
      %4846 = vrot.lane.b32.xlu0 %v1822, 71
      %v4847 = vpop.permute.xlu0 %4846
      %4848 = vrot.lane.b32.xlu0 %v1831, 71
      %v4849 = vpop.permute.xlu0 %4848
      %4850 = vrot.lane.b32.xlu0 %v1823, 71
      %v4851 = vpop.permute.xlu0 %4850
      %4852 = vrot.lane.b32.xlu0 %v1824, 71
      %v4853 = vpop.permute.xlu0 %4852
      %4854 = vrot.lane.b32.xlu0 %v1825, 71
      %v4855 = vpop.permute.xlu0 %4854
      %4856 = vrot.lane.b32.xlu0 %v1826, 71
      %v4857 = vpop.permute.xlu0 %4856
      %4858 = vrot.lane.b32.xlu0 %v1827, 71
      %v4859 = vpop.permute.xlu0 %4858
      %4860 = vrot.lane.b32.xlu0 %v1828, 71
      %v4861 = vpop.permute.xlu0 %4860
      %4862 = vrot.lane.b32.xlu0 %v1829, 71
      %v4863 = vpop.permute.xlu0 %4862
      %4864 = vrot.lane.b32.xlu0 %v1830, 71
      %v4865 = vpop.permute.xlu0 %4864
      %4866 = vrot.lane.b32.xlu0 %v1832, 71
      %v4867 = vpop.permute.xlu0 %4866
      %v4868 = vsel %vm1524, %v4833, %v4835
      %v4869 = vsel %vm1524, %v4835, %v4837
      %v4870 = vsel %vm1524, %v4837, %v4839
      %v4871 = vsel %vm1524, %v4839, %v4841
      %v4872 = vsel %vm1524, %v4841, %v4843
      %v4873 = vsel %vm1524, %v4843, %v4845
      %v4874 = vsel %vm1524, %v4845, %v4847
      %v4875 = vsel %vm1524, %v4847, %v4849
      %v4876 = vsel %vm1524, %v4851, %v4853
      %v4877 = vsel %vm1524, %v4853, %v4855
      %v4878 = vsel %vm1524, %v4855, %v4857
      %v4879 = vsel %vm1524, %v4857, %v4859
      %v4880 = vsel %vm1524, %v4859, %v4861
      %v4881 = vsel %vm1524, %v4861, %v4863
      %v4882 = vsel %vm1524, %v4863, %v4865
      %v4883 = vsel %vm1524, %v4865, %v4867
      %v4893 = vsel %vm1911, %v1793, 0
      %v4896 = vsel %vm1911, %v1794, 0
      %v4899 = vsel %vm1911, %v1795, 0
      %v4901 = vsel %vm1921, %v4876, 0
      %v4903 = vsel %vm1921, %v4877, 0
      %v4905 = vsel %vm1921, %v4878, 0
      %v4907 = vsel %vm1921, %v4879, 0
      %v4909 = vsel %vm1921, %v4880, 0
      %v4911 = vsel %vm1921, %v4881, 0
      %v4913 = vsel %vm1921, %v4882, 0
      %v4915 = vsel %vm1921, %v4883, 0
      %4917 = vmatprep.subr.mxu0 0.0
      %4918 = vmatpush1.msra.mxu0 0.0
      %4919 = vmatprep.subr.mxu0 0.0
      %4920 = vmatpush1.msra.mxu0 0.0
      %4921 = vmatprep.subr.mxu0 0.0
      %4922 = vmatpush1.msra.mxu0 0.0
      %4923 = vmatprep.subr.mxu0 0.0
      %4924 = vmatpush1.msra.mxu0 0.0
      %4925 = vmatprep.subr.mxu0 0.0
      %4926 = vmatpush1.msra.mxu0 0.0
      %4927 = vmatprep.subr.mxu0 0.0
      %4928 = vmatpush1.msra.mxu0 0.0
      %4929 = vmatprep.subr.mxu0 0.0
      %4930 = vmatpush1.msra.mxu0 0.0
      %4931 = vmatprep.subr.mxu0 0.0
      %4932 = vmatpush1.msra.mxu0 0.0
      %4933 = vmatprep.subr.mxu0 0.0
      %4934 = vmatpush1.msra.mxu0 0.0
      %4935 = vmatprep.subr.mxu0 0.0
      %4936 = vmatpush1.msra.mxu0 0.0
      %4937 = vmatprep.subr.mxu0 0.0
      %4938 = vmatpush1.msra.mxu0 0.0
      %4939 = vmatprep.subr.mxu0 0.0
      %4940 = vmatpush1.msra.mxu0 0.0
      %4941 = vmatprep.subr.mxu0 0.0
      %4942 = vmatpush1.msra.mxu0 0.0
      %4943 = vmatprep.subr.mxu0 0.0
      %4944 = vmatpush1.msra.mxu0 0.0
      %4945 = vmatprep.subr.mxu0 %v4903
      %4946 = vmatpush1.msra.mxu0 %v4901
      %4947 = vmatprep.subr.mxu0 %v4869
      %4948 = vmatpush1.msra.mxu0 %v4868
      %4949 = vmatprep.subr.mxu0 0.0
      %4950 = vmatpush2.msra.mxu0 0.0
      %4951 = vmatprep.subr.mxu0 0.0
      %4952 = vmatpush2.msra.mxu0 0.0
      %4953 = vmatprep.subr.mxu0 0.0
      %4954 = vmatpush2.msra.mxu0 0.0
      %4955 = vmatprep.subr.mxu0 0.0
      %4956 = vmatpush2.msra.mxu0 0.0
      %4957 = vmatprep.subr.mxu0 0.0
      %4958 = vmatpush2.msra.mxu0 0.0
      %4959 = vmatprep.subr.mxu0 0.0
      %4960 = vmatpush2.msra.mxu0 0.0
      %4961 = vmatprep.subr.mxu0 0.0
      %4962 = vmatpush2.msra.mxu0 0.0
      %4963 = vmatprep.subr.mxu0 0.0
      %4964 = vmatpush2.msra.mxu0 0.0
      %4965 = vmatprep.subr.mxu0 0.0
      %4966 = vmatpush2.msra.mxu0 0.0
      %4967 = vmatprep.subr.mxu0 0.0
      %4968 = vmatpush2.msra.mxu0 0.0
      %4969 = vmatprep.subr.mxu0 0.0
      %4970 = vmatpush2.msra.mxu0 0.0
      %4971 = vmatprep.subr.mxu0 0.0
      %4972 = vmatpush2.msra.mxu0 0.0
      %4973 = vmatprep.subr.mxu0 0.0
      %4974 = vmatpush2.msra.mxu0 0.0
      %4975 = vmatprep.subr.mxu0 0.0
      %4976 = vmatpush2.msra.mxu0 0.0
      %4977 = vmatprep.subr.mxu0 0.0
      %4978 = vmatpush2.msra.mxu0 0.0
      %4979 = vmatprep.subr.mxu0 0.0
      %4980 = vmatpush2.msra.mxu0 0.0
      %4981 = vmatprep.mubr.f32.mxu0 0.0
      %4982 = vmatmul.mubr.f32.gmra.mxu0 %v4893
      %v4983 = vpop.f32.mrf.mxu0
      %v4984 = vadd.f32 0.0, %v4983
      %v4985 = vpop.f32.mrf.mxu0
      %v4986 = vadd.f32 0.0, %v4985
      %4987 = vmatprep.mubr.f32.mxu0 0.0
      %4988 = vmatmul.mubr.f32.gmra.mxu0 %v4896
      %v4989 = vpop.f32.mrf.mxu0
      %v4990 = vadd.f32 0.0, %v4989
      %v4991 = vpop.f32.mrf.mxu0
      %v4992 = vadd.f32 0.0, %v4991
      %4993 = vmatprep.mubr.f32.mxu0 0.0
      %4994 = vmatmul.mubr.f32.gmra.mxu0 %v4899
      %v4995 = vpop.f32.mrf.mxu0
      %v4996 = vadd.f32 0.0, %v4995
      %v4997 = vpop.f32.mrf.mxu0
      %v4998 = vadd.f32 0.0, %v4997
      %4999 = vdwg.mxu0
      %5000 = vmatprep.subr.mxu0 0.0
      %5001 = vmatpush1.msra.mxu0 0.0
      %5002 = vmatprep.subr.mxu0 0.0
      %5003 = vmatpush1.msra.mxu0 0.0
      %5004 = vmatprep.subr.mxu0 0.0
      %5005 = vmatpush1.msra.mxu0 0.0
      %5006 = vmatprep.subr.mxu0 0.0
      %5007 = vmatpush1.msra.mxu0 0.0
      %5008 = vmatprep.subr.mxu0 0.0
      %5009 = vmatpush1.msra.mxu0 0.0
      %5010 = vmatprep.subr.mxu0 0.0
      %5011 = vmatpush1.msra.mxu0 0.0
      %5012 = vmatprep.subr.mxu0 0.0
      %5013 = vmatpush1.msra.mxu0 0.0
      %5014 = vmatprep.subr.mxu0 0.0
      %5015 = vmatpush1.msra.mxu0 0.0
      %5016 = vmatprep.subr.mxu0 0.0
      %5017 = vmatpush1.msra.mxu0 0.0
      %5018 = vmatprep.subr.mxu0 0.0
      %5019 = vmatpush1.msra.mxu0 0.0
      %5020 = vmatprep.subr.mxu0 0.0
      %5021 = vmatpush1.msra.mxu0 0.0
      %5022 = vmatprep.subr.mxu0 0.0
      %5023 = vmatpush1.msra.mxu0 0.0
      %5024 = vmatprep.subr.mxu0 0.0
      %5025 = vmatpush1.msra.mxu0 0.0
      %5026 = vmatprep.subr.mxu0 0.0
      %5027 = vmatpush1.msra.mxu0 0.0
      %5028 = vmatprep.subr.mxu0 %v4907
      %5029 = vmatpush1.msra.mxu0 %v4905
      %5030 = vmatprep.subr.mxu0 %v4871
      %5031 = vmatpush1.msra.mxu0 %v4870
      %5032 = vmatprep.subr.mxu0 0.0
      %5033 = vmatpush2.msra.mxu0 0.0
      %5034 = vmatprep.subr.mxu0 0.0
      %5035 = vmatpush2.msra.mxu0 0.0
      %5036 = vmatprep.subr.mxu0 0.0
      %5037 = vmatpush2.msra.mxu0 0.0
      %5038 = vmatprep.subr.mxu0 0.0
      %5039 = vmatpush2.msra.mxu0 0.0
      %5040 = vmatprep.subr.mxu0 0.0
      %5041 = vmatpush2.msra.mxu0 0.0
      %5042 = vmatprep.subr.mxu0 0.0
      %5043 = vmatpush2.msra.mxu0 0.0
      %5044 = vmatprep.subr.mxu0 0.0
      %5045 = vmatpush2.msra.mxu0 0.0
      %5046 = vmatprep.subr.mxu0 0.0
      %5047 = vmatpush2.msra.mxu0 0.0
      %5048 = vmatprep.subr.mxu0 0.0
      %5049 = vmatpush2.msra.mxu0 0.0
      %5050 = vmatprep.subr.mxu0 0.0
      %5051 = vmatpush2.msra.mxu0 0.0
      %5052 = vmatprep.subr.mxu0 0.0
      %5053 = vmatpush2.msra.mxu0 0.0
      %5054 = vmatprep.subr.mxu0 0.0
      %5055 = vmatpush2.msra.mxu0 0.0
      %5056 = vmatprep.subr.mxu0 0.0
      %5057 = vmatpush2.msra.mxu0 0.0
      %5058 = vmatprep.subr.mxu0 0.0
      %5059 = vmatpush2.msra.mxu0 0.0
      %5060 = vmatprep.subr.mxu0 0.0
      %5061 = vmatpush2.msra.mxu0 0.0
      %5062 = vmatprep.subr.mxu0 0.0
      %5063 = vmatpush2.msra.mxu0 0.0
      %5064 = vmatprep.mubr.f32.mxu0 0.0
      %5065 = vmatmul.mubr.f32.gmra.mxu0 %v4893
      %v5066 = vpop.f32.mrf.mxu0
      %v5067 = vadd.f32 0.0, %v5066
      %v5068 = vpop.f32.mrf.mxu0
      %v5069 = vadd.f32 0.0, %v5068
      %5070 = vmatprep.mubr.f32.mxu0 0.0
      %5071 = vmatmul.mubr.f32.gmra.mxu0 %v4896
      %v5072 = vpop.f32.mrf.mxu0
      %v5073 = vadd.f32 0.0, %v5072
      %v5074 = vpop.f32.mrf.mxu0
      %v5075 = vadd.f32 0.0, %v5074
      %5076 = vmatprep.mubr.f32.mxu0 0.0
      %5077 = vmatmul.mubr.f32.gmra.mxu0 %v4899
      %v5078 = vpop.f32.mrf.mxu0
      %v5079 = vadd.f32 0.0, %v5078
      %v5080 = vpop.f32.mrf.mxu0
      %v5081 = vadd.f32 0.0, %v5080
      %5082 = vdwg.mxu0
      %5083 = vmatprep.subr.mxu0 0.0
      %5084 = vmatpush1.msra.mxu0 0.0
      %5085 = vmatprep.subr.mxu0 0.0
      %5086 = vmatpush1.msra.mxu0 0.0
      %5087 = vmatprep.subr.mxu0 0.0
      %5088 = vmatpush1.msra.mxu0 0.0
      %5089 = vmatprep.subr.mxu0 0.0
      %5090 = vmatpush1.msra.mxu0 0.0
      %5091 = vmatprep.subr.mxu0 0.0
      %5092 = vmatpush1.msra.mxu0 0.0
      %5093 = vmatprep.subr.mxu0 0.0
      %5094 = vmatpush1.msra.mxu0 0.0
      %5095 = vmatprep.subr.mxu0 0.0
      %5096 = vmatpush1.msra.mxu0 0.0
      %5097 = vmatprep.subr.mxu0 0.0
      %5098 = vmatpush1.msra.mxu0 0.0
      %5099 = vmatprep.subr.mxu0 0.0
      %5100 = vmatpush1.msra.mxu0 0.0
      %5101 = vmatprep.subr.mxu0 0.0
      %5102 = vmatpush1.msra.mxu0 0.0
      %5103 = vmatprep.subr.mxu0 0.0
      %5104 = vmatpush1.msra.mxu0 0.0
      %5105 = vmatprep.subr.mxu0 0.0
      %5106 = vmatpush1.msra.mxu0 0.0
      %5107 = vmatprep.subr.mxu0 0.0
      %5108 = vmatpush1.msra.mxu0 0.0
      %5109 = vmatprep.subr.mxu0 0.0
      %5110 = vmatpush1.msra.mxu0 0.0
      %5111 = vmatprep.subr.mxu0 %v4911
      %5112 = vmatpush1.msra.mxu0 %v4909
      %5113 = vmatprep.subr.mxu0 %v4873
      %5114 = vmatpush1.msra.mxu0 %v4872
      %5115 = vmatprep.subr.mxu0 0.0
      %5116 = vmatpush2.msra.mxu0 0.0
      %5117 = vmatprep.subr.mxu0 0.0
      %5118 = vmatpush2.msra.mxu0 0.0
      %5119 = vmatprep.subr.mxu0 0.0
      %5120 = vmatpush2.msra.mxu0 0.0
      %5121 = vmatprep.subr.mxu0 0.0
      %5122 = vmatpush2.msra.mxu0 0.0
      %5123 = vmatprep.subr.mxu0 0.0
      %5124 = vmatpush2.msra.mxu0 0.0
      %5125 = vmatprep.subr.mxu0 0.0
      %5126 = vmatpush2.msra.mxu0 0.0
      %5127 = vmatprep.subr.mxu0 0.0
      %5128 = vmatpush2.msra.mxu0 0.0
      %5129 = vmatprep.subr.mxu0 0.0
      %5130 = vmatpush2.msra.mxu0 0.0
      %5131 = vmatprep.subr.mxu0 0.0
      %5132 = vmatpush2.msra.mxu0 0.0
      %5133 = vmatprep.subr.mxu0 0.0
      %5134 = vmatpush2.msra.mxu0 0.0
      %5135 = vmatprep.subr.mxu0 0.0
      %5136 = vmatpush2.msra.mxu0 0.0
      %5137 = vmatprep.subr.mxu0 0.0
      %5138 = vmatpush2.msra.mxu0 0.0
      %5139 = vmatprep.subr.mxu0 0.0
      %5140 = vmatpush2.msra.mxu0 0.0
      %5141 = vmatprep.subr.mxu0 0.0
      %5142 = vmatpush2.msra.mxu0 0.0
      %5143 = vmatprep.subr.mxu0 0.0
      %5144 = vmatpush2.msra.mxu0 0.0
      %5145 = vmatprep.subr.mxu0 0.0
      %5146 = vmatpush2.msra.mxu0 0.0
      %5147 = vmatprep.mubr.f32.mxu0 0.0
      %5148 = vmatmul.mubr.f32.gmra.mxu0 %v4893
      %v5149 = vpop.f32.mrf.mxu0
      %v5150 = vadd.f32 0.0, %v5149
      %v5151 = vpop.f32.mrf.mxu0
      %v5152 = vadd.f32 0.0, %v5151
      %5153 = vmatprep.mubr.f32.mxu0 0.0
      %5154 = vmatmul.mubr.f32.gmra.mxu0 %v4896
      %v5155 = vpop.f32.mrf.mxu0
      %v5156 = vadd.f32 0.0, %v5155
      %v5157 = vpop.f32.mrf.mxu0
      %v5158 = vadd.f32 0.0, %v5157
      %5159 = vmatprep.mubr.f32.mxu0 0.0
      %5160 = vmatmul.mubr.f32.gmra.mxu0 %v4899
      %v5161 = vpop.f32.mrf.mxu0
      %v5162 = vadd.f32 0.0, %v5161
      %v5163 = vpop.f32.mrf.mxu0
      %v5164 = vadd.f32 0.0, %v5163
      %5165 = vdwg.mxu0
      %5166 = vmatprep.subr.mxu0 0.0
      %5167 = vmatpush1.msra.mxu0 0.0
      %5168 = vmatprep.subr.mxu0 0.0
      %5169 = vmatpush1.msra.mxu0 0.0
      %5170 = vmatprep.subr.mxu0 0.0
      %5171 = vmatpush1.msra.mxu0 0.0
      %5172 = vmatprep.subr.mxu0 0.0
      %5173 = vmatpush1.msra.mxu0 0.0
      %5174 = vmatprep.subr.mxu0 0.0
      %5175 = vmatpush1.msra.mxu0 0.0
      %5176 = vmatprep.subr.mxu0 0.0
      %5177 = vmatpush1.msra.mxu0 0.0
      %5178 = vmatprep.subr.mxu0 0.0
      %5179 = vmatpush1.msra.mxu0 0.0
      %5180 = vmatprep.subr.mxu0 0.0
      %5181 = vmatpush1.msra.mxu0 0.0
      %5182 = vmatprep.subr.mxu0 0.0
      %5183 = vmatpush1.msra.mxu0 0.0
      %5184 = vmatprep.subr.mxu0 0.0
      %5185 = vmatpush1.msra.mxu0 0.0
      %5186 = vmatprep.subr.mxu0 0.0
      %5187 = vmatpush1.msra.mxu0 0.0
      %5188 = vmatprep.subr.mxu0 0.0
      %5189 = vmatpush1.msra.mxu0 0.0
      %5190 = vmatprep.subr.mxu0 0.0
      %5191 = vmatpush1.msra.mxu0 0.0
      %5192 = vmatprep.subr.mxu0 0.0
      %5193 = vmatpush1.msra.mxu0 0.0
      %5194 = vmatprep.subr.mxu0 %v4915
      %5195 = vmatpush1.msra.mxu0 %v4913
      %5196 = vmatprep.subr.mxu0 %v4875
      %5197 = vmatpush1.msra.mxu0 %v4874
      %5198 = vmatprep.subr.mxu0 0.0
      %5199 = vmatpush2.msra.mxu0 0.0
      %5200 = vmatprep.subr.mxu0 0.0
      %5201 = vmatpush2.msra.mxu0 0.0
      %5202 = vmatprep.subr.mxu0 0.0
      %5203 = vmatpush2.msra.mxu0 0.0
      %5204 = vmatprep.subr.mxu0 0.0
      %5205 = vmatpush2.msra.mxu0 0.0
      %5206 = vmatprep.subr.mxu0 0.0
      %5207 = vmatpush2.msra.mxu0 0.0
      %5208 = vmatprep.subr.mxu0 0.0
      %5209 = vmatpush2.msra.mxu0 0.0
      %5210 = vmatprep.subr.mxu0 0.0
      %5211 = vmatpush2.msra.mxu0 0.0
      %5212 = vmatprep.subr.mxu0 0.0
      %5213 = vmatpush2.msra.mxu0 0.0
      %5214 = vmatprep.subr.mxu0 0.0
      %5215 = vmatpush2.msra.mxu0 0.0
      %5216 = vmatprep.subr.mxu0 0.0
      %5217 = vmatpush2.msra.mxu0 0.0
      %5218 = vmatprep.subr.mxu0 0.0
      %5219 = vmatpush2.msra.mxu0 0.0
      %5220 = vmatprep.subr.mxu0 0.0
      %5221 = vmatpush2.msra.mxu0 0.0
      %5222 = vmatprep.subr.mxu0 0.0
      %5223 = vmatpush2.msra.mxu0 0.0
      %5224 = vmatprep.subr.mxu0 0.0
      %5225 = vmatpush2.msra.mxu0 0.0
      %5226 = vmatprep.subr.mxu0 0.0
      %5227 = vmatpush2.msra.mxu0 0.0
      %5228 = vmatprep.subr.mxu0 0.0
      %5229 = vmatpush2.msra.mxu0 0.0
      %5230 = vmatprep.mubr.f32.mxu0 0.0
      %5231 = vmatmul.mubr.f32.gmra.mxu0 %v4893
      %v5232 = vpop.f32.mrf.mxu0
      %v5233 = vadd.f32 0.0, %v5232
      %v5234 = vpop.f32.mrf.mxu0
      %v5235 = vadd.f32 0.0, %v5234
      %5236 = vmatprep.mubr.f32.mxu0 0.0
      %5237 = vmatmul.mubr.f32.gmra.mxu0 %v4896
      %v5238 = vpop.f32.mrf.mxu0
      %v5239 = vadd.f32 0.0, %v5238
      %v5240 = vpop.f32.mrf.mxu0
      %v5241 = vadd.f32 0.0, %v5240
      %5242 = vmatprep.mubr.f32.mxu0 0.0
      %5243 = vmatmul.mubr.f32.gmra.mxu0 %v4899
      %v5244 = vpop.f32.mrf.mxu0
      %v5245 = vadd.f32 0.0, %v5244
      %v5246 = vpop.f32.mrf.mxu0
      %v5247 = vadd.f32 0.0, %v5246
      %5248 = vdwg.mxu0
      %v5249 = vadd.f32 %v4808, %v4984
      %v5250 = vadd.f32 %v4809, %v4986
      %v5251 = vadd.f32 %v4810, %v5067
      %v5252 = vadd.f32 %v4811, %v5069
      %v5253 = vadd.f32 %v4812, %v5150
      %v5254 = vadd.f32 %v4813, %v5152
      %v5255 = vadd.f32 %v4814, %v5233
      %v5256 = vadd.f32 %v4815, %v5235
      %v5257 = vadd.f32 %v4816, %v4990
      %v5258 = vadd.f32 %v4817, %v4992
      %v5259 = vadd.f32 %v4818, %v5073
      %v5260 = vadd.f32 %v4819, %v5075
      %v5261 = vadd.f32 %v4820, %v5156
      %v5262 = vadd.f32 %v4821, %v5158
      %v5263 = vadd.f32 %v4822, %v5239
      %v5264 = vadd.f32 %v4823, %v5241
      %v5265 = vadd.f32 %v4824, %v4996
      %v5266 = vadd.f32 %v4825, %v4998
      %v5267 = vadd.f32 %v4826, %v5079
      %v5268 = vadd.f32 %v4827, %v5081
      %v5269 = vadd.f32 %v4828, %v5162
      %v5270 = vadd.f32 %v4829, %v5164
      %v5271 = vadd.f32 %v4830, %v5245
      %v5272 = vadd.f32 %v4831, %v5247
      %5273 = vrot.lane.b32.xlu0 %v1815, 70
      %v5274 = vpop.permute.xlu0 %5273
      %5275 = vrot.lane.b32.xlu0 %v1816, 70
      %v5276 = vpop.permute.xlu0 %5275
      %5277 = vrot.lane.b32.xlu0 %v1817, 70
      %v5278 = vpop.permute.xlu0 %5277
      %5279 = vrot.lane.b32.xlu0 %v1818, 70
      %v5280 = vpop.permute.xlu0 %5279
      %5281 = vrot.lane.b32.xlu0 %v1819, 70
      %v5282 = vpop.permute.xlu0 %5281
      %5283 = vrot.lane.b32.xlu0 %v1820, 70
      %v5284 = vpop.permute.xlu0 %5283
      %5285 = vrot.lane.b32.xlu0 %v1821, 70
      %v5286 = vpop.permute.xlu0 %5285
      %5287 = vrot.lane.b32.xlu0 %v1822, 70
      %v5288 = vpop.permute.xlu0 %5287
      %5289 = vrot.lane.b32.xlu0 %v1831, 70
      %v5290 = vpop.permute.xlu0 %5289
      %5291 = vrot.lane.b32.xlu0 %v1823, 70
      %v5292 = vpop.permute.xlu0 %5291
      %5293 = vrot.lane.b32.xlu0 %v1824, 70
      %v5294 = vpop.permute.xlu0 %5293
      %5295 = vrot.lane.b32.xlu0 %v1825, 70
      %v5296 = vpop.permute.xlu0 %5295
      %5297 = vrot.lane.b32.xlu0 %v1826, 70
      %v5298 = vpop.permute.xlu0 %5297
      %5299 = vrot.lane.b32.xlu0 %v1827, 70
      %v5300 = vpop.permute.xlu0 %5299
      %5301 = vrot.lane.b32.xlu0 %v1828, 70
      %v5302 = vpop.permute.xlu0 %5301
      %5303 = vrot.lane.b32.xlu0 %v1829, 70
      %v5304 = vpop.permute.xlu0 %5303
      %5305 = vrot.lane.b32.xlu0 %v1830, 70
      %v5306 = vpop.permute.xlu0 %5305
      %5307 = vrot.lane.b32.xlu0 %v1832, 70
      %v5308 = vpop.permute.xlu0 %5307
      %v5309 = vsel %vm1655, %v5274, %v5276
      %v5310 = vsel %vm1655, %v5276, %v5278
      %v5311 = vsel %vm1655, %v5278, %v5280
      %v5312 = vsel %vm1655, %v5280, %v5282
      %v5313 = vsel %vm1655, %v5282, %v5284
      %v5314 = vsel %vm1655, %v5284, %v5286
      %v5315 = vsel %vm1655, %v5286, %v5288
      %v5316 = vsel %vm1655, %v5288, %v5290
      %v5317 = vsel %vm1655, %v5292, %v5294
      %v5318 = vsel %vm1655, %v5294, %v5296
      %v5319 = vsel %vm1655, %v5296, %v5298
      %v5320 = vsel %vm1655, %v5298, %v5300
      %v5321 = vsel %vm1655, %v5300, %v5302
      %v5322 = vsel %vm1655, %v5302, %v5304
      %v5323 = vsel %vm1655, %v5304, %v5306
      %v5324 = vsel %vm1655, %v5306, %v5308
      %v5334 = vsel %vm1911, %v1796, 0
      %v5337 = vsel %vm1911, %v1797, 0
      %v5340 = vsel %vm1911, %v1798, 0
      %v5342 = vsel %vm1921, %v5317, 0
      %v5344 = vsel %vm1921, %v5318, 0
      %v5346 = vsel %vm1921, %v5319, 0
      %v5348 = vsel %vm1921, %v5320, 0
      %v5350 = vsel %vm1921, %v5321, 0
      %v5352 = vsel %vm1921, %v5322, 0
      %v5354 = vsel %vm1921, %v5323, 0
      %v5356 = vsel %vm1921, %v5324, 0
      %5358 = vmatprep.subr.mxu0 0.0
      %5359 = vmatpush1.msra.mxu0 0.0
      %5360 = vmatprep.subr.mxu0 0.0
      %5361 = vmatpush1.msra.mxu0 0.0
      %5362 = vmatprep.subr.mxu0 0.0
      %5363 = vmatpush1.msra.mxu0 0.0
      %5364 = vmatprep.subr.mxu0 0.0
      %5365 = vmatpush1.msra.mxu0 0.0
      %5366 = vmatprep.subr.mxu0 0.0
      %5367 = vmatpush1.msra.mxu0 0.0
      %5368 = vmatprep.subr.mxu0 0.0
      %5369 = vmatpush1.msra.mxu0 0.0
      %5370 = vmatprep.subr.mxu0 0.0
      %5371 = vmatpush1.msra.mxu0 0.0
      %5372 = vmatprep.subr.mxu0 0.0
      %5373 = vmatpush1.msra.mxu0 0.0
      %5374 = vmatprep.subr.mxu0 0.0
      %5375 = vmatpush1.msra.mxu0 0.0
      %5376 = vmatprep.subr.mxu0 0.0
      %5377 = vmatpush1.msra.mxu0 0.0
      %5378 = vmatprep.subr.mxu0 0.0
      %5379 = vmatpush1.msra.mxu0 0.0
      %5380 = vmatprep.subr.mxu0 0.0
      %5381 = vmatpush1.msra.mxu0 0.0
      %5382 = vmatprep.subr.mxu0 0.0
      %5383 = vmatpush1.msra.mxu0 0.0
      %5384 = vmatprep.subr.mxu0 0.0
      %5385 = vmatpush1.msra.mxu0 0.0
      %5386 = vmatprep.subr.mxu0 %v5344
      %5387 = vmatpush1.msra.mxu0 %v5342
      %5388 = vmatprep.subr.mxu0 %v5310
      %5389 = vmatpush1.msra.mxu0 %v5309
      %5390 = vmatprep.subr.mxu0 0.0
      %5391 = vmatpush2.msra.mxu0 0.0
      %5392 = vmatprep.subr.mxu0 0.0
      %5393 = vmatpush2.msra.mxu0 0.0
      %5394 = vmatprep.subr.mxu0 0.0
      %5395 = vmatpush2.msra.mxu0 0.0
      %5396 = vmatprep.subr.mxu0 0.0
      %5397 = vmatpush2.msra.mxu0 0.0
      %5398 = vmatprep.subr.mxu0 0.0
      %5399 = vmatpush2.msra.mxu0 0.0
      %5400 = vmatprep.subr.mxu0 0.0
      %5401 = vmatpush2.msra.mxu0 0.0
      %5402 = vmatprep.subr.mxu0 0.0
      %5403 = vmatpush2.msra.mxu0 0.0
      %5404 = vmatprep.subr.mxu0 0.0
      %5405 = vmatpush2.msra.mxu0 0.0
      %5406 = vmatprep.subr.mxu0 0.0
      %5407 = vmatpush2.msra.mxu0 0.0
      %5408 = vmatprep.subr.mxu0 0.0
      %5409 = vmatpush2.msra.mxu0 0.0
      %5410 = vmatprep.subr.mxu0 0.0
      %5411 = vmatpush2.msra.mxu0 0.0
      %5412 = vmatprep.subr.mxu0 0.0
      %5413 = vmatpush2.msra.mxu0 0.0
      %5414 = vmatprep.subr.mxu0 0.0
      %5415 = vmatpush2.msra.mxu0 0.0
      %5416 = vmatprep.subr.mxu0 0.0
      %5417 = vmatpush2.msra.mxu0 0.0
      %5418 = vmatprep.subr.mxu0 0.0
      %5419 = vmatpush2.msra.mxu0 0.0
      %5420 = vmatprep.subr.mxu0 0.0
      %5421 = vmatpush2.msra.mxu0 0.0
      %5422 = vmatprep.mubr.f32.mxu0 0.0
      %5423 = vmatmul.mubr.f32.gmra.mxu0 %v5334
      %v5424 = vpop.f32.mrf.mxu0
      %v5425 = vadd.f32 0.0, %v5424
      %v5426 = vpop.f32.mrf.mxu0
      %v5427 = vadd.f32 0.0, %v5426
      %5428 = vmatprep.mubr.f32.mxu0 0.0
      %5429 = vmatmul.mubr.f32.gmra.mxu0 %v5337
      %v5430 = vpop.f32.mrf.mxu0
      %v5431 = vadd.f32 0.0, %v5430
      %v5432 = vpop.f32.mrf.mxu0
      %v5433 = vadd.f32 0.0, %v5432
      %5434 = vmatprep.mubr.f32.mxu0 0.0
      %5435 = vmatmul.mubr.f32.gmra.mxu0 %v5340
      %v5436 = vpop.f32.mrf.mxu0
      %v5437 = vadd.f32 0.0, %v5436
      %v5438 = vpop.f32.mrf.mxu0
      %v5439 = vadd.f32 0.0, %v5438
      %5440 = vdwg.mxu0
      %5441 = vmatprep.subr.mxu0 0.0
      %5442 = vmatpush1.msra.mxu0 0.0
      %5443 = vmatprep.subr.mxu0 0.0
      %5444 = vmatpush1.msra.mxu0 0.0
      %5445 = vmatprep.subr.mxu0 0.0
      %5446 = vmatpush1.msra.mxu0 0.0
      %5447 = vmatprep.subr.mxu0 0.0
      %5448 = vmatpush1.msra.mxu0 0.0
      %5449 = vmatprep.subr.mxu0 0.0
      %5450 = vmatpush1.msra.mxu0 0.0
      %5451 = vmatprep.subr.mxu0 0.0
      %5452 = vmatpush1.msra.mxu0 0.0
      %5453 = vmatprep.subr.mxu0 0.0
      %5454 = vmatpush1.msra.mxu0 0.0
      %5455 = vmatprep.subr.mxu0 0.0
      %5456 = vmatpush1.msra.mxu0 0.0
      %5457 = vmatprep.subr.mxu0 0.0
      %5458 = vmatpush1.msra.mxu0 0.0
      %5459 = vmatprep.subr.mxu0 0.0
      %5460 = vmatpush1.msra.mxu0 0.0
      %5461 = vmatprep.subr.mxu0 0.0
      %5462 = vmatpush1.msra.mxu0 0.0
      %5463 = vmatprep.subr.mxu0 0.0
      %5464 = vmatpush1.msra.mxu0 0.0
      %5465 = vmatprep.subr.mxu0 0.0
      %5466 = vmatpush1.msra.mxu0 0.0
      %5467 = vmatprep.subr.mxu0 0.0
      %5468 = vmatpush1.msra.mxu0 0.0
      %5469 = vmatprep.subr.mxu0 %v5348
      %5470 = vmatpush1.msra.mxu0 %v5346
      %5471 = vmatprep.subr.mxu0 %v5312
      %5472 = vmatpush1.msra.mxu0 %v5311
      %5473 = vmatprep.subr.mxu0 0.0
      %5474 = vmatpush2.msra.mxu0 0.0
      %5475 = vmatprep.subr.mxu0 0.0
      %5476 = vmatpush2.msra.mxu0 0.0
      %5477 = vmatprep.subr.mxu0 0.0
      %5478 = vmatpush2.msra.mxu0 0.0
      %5479 = vmatprep.subr.mxu0 0.0
      %5480 = vmatpush2.msra.mxu0 0.0
      %5481 = vmatprep.subr.mxu0 0.0
      %5482 = vmatpush2.msra.mxu0 0.0
      %5483 = vmatprep.subr.mxu0 0.0
      %5484 = vmatpush2.msra.mxu0 0.0
      %5485 = vmatprep.subr.mxu0 0.0
      %5486 = vmatpush2.msra.mxu0 0.0
      %5487 = vmatprep.subr.mxu0 0.0
      %5488 = vmatpush2.msra.mxu0 0.0
      %5489 = vmatprep.subr.mxu0 0.0
      %5490 = vmatpush2.msra.mxu0 0.0
      %5491 = vmatprep.subr.mxu0 0.0
      %5492 = vmatpush2.msra.mxu0 0.0
      %5493 = vmatprep.subr.mxu0 0.0
      %5494 = vmatpush2.msra.mxu0 0.0
      %5495 = vmatprep.subr.mxu0 0.0
      %5496 = vmatpush2.msra.mxu0 0.0
      %5497 = vmatprep.subr.mxu0 0.0
      %5498 = vmatpush2.msra.mxu0 0.0
      %5499 = vmatprep.subr.mxu0 0.0
      %5500 = vmatpush2.msra.mxu0 0.0
      %5501 = vmatprep.subr.mxu0 0.0
      %5502 = vmatpush2.msra.mxu0 0.0
      %5503 = vmatprep.subr.mxu0 0.0
      %5504 = vmatpush2.msra.mxu0 0.0
      %5505 = vmatprep.mubr.f32.mxu0 0.0
      %5506 = vmatmul.mubr.f32.gmra.mxu0 %v5334
      %v5507 = vpop.f32.mrf.mxu0
      %v5508 = vadd.f32 0.0, %v5507
      %v5509 = vpop.f32.mrf.mxu0
      %v5510 = vadd.f32 0.0, %v5509
      %5511 = vmatprep.mubr.f32.mxu0 0.0
      %5512 = vmatmul.mubr.f32.gmra.mxu0 %v5337
      %v5513 = vpop.f32.mrf.mxu0
      %v5514 = vadd.f32 0.0, %v5513
      %v5515 = vpop.f32.mrf.mxu0
      %v5516 = vadd.f32 0.0, %v5515
      %5517 = vmatprep.mubr.f32.mxu0 0.0
      %5518 = vmatmul.mubr.f32.gmra.mxu0 %v5340
      %v5519 = vpop.f32.mrf.mxu0
      %v5520 = vadd.f32 0.0, %v5519
      %v5521 = vpop.f32.mrf.mxu0
      %v5522 = vadd.f32 0.0, %v5521
      %5523 = vdwg.mxu0
      %5524 = vmatprep.subr.mxu0 0.0
      %5525 = vmatpush1.msra.mxu0 0.0
      %5526 = vmatprep.subr.mxu0 0.0
      %5527 = vmatpush1.msra.mxu0 0.0
      %5528 = vmatprep.subr.mxu0 0.0
      %5529 = vmatpush1.msra.mxu0 0.0
      %5530 = vmatprep.subr.mxu0 0.0
      %5531 = vmatpush1.msra.mxu0 0.0
      %5532 = vmatprep.subr.mxu0 0.0
      %5533 = vmatpush1.msra.mxu0 0.0
      %5534 = vmatprep.subr.mxu0 0.0
      %5535 = vmatpush1.msra.mxu0 0.0
      %5536 = vmatprep.subr.mxu0 0.0
      %5537 = vmatpush1.msra.mxu0 0.0
      %5538 = vmatprep.subr.mxu0 0.0
      %5539 = vmatpush1.msra.mxu0 0.0
      %5540 = vmatprep.subr.mxu0 0.0
      %5541 = vmatpush1.msra.mxu0 0.0
      %5542 = vmatprep.subr.mxu0 0.0
      %5543 = vmatpush1.msra.mxu0 0.0
      %5544 = vmatprep.subr.mxu0 0.0
      %5545 = vmatpush1.msra.mxu0 0.0
      %5546 = vmatprep.subr.mxu0 0.0
      %5547 = vmatpush1.msra.mxu0 0.0
      %5548 = vmatprep.subr.mxu0 0.0
      %5549 = vmatpush1.msra.mxu0 0.0
      %5550 = vmatprep.subr.mxu0 0.0
      %5551 = vmatpush1.msra.mxu0 0.0
      %5552 = vmatprep.subr.mxu0 %v5352
      %5553 = vmatpush1.msra.mxu0 %v5350
      %5554 = vmatprep.subr.mxu0 %v5314
      %5555 = vmatpush1.msra.mxu0 %v5313
      %5556 = vmatprep.subr.mxu0 0.0
      %5557 = vmatpush2.msra.mxu0 0.0
      %5558 = vmatprep.subr.mxu0 0.0
      %5559 = vmatpush2.msra.mxu0 0.0
      %5560 = vmatprep.subr.mxu0 0.0
      %5561 = vmatpush2.msra.mxu0 0.0
      %5562 = vmatprep.subr.mxu0 0.0
      %5563 = vmatpush2.msra.mxu0 0.0
      %5564 = vmatprep.subr.mxu0 0.0
      %5565 = vmatpush2.msra.mxu0 0.0
      %5566 = vmatprep.subr.mxu0 0.0
      %5567 = vmatpush2.msra.mxu0 0.0
      %5568 = vmatprep.subr.mxu0 0.0
      %5569 = vmatpush2.msra.mxu0 0.0
      %5570 = vmatprep.subr.mxu0 0.0
      %5571 = vmatpush2.msra.mxu0 0.0
      %5572 = vmatprep.subr.mxu0 0.0
      %5573 = vmatpush2.msra.mxu0 0.0
      %5574 = vmatprep.subr.mxu0 0.0
      %5575 = vmatpush2.msra.mxu0 0.0
      %5576 = vmatprep.subr.mxu0 0.0
      %5577 = vmatpush2.msra.mxu0 0.0
      %5578 = vmatprep.subr.mxu0 0.0
      %5579 = vmatpush2.msra.mxu0 0.0
      %5580 = vmatprep.subr.mxu0 0.0
      %5581 = vmatpush2.msra.mxu0 0.0
      %5582 = vmatprep.subr.mxu0 0.0
      %5583 = vmatpush2.msra.mxu0 0.0
      %5584 = vmatprep.subr.mxu0 0.0
      %5585 = vmatpush2.msra.mxu0 0.0
      %5586 = vmatprep.subr.mxu0 0.0
      %5587 = vmatpush2.msra.mxu0 0.0
      %5588 = vmatprep.mubr.f32.mxu0 0.0
      %5589 = vmatmul.mubr.f32.gmra.mxu0 %v5334
      %v5590 = vpop.f32.mrf.mxu0
      %v5591 = vadd.f32 0.0, %v5590
      %v5592 = vpop.f32.mrf.mxu0
      %v5593 = vadd.f32 0.0, %v5592
      %5594 = vmatprep.mubr.f32.mxu0 0.0
      %5595 = vmatmul.mubr.f32.gmra.mxu0 %v5337
      %v5596 = vpop.f32.mrf.mxu0
      %v5597 = vadd.f32 0.0, %v5596
      %v5598 = vpop.f32.mrf.mxu0
      %v5599 = vadd.f32 0.0, %v5598
      %5600 = vmatprep.mubr.f32.mxu0 0.0
      %5601 = vmatmul.mubr.f32.gmra.mxu0 %v5340
      %v5602 = vpop.f32.mrf.mxu0
      %v5603 = vadd.f32 0.0, %v5602
      %v5604 = vpop.f32.mrf.mxu0
      %v5605 = vadd.f32 0.0, %v5604
      %5606 = vdwg.mxu0
      %5607 = vmatprep.subr.mxu0 0.0
      %5608 = vmatpush1.msra.mxu0 0.0
      %5609 = vmatprep.subr.mxu0 0.0
      %5610 = vmatpush1.msra.mxu0 0.0
      %5611 = vmatprep.subr.mxu0 0.0
      %5612 = vmatpush1.msra.mxu0 0.0
      %5613 = vmatprep.subr.mxu0 0.0
      %5614 = vmatpush1.msra.mxu0 0.0
      %5615 = vmatprep.subr.mxu0 0.0
      %5616 = vmatpush1.msra.mxu0 0.0
      %5617 = vmatprep.subr.mxu0 0.0
      %5618 = vmatpush1.msra.mxu0 0.0
      %5619 = vmatprep.subr.mxu0 0.0
      %5620 = vmatpush1.msra.mxu0 0.0
      %5621 = vmatprep.subr.mxu0 0.0
      %5622 = vmatpush1.msra.mxu0 0.0
      %5623 = vmatprep.subr.mxu0 0.0
      %5624 = vmatpush1.msra.mxu0 0.0
      %5625 = vmatprep.subr.mxu0 0.0
      %5626 = vmatpush1.msra.mxu0 0.0
      %5627 = vmatprep.subr.mxu0 0.0
      %5628 = vmatpush1.msra.mxu0 0.0
      %5629 = vmatprep.subr.mxu0 0.0
      %5630 = vmatpush1.msra.mxu0 0.0
      %5631 = vmatprep.subr.mxu0 0.0
      %5632 = vmatpush1.msra.mxu0 0.0
      %5633 = vmatprep.subr.mxu0 0.0
      %5634 = vmatpush1.msra.mxu0 0.0
      %5635 = vmatprep.subr.mxu0 %v5356
      %5636 = vmatpush1.msra.mxu0 %v5354
      %5637 = vmatprep.subr.mxu0 %v5316
      %5638 = vmatpush1.msra.mxu0 %v5315
      %5639 = vmatprep.subr.mxu0 0.0
      %5640 = vmatpush2.msra.mxu0 0.0
      %5641 = vmatprep.subr.mxu0 0.0
      %5642 = vmatpush2.msra.mxu0 0.0
      %5643 = vmatprep.subr.mxu0 0.0
      %5644 = vmatpush2.msra.mxu0 0.0
      %5645 = vmatprep.subr.mxu0 0.0
      %5646 = vmatpush2.msra.mxu0 0.0
      %5647 = vmatprep.subr.mxu0 0.0
      %5648 = vmatpush2.msra.mxu0 0.0
      %5649 = vmatprep.subr.mxu0 0.0
      %5650 = vmatpush2.msra.mxu0 0.0
      %5651 = vmatprep.subr.mxu0 0.0
      %5652 = vmatpush2.msra.mxu0 0.0
      %5653 = vmatprep.subr.mxu0 0.0
      %5654 = vmatpush2.msra.mxu0 0.0
      %5655 = vmatprep.subr.mxu0 0.0
      %5656 = vmatpush2.msra.mxu0 0.0
      %5657 = vmatprep.subr.mxu0 0.0
      %5658 = vmatpush2.msra.mxu0 0.0
      %5659 = vmatprep.subr.mxu0 0.0
      %5660 = vmatpush2.msra.mxu0 0.0
      %5661 = vmatprep.subr.mxu0 0.0
      %5662 = vmatpush2.msra.mxu0 0.0
      %5663 = vmatprep.subr.mxu0 0.0
      %5664 = vmatpush2.msra.mxu0 0.0
      %5665 = vmatprep.subr.mxu0 0.0
      %5666 = vmatpush2.msra.mxu0 0.0
      %5667 = vmatprep.subr.mxu0 0.0
      %5668 = vmatpush2.msra.mxu0 0.0
      %5669 = vmatprep.subr.mxu0 0.0
      %5670 = vmatpush2.msra.mxu0 0.0
      %5671 = vmatprep.mubr.f32.mxu0 0.0
      %5672 = vmatmul.mubr.f32.gmra.mxu0 %v5334
      %v5673 = vpop.f32.mrf.mxu0
      %v5674 = vadd.f32 0.0, %v5673
      %v5675 = vpop.f32.mrf.mxu0
      %v5676 = vadd.f32 0.0, %v5675
      %5677 = vmatprep.mubr.f32.mxu0 0.0
      %5678 = vmatmul.mubr.f32.gmra.mxu0 %v5337
      %v5679 = vpop.f32.mrf.mxu0
      %v5680 = vadd.f32 0.0, %v5679
      %v5681 = vpop.f32.mrf.mxu0
      %v5682 = vadd.f32 0.0, %v5681
      %5683 = vmatprep.mubr.f32.mxu0 0.0
      %5684 = vmatmul.mubr.f32.gmra.mxu0 %v5340
      %v5685 = vpop.f32.mrf.mxu0
      %v5686 = vadd.f32 0.0, %v5685
      %v5687 = vpop.f32.mrf.mxu0
      %v5688 = vadd.f32 0.0, %v5687
      %5689 = vdwg.mxu0
      %v5690 = vadd.f32 %v5249, %v5425
      %v5691 = vadd.f32 %v5250, %v5427
      %v5692 = vadd.f32 %v5251, %v5508
      %v5693 = vadd.f32 %v5252, %v5510
      %v5694 = vadd.f32 %v5253, %v5591
      %v5695 = vadd.f32 %v5254, %v5593
      %v5696 = vadd.f32 %v5255, %v5674
      %v5697 = vadd.f32 %v5256, %v5676
      %v5698 = vadd.f32 %v5257, %v5431
      %v5699 = vadd.f32 %v5258, %v5433
      %v5700 = vadd.f32 %v5259, %v5514
      %v5701 = vadd.f32 %v5260, %v5516
      %v5702 = vadd.f32 %v5261, %v5597
      %v5703 = vadd.f32 %v5262, %v5599
      %v5704 = vadd.f32 %v5263, %v5680
      %v5705 = vadd.f32 %v5264, %v5682
      %v5706 = vadd.f32 %v5265, %v5437
      %v5707 = vadd.f32 %v5266, %v5439
      %v5708 = vadd.f32 %v5267, %v5520
      %v5709 = vadd.f32 %v5268, %v5522
      %v5710 = vadd.f32 %v5269, %v5603
      %v5711 = vadd.f32 %v5270, %v5605
      %v5712 = vadd.f32 %v5271, %v5686
      %v5713 = vadd.f32 %v5272, %v5688
      %v5714 = vmax.f32 %v5690, 0.0
      %v5715 = vmax.f32 %v5691, 0.0
      %v5716 = vmax.f32 %v5692, 0.0
      %v5717 = vmax.f32 %v5693, 0.0
      %v5718 = vmax.f32 %v5694, 0.0
      %v5719 = vmax.f32 %v5695, 0.0
      %v5720 = vmax.f32 %v5696, 0.0
      %v5721 = vmax.f32 %v5697, 0.0
      %v5722 = vmax.f32 %v5698, 0.0
      %v5723 = vmax.f32 %v5699, 0.0
      %v5724 = vmax.f32 %v5700, 0.0
      %v5725 = vmax.f32 %v5701, 0.0
      %v5726 = vmax.f32 %v5702, 0.0
      %v5727 = vmax.f32 %v5703, 0.0
      %v5728 = vmax.f32 %v5704, 0.0
      %v5729 = vmax.f32 %v5705, 0.0
      %v5730 = vmax.f32 %v5706, 0.0
      %v5731 = vmax.f32 %v5707, 0.0
      %v5732 = vmax.f32 %v5708, 0.0
      %v5733 = vmax.f32 %v5709, 0.0
      %v5734 = vmax.f32 %v5710, 0.0
      %v5735 = vmax.f32 %v5711, 0.0
      %v5736 = vmax.f32 %v5712, 0.0
      %v5737 = vmax.f32 %v5713, 0.0
      %5739 = vset.pattern.permute.xlu0 0
      %5740 = vperm.xlu0 %5739, %v440
      %v5741 = vpop.permute.xlu0 %5740
      %5744 = vset.pattern.permute.xlu0 0
      %5745 = vperm.xlu0 %5744, %v441
      %v5746 = vpop.permute.xlu0 %5745
      %5749 = vset.pattern.permute.xlu0 0
      %5750 = vperm.xlu0 %5749, %v442
      %v5751 = vpop.permute.xlu0 %5750
      %v5753 = vmul.f32 %v5714, %v5741
      %v5754 = vmul.f32 %v5715, %v5741
      %v5755 = vmul.f32 %v5716, %v5741
      %v5756 = vmul.f32 %v5717, %v5741
      %v5757 = vmul.f32 %v5718, %v5741
      %v5758 = vmul.f32 %v5719, %v5741
      %v5759 = vmul.f32 %v5720, %v5741
      %v5760 = vmul.f32 %v5721, %v5741
      %v5761 = vmul.f32 %v5722, %v5746
      %v5762 = vmul.f32 %v5723, %v5746
      %v5763 = vmul.f32 %v5724, %v5746
      %v5764 = vmul.f32 %v5725, %v5746
      %v5765 = vmul.f32 %v5726, %v5746
      %v5766 = vmul.f32 %v5727, %v5746
      %v5767 = vmul.f32 %v5728, %v5746
      %v5768 = vmul.f32 %v5729, %v5746
      %v5769 = vmul.f32 %v5730, %v5751
      %v5770 = vmul.f32 %v5731, %v5751
      %v5771 = vmul.f32 %v5732, %v5751
      %v5772 = vmul.f32 %v5733, %v5751
      %v5773 = vmul.f32 %v5734, %v5751
      %v5774 = vmul.f32 %v5735, %v5751
      %v5775 = vmul.f32 %v5736, %v5751
      %v5776 = vmul.f32 %v5737, %v5751
      %5778 = vset.pattern.permute.xlu0 0
      %5779 = vperm.xlu0 %5778, %v454
      %v5780 = vpop.permute.xlu0 %5779
      %5783 = vset.pattern.permute.xlu0 0
      %5784 = vperm.xlu0 %5783, %v455
      %v5785 = vpop.permute.xlu0 %5784
      %5788 = vset.pattern.permute.xlu0 0
      %5789 = vperm.xlu0 %5788, %v456
      %v5790 = vpop.permute.xlu0 %5789
      %v5792 = vadd.f32 %v5753, %v5780
      %v5793 = vadd.f32 %v5754, %v5780
      %v5794 = vadd.f32 %v5755, %v5780
      %v5795 = vadd.f32 %v5756, %v5780
      %v5796 = vadd.f32 %v5757, %v5780
      %v5797 = vadd.f32 %v5758, %v5780
      %v5798 = vadd.f32 %v5759, %v5780
      %v5799 = vadd.f32 %v5760, %v5780
      %v5800 = vadd.f32 %v5761, %v5785
      %v5801 = vadd.f32 %v5762, %v5785
      %v5802 = vadd.f32 %v5763, %v5785
      %v5803 = vadd.f32 %v5764, %v5785
      %v5804 = vadd.f32 %v5765, %v5785
      %v5805 = vadd.f32 %v5766, %v5785
      %v5806 = vadd.f32 %v5767, %v5785
      %v5807 = vadd.f32 %v5768, %v5785
      %v5808 = vadd.f32 %v5769, %v5790
      %v5809 = vadd.f32 %v5770, %v5790
      %v5810 = vadd.f32 %v5771, %v5790
      %v5811 = vadd.f32 %v5772, %v5790
      %v5812 = vadd.f32 %v5773, %v5790
      %v5813 = vadd.f32 %v5774, %v5790
      %v5814 = vadd.f32 %v5775, %v5790
      %v5815 = vadd.f32 %v5776, %v5790
      %v5816 = vld [vmem:[%s3] sm:$0xff]
      %v5817 = vld [vmem:[%s3 + $0x8] sm:$0x3]
      %vm5818 = vcmask 162816
      %v5820 = vsel %vm5818, %v5816, 0
      %v5823 = vsel %vm5818, %v5817, 0
      %vm5825 = vcmask 1043456
      %v5827 = vsel %vm5825, %v5808, 0
      %v5830 = vsel %vm5825, %v5809, 0
      %v5833 = vsel %vm5825, %v5810, 0
      %v5836 = vsel %vm5825, %v5811, 0
      %v5839 = vsel %vm5825, %v5812, 0
      %v5842 = vsel %vm5825, %v5813, 0
      %v5845 = vsel %vm5825, %v5814, 0
      %v5848 = vsel %vm5825, %v5815, 0
      %5850 = vmatprep.subr.mxu0 0.0
      %5851 = vmatpush1.msra.mxu0 0.0
      %5852 = vmatprep.subr.mxu0 0.0
      %5853 = vmatpush1.msra.mxu0 0.0
      %5854 = vmatprep.subr.mxu0 0.0
      %5855 = vmatpush1.msra.mxu0 0.0
      %5856 = vmatprep.subr.mxu0 0.0
      %5857 = vmatpush1.msra.mxu0 0.0
      %5858 = vmatprep.subr.mxu0 0.0
      %5859 = vmatpush1.msra.mxu0 0.0
      %5860 = vmatprep.subr.mxu0 0.0
      %5861 = vmatpush1.msra.mxu0 0.0
      %5862 = vmatprep.subr.mxu0 0.0
      %5863 = vmatpush1.msra.mxu0 0.0
      %5864 = vmatprep.subr.mxu0 0.0
      %5865 = vmatpush1.msra.mxu0 0.0
      %5866 = vmatprep.subr.mxu0 0.0
      %5867 = vmatpush1.msra.mxu0 0.0
      %5868 = vmatprep.subr.mxu0 0.0
      %5869 = vmatpush1.msra.mxu0 0.0
      %5870 = vmatprep.subr.mxu0 0.0
      %5871 = vmatpush1.msra.mxu0 0.0
      %5872 = vmatprep.subr.mxu0 0.0
      %5873 = vmatpush1.msra.mxu0 0.0
      %5874 = vmatprep.subr.mxu0 0.0
      %5875 = vmatpush1.msra.mxu0 0.0
      %5876 = vmatprep.subr.mxu0 %v5830
      %5877 = vmatpush1.msra.mxu0 %v5827
      %5878 = vmatprep.subr.mxu0 %v5801
      %5879 = vmatpush1.msra.mxu0 %v5800
      %5880 = vmatprep.subr.mxu0 %v5793
      %5881 = vmatpush1.msra.mxu0 %v5792
      %5882 = vmatprep.subr.mxu0 0.0
      %5883 = vmatpush2.msra.mxu0 0.0
      %5884 = vmatprep.subr.mxu0 0.0
      %5885 = vmatpush2.msra.mxu0 0.0
      %5886 = vmatprep.subr.mxu0 0.0
      %5887 = vmatpush2.msra.mxu0 0.0
      %5888 = vmatprep.subr.mxu0 0.0
      %5889 = vmatpush2.msra.mxu0 0.0
      %5890 = vmatprep.subr.mxu0 0.0
      %5891 = vmatpush2.msra.mxu0 0.0
      %5892 = vmatprep.subr.mxu0 0.0
      %5893 = vmatpush2.msra.mxu0 0.0
      %5894 = vmatprep.subr.mxu0 0.0
      %5895 = vmatpush2.msra.mxu0 0.0
      %5896 = vmatprep.subr.mxu0 0.0
      %5897 = vmatpush2.msra.mxu0 0.0
      %5898 = vmatprep.subr.mxu0 0.0
      %5899 = vmatpush2.msra.mxu0 0.0
      %5900 = vmatprep.subr.mxu0 0.0
      %5901 = vmatpush2.msra.mxu0 0.0
      %5902 = vmatprep.subr.mxu0 0.0
      %5903 = vmatpush2.msra.mxu0 0.0
      %5904 = vmatprep.subr.mxu0 0.0
      %5905 = vmatpush2.msra.mxu0 0.0
      %5906 = vmatprep.subr.mxu0 0.0
      %5907 = vmatpush2.msra.mxu0 0.0
      %5908 = vmatprep.subr.mxu0 0.0
      %5909 = vmatpush2.msra.mxu0 0.0
      %5910 = vmatprep.subr.mxu0 0.0
      %5911 = vmatpush2.msra.mxu0 0.0
      %5912 = vmatprep.subr.mxu0 0.0
      %5913 = vmatpush2.msra.mxu0 0.0
      %5914 = vmatprep.mubr.f32.mxu0 0.0
      %5915 = vmatmul.mubr.f32.gmra.mxu0 %v5820
      %v5916 = vpop.f32.mrf.mxu0
      %v5917 = vadd.f32 0.0, %v5916
      %v5918 = vpop.f32.mrf.mxu0
      %v5919 = vadd.f32 0.0, %v5918
      %5920 = vmatprep.mubr.f32.mxu0 0.0
      %5921 = vmatmul.mubr.f32.gmra.mxu0 %v5823
      %v5922 = vpop.f32.mrf.mxu0
      %v5923 = vadd.f32 0.0, %v5922
      %v5924 = vpop.f32.mrf.mxu0
      %v5925 = vadd.f32 0.0, %v5924
      %5926 = vdwg.mxu0
      %5927 = vmatprep.subr.mxu0 0.0
      %5928 = vmatpush1.msra.mxu0 0.0
      %5929 = vmatprep.subr.mxu0 0.0
      %5930 = vmatpush1.msra.mxu0 0.0
      %5931 = vmatprep.subr.mxu0 0.0
      %5932 = vmatpush1.msra.mxu0 0.0
      %5933 = vmatprep.subr.mxu0 0.0
      %5934 = vmatpush1.msra.mxu0 0.0
      %5935 = vmatprep.subr.mxu0 0.0
      %5936 = vmatpush1.msra.mxu0 0.0
      %5937 = vmatprep.subr.mxu0 0.0
      %5938 = vmatpush1.msra.mxu0 0.0
      %5939 = vmatprep.subr.mxu0 0.0
      %5940 = vmatpush1.msra.mxu0 0.0
      %5941 = vmatprep.subr.mxu0 0.0
      %5942 = vmatpush1.msra.mxu0 0.0
      %5943 = vmatprep.subr.mxu0 0.0
      %5944 = vmatpush1.msra.mxu0 0.0
      %5945 = vmatprep.subr.mxu0 0.0
      %5946 = vmatpush1.msra.mxu0 0.0
      %5947 = vmatprep.subr.mxu0 0.0
      %5948 = vmatpush1.msra.mxu0 0.0
      %5949 = vmatprep.subr.mxu0 0.0
      %5950 = vmatpush1.msra.mxu0 0.0
      %5951 = vmatprep.subr.mxu0 0.0
      %5952 = vmatpush1.msra.mxu0 0.0
      %5953 = vmatprep.subr.mxu0 %v5836
      %5954 = vmatpush1.msra.mxu0 %v5833
      %5955 = vmatprep.subr.mxu0 %v5803
      %5956 = vmatpush1.msra.mxu0 %v5802
      %5957 = vmatprep.subr.mxu0 %v5795
      %5958 = vmatpush1.msra.mxu0 %v5794
      %5959 = vmatprep.subr.mxu0 0.0
      %5960 = vmatpush2.msra.mxu0 0.0
      %5961 = vmatprep.subr.mxu0 0.0
      %5962 = vmatpush2.msra.mxu0 0.0
      %5963 = vmatprep.subr.mxu0 0.0
      %5964 = vmatpush2.msra.mxu0 0.0
      %5965 = vmatprep.subr.mxu0 0.0
      %5966 = vmatpush2.msra.mxu0 0.0
      %5967 = vmatprep.subr.mxu0 0.0
      %5968 = vmatpush2.msra.mxu0 0.0
      %5969 = vmatprep.subr.mxu0 0.0
      %5970 = vmatpush2.msra.mxu0 0.0
      %5971 = vmatprep.subr.mxu0 0.0
      %5972 = vmatpush2.msra.mxu0 0.0
      %5973 = vmatprep.subr.mxu0 0.0
      %5974 = vmatpush2.msra.mxu0 0.0
      %5975 = vmatprep.subr.mxu0 0.0
      %5976 = vmatpush2.msra.mxu0 0.0
      %5977 = vmatprep.subr.mxu0 0.0
      %5978 = vmatpush2.msra.mxu0 0.0
      %5979 = vmatprep.subr.mxu0 0.0
      %5980 = vmatpush2.msra.mxu0 0.0
      %5981 = vmatprep.subr.mxu0 0.0
      %5982 = vmatpush2.msra.mxu0 0.0
      %5983 = vmatprep.subr.mxu0 0.0
      %5984 = vmatpush2.msra.mxu0 0.0
      %5985 = vmatprep.subr.mxu0 0.0
      %5986 = vmatpush2.msra.mxu0 0.0
      %5987 = vmatprep.subr.mxu0 0.0
      %5988 = vmatpush2.msra.mxu0 0.0
      %5989 = vmatprep.subr.mxu0 0.0
      %5990 = vmatpush2.msra.mxu0 0.0
      %5991 = vmatprep.mubr.f32.mxu0 0.0
      %5992 = vmatmul.mubr.f32.gmra.mxu0 %v5820
      %v5993 = vpop.f32.mrf.mxu0
      %v5994 = vadd.f32 0.0, %v5993
      %v5995 = vpop.f32.mrf.mxu0
      %v5996 = vadd.f32 0.0, %v5995
      %5997 = vmatprep.mubr.f32.mxu0 0.0
      %5998 = vmatmul.mubr.f32.gmra.mxu0 %v5823
      %v5999 = vpop.f32.mrf.mxu0
      %v6000 = vadd.f32 0.0, %v5999
      %v6001 = vpop.f32.mrf.mxu0
      %v6002 = vadd.f32 0.0, %v6001
      %6003 = vdwg.mxu0
      %6004 = vmatprep.subr.mxu0 0.0
      %6005 = vmatpush1.msra.mxu0 0.0
      %6006 = vmatprep.subr.mxu0 0.0
      %6007 = vmatpush1.msra.mxu0 0.0
      %6008 = vmatprep.subr.mxu0 0.0
      %6009 = vmatpush1.msra.mxu0 0.0
      %6010 = vmatprep.subr.mxu0 0.0
      %6011 = vmatpush1.msra.mxu0 0.0
      %6012 = vmatprep.subr.mxu0 0.0
      %6013 = vmatpush1.msra.mxu0 0.0
      %6014 = vmatprep.subr.mxu0 0.0
      %6015 = vmatpush1.msra.mxu0 0.0
      %6016 = vmatprep.subr.mxu0 0.0
      %6017 = vmatpush1.msra.mxu0 0.0
      %6018 = vmatprep.subr.mxu0 0.0
      %6019 = vmatpush1.msra.mxu0 0.0
      %6020 = vmatprep.subr.mxu0 0.0
      %6021 = vmatpush1.msra.mxu0 0.0
      %6022 = vmatprep.subr.mxu0 0.0
      %6023 = vmatpush1.msra.mxu0 0.0
      %6024 = vmatprep.subr.mxu0 0.0
      %6025 = vmatpush1.msra.mxu0 0.0
      %6026 = vmatprep.subr.mxu0 0.0
      %6027 = vmatpush1.msra.mxu0 0.0
      %6028 = vmatprep.subr.mxu0 0.0
      %6029 = vmatpush1.msra.mxu0 0.0
      %6030 = vmatprep.subr.mxu0 %v5842
      %6031 = vmatpush1.msra.mxu0 %v5839
      %6032 = vmatprep.subr.mxu0 %v5805
      %6033 = vmatpush1.msra.mxu0 %v5804
      %6034 = vmatprep.subr.mxu0 %v5797
      %6035 = vmatpush1.msra.mxu0 %v5796
      %6036 = vmatprep.subr.mxu0 0.0
      %6037 = vmatpush2.msra.mxu0 0.0
      %6038 = vmatprep.subr.mxu0 0.0
      %6039 = vmatpush2.msra.mxu0 0.0
      %6040 = vmatprep.subr.mxu0 0.0
      %6041 = vmatpush2.msra.mxu0 0.0
      %6042 = vmatprep.subr.mxu0 0.0
      %6043 = vmatpush2.msra.mxu0 0.0
      %6044 = vmatprep.subr.mxu0 0.0
      %6045 = vmatpush2.msra.mxu0 0.0
      %6046 = vmatprep.subr.mxu0 0.0
      %6047 = vmatpush2.msra.mxu0 0.0
      %6048 = vmatprep.subr.mxu0 0.0
      %6049 = vmatpush2.msra.mxu0 0.0
      %6050 = vmatprep.subr.mxu0 0.0
      %6051 = vmatpush2.msra.mxu0 0.0
      %6052 = vmatprep.subr.mxu0 0.0
      %6053 = vmatpush2.msra.mxu0 0.0
      %6054 = vmatprep.subr.mxu0 0.0
      %6055 = vmatpush2.msra.mxu0 0.0
      %6056 = vmatprep.subr.mxu0 0.0
      %6057 = vmatpush2.msra.mxu0 0.0
      %6058 = vmatprep.subr.mxu0 0.0
      %6059 = vmatpush2.msra.mxu0 0.0
      %6060 = vmatprep.subr.mxu0 0.0
      %6061 = vmatpush2.msra.mxu0 0.0
      %6062 = vmatprep.subr.mxu0 0.0
      %6063 = vmatpush2.msra.mxu0 0.0
      %6064 = vmatprep.subr.mxu0 0.0
      %6065 = vmatpush2.msra.mxu0 0.0
      %6066 = vmatprep.subr.mxu0 0.0
      %6067 = vmatpush2.msra.mxu0 0.0
      %6068 = vmatprep.mubr.f32.mxu0 0.0
      %6069 = vmatmul.mubr.f32.gmra.mxu0 %v5820
      %v6070 = vpop.f32.mrf.mxu0
      %v6071 = vadd.f32 0.0, %v6070
      %v6072 = vpop.f32.mrf.mxu0
      %v6073 = vadd.f32 0.0, %v6072
      %6074 = vmatprep.mubr.f32.mxu0 0.0
      %6075 = vmatmul.mubr.f32.gmra.mxu0 %v5823
      %v6076 = vpop.f32.mrf.mxu0
      %v6077 = vadd.f32 0.0, %v6076
      %v6078 = vpop.f32.mrf.mxu0
      %v6079 = vadd.f32 0.0, %v6078
      %6080 = vdwg.mxu0
      %6081 = vmatprep.subr.mxu0 0.0
      %6082 = vmatpush1.msra.mxu0 0.0
      %6083 = vmatprep.subr.mxu0 0.0
      %6084 = vmatpush1.msra.mxu0 0.0
      %6085 = vmatprep.subr.mxu0 0.0
      %6086 = vmatpush1.msra.mxu0 0.0
      %6087 = vmatprep.subr.mxu0 0.0
      %6088 = vmatpush1.msra.mxu0 0.0
      %6089 = vmatprep.subr.mxu0 0.0
      %6090 = vmatpush1.msra.mxu0 0.0
      %6091 = vmatprep.subr.mxu0 0.0
      %6092 = vmatpush1.msra.mxu0 0.0
      %6093 = vmatprep.subr.mxu0 0.0
      %6094 = vmatpush1.msra.mxu0 0.0
      %6095 = vmatprep.subr.mxu0 0.0
      %6096 = vmatpush1.msra.mxu0 0.0
      %6097 = vmatprep.subr.mxu0 0.0
      %6098 = vmatpush1.msra.mxu0 0.0
      %6099 = vmatprep.subr.mxu0 0.0
      %6100 = vmatpush1.msra.mxu0 0.0
      %6101 = vmatprep.subr.mxu0 0.0
      %6102 = vmatpush1.msra.mxu0 0.0
      %6103 = vmatprep.subr.mxu0 0.0
      %6104 = vmatpush1.msra.mxu0 0.0
      %6105 = vmatprep.subr.mxu0 0.0
      %6106 = vmatpush1.msra.mxu0 0.0
      %6107 = vmatprep.subr.mxu0 %v5848
      %6108 = vmatpush1.msra.mxu0 %v5845
      %6109 = vmatprep.subr.mxu0 %v5807
      %6110 = vmatpush1.msra.mxu0 %v5806
      %6111 = vmatprep.subr.mxu0 %v5799
      %6112 = vmatpush1.msra.mxu0 %v5798
      %6113 = vmatprep.subr.mxu0 0.0
      %6114 = vmatpush2.msra.mxu0 0.0
      %6115 = vmatprep.subr.mxu0 0.0
      %6116 = vmatpush2.msra.mxu0 0.0
      %6117 = vmatprep.subr.mxu0 0.0
      %6118 = vmatpush2.msra.mxu0 0.0
      %6119 = vmatprep.subr.mxu0 0.0
      %6120 = vmatpush2.msra.mxu0 0.0
      %6121 = vmatprep.subr.mxu0 0.0
      %6122 = vmatpush2.msra.mxu0 0.0
      %6123 = vmatprep.subr.mxu0 0.0
      %6124 = vmatpush2.msra.mxu0 0.0
      %6125 = vmatprep.subr.mxu0 0.0
      %6126 = vmatpush2.msra.mxu0 0.0
      %6127 = vmatprep.subr.mxu0 0.0
      %6128 = vmatpush2.msra.mxu0 0.0
      %6129 = vmatprep.subr.mxu0 0.0
      %6130 = vmatpush2.msra.mxu0 0.0
      %6131 = vmatprep.subr.mxu0 0.0
      %6132 = vmatpush2.msra.mxu0 0.0
      %6133 = vmatprep.subr.mxu0 0.0
      %6134 = vmatpush2.msra.mxu0 0.0
      %6135 = vmatprep.subr.mxu0 0.0
      %6136 = vmatpush2.msra.mxu0 0.0
      %6137 = vmatprep.subr.mxu0 0.0
      %6138 = vmatpush2.msra.mxu0 0.0
      %6139 = vmatprep.subr.mxu0 0.0
      %6140 = vmatpush2.msra.mxu0 0.0
      %6141 = vmatprep.subr.mxu0 0.0
      %6142 = vmatpush2.msra.mxu0 0.0
      %6143 = vmatprep.subr.mxu0 0.0
      %6144 = vmatpush2.msra.mxu0 0.0
      %6145 = vmatprep.mubr.f32.mxu0 0.0
      %6146 = vmatmul.mubr.f32.gmra.mxu0 %v5820
      %v6147 = vpop.f32.mrf.mxu0
      %v6148 = vadd.f32 0.0, %v6147
      %v6149 = vpop.f32.mrf.mxu0
      %v6150 = vadd.f32 0.0, %v6149
      %6151 = vmatprep.mubr.f32.mxu0 0.0
      %6152 = vmatmul.mubr.f32.gmra.mxu0 %v5823
      %v6153 = vpop.f32.mrf.mxu0
      %v6154 = vadd.f32 0.0, %v6153
      %v6155 = vpop.f32.mrf.mxu0
      %v6156 = vadd.f32 0.0, %v6155
      %6157 = vdwg.mxu0
      %6158 = vst [vmem:[#allocation2 + $0x8] sm:$0xff] %v5917
      %6159 = vst [vmem:[#allocation2 + $0x10] sm:$0xff] %v5919
      %6160 = vst [vmem:[#allocation2 + $0x18] sm:$0xff] %v5994
      %6161 = vst [vmem:[#allocation2 + $0x20] sm:$0xff] %v5996
      %6162 = vst [vmem:[#allocation2 + $0x28] sm:$0xff] %v6071
      %6163 = vst [vmem:[#allocation2 + $0x30] sm:$0xff] %v6073
      %6164 = vst [vmem:[#allocation2 + $0x38] sm:$0xff] %v6148
      %6165 = vst [vmem:[#allocation2 + $0x40] sm:$0xff] %v6150
      %6166 = vst [vmem:[#allocation2 + $0x58] sm:$0x3] %v5923
      %6167 = vst [vmem:[#allocation2 + $0x60] sm:$0x3] %v5925
      %6168 = vst [vmem:[#allocation2 + $0x68] sm:$0x3] %v6000
      %6169 = vst [vmem:[#allocation2 + $0x70] sm:$0x3] %v6002
      %6170 = vst [vmem:[#allocation2 + $0x78] sm:$0x3] %v6077
      %6171 = vst [vmem:[#allocation2 + $0x80] sm:$0x3] %v6079
      %6172 = vst [vmem:[#allocation2 + $0x88] sm:$0x3] %v6154
      %6173 = vst [vmem:[#allocation2 + $0x90] sm:$0x3] %v6156
      %v6174 = vld [vmem:[#allocation2 + $0x8] sm:$0xff]
      %v6175 = vld [vmem:[#allocation2 + $0x10] sm:$0xff]
      %v6176 = vld [vmem:[#allocation2 + $0x18] sm:$0xff]
      %v6177 = vld [vmem:[#allocation2 + $0x20] sm:$0xff]
      %v6178 = vld [vmem:[#allocation2 + $0x28] sm:$0xff]
      %v6179 = vld [vmem:[#allocation2 + $0x30] sm:$0xff]
      %v6180 = vld [vmem:[#allocation2 + $0x38] sm:$0xff]
      %v6181 = vld [vmem:[#allocation2 + $0x40] sm:$0xff]
      %v6182 = vld [vmem:[#allocation2 + $0x48] sm:$0xff]
      %v6183 = vld [vmem:[#allocation2 + $0x58] sm:$0x3]
      %v6184 = vld [vmem:[#allocation2 + $0x60] sm:$0x3]
      %v6185 = vld [vmem:[#allocation2 + $0x68] sm:$0x3]
      %v6186 = vld [vmem:[#allocation2 + $0x70] sm:$0x3]
      %v6187 = vld [vmem:[#allocation2 + $0x78] sm:$0x3]
      %v6188 = vld [vmem:[#allocation2 + $0x80] sm:$0x3]
      %v6189 = vld [vmem:[#allocation2 + $0x88] sm:$0x3]
      %v6190 = vld [vmem:[#allocation2 + $0x90] sm:$0x3]
      %v6191 = vld [vmem:[#allocation2 + $0x98] sm:$0x3]
      %6210 = vrot.lane.b32.xlu0 %v6174, 127
      %v6211 = vpop.permute.xlu0 %6210
      %6212 = vrot.lane.b32.xlu0 %v6175, 127
      %v6213 = vpop.permute.xlu0 %6212
      %6214 = vrot.lane.b32.xlu0 %v6176, 127
      %v6215 = vpop.permute.xlu0 %6214
      %6216 = vrot.lane.b32.xlu0 %v6177, 127
      %v6217 = vpop.permute.xlu0 %6216
      %6218 = vrot.lane.b32.xlu0 %v6178, 127
      %v6219 = vpop.permute.xlu0 %6218
      %6220 = vrot.lane.b32.xlu0 %v6179, 127
      %v6221 = vpop.permute.xlu0 %6220
      %6222 = vrot.lane.b32.xlu0 %v6180, 127
      %v6223 = vpop.permute.xlu0 %6222
      %6224 = vrot.lane.b32.xlu0 %v6181, 127
      %v6225 = vpop.permute.xlu0 %6224
      %6226 = vrot.lane.b32.xlu0 %v6182, 127
      %v6227 = vpop.permute.xlu0 %6226
      %6228 = vrot.lane.b32.xlu0 %v6183, 127
      %v6229 = vpop.permute.xlu0 %6228
      %6230 = vrot.lane.b32.xlu0 %v6184, 127
      %v6231 = vpop.permute.xlu0 %6230
      %6232 = vrot.lane.b32.xlu0 %v6185, 127
      %v6233 = vpop.permute.xlu0 %6232
      %6234 = vrot.lane.b32.xlu0 %v6186, 127
      %v6235 = vpop.permute.xlu0 %6234
      %6236 = vrot.lane.b32.xlu0 %v6187, 127
      %v6237 = vpop.permute.xlu0 %6236
      %6238 = vrot.lane.b32.xlu0 %v6188, 127
      %v6239 = vpop.permute.xlu0 %6238
      %6240 = vrot.lane.b32.xlu0 %v6189, 127
      %v6241 = vpop.permute.xlu0 %6240
      %6242 = vrot.lane.b32.xlu0 %v6190, 127
      %v6243 = vpop.permute.xlu0 %6242
      %6244 = vrot.lane.b32.xlu0 %v6191, 127
      %v6245 = vpop.permute.xlu0 %6244
      %v6246 = vsel %vm738, %v6211, %v6213
      %v6247 = vsel %vm738, %v6213, %v6215
      %v6248 = vsel %vm738, %v6215, %v6217
      %v6249 = vsel %vm738, %v6217, %v6219
      %v6250 = vsel %vm738, %v6219, %v6221
      %v6251 = vsel %vm738, %v6221, %v6223
      %v6252 = vsel %vm738, %v6223, %v6225
      %v6253 = vsel %vm738, %v6225, %v6227
      %v6254 = vsel %vm738, %v6229, %v6231
      %v6255 = vsel %vm738, %v6231, %v6233
      %v6256 = vsel %vm738, %v6233, %v6235
      %v6257 = vsel %vm738, %v6235, %v6237
      %v6258 = vsel %vm738, %v6237, %v6239
      %v6259 = vsel %vm738, %v6239, %v6241
      %v6260 = vsel %vm738, %v6241, %v6243
      %v6261 = vsel %vm738, %v6243, %v6245
      %v6278 = vmax.f32 %v5917, %v6246
      %v6279 = vmax.f32 %v5919, %v6247
      %v6280 = vmax.f32 %v5994, %v6248
      %v6281 = vmax.f32 %v5996, %v6249
      %v6282 = vmax.f32 %v6071, %v6250
      %v6283 = vmax.f32 %v6073, %v6251
      %v6284 = vmax.f32 %v6148, %v6252
      %v6285 = vmax.f32 %v6150, %v6253
      %v6286 = vmax.f32 %v5923, %v6254
      %v6287 = vmax.f32 %v5925, %v6255
      %v6288 = vmax.f32 %v6000, %v6256
      %v6289 = vmax.f32 %v6002, %v6257
      %v6290 = vmax.f32 %v6077, %v6258
      %v6291 = vmax.f32 %v6079, %v6259
      %v6292 = vmax.f32 %v6154, %v6260
      %v6293 = vmax.f32 %v6156, %v6261
      %6294 = vrot.lane.b32.xlu0 %v6174, 100
      %v6295 = vpop.permute.xlu0 %6294
      %6296 = vrot.lane.b32.xlu0 %v6175, 100
      %v6297 = vpop.permute.xlu0 %6296
      %6298 = vrot.lane.b32.xlu0 %v6176, 100
      %v6299 = vpop.permute.xlu0 %6298
      %6300 = vrot.lane.b32.xlu0 %v6177, 100
      %v6301 = vpop.permute.xlu0 %6300
      %6302 = vrot.lane.b32.xlu0 %v6178, 100
      %v6303 = vpop.permute.xlu0 %6302
      %6304 = vrot.lane.b32.xlu0 %v6179, 100
      %v6305 = vpop.permute.xlu0 %6304
      %6306 = vrot.lane.b32.xlu0 %v6180, 100
      %v6307 = vpop.permute.xlu0 %6306
      %6308 = vrot.lane.b32.xlu0 %v6181, 100
      %v6309 = vpop.permute.xlu0 %6308
      %6310 = vrot.lane.b32.xlu0 %v6182, 100
      %v6311 = vpop.permute.xlu0 %6310
      %6312 = vrot.lane.b32.xlu0 %v6183, 100
      %v6313 = vpop.permute.xlu0 %6312
      %6314 = vrot.lane.b32.xlu0 %v6184, 100
      %v6315 = vpop.permute.xlu0 %6314
      %6316 = vrot.lane.b32.xlu0 %v6185, 100
      %v6317 = vpop.permute.xlu0 %6316
      %6318 = vrot.lane.b32.xlu0 %v6186, 100
      %v6319 = vpop.permute.xlu0 %6318
      %6320 = vrot.lane.b32.xlu0 %v6187, 100
      %v6321 = vpop.permute.xlu0 %6320
      %6322 = vrot.lane.b32.xlu0 %v6188, 100
      %v6323 = vpop.permute.xlu0 %6322
      %6324 = vrot.lane.b32.xlu0 %v6189, 100
      %v6325 = vpop.permute.xlu0 %6324
      %6326 = vrot.lane.b32.xlu0 %v6190, 100
      %v6327 = vpop.permute.xlu0 %6326
      %6328 = vrot.lane.b32.xlu0 %v6191, 100
      %v6329 = vpop.permute.xlu0 %6328
      %v6330 = vsel %vm1000, %v6295, %v6297
      %v6331 = vsel %vm1000, %v6297, %v6299
      %v6332 = vsel %vm1000, %v6299, %v6301
      %v6333 = vsel %vm1000, %v6301, %v6303
      %v6334 = vsel %vm1000, %v6303, %v6305
      %v6335 = vsel %vm1000, %v6305, %v6307
      %v6336 = vsel %vm1000, %v6307, %v6309
      %v6337 = vsel %vm1000, %v6309, %v6311
      %v6338 = vsel %vm1000, %v6313, %v6315
      %v6339 = vsel %vm1000, %v6315, %v6317
      %v6340 = vsel %vm1000, %v6317, %v6319
      %v6341 = vsel %vm1000, %v6319, %v6321
      %v6342 = vsel %vm1000, %v6321, %v6323
      %v6343 = vsel %vm1000, %v6323, %v6325
      %v6344 = vsel %vm1000, %v6325, %v6327
      %v6345 = vsel %vm1000, %v6327, %v6329
      %v6362 = vmax.f32 %v6278, %v6330
      %v6363 = vmax.f32 %v6279, %v6331
      %v6364 = vmax.f32 %v6280, %v6332
      %v6365 = vmax.f32 %v6281, %v6333
      %v6366 = vmax.f32 %v6282, %v6334
      %v6367 = vmax.f32 %v6283, %v6335
      %v6368 = vmax.f32 %v6284, %v6336
      %v6369 = vmax.f32 %v6285, %v6337
      %v6370 = vmax.f32 %v6286, %v6338
      %v6371 = vmax.f32 %v6287, %v6339
      %v6372 = vmax.f32 %v6288, %v6340
      %v6373 = vmax.f32 %v6289, %v6341
      %v6374 = vmax.f32 %v6290, %v6342
      %v6375 = vmax.f32 %v6291, %v6343
      %v6376 = vmax.f32 %v6292, %v6344
      %v6377 = vmax.f32 %v6293, %v6345
      %6378 = vrot.lane.b32.xlu0 %v6174, 99
      %v6379 = vpop.permute.xlu0 %6378
      %6380 = vrot.lane.b32.xlu0 %v6175, 99
      %v6381 = vpop.permute.xlu0 %6380
      %6382 = vrot.lane.b32.xlu0 %v6176, 99
      %v6383 = vpop.permute.xlu0 %6382
      %6384 = vrot.lane.b32.xlu0 %v6177, 99
      %v6385 = vpop.permute.xlu0 %6384
      %6386 = vrot.lane.b32.xlu0 %v6178, 99
      %v6387 = vpop.permute.xlu0 %6386
      %6388 = vrot.lane.b32.xlu0 %v6179, 99
      %v6389 = vpop.permute.xlu0 %6388
      %6390 = vrot.lane.b32.xlu0 %v6180, 99
      %v6391 = vpop.permute.xlu0 %6390
      %6392 = vrot.lane.b32.xlu0 %v6181, 99
      %v6393 = vpop.permute.xlu0 %6392
      %6394 = vrot.lane.b32.xlu0 %v6182, 99
      %v6395 = vpop.permute.xlu0 %6394
      %6396 = vrot.lane.b32.xlu0 %v6183, 99
      %v6397 = vpop.permute.xlu0 %6396
      %6398 = vrot.lane.b32.xlu0 %v6184, 99
      %v6399 = vpop.permute.xlu0 %6398
      %6400 = vrot.lane.b32.xlu0 %v6185, 99
      %v6401 = vpop.permute.xlu0 %6400
      %6402 = vrot.lane.b32.xlu0 %v6186, 99
      %v6403 = vpop.permute.xlu0 %6402
      %6404 = vrot.lane.b32.xlu0 %v6187, 99
      %v6405 = vpop.permute.xlu0 %6404
      %6406 = vrot.lane.b32.xlu0 %v6188, 99
      %v6407 = vpop.permute.xlu0 %6406
      %6408 = vrot.lane.b32.xlu0 %v6189, 99
      %v6409 = vpop.permute.xlu0 %6408
      %6410 = vrot.lane.b32.xlu0 %v6190, 99
      %v6411 = vpop.permute.xlu0 %6410
      %6412 = vrot.lane.b32.xlu0 %v6191, 99
      %v6413 = vpop.permute.xlu0 %6412
      %v6414 = vsel %vm1131, %v6379, %v6381
      %v6415 = vsel %vm1131, %v6381, %v6383
      %v6416 = vsel %vm1131, %v6383, %v6385
      %v6417 = vsel %vm1131, %v6385, %v6387
      %v6418 = vsel %vm1131, %v6387, %v6389
      %v6419 = vsel %vm1131, %v6389, %v6391
      %v6420 = vsel %vm1131, %v6391, %v6393
      %v6421 = vsel %vm1131, %v6393, %v6395
      %v6422 = vsel %vm1131, %v6397, %v6399
      %v6423 = vsel %vm1131, %v6399, %v6401
      %v6424 = vsel %vm1131, %v6401, %v6403
      %v6425 = vsel %vm1131, %v6403, %v6405
      %v6426 = vsel %vm1131, %v6405, %v6407
      %v6427 = vsel %vm1131, %v6407, %v6409
      %v6428 = vsel %vm1131, %v6409, %v6411
      %v6429 = vsel %vm1131, %v6411, %v6413
      %v6446 = vmax.f32 %v6362, %v6414
      %v6447 = vmax.f32 %v6363, %v6415
      %v6448 = vmax.f32 %v6364, %v6416
      %v6449 = vmax.f32 %v6365, %v6417
      %v6450 = vmax.f32 %v6366, %v6418
      %v6451 = vmax.f32 %v6367, %v6419
      %v6452 = vmax.f32 %v6368, %v6420
      %v6453 = vmax.f32 %v6369, %v6421
      %v6454 = vmax.f32 %v6370, %v6422
      %v6455 = vmax.f32 %v6371, %v6423
      %v6456 = vmax.f32 %v6372, %v6424
      %v6457 = vmax.f32 %v6373, %v6425
      %v6458 = vmax.f32 %v6374, %v6426
      %v6459 = vmax.f32 %v6375, %v6427
      %v6460 = vmax.f32 %v6376, %v6428
      %v6461 = vmax.f32 %v6377, %v6429
      %v6462 = vld [vmem:[%s9] sm:$0xff]
      %v6463 = vld [vmem:[%s9 + $0x8] sm:$0xff]
      %v6464 = vld [vmem:[%s9 + $0x10] sm:$0xff]
      %v6465 = vld [vmem:[%s9 + $0x18] sm:$0xff]
      %v6466 = vld [vmem:[%s9 + $0x20] sm:$0xff]
      %v6467 = vld [vmem:[%s9 + $0x28] sm:$0xff]
      %v6468 = vld [vmem:[%s9 + $0x30] sm:$0xff]
      %v6469 = vld [vmem:[%s9 + $0x38] sm:$0xff]
      %v6470 = vld [vmem:[%s9 + $0x40] sm:$0xff]
      %v6471 = vld [vmem:[%s9 + $0x48] sm:$0xff]
      %v6472 = vld [vmem:[%s9 + $0x50] sm:$0xff]
      %v6473 = vld [vmem:[%s9 + $0x58] sm:$0xff]
      %v6474 = vld [vmem:[%s9 + $0x60] sm:$0xff]
      %v6475 = vld [vmem:[%s9 + $0x68] sm:$0xff]
      %v6476 = vld [vmem:[%s9 + $0x70] sm:$0xff]
      %v6477 = vld [vmem:[%s9 + $0x78] sm:$0xff]
      %v6478 = vld [vmem:[%s9 + $0x80] sm:$0xff]
      %v6479 = vld [vmem:[%s9 + $0x88] sm:$0xff]
      %v6480 = vld [vmem:[%s9 + $0x90] sm:$0xff]
      %v6481 = vld [vmem:[%s9 + $0x98] sm:$0xff]
      %v6482 = vld [vmem:[%s9 + $0xa0] sm:$0xff]
      %v6483 = vld [vmem:[%s9 + $0xa8] sm:$0xff]
      %v6484 = vld [vmem:[%s9 + $0xb0] sm:$0xff]
      %v6485 = vld [vmem:[%s9 + $0xb8] sm:$0xff]
      %v6486 = vld [vmem:[%s9 + $0xc0] sm:$0xff]
      %v6487 = vld [vmem:[%s9 + $0xc8] sm:$0xff]
      %v6488 = vld [vmem:[%s9 + $0xd0] sm:$0xff]
      %v6489 = vld [vmem:[%s9 + $0xd8] sm:$0xff]
      %v6490 = vld [vmem:[%s9 + $0xe0] sm:$0xff]
      %v6491 = vld [vmem:[%s9 + $0xe8] sm:$0xff]
      %v6492 = vld [vmem:[%s9 + $0xf0] sm:$0xff]
      %v6493 = vld [vmem:[%s9 + $0xf8] sm:$0xff]
      %v6494 = vld [vmem:[%s9 + $0x100] sm:$0xff]
      %v6495 = vld [vmem:[%s9 + $0x108] sm:$0xff]
      %v6496 = vld [vmem:[%s9 + $0x110] sm:$0xff]
      %v6497 = vld [vmem:[%s9 + $0x118] sm:$0xff]
      %v6498 = vld [vmem:[%s9 + $0x120] sm:$0xff]
      %v6499 = vld [vmem:[%s9 + $0x128] sm:$0xff]
      %v6500 = vld [vmem:[%s9 + $0x130] sm:$0xff]
      %v6501 = vld [vmem:[%s9 + $0x138] sm:$0xff]
      %v6502 = vld [vmem:[%s9 + $0x140] sm:$0xff]
      %v6503 = vld [vmem:[%s9 + $0x148] sm:$0xff]
      %v6504 = vld [vmem:[%s9 + $0x150] sm:$0xff]
      %v6505 = vld [vmem:[%s9 + $0x158] sm:$0xff]
      %v6506 = vld [vmem:[%s9 + $0x160] sm:$0xff]
      %v6507 = vld [vmem:[%s9 + $0x168] sm:$0xff]
      %v6508 = vld [vmem:[%s9 + $0x170] sm:$0xff]
      %v6509 = vld [vmem:[%s9 + $0x178] sm:$0xff]
      %v6510 = vld [vmem:[%s9 + $0x180] sm:$0xff]
      %v6511 = vld [vmem:[%s9 + $0x188] sm:$0xff]
      %v6512 = vld [vmem:[%s9 + $0x190] sm:$0xff]
      %v6513 = vld [vmem:[%s9 + $0x198] sm:$0xff]
      %v6514 = vld [vmem:[%s9 + $0x1a0] sm:$0xff]
      %v6515 = vld [vmem:[%s9 + $0x1a8] sm:$0xff]
      %v6516 = vld [vmem:[%s9 + $0x1b0] sm:$0xff]
      %v6517 = vld [vmem:[%s9 + $0x1b8] sm:$0xff]
      %v6518 = vld [vmem:[%s9 + $0x1c0] sm:$0xff]
      %v6519 = vld [vmem:[%s9 + $0x1c8] sm:$0xff]
      %v6520 = vld [vmem:[%s9 + $0x1d0] sm:$0xff]
      %v6521 = vld [vmem:[%s9 + $0x1d8] sm:$0xff]
      %v6522 = vld [vmem:[%s9 + $0x1e0] sm:$0xff]
      %v6523 = vld [vmem:[%s9 + $0x1e8] sm:$0xff]
      %v6524 = vld [vmem:[%s9 + $0x1f0] sm:$0xff]
      %v6525 = vld [vmem:[%s9 + $0x1f8] sm:$0xff]
      %v6526 = vld [vmem:[%s9 + $0x200] sm:$0xff]
      %v6527 = vld [vmem:[%s9 + $0x208] sm:$0xff]
      %v6528 = vld [vmem:[%s9 + $0x210] sm:$0xff]
      %v6529 = vld [vmem:[%s9 + $0x218] sm:$0xff]
      %v6530 = vld [vmem:[%s9 + $0x220] sm:$0xff]
      %v6531 = vld [vmem:[%s9 + $0x228] sm:$0xff]
      %v6532 = vld [vmem:[%s9 + $0x230] sm:$0xff]
      %v6533 = vld [vmem:[%s9 + $0x238] sm:$0xff]
      %v6534 = vld [vmem:[%s9 + $0x240] sm:$0xff]
      %v6535 = vld [vmem:[%s9 + $0x248] sm:$0xff]
      %v6536 = vld [vmem:[%s9 + $0x250] sm:$0xff]
      %v6537 = vld [vmem:[%s9 + $0x258] sm:$0xff]
      %v6538 = vld [vmem:[%s9 + $0x260] sm:$0xff]
      %v6539 = vld [vmem:[%s9 + $0x268] sm:$0xff]
      %v6540 = vld [vmem:[%s9 + $0x270] sm:$0xff]
      %v6541 = vld [vmem:[%s9 + $0x278] sm:$0xff]
      %v6542 = vld [vmem:[%s9 + $0x280] sm:$0xff]
      %v6543 = vld [vmem:[%s9 + $0x288] sm:$0xff]
      %v6544 = vld [vmem:[%s9 + $0x290] sm:$0xff]
      %v6545 = vld [vmem:[%s9 + $0x298] sm:$0xff]
      %v6546 = vld [vmem:[%s9 + $0x2a0] sm:$0xff]
      %v6547 = vld [vmem:[%s9 + $0x2a8] sm:$0xff]
      %v6548 = vld [vmem:[%s9 + $0x2b0] sm:$0xff]
      %v6549 = vld [vmem:[%s9 + $0x2b8] sm:$0xff]
      %v6550 = vld [vmem:[%s9 + $0x2c0] sm:$0xff]
      %v6551 = vld [vmem:[%s9 + $0x2c8] sm:$0xff]
      %v6552 = vld [vmem:[%s9 + $0x2d0] sm:$0xff]
      %v6553 = vld [vmem:[%s9 + $0x2d8] sm:$0xff]
      %v6554 = vld [vmem:[%s9 + $0x2e0] sm:$0xff]
      %v6555 = vld [vmem:[%s9 + $0x2e8] sm:$0xff]
      %v6556 = vld [vmem:[%s9 + $0x2f0] sm:$0xff]
      %v6557 = vld [vmem:[%s9 + $0x2f8] sm:$0xff]
      %v6558 = vld [vmem:[%s9 + $0x300] sm:$0xff]
      %v6559 = vld [vmem:[%s9 + $0x308] sm:$0xff]
      %v6560 = vld [vmem:[%s9 + $0x310] sm:$0xff]
      %v6561 = vld [vmem:[%s9 + $0x318] sm:$0xff]
      %v6562 = vld [vmem:[%s9 + $0x320] sm:$0xff]
      %v6563 = vld [vmem:[%s9 + $0x328] sm:$0xff]
      %v6564 = vld [vmem:[%s9 + $0x330] sm:$0xff]
      %v6565 = vld [vmem:[%s9 + $0x338] sm:$0xff]
      %v6566 = vld [vmem:[%s9 + $0x340] sm:$0xff]
      %v6567 = vld [vmem:[%s9 + $0x348] sm:$0xff]
      %v6568 = vld [vmem:[%s9 + $0x350] sm:$0xff]
      %v6569 = vld [vmem:[%s9 + $0x358] sm:$0xff]
      %v6570 = vld [vmem:[%s9 + $0x360] sm:$0xff]
      %v6571 = vld [vmem:[%s9 + $0x368] sm:$0xff]
      %v6572 = vld [vmem:[%s9 + $0x370] sm:$0xff]
      %v6573 = vld [vmem:[%s9 + $0x378] sm:$0xff]
      %v6574 = vld [vmem:[%s9 + $0x380] sm:$0xff]
      %v6575 = vld [vmem:[%s9 + $0x388] sm:$0xff]
      %v6576 = vld [vmem:[%s9 + $0x390] sm:$0xff]
      %v6577 = vld [vmem:[%s9 + $0x398] sm:$0xff]
      %v6578 = vld [vmem:[%s9 + $0x3a0] sm:$0xff]
      %v6579 = vld [vmem:[%s9 + $0x3a8] sm:$0xff]
      %v6580 = vld [vmem:[%s9 + $0x3b0] sm:$0xff]
      %v6581 = vld [vmem:[%s9 + $0x3b8] sm:$0xff]
      %v6582 = vld [vmem:[%s9 + $0x3c0] sm:$0xff]
      %v6583 = vld [vmem:[%s9 + $0x3c8] sm:$0xff]
      %v6584 = vld [vmem:[%s9 + $0x3d0] sm:$0xff]
      %v6585 = vld [vmem:[%s9 + $0x3d8] sm:$0xff]
      %v6586 = vld [vmem:[%s9 + $0x3e0] sm:$0xff]
      %v6587 = vld [vmem:[%s9 + $0x3e8] sm:$0xff]
      %v6588 = vld [vmem:[%s9 + $0x3f0] sm:$0xff]
      %v6589 = vld [vmem:[%s9 + $0x3f8] sm:$0xff]
      %v6590 = vld [vmem:[%s9 + $0x400] sm:$0xff]
      %v6591 = vld [vmem:[%s9 + $0x408] sm:$0xff]
      %v6592 = vld [vmem:[%s9 + $0x410] sm:$0xff]
      %v6593 = vld [vmem:[%s9 + $0x418] sm:$0xff]
      %v6594 = vld [vmem:[%s9 + $0x420] sm:$0xff]
      %v6595 = vld [vmem:[%s9 + $0x428] sm:$0xff]
      %v6596 = vld [vmem:[%s9 + $0x430] sm:$0xff]
      %v6597 = vld [vmem:[%s9 + $0x438] sm:$0xff]
      %v6598 = vld [vmem:[%s9 + $0x440] sm:$0xff]
      %v6599 = vld [vmem:[%s9 + $0x448] sm:$0xff]
      %v6600 = vld [vmem:[%s9 + $0x450] sm:$0xff]
      %v6601 = vld [vmem:[%s9 + $0x458] sm:$0xff]
      %v6602 = vld [vmem:[%s9 + $0x460] sm:$0xff]
      %v6603 = vld [vmem:[%s9 + $0x468] sm:$0xff]
      %v6604 = vld [vmem:[%s9 + $0x470] sm:$0xff]
      %v6605 = vld [vmem:[%s9 + $0x478] sm:$0xff]
      %v6606 = vld [vmem:[%s9 + $0x480] sm:$0xff]
      %v6607 = vld [vmem:[%s9 + $0x488] sm:$0xff]
      %v6608 = vld [vmem:[%s9 + $0x490] sm:$0xff]
      %v6609 = vld [vmem:[%s9 + $0x498] sm:$0xff]
      %v6610 = vld [vmem:[%s9 + $0x4a0] sm:$0xff]
      %v6611 = vld [vmem:[%s9 + $0x4a8] sm:$0xff]
      %v6612 = vld [vmem:[%s9 + $0x4b0] sm:$0xff]
      %v6613 = vld [vmem:[%s9 + $0x4b8] sm:$0xff]
      %v6614 = vld [vmem:[%s9 + $0x4c0] sm:$0xff]
      %v6615 = vld [vmem:[%s9 + $0x4c8] sm:$0xff]
      %v6616 = vld [vmem:[%s9 + $0x4d0] sm:$0xff]
      %v6617 = vld [vmem:[%s9 + $0x4d8] sm:$0xff]
      %v6618 = vld [vmem:[%s9 + $0x4e0] sm:$0xff]
      %v6619 = vld [vmem:[%s9 + $0x4e8] sm:$0xff]
      %v6620 = vld [vmem:[%s9 + $0x4f0] sm:$0xff]
      %v6621 = vld [vmem:[%s9 + $0x4f8] sm:$0xff]
      %v6622 = vld [vmem:[%s9 + $0x500] sm:$0xff]
      %v6623 = vld [vmem:[%s9 + $0x508] sm:$0xff]
      %v6624 = vld [vmem:[%s9 + $0x510] sm:$0xff]
      %v6625 = vld [vmem:[%s9 + $0x518] sm:$0xff]
      %v6626 = vld [vmem:[%s9 + $0x520] sm:$0xff]
      %v6627 = vld [vmem:[%s9 + $0x528] sm:$0xff]
      %v6628 = vld [vmem:[%s9 + $0x530] sm:$0xff]
      %v6629 = vld [vmem:[%s9 + $0x538] sm:$0xff]
      %v6630 = vld [vmem:[%s9 + $0x540] sm:$0xff]
      %v6631 = vld [vmem:[%s9 + $0x548] sm:$0xff]
      %v6632 = vld [vmem:[%s9 + $0x550] sm:$0xff]
      %v6633 = vld [vmem:[%s9 + $0x558] sm:$0xff]
      %v6634 = vld [vmem:[%s9 + $0x560] sm:$0xff]
      %v6635 = vld [vmem:[%s9 + $0x568] sm:$0xff]
      %v6636 = vld [vmem:[%s9 + $0x570] sm:$0xff]
      %v6637 = vld [vmem:[%s9 + $0x578] sm:$0xff]
      %v6638 = vld [vmem:[%s9 + $0x580] sm:$0xff]
      %v6639 = vld [vmem:[%s9 + $0x588] sm:$0xff]
      %v6640 = vld [vmem:[%s9 + $0x590] sm:$0xff]
      %v6641 = vld [vmem:[%s9 + $0x598] sm:$0xff]
      %v6642 = vld [vmem:[%s9 + $0x5a0] sm:$0xff]
      %v6643 = vld [vmem:[%s9 + $0x5a8] sm:$0xff]
      %v6644 = vld [vmem:[%s9 + $0x5b0] sm:$0xff]
      %v6645 = vld [vmem:[%s9 + $0x5b8] sm:$0xff]
      %v6646 = vld [vmem:[%s9 + $0x5c0] sm:$0xff]
      %v6647 = vld [vmem:[%s9 + $0x5c8] sm:$0xff]
      %v6648 = vld [vmem:[%s9 + $0x5d0] sm:$0xff]
      %v6649 = vld [vmem:[%s9 + $0x5d8] sm:$0xff]
      %v6650 = vld [vmem:[%s9 + $0x5e0] sm:$0xff]
      %v6651 = vld [vmem:[%s9 + $0x5e8] sm:$0xff]
      %v6652 = vld [vmem:[%s9 + $0x5f0] sm:$0xff]
      %v6653 = vld [vmem:[%s9 + $0x5f8] sm:$0xff]
      %v6654 = vld [vmem:[%s9 + $0x600] sm:$0xff]
      %v6655 = vld [vmem:[%s9 + $0x608] sm:$0xff]
      %v6656 = vld [vmem:[%s9 + $0x610] sm:$0xff]
      %v6657 = vld [vmem:[%s9 + $0x618] sm:$0xff]
      %v6658 = vld [vmem:[%s9 + $0x620] sm:$0xff]
      %v6659 = vld [vmem:[%s9 + $0x628] sm:$0xff]
      %v6660 = vld [vmem:[%s9 + $0x630] sm:$0xff]
      %v6661 = vld [vmem:[%s9 + $0x638] sm:$0xff]
      %v6662 = vld [vmem:[%s9 + $0x640] sm:$0xff]
      %v6663 = vld [vmem:[%s9 + $0x648] sm:$0xff]
      %v6664 = vld [vmem:[%s9 + $0x650] sm:$0xff]
      %v6665 = vld [vmem:[%s9 + $0x658] sm:$0xff]
      %v6666 = vld [vmem:[%s9 + $0x660] sm:$0xff]
      %v6667 = vld [vmem:[%s9 + $0x668] sm:$0xff]
      %v6668 = vld [vmem:[%s9 + $0x670] sm:$0xff]
      %v6669 = vld [vmem:[%s9 + $0x678] sm:$0xff]
      %v6670 = vld [vmem:[%s9 + $0x680] sm:$0xff]
      %v6671 = vld [vmem:[%s9 + $0x688] sm:$0xff]
      %v6672 = vld [vmem:[%s9 + $0x690] sm:$0xff]
      %v6673 = vld [vmem:[%s9 + $0x698] sm:$0xff]
      %v6674 = vld [vmem:[%s9 + $0x6a0] sm:$0xff]
      %v6675 = vld [vmem:[%s9 + $0x6a8] sm:$0xff]
      %v6676 = vld [vmem:[%s9 + $0x6b0] sm:$0xff]
      %v6677 = vld [vmem:[%s9 + $0x6b8] sm:$0xff]
      %v6678 = vld [vmem:[%s9 + $0x6c0] sm:$0xff]
      %v6679 = vld [vmem:[%s9 + $0x6c8] sm:$0xff]
      %v6680 = vld [vmem:[%s9 + $0x6d0] sm:$0xff]
      %v6681 = vld [vmem:[%s9 + $0x6d8] sm:$0xff]
      %v6682 = vld [vmem:[%s9 + $0x6e0] sm:$0xff]
      %v6683 = vld [vmem:[%s9 + $0x6e8] sm:$0xff]
      %v6684 = vld [vmem:[%s9 + $0x6f0] sm:$0xff]
      %v6685 = vld [vmem:[%s9 + $0x6f8] sm:$0xff]
      %v6686 = vld [vmem:[%s9 + $0x700] sm:$0xff]
      %v6687 = vld [vmem:[%s9 + $0x708] sm:$0xff]
      %v6688 = vld [vmem:[%s9 + $0x710] sm:$0xff]
      %v6689 = vld [vmem:[%s9 + $0x718] sm:$0xff]
      %v6690 = vld [vmem:[%s9 + $0x720] sm:$0xff]
      %v6691 = vld [vmem:[%s9 + $0x728] sm:$0xff]
      %v6692 = vld [vmem:[%s9 + $0x730] sm:$0xff]
      %v6693 = vld [vmem:[%s9 + $0x738] sm:$0xff]
      %v6694 = vld [vmem:[%s9 + $0x740] sm:$0xff]
      %v6695 = vld [vmem:[%s9 + $0x748] sm:$0xff]
      %v6696 = vld [vmem:[%s9 + $0x750] sm:$0xff]
      %v6697 = vld [vmem:[%s9 + $0x758] sm:$0xff]
      %v6698 = vld [vmem:[%s9 + $0x760] sm:$0xff]
      %v6699 = vld [vmem:[%s9 + $0x768] sm:$0xff]
      %v6700 = vld [vmem:[%s9 + $0x770] sm:$0xff]
      %v6701 = vld [vmem:[%s9 + $0x778] sm:$0xff]
      %v6702 = vld [vmem:[%s9 + $0x780] sm:$0xff]
      %v6703 = vld [vmem:[%s9 + $0x788] sm:$0xff]
      %v6704 = vld [vmem:[%s9 + $0x790] sm:$0xff]
      %v6705 = vld [vmem:[%s9 + $0x798] sm:$0xff]
      %v6706 = vld [vmem:[%s9 + $0x7a0] sm:$0xff]
      %v6707 = vld [vmem:[%s9 + $0x7a8] sm:$0xff]
      %v6708 = vld [vmem:[%s9 + $0x7b0] sm:$0xff]
      %v6709 = vld [vmem:[%s9 + $0x7b8] sm:$0xff]
      %v6710 = vld [vmem:[%s9 + $0x7c0] sm:$0xff]
      %v6711 = vld [vmem:[%s9 + $0x7c8] sm:$0xff]
      %v6712 = vld [vmem:[%s9 + $0x7d0] sm:$0xff]
      %v6713 = vld [vmem:[%s9 + $0x7d8] sm:$0xff]
      %v6714 = vld [vmem:[%s9 + $0x7e0] sm:$0xff]
      %v6715 = vld [vmem:[%s9 + $0x7e8] sm:$0xff]
      %v6716 = vld [vmem:[%s9 + $0x7f0] sm:$0xff]
      %v6717 = vld [vmem:[%s9 + $0x7f8] sm:$0xff]
      %6718 = vmatprep.subr.mxu0 %v6493
      %6719 = vmatpush1.msra.mxu0 %v6492
      %6720 = vmatprep.subr.mxu0 %v6491
      %6721 = vmatpush1.msra.mxu0 %v6490
      %6722 = vmatprep.subr.mxu0 %v6489
      %6723 = vmatpush1.msra.mxu0 %v6488
      %6724 = vmatprep.subr.mxu0 %v6487
      %6725 = vmatpush1.msra.mxu0 %v6486
      %6726 = vmatprep.subr.mxu0 %v6485
      %6727 = vmatpush1.msra.mxu0 %v6484
      %6728 = vmatprep.subr.mxu0 %v6483
      %6729 = vmatpush1.msra.mxu0 %v6482
      %6730 = vmatprep.subr.mxu0 %v6481
      %6731 = vmatpush1.msra.mxu0 %v6480
      %6732 = vmatprep.subr.mxu0 %v6479
      %6733 = vmatpush1.msra.mxu0 %v6478
      %6734 = vmatprep.subr.mxu0 %v6477
      %6735 = vmatpush1.msra.mxu0 %v6476
      %6736 = vmatprep.subr.mxu0 %v6475
      %6737 = vmatpush1.msra.mxu0 %v6474
      %6738 = vmatprep.subr.mxu0 %v6473
      %6739 = vmatpush1.msra.mxu0 %v6472
      %6740 = vmatprep.subr.mxu0 %v6471
      %6741 = vmatpush1.msra.mxu0 %v6470
      %6742 = vmatprep.subr.mxu0 %v6469
      %6743 = vmatpush1.msra.mxu0 %v6468
      %6744 = vmatprep.subr.mxu0 %v6467
      %6745 = vmatpush1.msra.mxu0 %v6466
      %6746 = vmatprep.subr.mxu0 %v6465
      %6747 = vmatpush1.msra.mxu0 %v6464
      %6748 = vmatprep.subr.mxu0 %v6463
      %6749 = vmatpush1.msra.mxu0 %v6462
      %6750 = vmatprep.subr.mxu0 %v6525
      %6751 = vmatpush2.msra.mxu0 %v6524
      %6752 = vmatprep.subr.mxu0 %v6523
      %6753 = vmatpush2.msra.mxu0 %v6522
      %6754 = vmatprep.subr.mxu0 %v6521
      %6755 = vmatpush2.msra.mxu0 %v6520
      %6756 = vmatprep.subr.mxu0 %v6519
      %6757 = vmatpush2.msra.mxu0 %v6518
      %6758 = vmatprep.subr.mxu0 %v6517
      %6759 = vmatpush2.msra.mxu0 %v6516
      %6760 = vmatprep.subr.mxu0 %v6515
      %6761 = vmatpush2.msra.mxu0 %v6514
      %6762 = vmatprep.subr.mxu0 %v6513
      %6763 = vmatpush2.msra.mxu0 %v6512
      %6764 = vmatprep.subr.mxu0 %v6511
      %6765 = vmatpush2.msra.mxu0 %v6510
      %6766 = vmatprep.subr.mxu0 %v6509
      %6767 = vmatpush2.msra.mxu0 %v6508
      %6768 = vmatprep.subr.mxu0 %v6507
      %6769 = vmatpush2.msra.mxu0 %v6506
      %6770 = vmatprep.subr.mxu0 %v6505
      %6771 = vmatpush2.msra.mxu0 %v6504
      %6772 = vmatprep.subr.mxu0 %v6503
      %6773 = vmatpush2.msra.mxu0 %v6502
      %6774 = vmatprep.subr.mxu0 %v6501
      %6775 = vmatpush2.msra.mxu0 %v6500
      %6776 = vmatprep.subr.mxu0 %v6499
      %6777 = vmatpush2.msra.mxu0 %v6498
      %6778 = vmatprep.subr.mxu0 %v6497
      %6779 = vmatpush2.msra.mxu0 %v6496
      %6780 = vmatprep.subr.mxu0 %v6495
      %6781 = vmatpush2.msra.mxu0 %v6494
      %6782 = vmatprep.mubr.f32.mxu0 %v6447
      %6783 = vmatmul.mubr.f32.gmra.mxu0 %v6446
      %v6784 = vpop.f32.mrf.mxu0
      %v6785 = vadd.f32 0.0, %v6784
      %v6786 = vpop.f32.mrf.mxu0
      %v6787 = vadd.f32 0.0, %v6786
      %6788 = vmatprep.mubr.f32.mxu0 %v6455
      %6789 = vmatmul.mubr.f32.gmra.mxu0 %v6454
      %v6790 = vpop.f32.mrf.mxu0
      %v6791 = vadd.f32 0.0, %v6790
      %v6792 = vpop.f32.mrf.mxu0
      %v6793 = vadd.f32 0.0, %v6792
      %6794 = vdwg.mxu0
      %6795 = vmatprep.subr.mxu0 %v6557
      %6796 = vmatpush1.msra.mxu0 %v6556
      %6797 = vmatprep.subr.mxu0 %v6555
      %6798 = vmatpush1.msra.mxu0 %v6554
      %6799 = vmatprep.subr.mxu0 %v6553
      %6800 = vmatpush1.msra.mxu0 %v6552
      %6801 = vmatprep.subr.mxu0 %v6551
      %6802 = vmatpush1.msra.mxu0 %v6550
      %6803 = vmatprep.subr.mxu0 %v6549
      %6804 = vmatpush1.msra.mxu0 %v6548
      %6805 = vmatprep.subr.mxu0 %v6547
      %6806 = vmatpush1.msra.mxu0 %v6546
      %6807 = vmatprep.subr.mxu0 %v6545
      %6808 = vmatpush1.msra.mxu0 %v6544
      %6809 = vmatprep.subr.mxu0 %v6543
      %6810 = vmatpush1.msra.mxu0 %v6542
      %6811 = vmatprep.subr.mxu0 %v6541
      %6812 = vmatpush1.msra.mxu0 %v6540
      %6813 = vmatprep.subr.mxu0 %v6539
      %6814 = vmatpush1.msra.mxu0 %v6538
      %6815 = vmatprep.subr.mxu0 %v6537
      %6816 = vmatpush1.msra.mxu0 %v6536
      %6817 = vmatprep.subr.mxu0 %v6535
      %6818 = vmatpush1.msra.mxu0 %v6534
      %6819 = vmatprep.subr.mxu0 %v6533
      %6820 = vmatpush1.msra.mxu0 %v6532
      %6821 = vmatprep.subr.mxu0 %v6531
      %6822 = vmatpush1.msra.mxu0 %v6530
      %6823 = vmatprep.subr.mxu0 %v6529
      %6824 = vmatpush1.msra.mxu0 %v6528
      %6825 = vmatprep.subr.mxu0 %v6527
      %6826 = vmatpush1.msra.mxu0 %v6526
      %6827 = vmatprep.subr.mxu0 %v6589
      %6828 = vmatpush2.msra.mxu0 %v6588
      %6829 = vmatprep.subr.mxu0 %v6587
      %6830 = vmatpush2.msra.mxu0 %v6586
      %6831 = vmatprep.subr.mxu0 %v6585
      %6832 = vmatpush2.msra.mxu0 %v6584
      %6833 = vmatprep.subr.mxu0 %v6583
      %6834 = vmatpush2.msra.mxu0 %v6582
      %6835 = vmatprep.subr.mxu0 %v6581
      %6836 = vmatpush2.msra.mxu0 %v6580
      %6837 = vmatprep.subr.mxu0 %v6579
      %6838 = vmatpush2.msra.mxu0 %v6578
      %6839 = vmatprep.subr.mxu0 %v6577
      %6840 = vmatpush2.msra.mxu0 %v6576
      %6841 = vmatprep.subr.mxu0 %v6575
      %6842 = vmatpush2.msra.mxu0 %v6574
      %6843 = vmatprep.subr.mxu0 %v6573
      %6844 = vmatpush2.msra.mxu0 %v6572
      %6845 = vmatprep.subr.mxu0 %v6571
      %6846 = vmatpush2.msra.mxu0 %v6570
      %6847 = vmatprep.subr.mxu0 %v6569
      %6848 = vmatpush2.msra.mxu0 %v6568
      %6849 = vmatprep.subr.mxu0 %v6567
      %6850 = vmatpush2.msra.mxu0 %v6566
      %6851 = vmatprep.subr.mxu0 %v6565
      %6852 = vmatpush2.msra.mxu0 %v6564
      %6853 = vmatprep.subr.mxu0 %v6563
      %6854 = vmatpush2.msra.mxu0 %v6562
      %6855 = vmatprep.subr.mxu0 %v6561
      %6856 = vmatpush2.msra.mxu0 %v6560
      %6857 = vmatprep.subr.mxu0 %v6559
      %6858 = vmatpush2.msra.mxu0 %v6558
      %6859 = vmatprep.mubr.f32.mxu0 %v6449
      %6860 = vmatmul.mubr.f32.gmra.mxu0 %v6448
      %v6861 = vpop.f32.mrf.mxu0
      %v6862 = vadd.f32 %v6785, %v6861
      %v6863 = vpop.f32.mrf.mxu0
      %v6864 = vadd.f32 %v6787, %v6863
      %6865 = vmatprep.mubr.f32.mxu0 %v6457
      %6866 = vmatmul.mubr.f32.gmra.mxu0 %v6456
      %v6867 = vpop.f32.mrf.mxu0
      %v6868 = vadd.f32 %v6791, %v6867
      %v6869 = vpop.f32.mrf.mxu0
      %v6870 = vadd.f32 %v6793, %v6869
      %6871 = vdwg.mxu0
      %6872 = vmatprep.subr.mxu0 %v6621
      %6873 = vmatpush1.msra.mxu0 %v6620
      %6874 = vmatprep.subr.mxu0 %v6619
      %6875 = vmatpush1.msra.mxu0 %v6618
      %6876 = vmatprep.subr.mxu0 %v6617
      %6877 = vmatpush1.msra.mxu0 %v6616
      %6878 = vmatprep.subr.mxu0 %v6615
      %6879 = vmatpush1.msra.mxu0 %v6614
      %6880 = vmatprep.subr.mxu0 %v6613
      %6881 = vmatpush1.msra.mxu0 %v6612
      %6882 = vmatprep.subr.mxu0 %v6611
      %6883 = vmatpush1.msra.mxu0 %v6610
      %6884 = vmatprep.subr.mxu0 %v6609
      %6885 = vmatpush1.msra.mxu0 %v6608
      %6886 = vmatprep.subr.mxu0 %v6607
      %6887 = vmatpush1.msra.mxu0 %v6606
      %6888 = vmatprep.subr.mxu0 %v6605
      %6889 = vmatpush1.msra.mxu0 %v6604
      %6890 = vmatprep.subr.mxu0 %v6603
      %6891 = vmatpush1.msra.mxu0 %v6602
      %6892 = vmatprep.subr.mxu0 %v6601
      %6893 = vmatpush1.msra.mxu0 %v6600
      %6894 = vmatprep.subr.mxu0 %v6599
      %6895 = vmatpush1.msra.mxu0 %v6598
      %6896 = vmatprep.subr.mxu0 %v6597
      %6897 = vmatpush1.msra.mxu0 %v6596
      %6898 = vmatprep.subr.mxu0 %v6595
      %6899 = vmatpush1.msra.mxu0 %v6594
      %6900 = vmatprep.subr.mxu0 %v6593
      %6901 = vmatpush1.msra.mxu0 %v6592
      %6902 = vmatprep.subr.mxu0 %v6591
      %6903 = vmatpush1.msra.mxu0 %v6590
      %6904 = vmatprep.subr.mxu0 %v6653
      %6905 = vmatpush2.msra.mxu0 %v6652
      %6906 = vmatprep.subr.mxu0 %v6651
      %6907 = vmatpush2.msra.mxu0 %v6650
      %6908 = vmatprep.subr.mxu0 %v6649
      %6909 = vmatpush2.msra.mxu0 %v6648
      %6910 = vmatprep.subr.mxu0 %v6647
      %6911 = vmatpush2.msra.mxu0 %v6646
      %6912 = vmatprep.subr.mxu0 %v6645
      %6913 = vmatpush2.msra.mxu0 %v6644
      %6914 = vmatprep.subr.mxu0 %v6643
      %6915 = vmatpush2.msra.mxu0 %v6642
      %6916 = vmatprep.subr.mxu0 %v6641
      %6917 = vmatpush2.msra.mxu0 %v6640
      %6918 = vmatprep.subr.mxu0 %v6639
      %6919 = vmatpush2.msra.mxu0 %v6638
      %6920 = vmatprep.subr.mxu0 %v6637
      %6921 = vmatpush2.msra.mxu0 %v6636
      %6922 = vmatprep.subr.mxu0 %v6635
      %6923 = vmatpush2.msra.mxu0 %v6634
      %6924 = vmatprep.subr.mxu0 %v6633
      %6925 = vmatpush2.msra.mxu0 %v6632
      %6926 = vmatprep.subr.mxu0 %v6631
      %6927 = vmatpush2.msra.mxu0 %v6630
      %6928 = vmatprep.subr.mxu0 %v6629
      %6929 = vmatpush2.msra.mxu0 %v6628
      %6930 = vmatprep.subr.mxu0 %v6627
      %6931 = vmatpush2.msra.mxu0 %v6626
      %6932 = vmatprep.subr.mxu0 %v6625
      %6933 = vmatpush2.msra.mxu0 %v6624
      %6934 = vmatprep.subr.mxu0 %v6623
      %6935 = vmatpush2.msra.mxu0 %v6622
      %6936 = vmatprep.mubr.f32.mxu0 %v6451
      %6937 = vmatmul.mubr.f32.gmra.mxu0 %v6450
      %v6938 = vpop.f32.mrf.mxu0
      %v6939 = vadd.f32 %v6862, %v6938
      %v6940 = vpop.f32.mrf.mxu0
      %v6941 = vadd.f32 %v6864, %v6940
      %6942 = vmatprep.mubr.f32.mxu0 %v6459
      %6943 = vmatmul.mubr.f32.gmra.mxu0 %v6458
      %v6944 = vpop.f32.mrf.mxu0
      %v6945 = vadd.f32 %v6868, %v6944
      %v6946 = vpop.f32.mrf.mxu0
      %v6947 = vadd.f32 %v6870, %v6946
      %6948 = vdwg.mxu0
      %6949 = vmatprep.subr.mxu0 %v6685
      %6950 = vmatpush1.msra.mxu0 %v6684
      %6951 = vmatprep.subr.mxu0 %v6683
      %6952 = vmatpush1.msra.mxu0 %v6682
      %6953 = vmatprep.subr.mxu0 %v6681
      %6954 = vmatpush1.msra.mxu0 %v6680
      %6955 = vmatprep.subr.mxu0 %v6679
      %6956 = vmatpush1.msra.mxu0 %v6678
      %6957 = vmatprep.subr.mxu0 %v6677
      %6958 = vmatpush1.msra.mxu0 %v6676
      %6959 = vmatprep.subr.mxu0 %v6675
      %6960 = vmatpush1.msra.mxu0 %v6674
      %6961 = vmatprep.subr.mxu0 %v6673
      %6962 = vmatpush1.msra.mxu0 %v6672
      %6963 = vmatprep.subr.mxu0 %v6671
      %6964 = vmatpush1.msra.mxu0 %v6670
      %6965 = vmatprep.subr.mxu0 %v6669
      %6966 = vmatpush1.msra.mxu0 %v6668
      %6967 = vmatprep.subr.mxu0 %v6667
      %6968 = vmatpush1.msra.mxu0 %v6666
      %6969 = vmatprep.subr.mxu0 %v6665
      %6970 = vmatpush1.msra.mxu0 %v6664
      %6971 = vmatprep.subr.mxu0 %v6663
      %6972 = vmatpush1.msra.mxu0 %v6662
      %6973 = vmatprep.subr.mxu0 %v6661
      %6974 = vmatpush1.msra.mxu0 %v6660
      %6975 = vmatprep.subr.mxu0 %v6659
      %6976 = vmatpush1.msra.mxu0 %v6658
      %6977 = vmatprep.subr.mxu0 %v6657
      %6978 = vmatpush1.msra.mxu0 %v6656
      %6979 = vmatprep.subr.mxu0 %v6655
      %6980 = vmatpush1.msra.mxu0 %v6654
      %6981 = vmatprep.subr.mxu0 %v6717
      %6982 = vmatpush2.msra.mxu0 %v6716
      %6983 = vmatprep.subr.mxu0 %v6715
      %6984 = vmatpush2.msra.mxu0 %v6714
      %6985 = vmatprep.subr.mxu0 %v6713
      %6986 = vmatpush2.msra.mxu0 %v6712
      %6987 = vmatprep.subr.mxu0 %v6711
      %6988 = vmatpush2.msra.mxu0 %v6710
      %6989 = vmatprep.subr.mxu0 %v6709
      %6990 = vmatpush2.msra.mxu0 %v6708
      %6991 = vmatprep.subr.mxu0 %v6707
      %6992 = vmatpush2.msra.mxu0 %v6706
      %6993 = vmatprep.subr.mxu0 %v6705
      %6994 = vmatpush2.msra.mxu0 %v6704
      %6995 = vmatprep.subr.mxu0 %v6703
      %6996 = vmatpush2.msra.mxu0 %v6702
      %6997 = vmatprep.subr.mxu0 %v6701
      %6998 = vmatpush2.msra.mxu0 %v6700
      %6999 = vmatprep.subr.mxu0 %v6699
      %7000 = vmatpush2.msra.mxu0 %v6698
      %7001 = vmatprep.subr.mxu0 %v6697
      %7002 = vmatpush2.msra.mxu0 %v6696
      %7003 = vmatprep.subr.mxu0 %v6695
      %7004 = vmatpush2.msra.mxu0 %v6694
      %7005 = vmatprep.subr.mxu0 %v6693
      %7006 = vmatpush2.msra.mxu0 %v6692
      %7007 = vmatprep.subr.mxu0 %v6691
      %7008 = vmatpush2.msra.mxu0 %v6690
      %7009 = vmatprep.subr.mxu0 %v6689
      %7010 = vmatpush2.msra.mxu0 %v6688
      %7011 = vmatprep.subr.mxu0 %v6687
      %7012 = vmatpush2.msra.mxu0 %v6686
      %7013 = vmatprep.mubr.f32.mxu0 %v6453
      %7014 = vmatmul.mubr.f32.gmra.mxu0 %v6452
      %v7015 = vpop.f32.mrf.mxu0
      %v7016 = vadd.f32 %v6939, %v7015
      %v7017 = vpop.f32.mrf.mxu0
      %v7018 = vadd.f32 %v6941, %v7017
      %7019 = vmatprep.mubr.f32.mxu0 %v6461
      %7020 = vmatmul.mubr.f32.gmra.mxu0 %v6460
      %v7021 = vpop.f32.mrf.mxu0
      %v7022 = vadd.f32 %v6945, %v7021
      %v7023 = vpop.f32.mrf.mxu0
      %v7024 = vadd.f32 %v6947, %v7023
      %7025 = vdwg.mxu0
      %v7026 = vld [vmem:[%s4] sm:$0xff]
      %v7027 = vld [vmem:[%s4 + $0x8] sm:$0xff]
      %v7028 = vld [vmem:[%s4 + $0x10] sm:$0xf]
      %v7029 = vld [vmem:[%s4 + $0x18] sm:$0xff]
      %v7030 = vld [vmem:[%s4 + $0x20] sm:$0xff]
      %v7031 = vld [vmem:[%s4 + $0x28] sm:$0xf]
      %v7032 = vld [vmem:[%s4 + $0x30] sm:$0xff]
      %v7033 = vld [vmem:[%s4 + $0x38] sm:$0xff]
      %v7034 = vld [vmem:[%s4 + $0x40] sm:$0xf]
      %v7035 = vld [vmem:[%s4 + $0x48] sm:$0xff]
      %v7036 = vld [vmem:[%s4 + $0x50] sm:$0xff]
      %v7037 = vld [vmem:[%s4 + $0x58] sm:$0xf]
      %v7038 = vld [vmem:[%s4 + $0x60] sm:$0xff]
      %v7039 = vld [vmem:[%s4 + $0x68] sm:$0xff]
      %v7040 = vld [vmem:[%s4 + $0x70] sm:$0xf]
      %v7041 = vld [vmem:[%s4 + $0x78] sm:$0xff]
      %v7042 = vld [vmem:[%s4 + $0x80] sm:$0xff]
      %v7043 = vld [vmem:[%s4 + $0x88] sm:$0xf]
      %v7044 = vld [vmem:[%s4 + $0x90] sm:$0xff]
      %v7045 = vld [vmem:[%s4 + $0x98] sm:$0xff]
      %v7046 = vld [vmem:[%s4 + $0xa0] sm:$0xf]
      %v7047 = vld [vmem:[%s4 + $0xa8] sm:$0xff]
      %v7048 = vld [vmem:[%s4 + $0xb0] sm:$0xff]
      %v7049 = vld [vmem:[%s4 + $0xb8] sm:$0xf]
      %v7050 = vld [vmem:[%s4 + $0xc0] sm:$0xff]
      %v7051 = vld [vmem:[%s4 + $0xc8] sm:$0xff]
      %v7052 = vld [vmem:[%s4 + $0xd0] sm:$0xf]
      %7053 = vst [vmem:[#allocation2 + $0x8] sm:$0xff] %v7016
      %7054 = vst [vmem:[#allocation2 + $0x10] sm:$0xff] %v7018
      %7055 = vst [vmem:[#allocation2 + $0x58] sm:$0x3] %v7022
      %7056 = vst [vmem:[#allocation2 + $0x60] sm:$0x3] %v7024
      %v7057 = vld [vmem:[#allocation2 + $0x8] sm:$0xff]
      %v7058 = vld [vmem:[#allocation2 + $0x10] sm:$0xff]
      %v7059 = vld [vmem:[#allocation2 + $0x58] sm:$0x3]
      %v7060 = vld [vmem:[#allocation2 + $0x60] sm:$0x3]
      %v7061 = vld [vmem:[#allocation2 + $0x18] sm:$0xff]
      %v7062 = vld [vmem:[#allocation2 + $0x68] sm:$0x3]
      %7069 = vrot.lane.b32.xlu0 %v7057, 127
      %v7070 = vpop.permute.xlu0 %7069
      %7071 = vrot.lane.b32.xlu0 %v7058, 127
      %v7072 = vpop.permute.xlu0 %7071
      %7073 = vrot.lane.b32.xlu0 %v7061, 127
      %v7074 = vpop.permute.xlu0 %7073
      %7075 = vrot.lane.b32.xlu0 %v7059, 127
      %v7076 = vpop.permute.xlu0 %7075
      %7077 = vrot.lane.b32.xlu0 %v7060, 127
      %v7078 = vpop.permute.xlu0 %7077
      %7079 = vrot.lane.b32.xlu0 %v7062, 127
      %v7080 = vpop.permute.xlu0 %7079
      %v7081 = vsel %vm738, %v7070, %v7072
      %v7082 = vsel %vm738, %v7072, %v7074
      %v7083 = vsel %vm738, %v7076, %v7078
      %v7084 = vsel %vm738, %v7078, %v7080
      %v7088 = vsel %vm1911, %v7029, 0
      %v7091 = vsel %vm1911, %v7030, 0
      %v7094 = vsel %vm1911, %v7031, 0
      %v7096 = vsel %vm1921, %v7083, 0
      %v7098 = vsel %vm1921, %v7084, 0
      %7100 = vmatprep.subr.mxu0 0.0
      %7101 = vmatpush1.msra.mxu0 0.0
      %7102 = vmatprep.subr.mxu0 0.0
      %7103 = vmatpush1.msra.mxu0 0.0
      %7104 = vmatprep.subr.mxu0 0.0
      %7105 = vmatpush1.msra.mxu0 0.0
      %7106 = vmatprep.subr.mxu0 0.0
      %7107 = vmatpush1.msra.mxu0 0.0
      %7108 = vmatprep.subr.mxu0 0.0
      %7109 = vmatpush1.msra.mxu0 0.0
      %7110 = vmatprep.subr.mxu0 0.0
      %7111 = vmatpush1.msra.mxu0 0.0
      %7112 = vmatprep.subr.mxu0 0.0
      %7113 = vmatpush1.msra.mxu0 0.0
      %7114 = vmatprep.subr.mxu0 0.0
      %7115 = vmatpush1.msra.mxu0 0.0
      %7116 = vmatprep.subr.mxu0 0.0
      %7117 = vmatpush1.msra.mxu0 0.0
      %7118 = vmatprep.subr.mxu0 0.0
      %7119 = vmatpush1.msra.mxu0 0.0
      %7120 = vmatprep.subr.mxu0 0.0
      %7121 = vmatpush1.msra.mxu0 0.0
      %7122 = vmatprep.subr.mxu0 0.0
      %7123 = vmatpush1.msra.mxu0 0.0
      %7124 = vmatprep.subr.mxu0 0.0
      %7125 = vmatpush1.msra.mxu0 0.0
      %7126 = vmatprep.subr.mxu0 0.0
      %7127 = vmatpush1.msra.mxu0 0.0
      %7128 = vmatprep.subr.mxu0 %v7098
      %7129 = vmatpush1.msra.mxu0 %v7096
      %7130 = vmatprep.subr.mxu0 %v7082
      %7131 = vmatpush1.msra.mxu0 %v7081
      %7132 = vmatprep.subr.mxu0 0.0
      %7133 = vmatpush2.msra.mxu0 0.0
      %7134 = vmatprep.subr.mxu0 0.0
      %7135 = vmatpush2.msra.mxu0 0.0
      %7136 = vmatprep.subr.mxu0 0.0
      %7137 = vmatpush2.msra.mxu0 0.0
      %7138 = vmatprep.subr.mxu0 0.0
      %7139 = vmatpush2.msra.mxu0 0.0
      %7140 = vmatprep.subr.mxu0 0.0
      %7141 = vmatpush2.msra.mxu0 0.0
      %7142 = vmatprep.subr.mxu0 0.0
      %7143 = vmatpush2.msra.mxu0 0.0
      %7144 = vmatprep.subr.mxu0 0.0
      %7145 = vmatpush2.msra.mxu0 0.0
      %7146 = vmatprep.subr.mxu0 0.0
      %7147 = vmatpush2.msra.mxu0 0.0
      %7148 = vmatprep.subr.mxu0 0.0
      %7149 = vmatpush2.msra.mxu0 0.0
      %7150 = vmatprep.subr.mxu0 0.0
      %7151 = vmatpush2.msra.mxu0 0.0
      %7152 = vmatprep.subr.mxu0 0.0
      %7153 = vmatpush2.msra.mxu0 0.0
      %7154 = vmatprep.subr.mxu0 0.0
      %7155 = vmatpush2.msra.mxu0 0.0
      %7156 = vmatprep.subr.mxu0 0.0
      %7157 = vmatpush2.msra.mxu0 0.0
      %7158 = vmatprep.subr.mxu0 0.0
      %7159 = vmatpush2.msra.mxu0 0.0
      %7160 = vmatprep.subr.mxu0 0.0
      %7161 = vmatpush2.msra.mxu0 0.0
      %7162 = vmatprep.subr.mxu0 0.0
      %7163 = vmatpush2.msra.mxu0 0.0
      %7164 = vmatprep.mubr.f32.mxu0 0.0
      %7165 = vmatmul.mubr.f32.gmra.mxu0 %v7088
      %v7166 = vpop.f32.mrf.mxu0
      %v7167 = vadd.f32 0.0, %v7166
      %v7168 = vpop.f32.mrf.mxu0
      %v7169 = vadd.f32 0.0, %v7168
      %7170 = vmatprep.mubr.f32.mxu0 0.0
      %7171 = vmatmul.mubr.f32.gmra.mxu0 %v7091
      %v7172 = vpop.f32.mrf.mxu0
      %v7173 = vadd.f32 0.0, %v7172
      %v7174 = vpop.f32.mrf.mxu0
      %v7175 = vadd.f32 0.0, %v7174
      %7176 = vmatprep.mubr.f32.mxu0 0.0
      %7177 = vmatmul.mubr.f32.gmra.mxu0 %v7094
      %v7178 = vpop.f32.mrf.mxu0
      %v7179 = vadd.f32 0.0, %v7178
      %v7180 = vpop.f32.mrf.mxu0
      %v7181 = vadd.f32 0.0, %v7180
      %7182 = vdwg.mxu0
      %v7184 = vsel %vm1911, %v7026, 0
      %v7187 = vsel %vm1911, %v7027, 0
      %v7190 = vsel %vm1911, %v7028, 0
      %v7192 = vsel %vm1921, %v7059, 0
      %v7194 = vsel %vm1921, %v7060, 0
      %7196 = vmatprep.subr.mxu0 0.0
      %7197 = vmatpush1.msra.mxu0 0.0
      %7198 = vmatprep.subr.mxu0 0.0
      %7199 = vmatpush1.msra.mxu0 0.0
      %7200 = vmatprep.subr.mxu0 0.0
      %7201 = vmatpush1.msra.mxu0 0.0
      %7202 = vmatprep.subr.mxu0 0.0
      %7203 = vmatpush1.msra.mxu0 0.0
      %7204 = vmatprep.subr.mxu0 0.0
      %7205 = vmatpush1.msra.mxu0 0.0
      %7206 = vmatprep.subr.mxu0 0.0
      %7207 = vmatpush1.msra.mxu0 0.0
      %7208 = vmatprep.subr.mxu0 0.0
      %7209 = vmatpush1.msra.mxu0 0.0
      %7210 = vmatprep.subr.mxu0 0.0
      %7211 = vmatpush1.msra.mxu0 0.0
      %7212 = vmatprep.subr.mxu0 0.0
      %7213 = vmatpush1.msra.mxu0 0.0
      %7214 = vmatprep.subr.mxu0 0.0
      %7215 = vmatpush1.msra.mxu0 0.0
      %7216 = vmatprep.subr.mxu0 0.0
      %7217 = vmatpush1.msra.mxu0 0.0
      %7218 = vmatprep.subr.mxu0 0.0
      %7219 = vmatpush1.msra.mxu0 0.0
      %7220 = vmatprep.subr.mxu0 0.0
      %7221 = vmatpush1.msra.mxu0 0.0
      %7222 = vmatprep.subr.mxu0 0.0
      %7223 = vmatpush1.msra.mxu0 0.0
      %7224 = vmatprep.subr.mxu0 %v7194
      %7225 = vmatpush1.msra.mxu0 %v7192
      %7226 = vmatprep.subr.mxu0 %v7058
      %7227 = vmatpush1.msra.mxu0 %v7057
      %7228 = vmatprep.subr.mxu0 0.0
      %7229 = vmatpush2.msra.mxu0 0.0
      %7230 = vmatprep.subr.mxu0 0.0
      %7231 = vmatpush2.msra.mxu0 0.0
      %7232 = vmatprep.subr.mxu0 0.0
      %7233 = vmatpush2.msra.mxu0 0.0
      %7234 = vmatprep.subr.mxu0 0.0
      %7235 = vmatpush2.msra.mxu0 0.0
      %7236 = vmatprep.subr.mxu0 0.0
      %7237 = vmatpush2.msra.mxu0 0.0
      %7238 = vmatprep.subr.mxu0 0.0
      %7239 = vmatpush2.msra.mxu0 0.0
      %7240 = vmatprep.subr.mxu0 0.0
      %7241 = vmatpush2.msra.mxu0 0.0
      %7242 = vmatprep.subr.mxu0 0.0
      %7243 = vmatpush2.msra.mxu0 0.0
      %7244 = vmatprep.subr.mxu0 0.0
      %7245 = vmatpush2.msra.mxu0 0.0
      %7246 = vmatprep.subr.mxu0 0.0
      %7247 = vmatpush2.msra.mxu0 0.0
      %7248 = vmatprep.subr.mxu0 0.0
      %7249 = vmatpush2.msra.mxu0 0.0
      %7250 = vmatprep.subr.mxu0 0.0
      %7251 = vmatpush2.msra.mxu0 0.0
      %7252 = vmatprep.subr.mxu0 0.0
      %7253 = vmatpush2.msra.mxu0 0.0
      %7254 = vmatprep.subr.mxu0 0.0
      %7255 = vmatpush2.msra.mxu0 0.0
      %7256 = vmatprep.subr.mxu0 0.0
      %7257 = vmatpush2.msra.mxu0 0.0
      %7258 = vmatprep.subr.mxu0 0.0
      %7259 = vmatpush2.msra.mxu0 0.0
      %7260 = vmatprep.mubr.f32.mxu0 0.0
      %7261 = vmatmul.mubr.f32.gmra.mxu0 %v7184
      %v7262 = vpop.f32.mrf.mxu0
      %v7263 = vadd.f32 %v7167, %v7262
      %v7264 = vpop.f32.mrf.mxu0
      %v7265 = vadd.f32 %v7169, %v7264
      %7266 = vmatprep.mubr.f32.mxu0 0.0
      %7267 = vmatmul.mubr.f32.gmra.mxu0 %v7187
      %v7268 = vpop.f32.mrf.mxu0
      %v7269 = vadd.f32 %v7173, %v7268
      %v7270 = vpop.f32.mrf.mxu0
      %v7271 = vadd.f32 %v7175, %v7270
      %7272 = vmatprep.mubr.f32.mxu0 0.0
      %7273 = vmatmul.mubr.f32.gmra.mxu0 %v7190
      %v7274 = vpop.f32.mrf.mxu0
      %v7275 = vadd.f32 %v7179, %v7274
      %v7276 = vpop.f32.mrf.mxu0
      %v7277 = vadd.f32 %v7181, %v7276
      %7278 = vdwg.mxu0
      %7279 = vrot.lane.b32.xlu0 %v7057, 126
      %v7280 = vpop.permute.xlu0 %7279
      %7281 = vrot.lane.b32.xlu0 %v7058, 126
      %v7282 = vpop.permute.xlu0 %7281
      %7283 = vrot.lane.b32.xlu0 %v7061, 126
      %v7284 = vpop.permute.xlu0 %7283
      %7285 = vrot.lane.b32.xlu0 %v7059, 126
      %v7286 = vpop.permute.xlu0 %7285
      %7287 = vrot.lane.b32.xlu0 %v7060, 126
      %v7288 = vpop.permute.xlu0 %7287
      %7289 = vrot.lane.b32.xlu0 %v7062, 126
      %v7290 = vpop.permute.xlu0 %7289
      %v7291 = vsel %vm869, %v7280, %v7282
      %v7292 = vsel %vm869, %v7282, %v7284
      %v7293 = vsel %vm869, %v7286, %v7288
      %v7294 = vsel %vm869, %v7288, %v7290
      %v7298 = vsel %vm1911, %v7032, 0
      %v7301 = vsel %vm1911, %v7033, 0
      %v7304 = vsel %vm1911, %v7034, 0
      %v7306 = vsel %vm1921, %v7293, 0
      %v7308 = vsel %vm1921, %v7294, 0
      %7310 = vmatprep.subr.mxu0 0.0
      %7311 = vmatpush1.msra.mxu0 0.0
      %7312 = vmatprep.subr.mxu0 0.0
      %7313 = vmatpush1.msra.mxu0 0.0
      %7314 = vmatprep.subr.mxu0 0.0
      %7315 = vmatpush1.msra.mxu0 0.0
      %7316 = vmatprep.subr.mxu0 0.0
      %7317 = vmatpush1.msra.mxu0 0.0
      %7318 = vmatprep.subr.mxu0 0.0
      %7319 = vmatpush1.msra.mxu0 0.0
      %7320 = vmatprep.subr.mxu0 0.0
      %7321 = vmatpush1.msra.mxu0 0.0
      %7322 = vmatprep.subr.mxu0 0.0
      %7323 = vmatpush1.msra.mxu0 0.0
      %7324 = vmatprep.subr.mxu0 0.0
      %7325 = vmatpush1.msra.mxu0 0.0
      %7326 = vmatprep.subr.mxu0 0.0
      %7327 = vmatpush1.msra.mxu0 0.0
      %7328 = vmatprep.subr.mxu0 0.0
      %7329 = vmatpush1.msra.mxu0 0.0
      %7330 = vmatprep.subr.mxu0 0.0
      %7331 = vmatpush1.msra.mxu0 0.0
      %7332 = vmatprep.subr.mxu0 0.0
      %7333 = vmatpush1.msra.mxu0 0.0
      %7334 = vmatprep.subr.mxu0 0.0
      %7335 = vmatpush1.msra.mxu0 0.0
      %7336 = vmatprep.subr.mxu0 0.0
      %7337 = vmatpush1.msra.mxu0 0.0
      %7338 = vmatprep.subr.mxu0 %v7308
      %7339 = vmatpush1.msra.mxu0 %v7306
      %7340 = vmatprep.subr.mxu0 %v7292
      %7341 = vmatpush1.msra.mxu0 %v7291
      %7342 = vmatprep.subr.mxu0 0.0
      %7343 = vmatpush2.msra.mxu0 0.0
      %7344 = vmatprep.subr.mxu0 0.0
      %7345 = vmatpush2.msra.mxu0 0.0
      %7346 = vmatprep.subr.mxu0 0.0
      %7347 = vmatpush2.msra.mxu0 0.0
      %7348 = vmatprep.subr.mxu0 0.0
      %7349 = vmatpush2.msra.mxu0 0.0
      %7350 = vmatprep.subr.mxu0 0.0
      %7351 = vmatpush2.msra.mxu0 0.0
      %7352 = vmatprep.subr.mxu0 0.0
      %7353 = vmatpush2.msra.mxu0 0.0
      %7354 = vmatprep.subr.mxu0 0.0
      %7355 = vmatpush2.msra.mxu0 0.0
      %7356 = vmatprep.subr.mxu0 0.0
      %7357 = vmatpush2.msra.mxu0 0.0
      %7358 = vmatprep.subr.mxu0 0.0
      %7359 = vmatpush2.msra.mxu0 0.0
      %7360 = vmatprep.subr.mxu0 0.0
      %7361 = vmatpush2.msra.mxu0 0.0
      %7362 = vmatprep.subr.mxu0 0.0
      %7363 = vmatpush2.msra.mxu0 0.0
      %7364 = vmatprep.subr.mxu0 0.0
      %7365 = vmatpush2.msra.mxu0 0.0
      %7366 = vmatprep.subr.mxu0 0.0
      %7367 = vmatpush2.msra.mxu0 0.0
      %7368 = vmatprep.subr.mxu0 0.0
      %7369 = vmatpush2.msra.mxu0 0.0
      %7370 = vmatprep.subr.mxu0 0.0
      %7371 = vmatpush2.msra.mxu0 0.0
      %7372 = vmatprep.subr.mxu0 0.0
      %7373 = vmatpush2.msra.mxu0 0.0
      %7374 = vmatprep.mubr.f32.mxu0 0.0
      %7375 = vmatmul.mubr.f32.gmra.mxu0 %v7298
      %v7376 = vpop.f32.mrf.mxu0
      %v7377 = vadd.f32 0.0, %v7376
      %v7378 = vpop.f32.mrf.mxu0
      %v7379 = vadd.f32 0.0, %v7378
      %7380 = vmatprep.mubr.f32.mxu0 0.0
      %7381 = vmatmul.mubr.f32.gmra.mxu0 %v7301
      %v7382 = vpop.f32.mrf.mxu0
      %v7383 = vadd.f32 0.0, %v7382
      %v7384 = vpop.f32.mrf.mxu0
      %v7385 = vadd.f32 0.0, %v7384
      %7386 = vmatprep.mubr.f32.mxu0 0.0
      %7387 = vmatmul.mubr.f32.gmra.mxu0 %v7304
      %v7388 = vpop.f32.mrf.mxu0
      %v7389 = vadd.f32 0.0, %v7388
      %v7390 = vpop.f32.mrf.mxu0
      %v7391 = vadd.f32 0.0, %v7390
      %7392 = vdwg.mxu0
      %v7393 = vadd.f32 %v7263, %v7377
      %v7394 = vadd.f32 %v7265, %v7379
      %v7395 = vadd.f32 %v7269, %v7383
      %v7396 = vadd.f32 %v7271, %v7385
      %v7397 = vadd.f32 %v7275, %v7389
      %v7398 = vadd.f32 %v7277, %v7391
      %7399 = vrot.lane.b32.xlu0 %v7057, 114
      %v7400 = vpop.permute.xlu0 %7399
      %7401 = vrot.lane.b32.xlu0 %v7058, 114
      %v7402 = vpop.permute.xlu0 %7401
      %7403 = vrot.lane.b32.xlu0 %v7061, 114
      %v7404 = vpop.permute.xlu0 %7403
      %7405 = vrot.lane.b32.xlu0 %v7059, 114
      %v7406 = vpop.permute.xlu0 %7405
      %7407 = vrot.lane.b32.xlu0 %v7060, 114
      %v7408 = vpop.permute.xlu0 %7407
      %7409 = vrot.lane.b32.xlu0 %v7062, 114
      %v7410 = vpop.permute.xlu0 %7409
      %vm7411 = vcmask 932864
      %v7412 = vsel %vm7411, %v7400, %v7402
      %v7413 = vsel %vm7411, %v7402, %v7404
      %v7414 = vsel %vm7411, %v7406, %v7408
      %v7415 = vsel %vm7411, %v7408, %v7410
      %v7419 = vsel %vm1911, %v7035, 0
      %v7422 = vsel %vm1911, %v7036, 0
      %v7425 = vsel %vm1911, %v7037, 0
      %v7427 = vsel %vm1921, %v7414, 0
      %v7429 = vsel %vm1921, %v7415, 0
      %7431 = vmatprep.subr.mxu0 0.0
      %7432 = vmatpush1.msra.mxu0 0.0
      %7433 = vmatprep.subr.mxu0 0.0
      %7434 = vmatpush1.msra.mxu0 0.0
      %7435 = vmatprep.subr.mxu0 0.0
      %7436 = vmatpush1.msra.mxu0 0.0
      %7437 = vmatprep.subr.mxu0 0.0
      %7438 = vmatpush1.msra.mxu0 0.0
      %7439 = vmatprep.subr.mxu0 0.0
      %7440 = vmatpush1.msra.mxu0 0.0
      %7441 = vmatprep.subr.mxu0 0.0
      %7442 = vmatpush1.msra.mxu0 0.0
      %7443 = vmatprep.subr.mxu0 0.0
      %7444 = vmatpush1.msra.mxu0 0.0
      %7445 = vmatprep.subr.mxu0 0.0
      %7446 = vmatpush1.msra.mxu0 0.0
      %7447 = vmatprep.subr.mxu0 0.0
      %7448 = vmatpush1.msra.mxu0 0.0
      %7449 = vmatprep.subr.mxu0 0.0
      %7450 = vmatpush1.msra.mxu0 0.0
      %7451 = vmatprep.subr.mxu0 0.0
      %7452 = vmatpush1.msra.mxu0 0.0
      %7453 = vmatprep.subr.mxu0 0.0
      %7454 = vmatpush1.msra.mxu0 0.0
      %7455 = vmatprep.subr.mxu0 0.0
      %7456 = vmatpush1.msra.mxu0 0.0
      %7457 = vmatprep.subr.mxu0 0.0
      %7458 = vmatpush1.msra.mxu0 0.0
      %7459 = vmatprep.subr.mxu0 %v7429
      %7460 = vmatpush1.msra.mxu0 %v7427
      %7461 = vmatprep.subr.mxu0 %v7413
      %7462 = vmatpush1.msra.mxu0 %v7412
      %7463 = vmatprep.subr.mxu0 0.0
      %7464 = vmatpush2.msra.mxu0 0.0
      %7465 = vmatprep.subr.mxu0 0.0
      %7466 = vmatpush2.msra.mxu0 0.0
      %7467 = vmatprep.subr.mxu0 0.0
      %7468 = vmatpush2.msra.mxu0 0.0
      %7469 = vmatprep.subr.mxu0 0.0
      %7470 = vmatpush2.msra.mxu0 0.0
      %7471 = vmatprep.subr.mxu0 0.0
      %7472 = vmatpush2.msra.mxu0 0.0
      %7473 = vmatprep.subr.mxu0 0.0
      %7474 = vmatpush2.msra.mxu0 0.0
      %7475 = vmatprep.subr.mxu0 0.0
      %7476 = vmatpush2.msra.mxu0 0.0
      %7477 = vmatprep.subr.mxu0 0.0
      %7478 = vmatpush2.msra.mxu0 0.0
      %7479 = vmatprep.subr.mxu0 0.0
      %7480 = vmatpush2.msra.mxu0 0.0
      %7481 = vmatprep.subr.mxu0 0.0
      %7482 = vmatpush2.msra.mxu0 0.0
      %7483 = vmatprep.subr.mxu0 0.0
      %7484 = vmatpush2.msra.mxu0 0.0
      %7485 = vmatprep.subr.mxu0 0.0
      %7486 = vmatpush2.msra.mxu0 0.0
      %7487 = vmatprep.subr.mxu0 0.0
      %7488 = vmatpush2.msra.mxu0 0.0
      %7489 = vmatprep.subr.mxu0 0.0
      %7490 = vmatpush2.msra.mxu0 0.0
      %7491 = vmatprep.subr.mxu0 0.0
      %7492 = vmatpush2.msra.mxu0 0.0
      %7493 = vmatprep.subr.mxu0 0.0
      %7494 = vmatpush2.msra.mxu0 0.0
      %7495 = vmatprep.mubr.f32.mxu0 0.0
      %7496 = vmatmul.mubr.f32.gmra.mxu0 %v7419
      %v7497 = vpop.f32.mrf.mxu0
      %v7498 = vadd.f32 0.0, %v7497
      %v7499 = vpop.f32.mrf.mxu0
      %v7500 = vadd.f32 0.0, %v7499
      %7501 = vmatprep.mubr.f32.mxu0 0.0
      %7502 = vmatmul.mubr.f32.gmra.mxu0 %v7422
      %v7503 = vpop.f32.mrf.mxu0
      %v7504 = vadd.f32 0.0, %v7503
      %v7505 = vpop.f32.mrf.mxu0
      %v7506 = vadd.f32 0.0, %v7505
      %7507 = vmatprep.mubr.f32.mxu0 0.0
      %7508 = vmatmul.mubr.f32.gmra.mxu0 %v7425
      %v7509 = vpop.f32.mrf.mxu0
      %v7510 = vadd.f32 0.0, %v7509
      %v7511 = vpop.f32.mrf.mxu0
      %v7512 = vadd.f32 0.0, %v7511
      %7513 = vdwg.mxu0
      %v7514 = vadd.f32 %v7393, %v7498
      %v7515 = vadd.f32 %v7394, %v7500
      %v7516 = vadd.f32 %v7395, %v7504
      %v7517 = vadd.f32 %v7396, %v7506
      %v7518 = vadd.f32 %v7397, %v7510
      %v7519 = vadd.f32 %v7398, %v7512
      %7520 = vrot.lane.b32.xlu0 %v7057, 113
      %v7521 = vpop.permute.xlu0 %7520
      %7522 = vrot.lane.b32.xlu0 %v7058, 113
      %v7523 = vpop.permute.xlu0 %7522
      %7524 = vrot.lane.b32.xlu0 %v7061, 113
      %v7525 = vpop.permute.xlu0 %7524
      %7526 = vrot.lane.b32.xlu0 %v7059, 113
      %v7527 = vpop.permute.xlu0 %7526
      %7528 = vrot.lane.b32.xlu0 %v7060, 113
      %v7529 = vpop.permute.xlu0 %7528
      %7530 = vrot.lane.b32.xlu0 %v7062, 113
      %v7531 = vpop.permute.xlu0 %7530
      %vm7532 = vcmask 924672
      %v7533 = vsel %vm7532, %v7521, %v7523
      %v7534 = vsel %vm7532, %v7523, %v7525
      %v7535 = vsel %vm7532, %v7527, %v7529
      %v7536 = vsel %vm7532, %v7529, %v7531
      %v7540 = vsel %vm1911, %v7038, 0
      %v7543 = vsel %vm1911, %v7039, 0
      %v7546 = vsel %vm1911, %v7040, 0
      %v7548 = vsel %vm1921, %v7535, 0
      %v7550 = vsel %vm1921, %v7536, 0
      %7552 = vmatprep.subr.mxu0 0.0
      %7553 = vmatpush1.msra.mxu0 0.0
      %7554 = vmatprep.subr.mxu0 0.0
      %7555 = vmatpush1.msra.mxu0 0.0
      %7556 = vmatprep.subr.mxu0 0.0
      %7557 = vmatpush1.msra.mxu0 0.0
      %7558 = vmatprep.subr.mxu0 0.0
      %7559 = vmatpush1.msra.mxu0 0.0
      %7560 = vmatprep.subr.mxu0 0.0
      %7561 = vmatpush1.msra.mxu0 0.0
      %7562 = vmatprep.subr.mxu0 0.0
      %7563 = vmatpush1.msra.mxu0 0.0
      %7564 = vmatprep.subr.mxu0 0.0
      %7565 = vmatpush1.msra.mxu0 0.0
      %7566 = vmatprep.subr.mxu0 0.0
      %7567 = vmatpush1.msra.mxu0 0.0
      %7568 = vmatprep.subr.mxu0 0.0
      %7569 = vmatpush1.msra.mxu0 0.0
      %7570 = vmatprep.subr.mxu0 0.0
      %7571 = vmatpush1.msra.mxu0 0.0
      %7572 = vmatprep.subr.mxu0 0.0
      %7573 = vmatpush1.msra.mxu0 0.0
      %7574 = vmatprep.subr.mxu0 0.0
      %7575 = vmatpush1.msra.mxu0 0.0
      %7576 = vmatprep.subr.mxu0 0.0
      %7577 = vmatpush1.msra.mxu0 0.0
      %7578 = vmatprep.subr.mxu0 0.0
      %7579 = vmatpush1.msra.mxu0 0.0
      %7580 = vmatprep.subr.mxu0 %v7550
      %7581 = vmatpush1.msra.mxu0 %v7548
      %7582 = vmatprep.subr.mxu0 %v7534
      %7583 = vmatpush1.msra.mxu0 %v7533
      %7584 = vmatprep.subr.mxu0 0.0
      %7585 = vmatpush2.msra.mxu0 0.0
      %7586 = vmatprep.subr.mxu0 0.0
      %7587 = vmatpush2.msra.mxu0 0.0
      %7588 = vmatprep.subr.mxu0 0.0
      %7589 = vmatpush2.msra.mxu0 0.0
      %7590 = vmatprep.subr.mxu0 0.0
      %7591 = vmatpush2.msra.mxu0 0.0
      %7592 = vmatprep.subr.mxu0 0.0
      %7593 = vmatpush2.msra.mxu0 0.0
      %7594 = vmatprep.subr.mxu0 0.0
      %7595 = vmatpush2.msra.mxu0 0.0
      %7596 = vmatprep.subr.mxu0 0.0
      %7597 = vmatpush2.msra.mxu0 0.0
      %7598 = vmatprep.subr.mxu0 0.0
      %7599 = vmatpush2.msra.mxu0 0.0
      %7600 = vmatprep.subr.mxu0 0.0
      %7601 = vmatpush2.msra.mxu0 0.0
      %7602 = vmatprep.subr.mxu0 0.0
      %7603 = vmatpush2.msra.mxu0 0.0
      %7604 = vmatprep.subr.mxu0 0.0
      %7605 = vmatpush2.msra.mxu0 0.0
      %7606 = vmatprep.subr.mxu0 0.0
      %7607 = vmatpush2.msra.mxu0 0.0
      %7608 = vmatprep.subr.mxu0 0.0
      %7609 = vmatpush2.msra.mxu0 0.0
      %7610 = vmatprep.subr.mxu0 0.0
      %7611 = vmatpush2.msra.mxu0 0.0
      %7612 = vmatprep.subr.mxu0 0.0
      %7613 = vmatpush2.msra.mxu0 0.0
      %7614 = vmatprep.subr.mxu0 0.0
      %7615 = vmatpush2.msra.mxu0 0.0
      %7616 = vmatprep.mubr.f32.mxu0 0.0
      %7617 = vmatmul.mubr.f32.gmra.mxu0 %v7540
      %v7618 = vpop.f32.mrf.mxu0
      %v7619 = vadd.f32 0.0, %v7618
      %v7620 = vpop.f32.mrf.mxu0
      %v7621 = vadd.f32 0.0, %v7620
      %7622 = vmatprep.mubr.f32.mxu0 0.0
      %7623 = vmatmul.mubr.f32.gmra.mxu0 %v7543
      %v7624 = vpop.f32.mrf.mxu0
      %v7625 = vadd.f32 0.0, %v7624
      %v7626 = vpop.f32.mrf.mxu0
      %v7627 = vadd.f32 0.0, %v7626
      %7628 = vmatprep.mubr.f32.mxu0 0.0
      %7629 = vmatmul.mubr.f32.gmra.mxu0 %v7546
      %v7630 = vpop.f32.mrf.mxu0
      %v7631 = vadd.f32 0.0, %v7630
      %v7632 = vpop.f32.mrf.mxu0
      %v7633 = vadd.f32 0.0, %v7632
      %7634 = vdwg.mxu0
      %v7635 = vadd.f32 %v7514, %v7619
      %v7636 = vadd.f32 %v7515, %v7621
      %v7637 = vadd.f32 %v7516, %v7625
      %v7638 = vadd.f32 %v7517, %v7627
      %v7639 = vadd.f32 %v7518, %v7631
      %v7640 = vadd.f32 %v7519, %v7633
      %7641 = vrot.lane.b32.xlu0 %v7057, 112
      %v7642 = vpop.permute.xlu0 %7641
      %7643 = vrot.lane.b32.xlu0 %v7058, 112
      %v7644 = vpop.permute.xlu0 %7643
      %7645 = vrot.lane.b32.xlu0 %v7061, 112
      %v7646 = vpop.permute.xlu0 %7645
      %7647 = vrot.lane.b32.xlu0 %v7059, 112
      %v7648 = vpop.permute.xlu0 %7647
      %7649 = vrot.lane.b32.xlu0 %v7060, 112
      %v7650 = vpop.permute.xlu0 %7649
      %7651 = vrot.lane.b32.xlu0 %v7062, 112
      %v7652 = vpop.permute.xlu0 %7651
      %vm7653 = vcmask 916480
      %v7654 = vsel %vm7653, %v7642, %v7644
      %v7655 = vsel %vm7653, %v7644, %v7646
      %v7656 = vsel %vm7653, %v7648, %v7650
      %v7657 = vsel %vm7653, %v7650, %v7652
      %v7661 = vsel %vm1911, %v7041, 0
      %v7664 = vsel %vm1911, %v7042, 0
      %v7667 = vsel %vm1911, %v7043, 0
      %v7669 = vsel %vm1921, %v7656, 0
      %v7671 = vsel %vm1921, %v7657, 0
      %7673 = vmatprep.subr.mxu0 0.0
      %7674 = vmatpush1.msra.mxu0 0.0
      %7675 = vmatprep.subr.mxu0 0.0
      %7676 = vmatpush1.msra.mxu0 0.0
      %7677 = vmatprep.subr.mxu0 0.0
      %7678 = vmatpush1.msra.mxu0 0.0
      %7679 = vmatprep.subr.mxu0 0.0
      %7680 = vmatpush1.msra.mxu0 0.0
      %7681 = vmatprep.subr.mxu0 0.0
      %7682 = vmatpush1.msra.mxu0 0.0
      %7683 = vmatprep.subr.mxu0 0.0
      %7684 = vmatpush1.msra.mxu0 0.0
      %7685 = vmatprep.subr.mxu0 0.0
      %7686 = vmatpush1.msra.mxu0 0.0
      %7687 = vmatprep.subr.mxu0 0.0
      %7688 = vmatpush1.msra.mxu0 0.0
      %7689 = vmatprep.subr.mxu0 0.0
      %7690 = vmatpush1.msra.mxu0 0.0
      %7691 = vmatprep.subr.mxu0 0.0
      %7692 = vmatpush1.msra.mxu0 0.0
      %7693 = vmatprep.subr.mxu0 0.0
      %7694 = vmatpush1.msra.mxu0 0.0
      %7695 = vmatprep.subr.mxu0 0.0
      %7696 = vmatpush1.msra.mxu0 0.0
      %7697 = vmatprep.subr.mxu0 0.0
      %7698 = vmatpush1.msra.mxu0 0.0
      %7699 = vmatprep.subr.mxu0 0.0
      %7700 = vmatpush1.msra.mxu0 0.0
      %7701 = vmatprep.subr.mxu0 %v7671
      %7702 = vmatpush1.msra.mxu0 %v7669
      %7703 = vmatprep.subr.mxu0 %v7655
      %7704 = vmatpush1.msra.mxu0 %v7654
      %7705 = vmatprep.subr.mxu0 0.0
      %7706 = vmatpush2.msra.mxu0 0.0
      %7707 = vmatprep.subr.mxu0 0.0
      %7708 = vmatpush2.msra.mxu0 0.0
      %7709 = vmatprep.subr.mxu0 0.0
      %7710 = vmatpush2.msra.mxu0 0.0
      %7711 = vmatprep.subr.mxu0 0.0
      %7712 = vmatpush2.msra.mxu0 0.0
      %7713 = vmatprep.subr.mxu0 0.0
      %7714 = vmatpush2.msra.mxu0 0.0
      %7715 = vmatprep.subr.mxu0 0.0
      %7716 = vmatpush2.msra.mxu0 0.0
      %7717 = vmatprep.subr.mxu0 0.0
      %7718 = vmatpush2.msra.mxu0 0.0
      %7719 = vmatprep.subr.mxu0 0.0
      %7720 = vmatpush2.msra.mxu0 0.0
      %7721 = vmatprep.subr.mxu0 0.0
      %7722 = vmatpush2.msra.mxu0 0.0
      %7723 = vmatprep.subr.mxu0 0.0
      %7724 = vmatpush2.msra.mxu0 0.0
      %7725 = vmatprep.subr.mxu0 0.0
      %7726 = vmatpush2.msra.mxu0 0.0
      %7727 = vmatprep.subr.mxu0 0.0
      %7728 = vmatpush2.msra.mxu0 0.0
      %7729 = vmatprep.subr.mxu0 0.0
      %7730 = vmatpush2.msra.mxu0 0.0
      %7731 = vmatprep.subr.mxu0 0.0
      %7732 = vmatpush2.msra.mxu0 0.0
      %7733 = vmatprep.subr.mxu0 0.0
      %7734 = vmatpush2.msra.mxu0 0.0
      %7735 = vmatprep.subr.mxu0 0.0
      %7736 = vmatpush2.msra.mxu0 0.0
      %7737 = vmatprep.mubr.f32.mxu0 0.0
      %7738 = vmatmul.mubr.f32.gmra.mxu0 %v7661
      %v7739 = vpop.f32.mrf.mxu0
      %v7740 = vadd.f32 0.0, %v7739
      %v7741 = vpop.f32.mrf.mxu0
      %v7742 = vadd.f32 0.0, %v7741
      %7743 = vmatprep.mubr.f32.mxu0 0.0
      %7744 = vmatmul.mubr.f32.gmra.mxu0 %v7664
      %v7745 = vpop.f32.mrf.mxu0
      %v7746 = vadd.f32 0.0, %v7745
      %v7747 = vpop.f32.mrf.mxu0
      %v7748 = vadd.f32 0.0, %v7747
      %7749 = vmatprep.mubr.f32.mxu0 0.0
      %7750 = vmatmul.mubr.f32.gmra.mxu0 %v7667
      %v7751 = vpop.f32.mrf.mxu0
      %v7752 = vadd.f32 0.0, %v7751
      %v7753 = vpop.f32.mrf.mxu0
      %v7754 = vadd.f32 0.0, %v7753
      %7755 = vdwg.mxu0
      %v7756 = vadd.f32 %v7635, %v7740
      %v7757 = vadd.f32 %v7636, %v7742
      %v7758 = vadd.f32 %v7637, %v7746
      %v7759 = vadd.f32 %v7638, %v7748
      %v7760 = vadd.f32 %v7639, %v7752
      %v7761 = vadd.f32 %v7640, %v7754
      %7762 = vrot.lane.b32.xlu0 %v7057, 100
      %v7763 = vpop.permute.xlu0 %7762
      %7764 = vrot.lane.b32.xlu0 %v7058, 100
      %v7765 = vpop.permute.xlu0 %7764
      %7766 = vrot.lane.b32.xlu0 %v7061, 100
      %v7767 = vpop.permute.xlu0 %7766
      %7768 = vrot.lane.b32.xlu0 %v7059, 100
      %v7769 = vpop.permute.xlu0 %7768
      %7770 = vrot.lane.b32.xlu0 %v7060, 100
      %v7771 = vpop.permute.xlu0 %7770
      %7772 = vrot.lane.b32.xlu0 %v7062, 100
      %v7773 = vpop.permute.xlu0 %7772
      %v7774 = vsel %vm1000, %v7763, %v7765
      %v7775 = vsel %vm1000, %v7765, %v7767
      %v7776 = vsel %vm1000, %v7769, %v7771
      %v7777 = vsel %vm1000, %v7771, %v7773
      %v7781 = vsel %vm1911, %v7044, 0
      %v7784 = vsel %vm1911, %v7045, 0
      %v7787 = vsel %vm1911, %v7046, 0
      %v7789 = vsel %vm1921, %v7776, 0
      %v7791 = vsel %vm1921, %v7777, 0
      %7793 = vmatprep.subr.mxu0 0.0
      %7794 = vmatpush1.msra.mxu0 0.0
      %7795 = vmatprep.subr.mxu0 0.0
      %7796 = vmatpush1.msra.mxu0 0.0
      %7797 = vmatprep.subr.mxu0 0.0
      %7798 = vmatpush1.msra.mxu0 0.0
      %7799 = vmatprep.subr.mxu0 0.0
      %7800 = vmatpush1.msra.mxu0 0.0
      %7801 = vmatprep.subr.mxu0 0.0
      %7802 = vmatpush1.msra.mxu0 0.0
      %7803 = vmatprep.subr.mxu0 0.0
      %7804 = vmatpush1.msra.mxu0 0.0
      %7805 = vmatprep.subr.mxu0 0.0
      %7806 = vmatpush1.msra.mxu0 0.0
      %7807 = vmatprep.subr.mxu0 0.0
      %7808 = vmatpush1.msra.mxu0 0.0
      %7809 = vmatprep.subr.mxu0 0.0
      %7810 = vmatpush1.msra.mxu0 0.0
      %7811 = vmatprep.subr.mxu0 0.0
      %7812 = vmatpush1.msra.mxu0 0.0
      %7813 = vmatprep.subr.mxu0 0.0
      %7814 = vmatpush1.msra.mxu0 0.0
      %7815 = vmatprep.subr.mxu0 0.0
      %7816 = vmatpush1.msra.mxu0 0.0
      %7817 = vmatprep.subr.mxu0 0.0
      %7818 = vmatpush1.msra.mxu0 0.0
      %7819 = vmatprep.subr.mxu0 0.0
      %7820 = vmatpush1.msra.mxu0 0.0
      %7821 = vmatprep.subr.mxu0 %v7791
      %7822 = vmatpush1.msra.mxu0 %v7789
      %7823 = vmatprep.subr.mxu0 %v7775
      %7824 = vmatpush1.msra.mxu0 %v7774
      %7825 = vmatprep.subr.mxu0 0.0
      %7826 = vmatpush2.msra.mxu0 0.0
      %7827 = vmatprep.subr.mxu0 0.0
      %7828 = vmatpush2.msra.mxu0 0.0
      %7829 = vmatprep.subr.mxu0 0.0
      %7830 = vmatpush2.msra.mxu0 0.0
      %7831 = vmatprep.subr.mxu0 0.0
      %7832 = vmatpush2.msra.mxu0 0.0
      %7833 = vmatprep.subr.mxu0 0.0
      %7834 = vmatpush2.msra.mxu0 0.0
      %7835 = vmatprep.subr.mxu0 0.0
      %7836 = vmatpush2.msra.mxu0 0.0
      %7837 = vmatprep.subr.mxu0 0.0
      %7838 = vmatpush2.msra.mxu0 0.0
      %7839 = vmatprep.subr.mxu0 0.0
      %7840 = vmatpush2.msra.mxu0 0.0
      %7841 = vmatprep.subr.mxu0 0.0
      %7842 = vmatpush2.msra.mxu0 0.0
      %7843 = vmatprep.subr.mxu0 0.0
      %7844 = vmatpush2.msra.mxu0 0.0
      %7845 = vmatprep.subr.mxu0 0.0
      %7846 = vmatpush2.msra.mxu0 0.0
      %7847 = vmatprep.subr.mxu0 0.0
      %7848 = vmatpush2.msra.mxu0 0.0
      %7849 = vmatprep.subr.mxu0 0.0
      %7850 = vmatpush2.msra.mxu0 0.0
      %7851 = vmatprep.subr.mxu0 0.0
      %7852 = vmatpush2.msra.mxu0 0.0
      %7853 = vmatprep.subr.mxu0 0.0
      %7854 = vmatpush2.msra.mxu0 0.0
      %7855 = vmatprep.subr.mxu0 0.0
      %7856 = vmatpush2.msra.mxu0 0.0
      %7857 = vmatprep.mubr.f32.mxu0 0.0
      %7858 = vmatmul.mubr.f32.gmra.mxu0 %v7781
      %v7859 = vpop.f32.mrf.mxu0
      %v7860 = vadd.f32 0.0, %v7859
      %v7861 = vpop.f32.mrf.mxu0
      %v7862 = vadd.f32 0.0, %v7861
      %7863 = vmatprep.mubr.f32.mxu0 0.0
      %7864 = vmatmul.mubr.f32.gmra.mxu0 %v7784
      %v7865 = vpop.f32.mrf.mxu0
      %v7866 = vadd.f32 0.0, %v7865
      %v7867 = vpop.f32.mrf.mxu0
      %v7868 = vadd.f32 0.0, %v7867
      %7869 = vmatprep.mubr.f32.mxu0 0.0
      %7870 = vmatmul.mubr.f32.gmra.mxu0 %v7787
      %v7871 = vpop.f32.mrf.mxu0
      %v7872 = vadd.f32 0.0, %v7871
      %v7873 = vpop.f32.mrf.mxu0
      %v7874 = vadd.f32 0.0, %v7873
      %7875 = vdwg.mxu0
      %v7876 = vadd.f32 %v7756, %v7860
      %v7877 = vadd.f32 %v7757, %v7862
      %v7878 = vadd.f32 %v7758, %v7866
      %v7879 = vadd.f32 %v7759, %v7868
      %v7880 = vadd.f32 %v7760, %v7872
      %v7881 = vadd.f32 %v7761, %v7874
      %7882 = vrot.lane.b32.xlu0 %v7057, 99
      %v7883 = vpop.permute.xlu0 %7882
      %7884 = vrot.lane.b32.xlu0 %v7058, 99
      %v7885 = vpop.permute.xlu0 %7884
      %7886 = vrot.lane.b32.xlu0 %v7061, 99
      %v7887 = vpop.permute.xlu0 %7886
      %7888 = vrot.lane.b32.xlu0 %v7059, 99
      %v7889 = vpop.permute.xlu0 %7888
      %7890 = vrot.lane.b32.xlu0 %v7060, 99
      %v7891 = vpop.permute.xlu0 %7890
      %7892 = vrot.lane.b32.xlu0 %v7062, 99
      %v7893 = vpop.permute.xlu0 %7892
      %v7894 = vsel %vm1131, %v7883, %v7885
      %v7895 = vsel %vm1131, %v7885, %v7887
      %v7896 = vsel %vm1131, %v7889, %v7891
      %v7897 = vsel %vm1131, %v7891, %v7893
      %v7901 = vsel %vm1911, %v7047, 0
      %v7904 = vsel %vm1911, %v7048, 0
      %v7907 = vsel %vm1911, %v7049, 0
      %v7909 = vsel %vm1921, %v7896, 0
      %v7911 = vsel %vm1921, %v7897, 0
      %7913 = vmatprep.subr.mxu0 0.0
      %7914 = vmatpush1.msra.mxu0 0.0
      %7915 = vmatprep.subr.mxu0 0.0
      %7916 = vmatpush1.msra.mxu0 0.0
      %7917 = vmatprep.subr.mxu0 0.0
      %7918 = vmatpush1.msra.mxu0 0.0
      %7919 = vmatprep.subr.mxu0 0.0
      %7920 = vmatpush1.msra.mxu0 0.0
      %7921 = vmatprep.subr.mxu0 0.0
      %7922 = vmatpush1.msra.mxu0 0.0
      %7923 = vmatprep.subr.mxu0 0.0
      %7924 = vmatpush1.msra.mxu0 0.0
      %7925 = vmatprep.subr.mxu0 0.0
      %7926 = vmatpush1.msra.mxu0 0.0
      %7927 = vmatprep.subr.mxu0 0.0
      %7928 = vmatpush1.msra.mxu0 0.0
      %7929 = vmatprep.subr.mxu0 0.0
      %7930 = vmatpush1.msra.mxu0 0.0
      %7931 = vmatprep.subr.mxu0 0.0
      %7932 = vmatpush1.msra.mxu0 0.0
      %7933 = vmatprep.subr.mxu0 0.0
      %7934 = vmatpush1.msra.mxu0 0.0
      %7935 = vmatprep.subr.mxu0 0.0
      %7936 = vmatpush1.msra.mxu0 0.0
      %7937 = vmatprep.subr.mxu0 0.0
      %7938 = vmatpush1.msra.mxu0 0.0
      %7939 = vmatprep.subr.mxu0 0.0
      %7940 = vmatpush1.msra.mxu0 0.0
      %7941 = vmatprep.subr.mxu0 %v7911
      %7942 = vmatpush1.msra.mxu0 %v7909
      %7943 = vmatprep.subr.mxu0 %v7895
      %7944 = vmatpush1.msra.mxu0 %v7894
      %7945 = vmatprep.subr.mxu0 0.0
      %7946 = vmatpush2.msra.mxu0 0.0
      %7947 = vmatprep.subr.mxu0 0.0
      %7948 = vmatpush2.msra.mxu0 0.0
      %7949 = vmatprep.subr.mxu0 0.0
      %7950 = vmatpush2.msra.mxu0 0.0
      %7951 = vmatprep.subr.mxu0 0.0
      %7952 = vmatpush2.msra.mxu0 0.0
      %7953 = vmatprep.subr.mxu0 0.0
      %7954 = vmatpush2.msra.mxu0 0.0
      %7955 = vmatprep.subr.mxu0 0.0
      %7956 = vmatpush2.msra.mxu0 0.0
      %7957 = vmatprep.subr.mxu0 0.0
      %7958 = vmatpush2.msra.mxu0 0.0
      %7959 = vmatprep.subr.mxu0 0.0
      %7960 = vmatpush2.msra.mxu0 0.0
      %7961 = vmatprep.subr.mxu0 0.0
      %7962 = vmatpush2.msra.mxu0 0.0
      %7963 = vmatprep.subr.mxu0 0.0
      %7964 = vmatpush2.msra.mxu0 0.0
      %7965 = vmatprep.subr.mxu0 0.0
      %7966 = vmatpush2.msra.mxu0 0.0
      %7967 = vmatprep.subr.mxu0 0.0
      %7968 = vmatpush2.msra.mxu0 0.0
      %7969 = vmatprep.subr.mxu0 0.0
      %7970 = vmatpush2.msra.mxu0 0.0
      %7971 = vmatprep.subr.mxu0 0.0
      %7972 = vmatpush2.msra.mxu0 0.0
      %7973 = vmatprep.subr.mxu0 0.0
      %7974 = vmatpush2.msra.mxu0 0.0
      %7975 = vmatprep.subr.mxu0 0.0
      %7976 = vmatpush2.msra.mxu0 0.0
      %7977 = vmatprep.mubr.f32.mxu0 0.0
      %7978 = vmatmul.mubr.f32.gmra.mxu0 %v7901
      %v7979 = vpop.f32.mrf.mxu0
      %v7980 = vadd.f32 0.0, %v7979
      %v7981 = vpop.f32.mrf.mxu0
      %v7982 = vadd.f32 0.0, %v7981
      %7983 = vmatprep.mubr.f32.mxu0 0.0
      %7984 = vmatmul.mubr.f32.gmra.mxu0 %v7904
      %v7985 = vpop.f32.mrf.mxu0
      %v7986 = vadd.f32 0.0, %v7985
      %v7987 = vpop.f32.mrf.mxu0
      %v7988 = vadd.f32 0.0, %v7987
      %7989 = vmatprep.mubr.f32.mxu0 0.0
      %7990 = vmatmul.mubr.f32.gmra.mxu0 %v7907
      %v7991 = vpop.f32.mrf.mxu0
      %v7992 = vadd.f32 0.0, %v7991
      %v7993 = vpop.f32.mrf.mxu0
      %v7994 = vadd.f32 0.0, %v7993
      %7995 = vdwg.mxu0
      %v7996 = vadd.f32 %v7876, %v7980
      %v7997 = vadd.f32 %v7877, %v7982
      %v7998 = vadd.f32 %v7878, %v7986
      %v7999 = vadd.f32 %v7879, %v7988
      %v8000 = vadd.f32 %v7880, %v7992
      %v8001 = vadd.f32 %v7881, %v7994
      %8002 = vrot.lane.b32.xlu0 %v7057, 98
      %v8003 = vpop.permute.xlu0 %8002
      %8004 = vrot.lane.b32.xlu0 %v7058, 98
      %v8005 = vpop.permute.xlu0 %8004
      %8006 = vrot.lane.b32.xlu0 %v7061, 98
      %v8007 = vpop.permute.xlu0 %8006
      %8008 = vrot.lane.b32.xlu0 %v7059, 98
      %v8009 = vpop.permute.xlu0 %8008
      %8010 = vrot.lane.b32.xlu0 %v7060, 98
      %v8011 = vpop.permute.xlu0 %8010
      %8012 = vrot.lane.b32.xlu0 %v7062, 98
      %v8013 = vpop.permute.xlu0 %8012
      %v8014 = vsel %vm1262, %v8003, %v8005
      %v8015 = vsel %vm1262, %v8005, %v8007
      %v8016 = vsel %vm1262, %v8009, %v8011
      %v8017 = vsel %vm1262, %v8011, %v8013
      %v8021 = vsel %vm1911, %v7050, 0
      %v8024 = vsel %vm1911, %v7051, 0
      %v8027 = vsel %vm1911, %v7052, 0
      %v8029 = vsel %vm1921, %v8016, 0
      %v8031 = vsel %vm1921, %v8017, 0
      %8033 = vmatprep.subr.mxu0 0.0
      %8034 = vmatpush1.msra.mxu0 0.0
      %8035 = vmatprep.subr.mxu0 0.0
      %8036 = vmatpush1.msra.mxu0 0.0
      %8037 = vmatprep.subr.mxu0 0.0
      %8038 = vmatpush1.msra.mxu0 0.0
      %8039 = vmatprep.subr.mxu0 0.0
      %8040 = vmatpush1.msra.mxu0 0.0
      %8041 = vmatprep.subr.mxu0 0.0
      %8042 = vmatpush1.msra.mxu0 0.0
      %8043 = vmatprep.subr.mxu0 0.0
      %8044 = vmatpush1.msra.mxu0 0.0
      %8045 = vmatprep.subr.mxu0 0.0
      %8046 = vmatpush1.msra.mxu0 0.0
      %8047 = vmatprep.subr.mxu0 0.0
      %8048 = vmatpush1.msra.mxu0 0.0
      %8049 = vmatprep.subr.mxu0 0.0
      %8050 = vmatpush1.msra.mxu0 0.0
      %8051 = vmatprep.subr.mxu0 0.0
      %8052 = vmatpush1.msra.mxu0 0.0
      %8053 = vmatprep.subr.mxu0 0.0
      %8054 = vmatpush1.msra.mxu0 0.0
      %8055 = vmatprep.subr.mxu0 0.0
      %8056 = vmatpush1.msra.mxu0 0.0
      %8057 = vmatprep.subr.mxu0 0.0
      %8058 = vmatpush1.msra.mxu0 0.0
      %8059 = vmatprep.subr.mxu0 0.0
      %8060 = vmatpush1.msra.mxu0 0.0
      %8061 = vmatprep.subr.mxu0 %v8031
      %8062 = vmatpush1.msra.mxu0 %v8029
      %8063 = vmatprep.subr.mxu0 %v8015
      %8064 = vmatpush1.msra.mxu0 %v8014
      %8065 = vmatprep.subr.mxu0 0.0
      %8066 = vmatpush2.msra.mxu0 0.0
      %8067 = vmatprep.subr.mxu0 0.0
      %8068 = vmatpush2.msra.mxu0 0.0
      %8069 = vmatprep.subr.mxu0 0.0
      %8070 = vmatpush2.msra.mxu0 0.0
      %8071 = vmatprep.subr.mxu0 0.0
      %8072 = vmatpush2.msra.mxu0 0.0
      %8073 = vmatprep.subr.mxu0 0.0
      %8074 = vmatpush2.msra.mxu0 0.0
      %8075 = vmatprep.subr.mxu0 0.0
      %8076 = vmatpush2.msra.mxu0 0.0
      %8077 = vmatprep.subr.mxu0 0.0
      %8078 = vmatpush2.msra.mxu0 0.0
      %8079 = vmatprep.subr.mxu0 0.0
      %8080 = vmatpush2.msra.mxu0 0.0
      %8081 = vmatprep.subr.mxu0 0.0
      %8082 = vmatpush2.msra.mxu0 0.0
      %8083 = vmatprep.subr.mxu0 0.0
      %8084 = vmatpush2.msra.mxu0 0.0
      %8085 = vmatprep.subr.mxu0 0.0
      %8086 = vmatpush2.msra.mxu0 0.0
      %8087 = vmatprep.subr.mxu0 0.0
      %8088 = vmatpush2.msra.mxu0 0.0
      %8089 = vmatprep.subr.mxu0 0.0
      %8090 = vmatpush2.msra.mxu0 0.0
      %8091 = vmatprep.subr.mxu0 0.0
      %8092 = vmatpush2.msra.mxu0 0.0
      %8093 = vmatprep.subr.mxu0 0.0
      %8094 = vmatpush2.msra.mxu0 0.0
      %8095 = vmatprep.subr.mxu0 0.0
      %8096 = vmatpush2.msra.mxu0 0.0
      %8097 = vmatprep.mubr.f32.mxu0 0.0
      %8098 = vmatmul.mubr.f32.gmra.mxu0 %v8021
      %v8099 = vpop.f32.mrf.mxu0
      %v8100 = vadd.f32 0.0, %v8099
      %v8101 = vpop.f32.mrf.mxu0
      %v8102 = vadd.f32 0.0, %v8101
      %8103 = vmatprep.mubr.f32.mxu0 0.0
      %8104 = vmatmul.mubr.f32.gmra.mxu0 %v8024
      %v8105 = vpop.f32.mrf.mxu0
      %v8106 = vadd.f32 0.0, %v8105
      %v8107 = vpop.f32.mrf.mxu0
      %v8108 = vadd.f32 0.0, %v8107
      %8109 = vmatprep.mubr.f32.mxu0 0.0
      %8110 = vmatmul.mubr.f32.gmra.mxu0 %v8027
      %v8111 = vpop.f32.mrf.mxu0
      %v8112 = vadd.f32 0.0, %v8111
      %v8113 = vpop.f32.mrf.mxu0
      %v8114 = vadd.f32 0.0, %v8113
      %8115 = vdwg.mxu0
      %v8116 = vadd.f32 %v7996, %v8100
      %v8117 = vadd.f32 %v7997, %v8102
      %v8118 = vadd.f32 %v7998, %v8106
      %v8119 = vadd.f32 %v7999, %v8108
      %v8120 = vadd.f32 %v8000, %v8112
      %v8121 = vadd.f32 %v8001, %v8114
      %v8122 = vmax.f32 %v8116, 0.0
      %v8123 = vmax.f32 %v8117, 0.0
      %v8124 = vmax.f32 %v8118, 0.0
      %v8125 = vmax.f32 %v8119, 0.0
      %v8126 = vmax.f32 %v8120, 0.0
      %v8127 = vmax.f32 %v8121, 0.0
      %8129 = vset.pattern.permute.xlu0 0
      %8130 = vperm.xlu0 %8129, %v443
      %v8131 = vpop.permute.xlu0 %8130
      %8134 = vset.pattern.permute.xlu0 0
      %8135 = vperm.xlu0 %8134, %v444
      %v8136 = vpop.permute.xlu0 %8135
      %8139 = vset.pattern.permute.xlu0 0
      %8140 = vperm.xlu0 %8139, %v445
      %v8141 = vpop.permute.xlu0 %8140
      %v8143 = vmul.f32 %v8122, %v8131
      %v8144 = vmul.f32 %v8123, %v8131
      %v8145 = vmul.f32 %v8124, %v8136
      %v8146 = vmul.f32 %v8125, %v8136
      %v8147 = vmul.f32 %v8126, %v8141
      %v8148 = vmul.f32 %v8127, %v8141
      %8150 = vset.pattern.permute.xlu0 0
      %8151 = vperm.xlu0 %8150, %v457
      %v8152 = vpop.permute.xlu0 %8151
      %8155 = vset.pattern.permute.xlu0 0
      %8156 = vperm.xlu0 %8155, %v458
      %v8157 = vpop.permute.xlu0 %8156
      %8160 = vset.pattern.permute.xlu0 0
      %8161 = vperm.xlu0 %8160, %v459
      %v8162 = vpop.permute.xlu0 %8161
      %v8164 = vadd.f32 %v8143, %v8152
      %v8165 = vadd.f32 %v8144, %v8152
      %v8166 = vadd.f32 %v8145, %v8157
      %v8167 = vadd.f32 %v8146, %v8157
      %v8168 = vadd.f32 %v8147, %v8162
      %v8169 = vadd.f32 %v8148, %v8162
      %v8170 = vld [vmem:[%s5] sm:$0xff]
      %v8171 = vld [vmem:[%s5 + $0x8] sm:$0x3]
      %v8172 = vld [vmem:[%s5 + $0x10] sm:$0xff]
      %v8173 = vld [vmem:[%s5 + $0x18] sm:$0x3]
      %v8174 = vld [vmem:[%s5 + $0x20] sm:$0xff]
      %v8175 = vld [vmem:[%s5 + $0x28] sm:$0x3]
      %v8176 = vld [vmem:[%s5 + $0x30] sm:$0xff]
      %v8177 = vld [vmem:[%s5 + $0x38] sm:$0x3]
      %v8178 = vld [vmem:[%s5 + $0x40] sm:$0xff]
      %v8179 = vld [vmem:[%s5 + $0x48] sm:$0x3]
      %v8180 = vld [vmem:[%s5 + $0x50] sm:$0xff]
      %v8181 = vld [vmem:[%s5 + $0x58] sm:$0x3]
      %v8182 = vld [vmem:[%s5 + $0x60] sm:$0xff]
      %v8183 = vld [vmem:[%s5 + $0x68] sm:$0x3]
      %v8184 = vld [vmem:[%s5 + $0x70] sm:$0xff]
      %v8185 = vld [vmem:[%s5 + $0x78] sm:$0x3]
      %v8186 = vld [vmem:[%s5 + $0x80] sm:$0xff]
      %v8187 = vld [vmem:[%s5 + $0x88] sm:$0x3]
      %8188 = vst [vmem:[#allocation2 + $0x8] sm:$0xff] %v8164
      %8189 = vst [vmem:[#allocation2 + $0x10] sm:$0xff] %v8165
      %8190 = vst [vmem:[#allocation2 + $0x58] sm:$0xff] %v8166
      %8191 = vst [vmem:[#allocation2 + $0x60] sm:$0xff] %v8167
      %8192 = vst [vmem:[#allocation2 + $0xa8] sm:$0xf] %v8168
      %8193 = vst [vmem:[#allocation2 + $0xb0] sm:$0xf] %v8169
      %v8194 = vld [vmem:[#allocation2 + $0x8] sm:$0xff]
      %v8195 = vld [vmem:[#allocation2 + $0x10] sm:$0xff]
      %v8196 = vld [vmem:[#allocation2 + $0x58] sm:$0xff]
      %v8197 = vld [vmem:[#allocation2 + $0x60] sm:$0xff]
      %v8198 = vld [vmem:[#allocation2 + $0xa8] sm:$0xf]
      %v8199 = vld [vmem:[#allocation2 + $0xb0] sm:$0xf]
      %v8200 = vld [vmem:[#allocation2 + $0x18] sm:$0xff]
      %v8201 = vld [vmem:[#allocation2 + $0x68] sm:$0xff]
      %v8202 = vld [vmem:[#allocation2 + $0xb8] sm:$0xf]
      %8212 = vrot.lane.b32.xlu0 %v8194, 127
      %v8213 = vpop.permute.xlu0 %8212
      %8214 = vrot.lane.b32.xlu0 %v8195, 127
      %v8215 = vpop.permute.xlu0 %8214
      %8216 = vrot.lane.b32.xlu0 %v8200, 127
      %v8217 = vpop.permute.xlu0 %8216
      %8218 = vrot.lane.b32.xlu0 %v8196, 127
      %v8219 = vpop.permute.xlu0 %8218
      %8220 = vrot.lane.b32.xlu0 %v8197, 127
      %v8221 = vpop.permute.xlu0 %8220
      %8222 = vrot.lane.b32.xlu0 %v8201, 127
      %v8223 = vpop.permute.xlu0 %8222
      %8224 = vrot.lane.b32.xlu0 %v8198, 127
      %v8225 = vpop.permute.xlu0 %8224
      %8226 = vrot.lane.b32.xlu0 %v8199, 127
      %v8227 = vpop.permute.xlu0 %8226
      %8228 = vrot.lane.b32.xlu0 %v8202, 127
      %v8229 = vpop.permute.xlu0 %8228
      %v8230 = vsel %vm738, %v8213, %v8215
      %v8231 = vsel %vm738, %v8215, %v8217
      %v8232 = vsel %vm738, %v8219, %v8221
      %v8233 = vsel %vm738, %v8221, %v8223
      %v8234 = vsel %vm738, %v8225, %v8227
      %v8235 = vsel %vm738, %v8227, %v8229
      %v8241 = vsel %vm5818, %v8172, 0
      %v8244 = vsel %vm5818, %v8173, 0
      %v8246 = vsel %vm5825, %v8234, 0
      %v8248 = vsel %vm5825, %v8235, 0
      %8250 = vmatprep.subr.mxu0 0.0
      %8251 = vmatpush1.msra.mxu0 0.0
      %8252 = vmatprep.subr.mxu0 0.0
      %8253 = vmatpush1.msra.mxu0 0.0
      %8254 = vmatprep.subr.mxu0 0.0
      %8255 = vmatpush1.msra.mxu0 0.0
      %8256 = vmatprep.subr.mxu0 0.0
      %8257 = vmatpush1.msra.mxu0 0.0
      %8258 = vmatprep.subr.mxu0 0.0
      %8259 = vmatpush1.msra.mxu0 0.0
      %8260 = vmatprep.subr.mxu0 0.0
      %8261 = vmatpush1.msra.mxu0 0.0
      %8262 = vmatprep.subr.mxu0 0.0
      %8263 = vmatpush1.msra.mxu0 0.0
      %8264 = vmatprep.subr.mxu0 0.0
      %8265 = vmatpush1.msra.mxu0 0.0
      %8266 = vmatprep.subr.mxu0 0.0
      %8267 = vmatpush1.msra.mxu0 0.0
      %8268 = vmatprep.subr.mxu0 0.0
      %8269 = vmatpush1.msra.mxu0 0.0
      %8270 = vmatprep.subr.mxu0 0.0
      %8271 = vmatpush1.msra.mxu0 0.0
      %8272 = vmatprep.subr.mxu0 0.0
      %8273 = vmatpush1.msra.mxu0 0.0
      %8274 = vmatprep.subr.mxu0 0.0
      %8275 = vmatpush1.msra.mxu0 0.0
      %8276 = vmatprep.subr.mxu0 %v8248
      %8277 = vmatpush1.msra.mxu0 %v8246
      %8278 = vmatprep.subr.mxu0 %v8233
      %8279 = vmatpush1.msra.mxu0 %v8232
      %8280 = vmatprep.subr.mxu0 %v8231
      %8281 = vmatpush1.msra.mxu0 %v8230
      %8282 = vmatprep.subr.mxu0 0.0
      %8283 = vmatpush2.msra.mxu0 0.0
      %8284 = vmatprep.subr.mxu0 0.0
      %8285 = vmatpush2.msra.mxu0 0.0
      %8286 = vmatprep.subr.mxu0 0.0
      %8287 = vmatpush2.msra.mxu0 0.0
      %8288 = vmatprep.subr.mxu0 0.0
      %8289 = vmatpush2.msra.mxu0 0.0
      %8290 = vmatprep.subr.mxu0 0.0
      %8291 = vmatpush2.msra.mxu0 0.0
      %8292 = vmatprep.subr.mxu0 0.0
      %8293 = vmatpush2.msra.mxu0 0.0
      %8294 = vmatprep.subr.mxu0 0.0
      %8295 = vmatpush2.msra.mxu0 0.0
      %8296 = vmatprep.subr.mxu0 0.0
      %8297 = vmatpush2.msra.mxu0 0.0
      %8298 = vmatprep.subr.mxu0 0.0
      %8299 = vmatpush2.msra.mxu0 0.0
      %8300 = vmatprep.subr.mxu0 0.0
      %8301 = vmatpush2.msra.mxu0 0.0
      %8302 = vmatprep.subr.mxu0 0.0
      %8303 = vmatpush2.msra.mxu0 0.0
      %8304 = vmatprep.subr.mxu0 0.0
      %8305 = vmatpush2.msra.mxu0 0.0
      %8306 = vmatprep.subr.mxu0 0.0
      %8307 = vmatpush2.msra.mxu0 0.0
      %8308 = vmatprep.subr.mxu0 0.0
      %8309 = vmatpush2.msra.mxu0 0.0
      %8310 = vmatprep.subr.mxu0 0.0
      %8311 = vmatpush2.msra.mxu0 0.0
      %8312 = vmatprep.subr.mxu0 0.0
      %8313 = vmatpush2.msra.mxu0 0.0
      %8314 = vmatprep.mubr.f32.mxu0 0.0
      %8315 = vmatmul.mubr.f32.gmra.mxu0 %v8241
      %v8316 = vpop.f32.mrf.mxu0
      %v8317 = vadd.f32 0.0, %v8316
      %v8318 = vpop.f32.mrf.mxu0
      %v8319 = vadd.f32 0.0, %v8318
      %8320 = vmatprep.mubr.f32.mxu0 0.0
      %8321 = vmatmul.mubr.f32.gmra.mxu0 %v8244
      %v8322 = vpop.f32.mrf.mxu0
      %v8323 = vadd.f32 0.0, %v8322
      %v8324 = vpop.f32.mrf.mxu0
      %v8325 = vadd.f32 0.0, %v8324
      %8326 = vdwg.mxu0
      %v8328 = vsel %vm5818, %v8170, 0
      %v8331 = vsel %vm5818, %v8171, 0
      %v8333 = vsel %vm5825, %v8198, 0
      %v8335 = vsel %vm5825, %v8199, 0
      %8337 = vmatprep.subr.mxu0 0.0
      %8338 = vmatpush1.msra.mxu0 0.0
      %8339 = vmatprep.subr.mxu0 0.0
      %8340 = vmatpush1.msra.mxu0 0.0
      %8341 = vmatprep.subr.mxu0 0.0
      %8342 = vmatpush1.msra.mxu0 0.0
      %8343 = vmatprep.subr.mxu0 0.0
      %8344 = vmatpush1.msra.mxu0 0.0
      %8345 = vmatprep.subr.mxu0 0.0
      %8346 = vmatpush1.msra.mxu0 0.0
      %8347 = vmatprep.subr.mxu0 0.0
      %8348 = vmatpush1.msra.mxu0 0.0
      %8349 = vmatprep.subr.mxu0 0.0
      %8350 = vmatpush1.msra.mxu0 0.0
      %8351 = vmatprep.subr.mxu0 0.0
      %8352 = vmatpush1.msra.mxu0 0.0
      %8353 = vmatprep.subr.mxu0 0.0
      %8354 = vmatpush1.msra.mxu0 0.0
      %8355 = vmatprep.subr.mxu0 0.0
      %8356 = vmatpush1.msra.mxu0 0.0
      %8357 = vmatprep.subr.mxu0 0.0
      %8358 = vmatpush1.msra.mxu0 0.0
      %8359 = vmatprep.subr.mxu0 0.0
      %8360 = vmatpush1.msra.mxu0 0.0
      %8361 = vmatprep.subr.mxu0 0.0
      %8362 = vmatpush1.msra.mxu0 0.0
      %8363 = vmatprep.subr.mxu0 %v8335
      %8364 = vmatpush1.msra.mxu0 %v8333
      %8365 = vmatprep.subr.mxu0 %v8197
      %8366 = vmatpush1.msra.mxu0 %v8196
      %8367 = vmatprep.subr.mxu0 %v8195
      %8368 = vmatpush1.msra.mxu0 %v8194
      %8369 = vmatprep.subr.mxu0 0.0
      %8370 = vmatpush2.msra.mxu0 0.0
      %8371 = vmatprep.subr.mxu0 0.0
      %8372 = vmatpush2.msra.mxu0 0.0
      %8373 = vmatprep.subr.mxu0 0.0
      %8374 = vmatpush2.msra.mxu0 0.0
      %8375 = vmatprep.subr.mxu0 0.0
      %8376 = vmatpush2.msra.mxu0 0.0
      %8377 = vmatprep.subr.mxu0 0.0
      %8378 = vmatpush2.msra.mxu0 0.0
      %8379 = vmatprep.subr.mxu0 0.0
      %8380 = vmatpush2.msra.mxu0 0.0
      %8381 = vmatprep.subr.mxu0 0.0
      %8382 = vmatpush2.msra.mxu0 0.0
      %8383 = vmatprep.subr.mxu0 0.0
      %8384 = vmatpush2.msra.mxu0 0.0
      %8385 = vmatprep.subr.mxu0 0.0
      %8386 = vmatpush2.msra.mxu0 0.0
      %8387 = vmatprep.subr.mxu0 0.0
      %8388 = vmatpush2.msra.mxu0 0.0
      %8389 = vmatprep.subr.mxu0 0.0
      %8390 = vmatpush2.msra.mxu0 0.0
      %8391 = vmatprep.subr.mxu0 0.0
      %8392 = vmatpush2.msra.mxu0 0.0
      %8393 = vmatprep.subr.mxu0 0.0
      %8394 = vmatpush2.msra.mxu0 0.0
      %8395 = vmatprep.subr.mxu0 0.0
      %8396 = vmatpush2.msra.mxu0 0.0
      %8397 = vmatprep.subr.mxu0 0.0
      %8398 = vmatpush2.msra.mxu0 0.0
      %8399 = vmatprep.subr.mxu0 0.0
      %8400 = vmatpush2.msra.mxu0 0.0
      %8401 = vmatprep.mubr.f32.mxu0 0.0
      %8402 = vmatmul.mubr.f32.gmra.mxu0 %v8328
      %v8403 = vpop.f32.mrf.mxu0
      %v8404 = vadd.f32 %v8317, %v8403
      %v8405 = vpop.f32.mrf.mxu0
      %v8406 = vadd.f32 %v8319, %v8405
      %8407 = vmatprep.mubr.f32.mxu0 0.0
      %8408 = vmatmul.mubr.f32.gmra.mxu0 %v8331
      %v8409 = vpop.f32.mrf.mxu0
      %v8410 = vadd.f32 %v8323, %v8409
      %v8411 = vpop.f32.mrf.mxu0
      %v8412 = vadd.f32 %v8325, %v8411
      %8413 = vdwg.mxu0
      %8414 = vrot.lane.b32.xlu0 %v8194, 126
      %v8415 = vpop.permute.xlu0 %8414
      %8416 = vrot.lane.b32.xlu0 %v8195, 126
      %v8417 = vpop.permute.xlu0 %8416
      %8418 = vrot.lane.b32.xlu0 %v8200, 126
      %v8419 = vpop.permute.xlu0 %8418
      %8420 = vrot.lane.b32.xlu0 %v8196, 126
      %v8421 = vpop.permute.xlu0 %8420
      %8422 = vrot.lane.b32.xlu0 %v8197, 126
      %v8423 = vpop.permute.xlu0 %8422
      %8424 = vrot.lane.b32.xlu0 %v8201, 126
      %v8425 = vpop.permute.xlu0 %8424
      %8426 = vrot.lane.b32.xlu0 %v8198, 126
      %v8427 = vpop.permute.xlu0 %8426
      %8428 = vrot.lane.b32.xlu0 %v8199, 126
      %v8429 = vpop.permute.xlu0 %8428
      %8430 = vrot.lane.b32.xlu0 %v8202, 126
      %v8431 = vpop.permute.xlu0 %8430
      %v8432 = vsel %vm869, %v8415, %v8417
      %v8433 = vsel %vm869, %v8417, %v8419
      %v8434 = vsel %vm869, %v8421, %v8423
      %v8435 = vsel %vm869, %v8423, %v8425
      %v8436 = vsel %vm869, %v8427, %v8429
      %v8437 = vsel %vm869, %v8429, %v8431
      %v8443 = vsel %vm5818, %v8174, 0
      %v8446 = vsel %vm5818, %v8175, 0
      %v8448 = vsel %vm5825, %v8436, 0
      %v8450 = vsel %vm5825, %v8437, 0
      %8452 = vmatprep.subr.mxu0 0.0
      %8453 = vmatpush1.msra.mxu0 0.0
      %8454 = vmatprep.subr.mxu0 0.0
      %8455 = vmatpush1.msra.mxu0 0.0
      %8456 = vmatprep.subr.mxu0 0.0
      %8457 = vmatpush1.msra.mxu0 0.0
      %8458 = vmatprep.subr.mxu0 0.0
      %8459 = vmatpush1.msra.mxu0 0.0
      %8460 = vmatprep.subr.mxu0 0.0
      %8461 = vmatpush1.msra.mxu0 0.0
      %8462 = vmatprep.subr.mxu0 0.0
      %8463 = vmatpush1.msra.mxu0 0.0
      %8464 = vmatprep.subr.mxu0 0.0
      %8465 = vmatpush1.msra.mxu0 0.0
      %8466 = vmatprep.subr.mxu0 0.0
      %8467 = vmatpush1.msra.mxu0 0.0
      %8468 = vmatprep.subr.mxu0 0.0
      %8469 = vmatpush1.msra.mxu0 0.0
      %8470 = vmatprep.subr.mxu0 0.0
      %8471 = vmatpush1.msra.mxu0 0.0
      %8472 = vmatprep.subr.mxu0 0.0
      %8473 = vmatpush1.msra.mxu0 0.0
      %8474 = vmatprep.subr.mxu0 0.0
      %8475 = vmatpush1.msra.mxu0 0.0
      %8476 = vmatprep.subr.mxu0 0.0
      %8477 = vmatpush1.msra.mxu0 0.0
      %8478 = vmatprep.subr.mxu0 %v8450
      %8479 = vmatpush1.msra.mxu0 %v8448
      %8480 = vmatprep.subr.mxu0 %v8435
      %8481 = vmatpush1.msra.mxu0 %v8434
      %8482 = vmatprep.subr.mxu0 %v8433
      %8483 = vmatpush1.msra.mxu0 %v8432
      %8484 = vmatprep.subr.mxu0 0.0
      %8485 = vmatpush2.msra.mxu0 0.0
      %8486 = vmatprep.subr.mxu0 0.0
      %8487 = vmatpush2.msra.mxu0 0.0
      %8488 = vmatprep.subr.mxu0 0.0
      %8489 = vmatpush2.msra.mxu0 0.0
      %8490 = vmatprep.subr.mxu0 0.0
      %8491 = vmatpush2.msra.mxu0 0.0
      %8492 = vmatprep.subr.mxu0 0.0
      %8493 = vmatpush2.msra.mxu0 0.0
      %8494 = vmatprep.subr.mxu0 0.0
      %8495 = vmatpush2.msra.mxu0 0.0
      %8496 = vmatprep.subr.mxu0 0.0
      %8497 = vmatpush2.msra.mxu0 0.0
      %8498 = vmatprep.subr.mxu0 0.0
      %8499 = vmatpush2.msra.mxu0 0.0
      %8500 = vmatprep.subr.mxu0 0.0
      %8501 = vmatpush2.msra.mxu0 0.0
      %8502 = vmatprep.subr.mxu0 0.0
      %8503 = vmatpush2.msra.mxu0 0.0
      %8504 = vmatprep.subr.mxu0 0.0
      %8505 = vmatpush2.msra.mxu0 0.0
      %8506 = vmatprep.subr.mxu0 0.0
      %8507 = vmatpush2.msra.mxu0 0.0
      %8508 = vmatprep.subr.mxu0 0.0
      %8509 = vmatpush2.msra.mxu0 0.0
      %8510 = vmatprep.subr.mxu0 0.0
      %8511 = vmatpush2.msra.mxu0 0.0
      %8512 = vmatprep.subr.mxu0 0.0
      %8513 = vmatpush2.msra.mxu0 0.0
      %8514 = vmatprep.subr.mxu0 0.0
      %8515 = vmatpush2.msra.mxu0 0.0
      %8516 = vmatprep.mubr.f32.mxu0 0.0
      %8517 = vmatmul.mubr.f32.gmra.mxu0 %v8443
      %v8518 = vpop.f32.mrf.mxu0
      %v8519 = vadd.f32 0.0, %v8518
      %v8520 = vpop.f32.mrf.mxu0
      %v8521 = vadd.f32 0.0, %v8520
      %8522 = vmatprep.mubr.f32.mxu0 0.0
      %8523 = vmatmul.mubr.f32.gmra.mxu0 %v8446
      %v8524 = vpop.f32.mrf.mxu0
      %v8525 = vadd.f32 0.0, %v8524
      %v8526 = vpop.f32.mrf.mxu0
      %v8527 = vadd.f32 0.0, %v8526
      %8528 = vdwg.mxu0
      %v8529 = vadd.f32 %v8404, %v8519
      %v8530 = vadd.f32 %v8406, %v8521
      %v8531 = vadd.f32 %v8410, %v8525
      %v8532 = vadd.f32 %v8412, %v8527
      %8533 = vrot.lane.b32.xlu0 %v8194, 114
      %v8534 = vpop.permute.xlu0 %8533
      %8535 = vrot.lane.b32.xlu0 %v8195, 114
      %v8536 = vpop.permute.xlu0 %8535
      %8537 = vrot.lane.b32.xlu0 %v8200, 114
      %v8538 = vpop.permute.xlu0 %8537
      %8539 = vrot.lane.b32.xlu0 %v8196, 114
      %v8540 = vpop.permute.xlu0 %8539
      %8541 = vrot.lane.b32.xlu0 %v8197, 114
      %v8542 = vpop.permute.xlu0 %8541
      %8543 = vrot.lane.b32.xlu0 %v8201, 114
      %v8544 = vpop.permute.xlu0 %8543
      %8545 = vrot.lane.b32.xlu0 %v8198, 114
      %v8546 = vpop.permute.xlu0 %8545
      %8547 = vrot.lane.b32.xlu0 %v8199, 114
      %v8548 = vpop.permute.xlu0 %8547
      %8549 = vrot.lane.b32.xlu0 %v8202, 114
      %v8550 = vpop.permute.xlu0 %8549
      %v8551 = vsel %vm7411, %v8534, %v8536
      %v8552 = vsel %vm7411, %v8536, %v8538
      %v8553 = vsel %vm7411, %v8540, %v8542
      %v8554 = vsel %vm7411, %v8542, %v8544
      %v8555 = vsel %vm7411, %v8546, %v8548
      %v8556 = vsel %vm7411, %v8548, %v8550
      %v8562 = vsel %vm5818, %v8176, 0
      %v8565 = vsel %vm5818, %v8177, 0
      %v8567 = vsel %vm5825, %v8555, 0
      %v8569 = vsel %vm5825, %v8556, 0
      %8571 = vmatprep.subr.mxu0 0.0
      %8572 = vmatpush1.msra.mxu0 0.0
      %8573 = vmatprep.subr.mxu0 0.0
      %8574 = vmatpush1.msra.mxu0 0.0
      %8575 = vmatprep.subr.mxu0 0.0
      %8576 = vmatpush1.msra.mxu0 0.0
      %8577 = vmatprep.subr.mxu0 0.0
      %8578 = vmatpush1.msra.mxu0 0.0
      %8579 = vmatprep.subr.mxu0 0.0
      %8580 = vmatpush1.msra.mxu0 0.0
      %8581 = vmatprep.subr.mxu0 0.0
      %8582 = vmatpush1.msra.mxu0 0.0
      %8583 = vmatprep.subr.mxu0 0.0
      %8584 = vmatpush1.msra.mxu0 0.0
      %8585 = vmatprep.subr.mxu0 0.0
      %8586 = vmatpush1.msra.mxu0 0.0
      %8587 = vmatprep.subr.mxu0 0.0
      %8588 = vmatpush1.msra.mxu0 0.0
      %8589 = vmatprep.subr.mxu0 0.0
      %8590 = vmatpush1.msra.mxu0 0.0
      %8591 = vmatprep.subr.mxu0 0.0
      %8592 = vmatpush1.msra.mxu0 0.0
      %8593 = vmatprep.subr.mxu0 0.0
      %8594 = vmatpush1.msra.mxu0 0.0
      %8595 = vmatprep.subr.mxu0 0.0
      %8596 = vmatpush1.msra.mxu0 0.0
      %8597 = vmatprep.subr.mxu0 %v8569
      %8598 = vmatpush1.msra.mxu0 %v8567
      %8599 = vmatprep.subr.mxu0 %v8554
      %8600 = vmatpush1.msra.mxu0 %v8553
      %8601 = vmatprep.subr.mxu0 %v8552
      %8602 = vmatpush1.msra.mxu0 %v8551
      %8603 = vmatprep.subr.mxu0 0.0
      %8604 = vmatpush2.msra.mxu0 0.0
      %8605 = vmatprep.subr.mxu0 0.0
      %8606 = vmatpush2.msra.mxu0 0.0
      %8607 = vmatprep.subr.mxu0 0.0
      %8608 = vmatpush2.msra.mxu0 0.0
      %8609 = vmatprep.subr.mxu0 0.0
      %8610 = vmatpush2.msra.mxu0 0.0
      %8611 = vmatprep.subr.mxu0 0.0
      %8612 = vmatpush2.msra.mxu0 0.0
      %8613 = vmatprep.subr.mxu0 0.0
      %8614 = vmatpush2.msra.mxu0 0.0
      %8615 = vmatprep.subr.mxu0 0.0
      %8616 = vmatpush2.msra.mxu0 0.0
      %8617 = vmatprep.subr.mxu0 0.0
      %8618 = vmatpush2.msra.mxu0 0.0
      %8619 = vmatprep.subr.mxu0 0.0
      %8620 = vmatpush2.msra.mxu0 0.0
      %8621 = vmatprep.subr.mxu0 0.0
      %8622 = vmatpush2.msra.mxu0 0.0
      %8623 = vmatprep.subr.mxu0 0.0
      %8624 = vmatpush2.msra.mxu0 0.0
      %8625 = vmatprep.subr.mxu0 0.0
      %8626 = vmatpush2.msra.mxu0 0.0
      %8627 = vmatprep.subr.mxu0 0.0
      %8628 = vmatpush2.msra.mxu0 0.0
      %8629 = vmatprep.subr.mxu0 0.0
      %8630 = vmatpush2.msra.mxu0 0.0
      %8631 = vmatprep.subr.mxu0 0.0
      %8632 = vmatpush2.msra.mxu0 0.0
      %8633 = vmatprep.subr.mxu0 0.0
      %8634 = vmatpush2.msra.mxu0 0.0
      %8635 = vmatprep.mubr.f32.mxu0 0.0
      %8636 = vmatmul.mubr.f32.gmra.mxu0 %v8562
      %v8637 = vpop.f32.mrf.mxu0
      %v8638 = vadd.f32 0.0, %v8637
      %v8639 = vpop.f32.mrf.mxu0
      %v8640 = vadd.f32 0.0, %v8639
      %8641 = vmatprep.mubr.f32.mxu0 0.0
      %8642 = vmatmul.mubr.f32.gmra.mxu0 %v8565
      %v8643 = vpop.f32.mrf.mxu0
      %v8644 = vadd.f32 0.0, %v8643
      %v8645 = vpop.f32.mrf.mxu0
      %v8646 = vadd.f32 0.0, %v8645
      %8647 = vdwg.mxu0
      %v8648 = vadd.f32 %v8529, %v8638
      %v8649 = vadd.f32 %v8530, %v8640
      %v8650 = vadd.f32 %v8531, %v8644
      %v8651 = vadd.f32 %v8532, %v8646
      %8652 = vrot.lane.b32.xlu0 %v8194, 113
      %v8653 = vpop.permute.xlu0 %8652
      %8654 = vrot.lane.b32.xlu0 %v8195, 113
      %v8655 = vpop.permute.xlu0 %8654
      %8656 = vrot.lane.b32.xlu0 %v8200, 113
      %v8657 = vpop.permute.xlu0 %8656
      %8658 = vrot.lane.b32.xlu0 %v8196, 113
      %v8659 = vpop.permute.xlu0 %8658
      %8660 = vrot.lane.b32.xlu0 %v8197, 113
      %v8661 = vpop.permute.xlu0 %8660
      %8662 = vrot.lane.b32.xlu0 %v8201, 113
      %v8663 = vpop.permute.xlu0 %8662
      %8664 = vrot.lane.b32.xlu0 %v8198, 113
      %v8665 = vpop.permute.xlu0 %8664
      %8666 = vrot.lane.b32.xlu0 %v8199, 113
      %v8667 = vpop.permute.xlu0 %8666
      %8668 = vrot.lane.b32.xlu0 %v8202, 113
      %v8669 = vpop.permute.xlu0 %8668
      %v8670 = vsel %vm7532, %v8653, %v8655
      %v8671 = vsel %vm7532, %v8655, %v8657
      %v8672 = vsel %vm7532, %v8659, %v8661
      %v8673 = vsel %vm7532, %v8661, %v8663
      %v8674 = vsel %vm7532, %v8665, %v8667
      %v8675 = vsel %vm7532, %v8667, %v8669
      %v8681 = vsel %vm5818, %v8178, 0
      %v8684 = vsel %vm5818, %v8179, 0
      %v8686 = vsel %vm5825, %v8674, 0
      %v8688 = vsel %vm5825, %v8675, 0
      %8690 = vmatprep.subr.mxu0 0.0
      %8691 = vmatpush1.msra.mxu0 0.0
      %8692 = vmatprep.subr.mxu0 0.0
      %8693 = vmatpush1.msra.mxu0 0.0
      %8694 = vmatprep.subr.mxu0 0.0
      %8695 = vmatpush1.msra.mxu0 0.0
      %8696 = vmatprep.subr.mxu0 0.0
      %8697 = vmatpush1.msra.mxu0 0.0
      %8698 = vmatprep.subr.mxu0 0.0
      %8699 = vmatpush1.msra.mxu0 0.0
      %8700 = vmatprep.subr.mxu0 0.0
      %8701 = vmatpush1.msra.mxu0 0.0
      %8702 = vmatprep.subr.mxu0 0.0
      %8703 = vmatpush1.msra.mxu0 0.0
      %8704 = vmatprep.subr.mxu0 0.0
      %8705 = vmatpush1.msra.mxu0 0.0
      %8706 = vmatprep.subr.mxu0 0.0
      %8707 = vmatpush1.msra.mxu0 0.0
      %8708 = vmatprep.subr.mxu0 0.0
      %8709 = vmatpush1.msra.mxu0 0.0
      %8710 = vmatprep.subr.mxu0 0.0
      %8711 = vmatpush1.msra.mxu0 0.0
      %8712 = vmatprep.subr.mxu0 0.0
      %8713 = vmatpush1.msra.mxu0 0.0
      %8714 = vmatprep.subr.mxu0 0.0
      %8715 = vmatpush1.msra.mxu0 0.0
      %8716 = vmatprep.subr.mxu0 %v8688
      %8717 = vmatpush1.msra.mxu0 %v8686
      %8718 = vmatprep.subr.mxu0 %v8673
      %8719 = vmatpush1.msra.mxu0 %v8672
      %8720 = vmatprep.subr.mxu0 %v8671
      %8721 = vmatpush1.msra.mxu0 %v8670
      %8722 = vmatprep.subr.mxu0 0.0
      %8723 = vmatpush2.msra.mxu0 0.0
      %8724 = vmatprep.subr.mxu0 0.0
      %8725 = vmatpush2.msra.mxu0 0.0
      %8726 = vmatprep.subr.mxu0 0.0
      %8727 = vmatpush2.msra.mxu0 0.0
      %8728 = vmatprep.subr.mxu0 0.0
      %8729 = vmatpush2.msra.mxu0 0.0
      %8730 = vmatprep.subr.mxu0 0.0
      %8731 = vmatpush2.msra.mxu0 0.0
      %8732 = vmatprep.subr.mxu0 0.0
      %8733 = vmatpush2.msra.mxu0 0.0
      %8734 = vmatprep.subr.mxu0 0.0
      %8735 = vmatpush2.msra.mxu0 0.0
      %8736 = vmatprep.subr.mxu0 0.0
      %8737 = vmatpush2.msra.mxu0 0.0
      %8738 = vmatprep.subr.mxu0 0.0
      %8739 = vmatpush2.msra.mxu0 0.0
      %8740 = vmatprep.subr.mxu0 0.0
      %8741 = vmatpush2.msra.mxu0 0.0
      %8742 = vmatprep.subr.mxu0 0.0
      %8743 = vmatpush2.msra.mxu0 0.0
      %8744 = vmatprep.subr.mxu0 0.0
      %8745 = vmatpush2.msra.mxu0 0.0
      %8746 = vmatprep.subr.mxu0 0.0
      %8747 = vmatpush2.msra.mxu0 0.0
      %8748 = vmatprep.subr.mxu0 0.0
      %8749 = vmatpush2.msra.mxu0 0.0
      %8750 = vmatprep.subr.mxu0 0.0
      %8751 = vmatpush2.msra.mxu0 0.0
      %8752 = vmatprep.subr.mxu0 0.0
      %8753 = vmatpush2.msra.mxu0 0.0
      %8754 = vmatprep.mubr.f32.mxu0 0.0
      %8755 = vmatmul.mubr.f32.gmra.mxu0 %v8681
      %v8756 = vpop.f32.mrf.mxu0
      %v8757 = vadd.f32 0.0, %v8756
      %v8758 = vpop.f32.mrf.mxu0
      %v8759 = vadd.f32 0.0, %v8758
      %8760 = vmatprep.mubr.f32.mxu0 0.0
      %8761 = vmatmul.mubr.f32.gmra.mxu0 %v8684
      %v8762 = vpop.f32.mrf.mxu0
      %v8763 = vadd.f32 0.0, %v8762
      %v8764 = vpop.f32.mrf.mxu0
      %v8765 = vadd.f32 0.0, %v8764
      %8766 = vdwg.mxu0
      %v8767 = vadd.f32 %v8648, %v8757
      %v8768 = vadd.f32 %v8649, %v8759
      %v8769 = vadd.f32 %v8650, %v8763
      %v8770 = vadd.f32 %v8651, %v8765
      %8771 = vrot.lane.b32.xlu0 %v8194, 112
      %v8772 = vpop.permute.xlu0 %8771
      %8773 = vrot.lane.b32.xlu0 %v8195, 112
      %v8774 = vpop.permute.xlu0 %8773
      %8775 = vrot.lane.b32.xlu0 %v8200, 112
      %v8776 = vpop.permute.xlu0 %8775
      %8777 = vrot.lane.b32.xlu0 %v8196, 112
      %v8778 = vpop.permute.xlu0 %8777
      %8779 = vrot.lane.b32.xlu0 %v8197, 112
      %v8780 = vpop.permute.xlu0 %8779
      %8781 = vrot.lane.b32.xlu0 %v8201, 112
      %v8782 = vpop.permute.xlu0 %8781
      %8783 = vrot.lane.b32.xlu0 %v8198, 112
      %v8784 = vpop.permute.xlu0 %8783
      %8785 = vrot.lane.b32.xlu0 %v8199, 112
      %v8786 = vpop.permute.xlu0 %8785
      %8787 = vrot.lane.b32.xlu0 %v8202, 112
      %v8788 = vpop.permute.xlu0 %8787
      %v8789 = vsel %vm7653, %v8772, %v8774
      %v8790 = vsel %vm7653, %v8774, %v8776
      %v8791 = vsel %vm7653, %v8778, %v8780
      %v8792 = vsel %vm7653, %v8780, %v8782
      %v8793 = vsel %vm7653, %v8784, %v8786
      %v8794 = vsel %vm7653, %v8786, %v8788
      %v8800 = vsel %vm5818, %v8180, 0
      %v8803 = vsel %vm5818, %v8181, 0
      %v8805 = vsel %vm5825, %v8793, 0
      %v8807 = vsel %vm5825, %v8794, 0
      %8809 = vmatprep.subr.mxu0 0.0
      %8810 = vmatpush1.msra.mxu0 0.0
      %8811 = vmatprep.subr.mxu0 0.0
      %8812 = vmatpush1.msra.mxu0 0.0
      %8813 = vmatprep.subr.mxu0 0.0
      %8814 = vmatpush1.msra.mxu0 0.0
      %8815 = vmatprep.subr.mxu0 0.0
      %8816 = vmatpush1.msra.mxu0 0.0
      %8817 = vmatprep.subr.mxu0 0.0
      %8818 = vmatpush1.msra.mxu0 0.0
      %8819 = vmatprep.subr.mxu0 0.0
      %8820 = vmatpush1.msra.mxu0 0.0
      %8821 = vmatprep.subr.mxu0 0.0
      %8822 = vmatpush1.msra.mxu0 0.0
      %8823 = vmatprep.subr.mxu0 0.0
      %8824 = vmatpush1.msra.mxu0 0.0
      %8825 = vmatprep.subr.mxu0 0.0
      %8826 = vmatpush1.msra.mxu0 0.0
      %8827 = vmatprep.subr.mxu0 0.0
      %8828 = vmatpush1.msra.mxu0 0.0
      %8829 = vmatprep.subr.mxu0 0.0
      %8830 = vmatpush1.msra.mxu0 0.0
      %8831 = vmatprep.subr.mxu0 0.0
      %8832 = vmatpush1.msra.mxu0 0.0
      %8833 = vmatprep.subr.mxu0 0.0
      %8834 = vmatpush1.msra.mxu0 0.0
      %8835 = vmatprep.subr.mxu0 %v8807
      %8836 = vmatpush1.msra.mxu0 %v8805
      %8837 = vmatprep.subr.mxu0 %v8792
      %8838 = vmatpush1.msra.mxu0 %v8791
      %8839 = vmatprep.subr.mxu0 %v8790
      %8840 = vmatpush1.msra.mxu0 %v8789
      %8841 = vmatprep.subr.mxu0 0.0
      %8842 = vmatpush2.msra.mxu0 0.0
      %8843 = vmatprep.subr.mxu0 0.0
      %8844 = vmatpush2.msra.mxu0 0.0
      %8845 = vmatprep.subr.mxu0 0.0
      %8846 = vmatpush2.msra.mxu0 0.0
      %8847 = vmatprep.subr.mxu0 0.0
      %8848 = vmatpush2.msra.mxu0 0.0
      %8849 = vmatprep.subr.mxu0 0.0
      %8850 = vmatpush2.msra.mxu0 0.0
      %8851 = vmatprep.subr.mxu0 0.0
      %8852 = vmatpush2.msra.mxu0 0.0
      %8853 = vmatprep.subr.mxu0 0.0
      %8854 = vmatpush2.msra.mxu0 0.0
      %8855 = vmatprep.subr.mxu0 0.0
      %8856 = vmatpush2.msra.mxu0 0.0
      %8857 = vmatprep.subr.mxu0 0.0
      %8858 = vmatpush2.msra.mxu0 0.0
      %8859 = vmatprep.subr.mxu0 0.0
      %8860 = vmatpush2.msra.mxu0 0.0
      %8861 = vmatprep.subr.mxu0 0.0
      %8862 = vmatpush2.msra.mxu0 0.0
      %8863 = vmatprep.subr.mxu0 0.0
      %8864 = vmatpush2.msra.mxu0 0.0
      %8865 = vmatprep.subr.mxu0 0.0
      %8866 = vmatpush2.msra.mxu0 0.0
      %8867 = vmatprep.subr.mxu0 0.0
      %8868 = vmatpush2.msra.mxu0 0.0
      %8869 = vmatprep.subr.mxu0 0.0
      %8870 = vmatpush2.msra.mxu0 0.0
      %8871 = vmatprep.subr.mxu0 0.0
      %8872 = vmatpush2.msra.mxu0 0.0
      %8873 = vmatprep.mubr.f32.mxu0 0.0
      %8874 = vmatmul.mubr.f32.gmra.mxu0 %v8800
      %v8875 = vpop.f32.mrf.mxu0
      %v8876 = vadd.f32 0.0, %v8875
      %v8877 = vpop.f32.mrf.mxu0
      %v8878 = vadd.f32 0.0, %v8877
      %8879 = vmatprep.mubr.f32.mxu0 0.0
      %8880 = vmatmul.mubr.f32.gmra.mxu0 %v8803
      %v8881 = vpop.f32.mrf.mxu0
      %v8882 = vadd.f32 0.0, %v8881
      %v8883 = vpop.f32.mrf.mxu0
      %v8884 = vadd.f32 0.0, %v8883
      %8885 = vdwg.mxu0
      %v8886 = vadd.f32 %v8767, %v8876
      %v8887 = vadd.f32 %v8768, %v8878
      %v8888 = vadd.f32 %v8769, %v8882
      %v8889 = vadd.f32 %v8770, %v8884
      %8890 = vrot.lane.b32.xlu0 %v8194, 100
      %v8891 = vpop.permute.xlu0 %8890
      %8892 = vrot.lane.b32.xlu0 %v8195, 100
      %v8893 = vpop.permute.xlu0 %8892
      %8894 = vrot.lane.b32.xlu0 %v8200, 100
      %v8895 = vpop.permute.xlu0 %8894
      %8896 = vrot.lane.b32.xlu0 %v8196, 100
      %v8897 = vpop.permute.xlu0 %8896
      %8898 = vrot.lane.b32.xlu0 %v8197, 100
      %v8899 = vpop.permute.xlu0 %8898
      %8900 = vrot.lane.b32.xlu0 %v8201, 100
      %v8901 = vpop.permute.xlu0 %8900
      %8902 = vrot.lane.b32.xlu0 %v8198, 100
      %v8903 = vpop.permute.xlu0 %8902
      %8904 = vrot.lane.b32.xlu0 %v8199, 100
      %v8905 = vpop.permute.xlu0 %8904
      %8906 = vrot.lane.b32.xlu0 %v8202, 100
      %v8907 = vpop.permute.xlu0 %8906
      %v8908 = vsel %vm1000, %v8891, %v8893
      %v8909 = vsel %vm1000, %v8893, %v8895
      %v8910 = vsel %vm1000, %v8897, %v8899
      %v8911 = vsel %vm1000, %v8899, %v8901
      %v8912 = vsel %vm1000, %v8903, %v8905
      %v8913 = vsel %vm1000, %v8905, %v8907
      %v8919 = vsel %vm5818, %v8182, 0
      %v8922 = vsel %vm5818, %v8183, 0
      %v8924 = vsel %vm5825, %v8912, 0
      %v8926 = vsel %vm5825, %v8913, 0
      %8928 = vmatprep.subr.mxu0 0.0
      %8929 = vmatpush1.msra.mxu0 0.0
      %8930 = vmatprep.subr.mxu0 0.0
      %8931 = vmatpush1.msra.mxu0 0.0
      %8932 = vmatprep.subr.mxu0 0.0
      %8933 = vmatpush1.msra.mxu0 0.0
      %8934 = vmatprep.subr.mxu0 0.0
      %8935 = vmatpush1.msra.mxu0 0.0
      %8936 = vmatprep.subr.mxu0 0.0
      %8937 = vmatpush1.msra.mxu0 0.0
      %8938 = vmatprep.subr.mxu0 0.0
      %8939 = vmatpush1.msra.mxu0 0.0
      %8940 = vmatprep.subr.mxu0 0.0
      %8941 = vmatpush1.msra.mxu0 0.0
      %8942 = vmatprep.subr.mxu0 0.0
      %8943 = vmatpush1.msra.mxu0 0.0
      %8944 = vmatprep.subr.mxu0 0.0
      %8945 = vmatpush1.msra.mxu0 0.0
      %8946 = vmatprep.subr.mxu0 0.0
      %8947 = vmatpush1.msra.mxu0 0.0
      %8948 = vmatprep.subr.mxu0 0.0
      %8949 = vmatpush1.msra.mxu0 0.0
      %8950 = vmatprep.subr.mxu0 0.0
      %8951 = vmatpush1.msra.mxu0 0.0
      %8952 = vmatprep.subr.mxu0 0.0
      %8953 = vmatpush1.msra.mxu0 0.0
      %8954 = vmatprep.subr.mxu0 %v8926
      %8955 = vmatpush1.msra.mxu0 %v8924
      %8956 = vmatprep.subr.mxu0 %v8911
      %8957 = vmatpush1.msra.mxu0 %v8910
      %8958 = vmatprep.subr.mxu0 %v8909
      %8959 = vmatpush1.msra.mxu0 %v8908
      %8960 = vmatprep.subr.mxu0 0.0
      %8961 = vmatpush2.msra.mxu0 0.0
      %8962 = vmatprep.subr.mxu0 0.0
      %8963 = vmatpush2.msra.mxu0 0.0
      %8964 = vmatprep.subr.mxu0 0.0
      %8965 = vmatpush2.msra.mxu0 0.0
      %8966 = vmatprep.subr.mxu0 0.0
      %8967 = vmatpush2.msra.mxu0 0.0
      %8968 = vmatprep.subr.mxu0 0.0
      %8969 = vmatpush2.msra.mxu0 0.0
      %8970 = vmatprep.subr.mxu0 0.0
      %8971 = vmatpush2.msra.mxu0 0.0
      %8972 = vmatprep.subr.mxu0 0.0
      %8973 = vmatpush2.msra.mxu0 0.0
      %8974 = vmatprep.subr.mxu0 0.0
      %8975 = vmatpush2.msra.mxu0 0.0
      %8976 = vmatprep.subr.mxu0 0.0
      %8977 = vmatpush2.msra.mxu0 0.0
      %8978 = vmatprep.subr.mxu0 0.0
      %8979 = vmatpush2.msra.mxu0 0.0
      %8980 = vmatprep.subr.mxu0 0.0
      %8981 = vmatpush2.msra.mxu0 0.0
      %8982 = vmatprep.subr.mxu0 0.0
      %8983 = vmatpush2.msra.mxu0 0.0
      %8984 = vmatprep.subr.mxu0 0.0
      %8985 = vmatpush2.msra.mxu0 0.0
      %8986 = vmatprep.subr.mxu0 0.0
      %8987 = vmatpush2.msra.mxu0 0.0
      %8988 = vmatprep.subr.mxu0 0.0
      %8989 = vmatpush2.msra.mxu0 0.0
      %8990 = vmatprep.subr.mxu0 0.0
      %8991 = vmatpush2.msra.mxu0 0.0
      %8992 = vmatprep.mubr.f32.mxu0 0.0
      %8993 = vmatmul.mubr.f32.gmra.mxu0 %v8919
      %v8994 = vpop.f32.mrf.mxu0
      %v8995 = vadd.f32 0.0, %v8994
      %v8996 = vpop.f32.mrf.mxu0
      %v8997 = vadd.f32 0.0, %v8996
      %8998 = vmatprep.mubr.f32.mxu0 0.0
      %8999 = vmatmul.mubr.f32.gmra.mxu0 %v8922
      %v9000 = vpop.f32.mrf.mxu0
      %v9001 = vadd.f32 0.0, %v9000
      %v9002 = vpop.f32.mrf.mxu0
      %v9003 = vadd.f32 0.0, %v9002
      %9004 = vdwg.mxu0
      %v9005 = vadd.f32 %v8886, %v8995
      %v9006 = vadd.f32 %v8887, %v8997
      %v9007 = vadd.f32 %v8888, %v9001
      %v9008 = vadd.f32 %v8889, %v9003
      %9009 = vrot.lane.b32.xlu0 %v8194, 99
      %v9010 = vpop.permute.xlu0 %9009
      %9011 = vrot.lane.b32.xlu0 %v8195, 99
      %v9012 = vpop.permute.xlu0 %9011
      %9013 = vrot.lane.b32.xlu0 %v8200, 99
      %v9014 = vpop.permute.xlu0 %9013
      %9015 = vrot.lane.b32.xlu0 %v8196, 99
      %v9016 = vpop.permute.xlu0 %9015
      %9017 = vrot.lane.b32.xlu0 %v8197, 99
      %v9018 = vpop.permute.xlu0 %9017
      %9019 = vrot.lane.b32.xlu0 %v8201, 99
      %v9020 = vpop.permute.xlu0 %9019
      %9021 = vrot.lane.b32.xlu0 %v8198, 99
      %v9022 = vpop.permute.xlu0 %9021
      %9023 = vrot.lane.b32.xlu0 %v8199, 99
      %v9024 = vpop.permute.xlu0 %9023
      %9025 = vrot.lane.b32.xlu0 %v8202, 99
      %v9026 = vpop.permute.xlu0 %9025
      %v9027 = vsel %vm1131, %v9010, %v9012
      %v9028 = vsel %vm1131, %v9012, %v9014
      %v9029 = vsel %vm1131, %v9016, %v9018
      %v9030 = vsel %vm1131, %v9018, %v9020
      %v9031 = vsel %vm1131, %v9022, %v9024
      %v9032 = vsel %vm1131, %v9024, %v9026
      %v9038 = vsel %vm5818, %v8184, 0
      %v9041 = vsel %vm5818, %v8185, 0
      %v9043 = vsel %vm5825, %v9031, 0
      %v9045 = vsel %vm5825, %v9032, 0
      %9047 = vmatprep.subr.mxu0 0.0
      %9048 = vmatpush1.msra.mxu0 0.0
      %9049 = vmatprep.subr.mxu0 0.0
      %9050 = vmatpush1.msra.mxu0 0.0
      %9051 = vmatprep.subr.mxu0 0.0
      %9052 = vmatpush1.msra.mxu0 0.0
      %9053 = vmatprep.subr.mxu0 0.0
      %9054 = vmatpush1.msra.mxu0 0.0
      %9055 = vmatprep.subr.mxu0 0.0
      %9056 = vmatpush1.msra.mxu0 0.0
      %9057 = vmatprep.subr.mxu0 0.0
      %9058 = vmatpush1.msra.mxu0 0.0
      %9059 = vmatprep.subr.mxu0 0.0
      %9060 = vmatpush1.msra.mxu0 0.0
      %9061 = vmatprep.subr.mxu0 0.0
      %9062 = vmatpush1.msra.mxu0 0.0
      %9063 = vmatprep.subr.mxu0 0.0
      %9064 = vmatpush1.msra.mxu0 0.0
      %9065 = vmatprep.subr.mxu0 0.0
      %9066 = vmatpush1.msra.mxu0 0.0
      %9067 = vmatprep.subr.mxu0 0.0
      %9068 = vmatpush1.msra.mxu0 0.0
      %9069 = vmatprep.subr.mxu0 0.0
      %9070 = vmatpush1.msra.mxu0 0.0
      %9071 = vmatprep.subr.mxu0 0.0
      %9072 = vmatpush1.msra.mxu0 0.0
      %9073 = vmatprep.subr.mxu0 %v9045
      %9074 = vmatpush1.msra.mxu0 %v9043
      %9075 = vmatprep.subr.mxu0 %v9030
      %9076 = vmatpush1.msra.mxu0 %v9029
      %9077 = vmatprep.subr.mxu0 %v9028
      %9078 = vmatpush1.msra.mxu0 %v9027
      %9079 = vmatprep.subr.mxu0 0.0
      %9080 = vmatpush2.msra.mxu0 0.0
      %9081 = vmatprep.subr.mxu0 0.0
      %9082 = vmatpush2.msra.mxu0 0.0
      %9083 = vmatprep.subr.mxu0 0.0
      %9084 = vmatpush2.msra.mxu0 0.0
      %9085 = vmatprep.subr.mxu0 0.0
      %9086 = vmatpush2.msra.mxu0 0.0
      %9087 = vmatprep.subr.mxu0 0.0
      %9088 = vmatpush2.msra.mxu0 0.0
      %9089 = vmatprep.subr.mxu0 0.0
      %9090 = vmatpush2.msra.mxu0 0.0
      %9091 = vmatprep.subr.mxu0 0.0
      %9092 = vmatpush2.msra.mxu0 0.0
      %9093 = vmatprep.subr.mxu0 0.0
      %9094 = vmatpush2.msra.mxu0 0.0
      %9095 = vmatprep.subr.mxu0 0.0
      %9096 = vmatpush2.msra.mxu0 0.0
      %9097 = vmatprep.subr.mxu0 0.0
      %9098 = vmatpush2.msra.mxu0 0.0
      %9099 = vmatprep.subr.mxu0 0.0
      %9100 = vmatpush2.msra.mxu0 0.0
      %9101 = vmatprep.subr.mxu0 0.0
      %9102 = vmatpush2.msra.mxu0 0.0
      %9103 = vmatprep.subr.mxu0 0.0
      %9104 = vmatpush2.msra.mxu0 0.0
      %9105 = vmatprep.subr.mxu0 0.0
      %9106 = vmatpush2.msra.mxu0 0.0
      %9107 = vmatprep.subr.mxu0 0.0
      %9108 = vmatpush2.msra.mxu0 0.0
      %9109 = vmatprep.subr.mxu0 0.0
      %9110 = vmatpush2.msra.mxu0 0.0
      %9111 = vmatprep.mubr.f32.mxu0 0.0
      %9112 = vmatmul.mubr.f32.gmra.mxu0 %v9038
      %v9113 = vpop.f32.mrf.mxu0
      %v9114 = vadd.f32 0.0, %v9113
      %v9115 = vpop.f32.mrf.mxu0
      %v9116 = vadd.f32 0.0, %v9115
      %9117 = vmatprep.mubr.f32.mxu0 0.0
      %9118 = vmatmul.mubr.f32.gmra.mxu0 %v9041
      %v9119 = vpop.f32.mrf.mxu0
      %v9120 = vadd.f32 0.0, %v9119
      %v9121 = vpop.f32.mrf.mxu0
      %v9122 = vadd.f32 0.0, %v9121
      %9123 = vdwg.mxu0
      %v9124 = vadd.f32 %v9005, %v9114
      %v9125 = vadd.f32 %v9006, %v9116
      %v9126 = vadd.f32 %v9007, %v9120
      %v9127 = vadd.f32 %v9008, %v9122
      %9128 = vrot.lane.b32.xlu0 %v8194, 98
      %v9129 = vpop.permute.xlu0 %9128
      %9130 = vrot.lane.b32.xlu0 %v8195, 98
      %v9131 = vpop.permute.xlu0 %9130
      %9132 = vrot.lane.b32.xlu0 %v8200, 98
      %v9133 = vpop.permute.xlu0 %9132
      %9134 = vrot.lane.b32.xlu0 %v8196, 98
      %v9135 = vpop.permute.xlu0 %9134
      %9136 = vrot.lane.b32.xlu0 %v8197, 98
      %v9137 = vpop.permute.xlu0 %9136
      %9138 = vrot.lane.b32.xlu0 %v8201, 98
      %v9139 = vpop.permute.xlu0 %9138
      %9140 = vrot.lane.b32.xlu0 %v8198, 98
      %v9141 = vpop.permute.xlu0 %9140
      %9142 = vrot.lane.b32.xlu0 %v8199, 98
      %v9143 = vpop.permute.xlu0 %9142
      %9144 = vrot.lane.b32.xlu0 %v8202, 98
      %v9145 = vpop.permute.xlu0 %9144
      %v9146 = vsel %vm1262, %v9129, %v9131
      %v9147 = vsel %vm1262, %v9131, %v9133
      %v9148 = vsel %vm1262, %v9135, %v9137
      %v9149 = vsel %vm1262, %v9137, %v9139
      %v9150 = vsel %vm1262, %v9141, %v9143
      %v9151 = vsel %vm1262, %v9143, %v9145
      %v9157 = vsel %vm5818, %v8186, 0
      %v9160 = vsel %vm5818, %v8187, 0
      %v9162 = vsel %vm5825, %v9150, 0
      %v9164 = vsel %vm5825, %v9151, 0
      %9166 = vmatprep.subr.mxu0 0.0
      %9167 = vmatpush1.msra.mxu0 0.0
      %9168 = vmatprep.subr.mxu0 0.0
      %9169 = vmatpush1.msra.mxu0 0.0
      %9170 = vmatprep.subr.mxu0 0.0
      %9171 = vmatpush1.msra.mxu0 0.0
      %9172 = vmatprep.subr.mxu0 0.0
      %9173 = vmatpush1.msra.mxu0 0.0
      %9174 = vmatprep.subr.mxu0 0.0
      %9175 = vmatpush1.msra.mxu0 0.0
      %9176 = vmatprep.subr.mxu0 0.0
      %9177 = vmatpush1.msra.mxu0 0.0
      %9178 = vmatprep.subr.mxu0 0.0
      %9179 = vmatpush1.msra.mxu0 0.0
      %9180 = vmatprep.subr.mxu0 0.0
      %9181 = vmatpush1.msra.mxu0 0.0
      %9182 = vmatprep.subr.mxu0 0.0
      %9183 = vmatpush1.msra.mxu0 0.0
      %9184 = vmatprep.subr.mxu0 0.0
      %9185 = vmatpush1.msra.mxu0 0.0
      %9186 = vmatprep.subr.mxu0 0.0
      %9187 = vmatpush1.msra.mxu0 0.0
      %9188 = vmatprep.subr.mxu0 0.0
      %9189 = vmatpush1.msra.mxu0 0.0
      %9190 = vmatprep.subr.mxu0 0.0
      %9191 = vmatpush1.msra.mxu0 0.0
      %9192 = vmatprep.subr.mxu0 %v9164
      %9193 = vmatpush1.msra.mxu0 %v9162
      %9194 = vmatprep.subr.mxu0 %v9149
      %9195 = vmatpush1.msra.mxu0 %v9148
      %9196 = vmatprep.subr.mxu0 %v9147
      %9197 = vmatpush1.msra.mxu0 %v9146
      %9198 = vmatprep.subr.mxu0 0.0
      %9199 = vmatpush2.msra.mxu0 0.0
      %9200 = vmatprep.subr.mxu0 0.0
      %9201 = vmatpush2.msra.mxu0 0.0
      %9202 = vmatprep.subr.mxu0 0.0
      %9203 = vmatpush2.msra.mxu0 0.0
      %9204 = vmatprep.subr.mxu0 0.0
      %9205 = vmatpush2.msra.mxu0 0.0
      %9206 = vmatprep.subr.mxu0 0.0
      %9207 = vmatpush2.msra.mxu0 0.0
      %9208 = vmatprep.subr.mxu0 0.0
      %9209 = vmatpush2.msra.mxu0 0.0
      %9210 = vmatprep.subr.mxu0 0.0
      %9211 = vmatpush2.msra.mxu0 0.0
      %9212 = vmatprep.subr.mxu0 0.0
      %9213 = vmatpush2.msra.mxu0 0.0
      %9214 = vmatprep.subr.mxu0 0.0
      %9215 = vmatpush2.msra.mxu0 0.0
      %9216 = vmatprep.subr.mxu0 0.0
      %9217 = vmatpush2.msra.mxu0 0.0
      %9218 = vmatprep.subr.mxu0 0.0
      %9219 = vmatpush2.msra.mxu0 0.0
      %9220 = vmatprep.subr.mxu0 0.0
      %9221 = vmatpush2.msra.mxu0 0.0
      %9222 = vmatprep.subr.mxu0 0.0
      %9223 = vmatpush2.msra.mxu0 0.0
      %9224 = vmatprep.subr.mxu0 0.0
      %9225 = vmatpush2.msra.mxu0 0.0
      %9226 = vmatprep.subr.mxu0 0.0
      %9227 = vmatpush2.msra.mxu0 0.0
      %9228 = vmatprep.subr.mxu0 0.0
      %9229 = vmatpush2.msra.mxu0 0.0
      %9230 = vmatprep.mubr.f32.mxu0 0.0
      %9231 = vmatmul.mubr.f32.gmra.mxu0 %v9157
      %v9232 = vpop.f32.mrf.mxu0
      %v9233 = vadd.f32 0.0, %v9232
      %v9234 = vpop.f32.mrf.mxu0
      %v9235 = vadd.f32 0.0, %v9234
      %9236 = vmatprep.mubr.f32.mxu0 0.0
      %9237 = vmatmul.mubr.f32.gmra.mxu0 %v9160
      %v9238 = vpop.f32.mrf.mxu0
      %v9239 = vadd.f32 0.0, %v9238
      %v9240 = vpop.f32.mrf.mxu0
      %v9241 = vadd.f32 0.0, %v9240
      %9242 = vdwg.mxu0
      %v9243 = vadd.f32 %v9124, %v9233
      %v9244 = vadd.f32 %v9125, %v9235
      %v9245 = vadd.f32 %v9126, %v9239
      %v9246 = vadd.f32 %v9127, %v9241
      %v9247 = vmax.f32 %v9243, 0.0
      %v9248 = vmax.f32 %v9244, 0.0
      %v9249 = vmax.f32 %v9245, 0.0
      %v9250 = vmax.f32 %v9246, 0.0
      %9252 = vset.pattern.permute.xlu0 0
      %9253 = vperm.xlu0 %9252, %v446
      %v9254 = vpop.permute.xlu0 %9253
      %9257 = vset.pattern.permute.xlu0 0
      %9258 = vperm.xlu0 %9257, %v447
      %v9259 = vpop.permute.xlu0 %9258
      %v9261 = vmul.f32 %v9247, %v9254
      %v9262 = vmul.f32 %v9248, %v9254
      %v9263 = vmul.f32 %v9249, %v9259
      %v9264 = vmul.f32 %v9250, %v9259
      %9266 = vset.pattern.permute.xlu0 0
      %9267 = vperm.xlu0 %9266, %v460
      %v9268 = vpop.permute.xlu0 %9267
      %9271 = vset.pattern.permute.xlu0 0
      %9272 = vperm.xlu0 %9271, %v461
      %v9273 = vpop.permute.xlu0 %9272
      %v9275 = vadd.f32 %v9261, %v9268
      %v9276 = vadd.f32 %v9262, %v9268
      %v9277 = vadd.f32 %v9263, %v9273
      %v9278 = vadd.f32 %v9264, %v9273
      %v9279 = vld [vmem:[%s6] sm:$0xff]
      %v9280 = vld [vmem:[%s6 + $0x8] sm:$0x3]
      %v9281 = vld [vmem:[%s6 + $0x10] sm:$0xff]
      %v9282 = vld [vmem:[%s6 + $0x18] sm:$0x3]
      %v9283 = vld [vmem:[%s6 + $0x20] sm:$0xff]
      %v9284 = vld [vmem:[%s6 + $0x28] sm:$0x3]
      %v9285 = vld [vmem:[%s6 + $0x30] sm:$0xff]
      %v9286 = vld [vmem:[%s6 + $0x38] sm:$0x3]
      %v9287 = vld [vmem:[%s6 + $0x40] sm:$0xff]
      %v9288 = vld [vmem:[%s6 + $0x48] sm:$0x3]
      %v9289 = vld [vmem:[%s6 + $0x50] sm:$0xff]
      %v9290 = vld [vmem:[%s6 + $0x58] sm:$0x3]
      %v9291 = vld [vmem:[%s6 + $0x60] sm:$0xff]
      %v9292 = vld [vmem:[%s6 + $0x68] sm:$0x3]
      %v9293 = vld [vmem:[%s6 + $0x70] sm:$0xff]
      %v9294 = vld [vmem:[%s6 + $0x78] sm:$0x3]
      %v9295 = vld [vmem:[%s6 + $0x80] sm:$0xff]
      %v9296 = vld [vmem:[%s6 + $0x88] sm:$0x3]
      %9297 = vst [vmem:[#allocation2 + $0x8] sm:$0xff] %v9275
      %9298 = vst [vmem:[#allocation2 + $0x10] sm:$0xff] %v9276
      %9299 = vst [vmem:[#allocation2 + $0x58] sm:$0x3] %v9277
      %9300 = vst [vmem:[#allocation2 + $0x60] sm:$0x3] %v9278
      %v9301 = vld [vmem:[#allocation2 + $0x8] sm:$0xff]
      %v9302 = vld [vmem:[#allocation2 + $0x10] sm:$0xff]
      %v9303 = vld [vmem:[#allocation2 + $0x58] sm:$0x3]
      %v9304 = vld [vmem:[#allocation2 + $0x60] sm:$0x3]
      %v9305 = vld [vmem:[#allocation2 + $0x18] sm:$0xff]
      %v9306 = vld [vmem:[#allocation2 + $0x68] sm:$0x3]
      %9313 = vrot.lane.b32.xlu0 %v9301, 127
      %v9314 = vpop.permute.xlu0 %9313
      %9315 = vrot.lane.b32.xlu0 %v9302, 127
      %v9316 = vpop.permute.xlu0 %9315
      %9317 = vrot.lane.b32.xlu0 %v9305, 127
      %v9318 = vpop.permute.xlu0 %9317
      %9319 = vrot.lane.b32.xlu0 %v9303, 127
      %v9320 = vpop.permute.xlu0 %9319
      %9321 = vrot.lane.b32.xlu0 %v9304, 127
      %v9322 = vpop.permute.xlu0 %9321
      %9323 = vrot.lane.b32.xlu0 %v9306, 127
      %v9324 = vpop.permute.xlu0 %9323
      %v9325 = vsel %vm738, %v9314, %v9316
      %v9326 = vsel %vm738, %v9316, %v9318
      %v9327 = vsel %vm738, %v9320, %v9322
      %v9328 = vsel %vm738, %v9322, %v9324
      %v9332 = vsel %vm1911, %v9281, 0
      %v9335 = vsel %vm1911, %v9282, 0
      %v9337 = vsel %vm1921, %v9327, 0
      %v9339 = vsel %vm1921, %v9328, 0
      %9341 = vmatprep.subr.mxu0 0.0
      %9342 = vmatpush1.msra.mxu0 0.0
      %9343 = vmatprep.subr.mxu0 0.0
      %9344 = vmatpush1.msra.mxu0 0.0
      %9345 = vmatprep.subr.mxu0 0.0
      %9346 = vmatpush1.msra.mxu0 0.0
      %9347 = vmatprep.subr.mxu0 0.0
      %9348 = vmatpush1.msra.mxu0 0.0
      %9349 = vmatprep.subr.mxu0 0.0
      %9350 = vmatpush1.msra.mxu0 0.0
      %9351 = vmatprep.subr.mxu0 0.0
      %9352 = vmatpush1.msra.mxu0 0.0
      %9353 = vmatprep.subr.mxu0 0.0
      %9354 = vmatpush1.msra.mxu0 0.0
      %9355 = vmatprep.subr.mxu0 0.0
      %9356 = vmatpush1.msra.mxu0 0.0
      %9357 = vmatprep.subr.mxu0 0.0
      %9358 = vmatpush1.msra.mxu0 0.0
      %9359 = vmatprep.subr.mxu0 0.0
      %9360 = vmatpush1.msra.mxu0 0.0
      %9361 = vmatprep.subr.mxu0 0.0
      %9362 = vmatpush1.msra.mxu0 0.0
      %9363 = vmatprep.subr.mxu0 0.0
      %9364 = vmatpush1.msra.mxu0 0.0
      %9365 = vmatprep.subr.mxu0 0.0
      %9366 = vmatpush1.msra.mxu0 0.0
      %9367 = vmatprep.subr.mxu0 0.0
      %9368 = vmatpush1.msra.mxu0 0.0
      %9369 = vmatprep.subr.mxu0 %v9339
      %9370 = vmatpush1.msra.mxu0 %v9337
      %9371 = vmatprep.subr.mxu0 %v9326
      %9372 = vmatpush1.msra.mxu0 %v9325
      %9373 = vmatprep.subr.mxu0 0.0
      %9374 = vmatpush2.msra.mxu0 0.0
      %9375 = vmatprep.subr.mxu0 0.0
      %9376 = vmatpush2.msra.mxu0 0.0
      %9377 = vmatprep.subr.mxu0 0.0
      %9378 = vmatpush2.msra.mxu0 0.0
      %9379 = vmatprep.subr.mxu0 0.0
      %9380 = vmatpush2.msra.mxu0 0.0
      %9381 = vmatprep.subr.mxu0 0.0
      %9382 = vmatpush2.msra.mxu0 0.0
      %9383 = vmatprep.subr.mxu0 0.0
      %9384 = vmatpush2.msra.mxu0 0.0
      %9385 = vmatprep.subr.mxu0 0.0
      %9386 = vmatpush2.msra.mxu0 0.0
      %9387 = vmatprep.subr.mxu0 0.0
      %9388 = vmatpush2.msra.mxu0 0.0
      %9389 = vmatprep.subr.mxu0 0.0
      %9390 = vmatpush2.msra.mxu0 0.0
      %9391 = vmatprep.subr.mxu0 0.0
      %9392 = vmatpush2.msra.mxu0 0.0
      %9393 = vmatprep.subr.mxu0 0.0
      %9394 = vmatpush2.msra.mxu0 0.0
      %9395 = vmatprep.subr.mxu0 0.0
      %9396 = vmatpush2.msra.mxu0 0.0
      %9397 = vmatprep.subr.mxu0 0.0
      %9398 = vmatpush2.msra.mxu0 0.0
      %9399 = vmatprep.subr.mxu0 0.0
      %9400 = vmatpush2.msra.mxu0 0.0
      %9401 = vmatprep.subr.mxu0 0.0
      %9402 = vmatpush2.msra.mxu0 0.0
      %9403 = vmatprep.subr.mxu0 0.0
      %9404 = vmatpush2.msra.mxu0 0.0
      %9405 = vmatprep.mubr.f32.mxu0 0.0
      %9406 = vmatmul.mubr.f32.gmra.mxu0 %v9332
      %v9407 = vpop.f32.mrf.mxu0
      %v9408 = vadd.f32 0.0, %v9407
      %v9409 = vpop.f32.mrf.mxu0
      %v9410 = vadd.f32 0.0, %v9409
      %9411 = vmatprep.mubr.f32.mxu0 0.0
      %9412 = vmatmul.mubr.f32.gmra.mxu0 %v9335
      %v9413 = vpop.f32.mrf.mxu0
      %v9414 = vadd.f32 0.0, %v9413
      %v9415 = vpop.f32.mrf.mxu0
      %v9416 = vadd.f32 0.0, %v9415
      %9417 = vdwg.mxu0
      %v9419 = vsel %vm1911, %v9279, 0
      %v9422 = vsel %vm1911, %v9280, 0
      %v9424 = vsel %vm1921, %v9303, 0
      %v9426 = vsel %vm1921, %v9304, 0
      %9428 = vmatprep.subr.mxu0 0.0
      %9429 = vmatpush1.msra.mxu0 0.0
      %9430 = vmatprep.subr.mxu0 0.0
      %9431 = vmatpush1.msra.mxu0 0.0
      %9432 = vmatprep.subr.mxu0 0.0
      %9433 = vmatpush1.msra.mxu0 0.0
      %9434 = vmatprep.subr.mxu0 0.0
      %9435 = vmatpush1.msra.mxu0 0.0
      %9436 = vmatprep.subr.mxu0 0.0
      %9437 = vmatpush1.msra.mxu0 0.0
      %9438 = vmatprep.subr.mxu0 0.0
      %9439 = vmatpush1.msra.mxu0 0.0
      %9440 = vmatprep.subr.mxu0 0.0
      %9441 = vmatpush1.msra.mxu0 0.0
      %9442 = vmatprep.subr.mxu0 0.0
      %9443 = vmatpush1.msra.mxu0 0.0
      %9444 = vmatprep.subr.mxu0 0.0
      %9445 = vmatpush1.msra.mxu0 0.0
      %9446 = vmatprep.subr.mxu0 0.0
      %9447 = vmatpush1.msra.mxu0 0.0
      %9448 = vmatprep.subr.mxu0 0.0
      %9449 = vmatpush1.msra.mxu0 0.0
      %9450 = vmatprep.subr.mxu0 0.0
      %9451 = vmatpush1.msra.mxu0 0.0
      %9452 = vmatprep.subr.mxu0 0.0
      %9453 = vmatpush1.msra.mxu0 0.0
      %9454 = vmatprep.subr.mxu0 0.0
      %9455 = vmatpush1.msra.mxu0 0.0
      %9456 = vmatprep.subr.mxu0 %v9426
      %9457 = vmatpush1.msra.mxu0 %v9424
      %9458 = vmatprep.subr.mxu0 %v9302
      %9459 = vmatpush1.msra.mxu0 %v9301
      %9460 = vmatprep.subr.mxu0 0.0
      %9461 = vmatpush2.msra.mxu0 0.0
      %9462 = vmatprep.subr.mxu0 0.0
      %9463 = vmatpush2.msra.mxu0 0.0
      %9464 = vmatprep.subr.mxu0 0.0
      %9465 = vmatpush2.msra.mxu0 0.0
      %9466 = vmatprep.subr.mxu0 0.0
      %9467 = vmatpush2.msra.mxu0 0.0
      %9468 = vmatprep.subr.mxu0 0.0
      %9469 = vmatpush2.msra.mxu0 0.0
      %9470 = vmatprep.subr.mxu0 0.0
      %9471 = vmatpush2.msra.mxu0 0.0
      %9472 = vmatprep.subr.mxu0 0.0
      %9473 = vmatpush2.msra.mxu0 0.0
      %9474 = vmatprep.subr.mxu0 0.0
      %9475 = vmatpush2.msra.mxu0 0.0
      %9476 = vmatprep.subr.mxu0 0.0
      %9477 = vmatpush2.msra.mxu0 0.0
      %9478 = vmatprep.subr.mxu0 0.0
      %9479 = vmatpush2.msra.mxu0 0.0
      %9480 = vmatprep.subr.mxu0 0.0
      %9481 = vmatpush2.msra.mxu0 0.0
      %9482 = vmatprep.subr.mxu0 0.0
      %9483 = vmatpush2.msra.mxu0 0.0
      %9484 = vmatprep.subr.mxu0 0.0
      %9485 = vmatpush2.msra.mxu0 0.0
      %9486 = vmatprep.subr.mxu0 0.0
      %9487 = vmatpush2.msra.mxu0 0.0
      %9488 = vmatprep.subr.mxu0 0.0
      %9489 = vmatpush2.msra.mxu0 0.0
      %9490 = vmatprep.subr.mxu0 0.0
      %9491 = vmatpush2.msra.mxu0 0.0
      %9492 = vmatprep.mubr.f32.mxu0 0.0
      %9493 = vmatmul.mubr.f32.gmra.mxu0 %v9419
      %v9494 = vpop.f32.mrf.mxu0
      %v9495 = vadd.f32 %v9408, %v9494
      %v9496 = vpop.f32.mrf.mxu0
      %v9497 = vadd.f32 %v9410, %v9496
      %9498 = vmatprep.mubr.f32.mxu0 0.0
      %9499 = vmatmul.mubr.f32.gmra.mxu0 %v9422
      %v9500 = vpop.f32.mrf.mxu0
      %v9501 = vadd.f32 %v9414, %v9500
      %v9502 = vpop.f32.mrf.mxu0
      %v9503 = vadd.f32 %v9416, %v9502
      %9504 = vdwg.mxu0
      %9505 = vrot.lane.b32.xlu0 %v9301, 126
      %v9506 = vpop.permute.xlu0 %9505
      %9507 = vrot.lane.b32.xlu0 %v9302, 126
      %v9508 = vpop.permute.xlu0 %9507
      %9509 = vrot.lane.b32.xlu0 %v9305, 126
      %v9510 = vpop.permute.xlu0 %9509
      %9511 = vrot.lane.b32.xlu0 %v9303, 126
      %v9512 = vpop.permute.xlu0 %9511
      %9513 = vrot.lane.b32.xlu0 %v9304, 126
      %v9514 = vpop.permute.xlu0 %9513
      %9515 = vrot.lane.b32.xlu0 %v9306, 126
      %v9516 = vpop.permute.xlu0 %9515
      %v9517 = vsel %vm869, %v9506, %v9508
      %v9518 = vsel %vm869, %v9508, %v9510
      %v9519 = vsel %vm869, %v9512, %v9514
      %v9520 = vsel %vm869, %v9514, %v9516
      %v9524 = vsel %vm1911, %v9283, 0
      %v9527 = vsel %vm1911, %v9284, 0
      %v9529 = vsel %vm1921, %v9519, 0
      %v9531 = vsel %vm1921, %v9520, 0
      %9533 = vmatprep.subr.mxu0 0.0
      %9534 = vmatpush1.msra.mxu0 0.0
      %9535 = vmatprep.subr.mxu0 0.0
      %9536 = vmatpush1.msra.mxu0 0.0
      %9537 = vmatprep.subr.mxu0 0.0
      %9538 = vmatpush1.msra.mxu0 0.0
      %9539 = vmatprep.subr.mxu0 0.0
      %9540 = vmatpush1.msra.mxu0 0.0
      %9541 = vmatprep.subr.mxu0 0.0
      %9542 = vmatpush1.msra.mxu0 0.0
      %9543 = vmatprep.subr.mxu0 0.0
      %9544 = vmatpush1.msra.mxu0 0.0
      %9545 = vmatprep.subr.mxu0 0.0
      %9546 = vmatpush1.msra.mxu0 0.0
      %9547 = vmatprep.subr.mxu0 0.0
      %9548 = vmatpush1.msra.mxu0 0.0
      %9549 = vmatprep.subr.mxu0 0.0
      %9550 = vmatpush1.msra.mxu0 0.0
      %9551 = vmatprep.subr.mxu0 0.0
      %9552 = vmatpush1.msra.mxu0 0.0
      %9553 = vmatprep.subr.mxu0 0.0
      %9554 = vmatpush1.msra.mxu0 0.0
      %9555 = vmatprep.subr.mxu0 0.0
      %9556 = vmatpush1.msra.mxu0 0.0
      %9557 = vmatprep.subr.mxu0 0.0
      %9558 = vmatpush1.msra.mxu0 0.0
      %9559 = vmatprep.subr.mxu0 0.0
      %9560 = vmatpush1.msra.mxu0 0.0
      %9561 = vmatprep.subr.mxu0 %v9531
      %9562 = vmatpush1.msra.mxu0 %v9529
      %9563 = vmatprep.subr.mxu0 %v9518
      %9564 = vmatpush1.msra.mxu0 %v9517
      %9565 = vmatprep.subr.mxu0 0.0
      %9566 = vmatpush2.msra.mxu0 0.0
      %9567 = vmatprep.subr.mxu0 0.0
      %9568 = vmatpush2.msra.mxu0 0.0
      %9569 = vmatprep.subr.mxu0 0.0
      %9570 = vmatpush2.msra.mxu0 0.0
      %9571 = vmatprep.subr.mxu0 0.0
      %9572 = vmatpush2.msra.mxu0 0.0
      %9573 = vmatprep.subr.mxu0 0.0
      %9574 = vmatpush2.msra.mxu0 0.0
      %9575 = vmatprep.subr.mxu0 0.0
      %9576 = vmatpush2.msra.mxu0 0.0
      %9577 = vmatprep.subr.mxu0 0.0
      %9578 = vmatpush2.msra.mxu0 0.0
      %9579 = vmatprep.subr.mxu0 0.0
      %9580 = vmatpush2.msra.mxu0 0.0
      %9581 = vmatprep.subr.mxu0 0.0
      %9582 = vmatpush2.msra.mxu0 0.0
      %9583 = vmatprep.subr.mxu0 0.0
      %9584 = vmatpush2.msra.mxu0 0.0
      %9585 = vmatprep.subr.mxu0 0.0
      %9586 = vmatpush2.msra.mxu0 0.0
      %9587 = vmatprep.subr.mxu0 0.0
      %9588 = vmatpush2.msra.mxu0 0.0
      %9589 = vmatprep.subr.mxu0 0.0
      %9590 = vmatpush2.msra.mxu0 0.0
      %9591 = vmatprep.subr.mxu0 0.0
      %9592 = vmatpush2.msra.mxu0 0.0
      %9593 = vmatprep.subr.mxu0 0.0
      %9594 = vmatpush2.msra.mxu0 0.0
      %9595 = vmatprep.subr.mxu0 0.0
      %9596 = vmatpush2.msra.mxu0 0.0
      %9597 = vmatprep.mubr.f32.mxu0 0.0
      %9598 = vmatmul.mubr.f32.gmra.mxu0 %v9524
      %v9599 = vpop.f32.mrf.mxu0
      %v9600 = vadd.f32 0.0, %v9599
      %v9601 = vpop.f32.mrf.mxu0
      %v9602 = vadd.f32 0.0, %v9601
      %9603 = vmatprep.mubr.f32.mxu0 0.0
      %9604 = vmatmul.mubr.f32.gmra.mxu0 %v9527
      %v9605 = vpop.f32.mrf.mxu0
      %v9606 = vadd.f32 0.0, %v9605
      %v9607 = vpop.f32.mrf.mxu0
      %v9608 = vadd.f32 0.0, %v9607
      %9609 = vdwg.mxu0
      %v9610 = vadd.f32 %v9495, %v9600
      %v9611 = vadd.f32 %v9497, %v9602
      %v9612 = vadd.f32 %v9501, %v9606
      %v9613 = vadd.f32 %v9503, %v9608
      %9614 = vrot.lane.b32.xlu0 %v9301, 114
      %v9615 = vpop.permute.xlu0 %9614
      %9616 = vrot.lane.b32.xlu0 %v9302, 114
      %v9617 = vpop.permute.xlu0 %9616
      %9618 = vrot.lane.b32.xlu0 %v9305, 114
      %v9619 = vpop.permute.xlu0 %9618
      %9620 = vrot.lane.b32.xlu0 %v9303, 114
      %v9621 = vpop.permute.xlu0 %9620
      %9622 = vrot.lane.b32.xlu0 %v9304, 114
      %v9623 = vpop.permute.xlu0 %9622
      %9624 = vrot.lane.b32.xlu0 %v9306, 114
      %v9625 = vpop.permute.xlu0 %9624
      %v9626 = vsel %vm7411, %v9615, %v9617
      %v9627 = vsel %vm7411, %v9617, %v9619
      %v9628 = vsel %vm7411, %v9621, %v9623
      %v9629 = vsel %vm7411, %v9623, %v9625
      %v9633 = vsel %vm1911, %v9285, 0
      %v9636 = vsel %vm1911, %v9286, 0
      %v9638 = vsel %vm1921, %v9628, 0
      %v9640 = vsel %vm1921, %v9629, 0
      %9642 = vmatprep.subr.mxu0 0.0
      %9643 = vmatpush1.msra.mxu0 0.0
      %9644 = vmatprep.subr.mxu0 0.0
      %9645 = vmatpush1.msra.mxu0 0.0
      %9646 = vmatprep.subr.mxu0 0.0
      %9647 = vmatpush1.msra.mxu0 0.0
      %9648 = vmatprep.subr.mxu0 0.0
      %9649 = vmatpush1.msra.mxu0 0.0
      %9650 = vmatprep.subr.mxu0 0.0
      %9651 = vmatpush1.msra.mxu0 0.0
      %9652 = vmatprep.subr.mxu0 0.0
      %9653 = vmatpush1.msra.mxu0 0.0
      %9654 = vmatprep.subr.mxu0 0.0
      %9655 = vmatpush1.msra.mxu0 0.0
      %9656 = vmatprep.subr.mxu0 0.0
      %9657 = vmatpush1.msra.mxu0 0.0
      %9658 = vmatprep.subr.mxu0 0.0
      %9659 = vmatpush1.msra.mxu0 0.0
      %9660 = vmatprep.subr.mxu0 0.0
      %9661 = vmatpush1.msra.mxu0 0.0
      %9662 = vmatprep.subr.mxu0 0.0
      %9663 = vmatpush1.msra.mxu0 0.0
      %9664 = vmatprep.subr.mxu0 0.0
      %9665 = vmatpush1.msra.mxu0 0.0
      %9666 = vmatprep.subr.mxu0 0.0
      %9667 = vmatpush1.msra.mxu0 0.0
      %9668 = vmatprep.subr.mxu0 0.0
      %9669 = vmatpush1.msra.mxu0 0.0
      %9670 = vmatprep.subr.mxu0 %v9640
      %9671 = vmatpush1.msra.mxu0 %v9638
      %9672 = vmatprep.subr.mxu0 %v9627
      %9673 = vmatpush1.msra.mxu0 %v9626
      %9674 = vmatprep.subr.mxu0 0.0
      %9675 = vmatpush2.msra.mxu0 0.0
      %9676 = vmatprep.subr.mxu0 0.0
      %9677 = vmatpush2.msra.mxu0 0.0
      %9678 = vmatprep.subr.mxu0 0.0
      %9679 = vmatpush2.msra.mxu0 0.0
      %9680 = vmatprep.subr.mxu0 0.0
      %9681 = vmatpush2.msra.mxu0 0.0
      %9682 = vmatprep.subr.mxu0 0.0
      %9683 = vmatpush2.msra.mxu0 0.0
      %9684 = vmatprep.subr.mxu0 0.0
      %9685 = vmatpush2.msra.mxu0 0.0
      %9686 = vmatprep.subr.mxu0 0.0
      %9687 = vmatpush2.msra.mxu0 0.0
      %9688 = vmatprep.subr.mxu0 0.0
      %9689 = vmatpush2.msra.mxu0 0.0
      %9690 = vmatprep.subr.mxu0 0.0
      %9691 = vmatpush2.msra.mxu0 0.0
      %9692 = vmatprep.subr.mxu0 0.0
      %9693 = vmatpush2.msra.mxu0 0.0
      %9694 = vmatprep.subr.mxu0 0.0
      %9695 = vmatpush2.msra.mxu0 0.0
      %9696 = vmatprep.subr.mxu0 0.0
      %9697 = vmatpush2.msra.mxu0 0.0
      %9698 = vmatprep.subr.mxu0 0.0
      %9699 = vmatpush2.msra.mxu0 0.0
      %9700 = vmatprep.subr.mxu0 0.0
      %9701 = vmatpush2.msra.mxu0 0.0
      %9702 = vmatprep.subr.mxu0 0.0
      %9703 = vmatpush2.msra.mxu0 0.0
      %9704 = vmatprep.subr.mxu0 0.0
      %9705 = vmatpush2.msra.mxu0 0.0
      %9706 = vmatprep.mubr.f32.mxu0 0.0
      %9707 = vmatmul.mubr.f32.gmra.mxu0 %v9633
      %v9708 = vpop.f32.mrf.mxu0
      %v9709 = vadd.f32 0.0, %v9708
      %v9710 = vpop.f32.mrf.mxu0
      %v9711 = vadd.f32 0.0, %v9710
      %9712 = vmatprep.mubr.f32.mxu0 0.0
      %9713 = vmatmul.mubr.f32.gmra.mxu0 %v9636
      %v9714 = vpop.f32.mrf.mxu0
      %v9715 = vadd.f32 0.0, %v9714
      %v9716 = vpop.f32.mrf.mxu0
      %v9717 = vadd.f32 0.0, %v9716
      %9718 = vdwg.mxu0
      %v9719 = vadd.f32 %v9610, %v9709
      %v9720 = vadd.f32 %v9611, %v9711
      %v9721 = vadd.f32 %v9612, %v9715
      %v9722 = vadd.f32 %v9613, %v9717
      %9723 = vrot.lane.b32.xlu0 %v9301, 113
      %v9724 = vpop.permute.xlu0 %9723
      %9725 = vrot.lane.b32.xlu0 %v9302, 113
      %v9726 = vpop.permute.xlu0 %9725
      %9727 = vrot.lane.b32.xlu0 %v9305, 113
      %v9728 = vpop.permute.xlu0 %9727
      %9729 = vrot.lane.b32.xlu0 %v9303, 113
      %v9730 = vpop.permute.xlu0 %9729
      %9731 = vrot.lane.b32.xlu0 %v9304, 113
      %v9732 = vpop.permute.xlu0 %9731
      %9733 = vrot.lane.b32.xlu0 %v9306, 113
      %v9734 = vpop.permute.xlu0 %9733
      %v9735 = vsel %vm7532, %v9724, %v9726
      %v9736 = vsel %vm7532, %v9726, %v9728
      %v9737 = vsel %vm7532, %v9730, %v9732
      %v9738 = vsel %vm7532, %v9732, %v9734
      %v9742 = vsel %vm1911, %v9287, 0
      %v9745 = vsel %vm1911, %v9288, 0
      %v9747 = vsel %vm1921, %v9737, 0
      %v9749 = vsel %vm1921, %v9738, 0
      %9751 = vmatprep.subr.mxu0 0.0
      %9752 = vmatpush1.msra.mxu0 0.0
      %9753 = vmatprep.subr.mxu0 0.0
      %9754 = vmatpush1.msra.mxu0 0.0
      %9755 = vmatprep.subr.mxu0 0.0
      %9756 = vmatpush1.msra.mxu0 0.0
      %9757 = vmatprep.subr.mxu0 0.0
      %9758 = vmatpush1.msra.mxu0 0.0
      %9759 = vmatprep.subr.mxu0 0.0
      %9760 = vmatpush1.msra.mxu0 0.0
      %9761 = vmatprep.subr.mxu0 0.0
      %9762 = vmatpush1.msra.mxu0 0.0
      %9763 = vmatprep.subr.mxu0 0.0
      %9764 = vmatpush1.msra.mxu0 0.0
      %9765 = vmatprep.subr.mxu0 0.0
      %9766 = vmatpush1.msra.mxu0 0.0
      %9767 = vmatprep.subr.mxu0 0.0
      %9768 = vmatpush1.msra.mxu0 0.0
      %9769 = vmatprep.subr.mxu0 0.0
      %9770 = vmatpush1.msra.mxu0 0.0
      %9771 = vmatprep.subr.mxu0 0.0
      %9772 = vmatpush1.msra.mxu0 0.0
      %9773 = vmatprep.subr.mxu0 0.0
      %9774 = vmatpush1.msra.mxu0 0.0
      %9775 = vmatprep.subr.mxu0 0.0
      %9776 = vmatpush1.msra.mxu0 0.0
      %9777 = vmatprep.subr.mxu0 0.0
      %9778 = vmatpush1.msra.mxu0 0.0
      %9779 = vmatprep.subr.mxu0 %v9749
      %9780 = vmatpush1.msra.mxu0 %v9747
      %9781 = vmatprep.subr.mxu0 %v9736
      %9782 = vmatpush1.msra.mxu0 %v9735
      %9783 = vmatprep.subr.mxu0 0.0
      %9784 = vmatpush2.msra.mxu0 0.0
      %9785 = vmatprep.subr.mxu0 0.0
      %9786 = vmatpush2.msra.mxu0 0.0
      %9787 = vmatprep.subr.mxu0 0.0
      %9788 = vmatpush2.msra.mxu0 0.0
      %9789 = vmatprep.subr.mxu0 0.0
      %9790 = vmatpush2.msra.mxu0 0.0
      %9791 = vmatprep.subr.mxu0 0.0
      %9792 = vmatpush2.msra.mxu0 0.0
      %9793 = vmatprep.subr.mxu0 0.0
      %9794 = vmatpush2.msra.mxu0 0.0
      %9795 = vmatprep.subr.mxu0 0.0
      %9796 = vmatpush2.msra.mxu0 0.0
      %9797 = vmatprep.subr.mxu0 0.0
      %9798 = vmatpush2.msra.mxu0 0.0
      %9799 = vmatprep.subr.mxu0 0.0
      %9800 = vmatpush2.msra.mxu0 0.0
      %9801 = vmatprep.subr.mxu0 0.0
      %9802 = vmatpush2.msra.mxu0 0.0
      %9803 = vmatprep.subr.mxu0 0.0
      %9804 = vmatpush2.msra.mxu0 0.0
      %9805 = vmatprep.subr.mxu0 0.0
      %9806 = vmatpush2.msra.mxu0 0.0
      %9807 = vmatprep.subr.mxu0 0.0
      %9808 = vmatpush2.msra.mxu0 0.0
      %9809 = vmatprep.subr.mxu0 0.0
      %9810 = vmatpush2.msra.mxu0 0.0
      %9811 = vmatprep.subr.mxu0 0.0
      %9812 = vmatpush2.msra.mxu0 0.0
      %9813 = vmatprep.subr.mxu0 0.0
      %9814 = vmatpush2.msra.mxu0 0.0
      %9815 = vmatprep.mubr.f32.mxu0 0.0
      %9816 = vmatmul.mubr.f32.gmra.mxu0 %v9742
      %v9817 = vpop.f32.mrf.mxu0
      %v9818 = vadd.f32 0.0, %v9817
      %v9819 = vpop.f32.mrf.mxu0
      %v9820 = vadd.f32 0.0, %v9819
      %9821 = vmatprep.mubr.f32.mxu0 0.0
      %9822 = vmatmul.mubr.f32.gmra.mxu0 %v9745
      %v9823 = vpop.f32.mrf.mxu0
      %v9824 = vadd.f32 0.0, %v9823
      %v9825 = vpop.f32.mrf.mxu0
      %v9826 = vadd.f32 0.0, %v9825
      %9827 = vdwg.mxu0
      %v9828 = vadd.f32 %v9719, %v9818
      %v9829 = vadd.f32 %v9720, %v9820
      %v9830 = vadd.f32 %v9721, %v9824
      %v9831 = vadd.f32 %v9722, %v9826
      %9832 = vrot.lane.b32.xlu0 %v9301, 112
      %v9833 = vpop.permute.xlu0 %9832
      %9834 = vrot.lane.b32.xlu0 %v9302, 112
      %v9835 = vpop.permute.xlu0 %9834
      %9836 = vrot.lane.b32.xlu0 %v9305, 112
      %v9837 = vpop.permute.xlu0 %9836
      %9838 = vrot.lane.b32.xlu0 %v9303, 112
      %v9839 = vpop.permute.xlu0 %9838
      %9840 = vrot.lane.b32.xlu0 %v9304, 112
      %v9841 = vpop.permute.xlu0 %9840
      %9842 = vrot.lane.b32.xlu0 %v9306, 112
      %v9843 = vpop.permute.xlu0 %9842
      %v9844 = vsel %vm7653, %v9833, %v9835
      %v9845 = vsel %vm7653, %v9835, %v9837
      %v9846 = vsel %vm7653, %v9839, %v9841
      %v9847 = vsel %vm7653, %v9841, %v9843
      %v9851 = vsel %vm1911, %v9289, 0
      %v9854 = vsel %vm1911, %v9290, 0
      %v9856 = vsel %vm1921, %v9846, 0
      %v9858 = vsel %vm1921, %v9847, 0
      %9860 = vmatprep.subr.mxu0 0.0
      %9861 = vmatpush1.msra.mxu0 0.0
      %9862 = vmatprep.subr.mxu0 0.0
      %9863 = vmatpush1.msra.mxu0 0.0
      %9864 = vmatprep.subr.mxu0 0.0
      %9865 = vmatpush1.msra.mxu0 0.0
      %9866 = vmatprep.subr.mxu0 0.0
      %9867 = vmatpush1.msra.mxu0 0.0
      %9868 = vmatprep.subr.mxu0 0.0
      %9869 = vmatpush1.msra.mxu0 0.0
      %9870 = vmatprep.subr.mxu0 0.0
      %9871 = vmatpush1.msra.mxu0 0.0
      %9872 = vmatprep.subr.mxu0 0.0
      %9873 = vmatpush1.msra.mxu0 0.0
      %9874 = vmatprep.subr.mxu0 0.0
      %9875 = vmatpush1.msra.mxu0 0.0
      %9876 = vmatprep.subr.mxu0 0.0
      %9877 = vmatpush1.msra.mxu0 0.0
      %9878 = vmatprep.subr.mxu0 0.0
      %9879 = vmatpush1.msra.mxu0 0.0
      %9880 = vmatprep.subr.mxu0 0.0
      %9881 = vmatpush1.msra.mxu0 0.0
      %9882 = vmatprep.subr.mxu0 0.0
      %9883 = vmatpush1.msra.mxu0 0.0
      %9884 = vmatprep.subr.mxu0 0.0
      %9885 = vmatpush1.msra.mxu0 0.0
      %9886 = vmatprep.subr.mxu0 0.0
      %9887 = vmatpush1.msra.mxu0 0.0
      %9888 = vmatprep.subr.mxu0 %v9858
      %9889 = vmatpush1.msra.mxu0 %v9856
      %9890 = vmatprep.subr.mxu0 %v9845
      %9891 = vmatpush1.msra.mxu0 %v9844
      %9892 = vmatprep.subr.mxu0 0.0
      %9893 = vmatpush2.msra.mxu0 0.0
      %9894 = vmatprep.subr.mxu0 0.0
      %9895 = vmatpush2.msra.mxu0 0.0
      %9896 = vmatprep.subr.mxu0 0.0
      %9897 = vmatpush2.msra.mxu0 0.0
      %9898 = vmatprep.subr.mxu0 0.0
      %9899 = vmatpush2.msra.mxu0 0.0
      %9900 = vmatprep.subr.mxu0 0.0
      %9901 = vmatpush2.msra.mxu0 0.0
      %9902 = vmatprep.subr.mxu0 0.0
      %9903 = vmatpush2.msra.mxu0 0.0
      %9904 = vmatprep.subr.mxu0 0.0
      %9905 = vmatpush2.msra.mxu0 0.0
      %9906 = vmatprep.subr.mxu0 0.0
      %9907 = vmatpush2.msra.mxu0 0.0
      %9908 = vmatprep.subr.mxu0 0.0
      %9909 = vmatpush2.msra.mxu0 0.0
      %9910 = vmatprep.subr.mxu0 0.0
      %9911 = vmatpush2.msra.mxu0 0.0
      %9912 = vmatprep.subr.mxu0 0.0
      %9913 = vmatpush2.msra.mxu0 0.0
      %9914 = vmatprep.subr.mxu0 0.0
      %9915 = vmatpush2.msra.mxu0 0.0
      %9916 = vmatprep.subr.mxu0 0.0
      %9917 = vmatpush2.msra.mxu0 0.0
      %9918 = vmatprep.subr.mxu0 0.0
      %9919 = vmatpush2.msra.mxu0 0.0
      %9920 = vmatprep.subr.mxu0 0.0
      %9921 = vmatpush2.msra.mxu0 0.0
      %9922 = vmatprep.subr.mxu0 0.0
      %9923 = vmatpush2.msra.mxu0 0.0
      %9924 = vmatprep.mubr.f32.mxu0 0.0
      %9925 = vmatmul.mubr.f32.gmra.mxu0 %v9851
      %v9926 = vpop.f32.mrf.mxu0
      %v9927 = vadd.f32 0.0, %v9926
      %v9928 = vpop.f32.mrf.mxu0
      %v9929 = vadd.f32 0.0, %v9928
      %9930 = vmatprep.mubr.f32.mxu0 0.0
      %9931 = vmatmul.mubr.f32.gmra.mxu0 %v9854
      %v9932 = vpop.f32.mrf.mxu0
      %v9933 = vadd.f32 0.0, %v9932
      %v9934 = vpop.f32.mrf.mxu0
      %v9935 = vadd.f32 0.0, %v9934
      %9936 = vdwg.mxu0
      %v9937 = vadd.f32 %v9828, %v9927
      %v9938 = vadd.f32 %v9829, %v9929
      %v9939 = vadd.f32 %v9830, %v9933
      %v9940 = vadd.f32 %v9831, %v9935
      %9941 = vrot.lane.b32.xlu0 %v9301, 100
      %v9942 = vpop.permute.xlu0 %9941
      %9943 = vrot.lane.b32.xlu0 %v9302, 100
      %v9944 = vpop.permute.xlu0 %9943
      %9945 = vrot.lane.b32.xlu0 %v9305, 100
      %v9946 = vpop.permute.xlu0 %9945
      %9947 = vrot.lane.b32.xlu0 %v9303, 100
      %v9948 = vpop.permute.xlu0 %9947
      %9949 = vrot.lane.b32.xlu0 %v9304, 100
      %v9950 = vpop.permute.xlu0 %9949
      %9951 = vrot.lane.b32.xlu0 %v9306, 100
      %v9952 = vpop.permute.xlu0 %9951
      %v9953 = vsel %vm1000, %v9942, %v9944
      %v9954 = vsel %vm1000, %v9944, %v9946
      %v9955 = vsel %vm1000, %v9948, %v9950
      %v9956 = vsel %vm1000, %v9950, %v9952
      %v9960 = vsel %vm1911, %v9291, 0
      %v9963 = vsel %vm1911, %v9292, 0
      %v9965 = vsel %vm1921, %v9955, 0
      %v9967 = vsel %vm1921, %v9956, 0
      %9969 = vmatprep.subr.mxu0 0.0
      %9970 = vmatpush1.msra.mxu0 0.0
      %9971 = vmatprep.subr.mxu0 0.0
      %9972 = vmatpush1.msra.mxu0 0.0
      %9973 = vmatprep.subr.mxu0 0.0
      %9974 = vmatpush1.msra.mxu0 0.0
      %9975 = vmatprep.subr.mxu0 0.0
      %9976 = vmatpush1.msra.mxu0 0.0
      %9977 = vmatprep.subr.mxu0 0.0
      %9978 = vmatpush1.msra.mxu0 0.0
      %9979 = vmatprep.subr.mxu0 0.0
      %9980 = vmatpush1.msra.mxu0 0.0
      %9981 = vmatprep.subr.mxu0 0.0
      %9982 = vmatpush1.msra.mxu0 0.0
      %9983 = vmatprep.subr.mxu0 0.0
      %9984 = vmatpush1.msra.mxu0 0.0
      %9985 = vmatprep.subr.mxu0 0.0
      %9986 = vmatpush1.msra.mxu0 0.0
      %9987 = vmatprep.subr.mxu0 0.0
      %9988 = vmatpush1.msra.mxu0 0.0
      %9989 = vmatprep.subr.mxu0 0.0
      %9990 = vmatpush1.msra.mxu0 0.0
      %9991 = vmatprep.subr.mxu0 0.0
      %9992 = vmatpush1.msra.mxu0 0.0
      %9993 = vmatprep.subr.mxu0 0.0
      %9994 = vmatpush1.msra.mxu0 0.0
      %9995 = vmatprep.subr.mxu0 0.0
      %9996 = vmatpush1.msra.mxu0 0.0
      %9997 = vmatprep.subr.mxu0 %v9967
      %9998 = vmatpush1.msra.mxu0 %v9965
      %9999 = vmatprep.subr.mxu0 %v9954
      %10000 = vmatpush1.msra.mxu0 %v9953
      %10001 = vmatprep.subr.mxu0 0.0
      %10002 = vmatpush2.msra.mxu0 0.0
      %10003 = vmatprep.subr.mxu0 0.0
      %10004 = vmatpush2.msra.mxu0 0.0
      %10005 = vmatprep.subr.mxu0 0.0
      %10006 = vmatpush2.msra.mxu0 0.0
      %10007 = vmatprep.subr.mxu0 0.0
      %10008 = vmatpush2.msra.mxu0 0.0
      %10009 = vmatprep.subr.mxu0 0.0
      %10010 = vmatpush2.msra.mxu0 0.0
      %10011 = vmatprep.subr.mxu0 0.0
      %10012 = vmatpush2.msra.mxu0 0.0
      %10013 = vmatprep.subr.mxu0 0.0
      %10014 = vmatpush2.msra.mxu0 0.0
      %10015 = vmatprep.subr.mxu0 0.0
      %10016 = vmatpush2.msra.mxu0 0.0
      %10017 = vmatprep.subr.mxu0 0.0
      %10018 = vmatpush2.msra.mxu0 0.0
      %10019 = vmatprep.subr.mxu0 0.0
      %10020 = vmatpush2.msra.mxu0 0.0
      %10021 = vmatprep.subr.mxu0 0.0
      %10022 = vmatpush2.msra.mxu0 0.0
      %10023 = vmatprep.subr.mxu0 0.0
      %10024 = vmatpush2.msra.mxu0 0.0
      %10025 = vmatprep.subr.mxu0 0.0
      %10026 = vmatpush2.msra.mxu0 0.0
      %10027 = vmatprep.subr.mxu0 0.0
      %10028 = vmatpush2.msra.mxu0 0.0
      %10029 = vmatprep.subr.mxu0 0.0
      %10030 = vmatpush2.msra.mxu0 0.0
      %10031 = vmatprep.subr.mxu0 0.0
      %10032 = vmatpush2.msra.mxu0 0.0
      %10033 = vmatprep.mubr.f32.mxu0 0.0
      %10034 = vmatmul.mubr.f32.gmra.mxu0 %v9960
      %v10035 = vpop.f32.mrf.mxu0
      %v10036 = vadd.f32 0.0, %v10035
      %v10037 = vpop.f32.mrf.mxu0
      %v10038 = vadd.f32 0.0, %v10037
      %10039 = vmatprep.mubr.f32.mxu0 0.0
      %10040 = vmatmul.mubr.f32.gmra.mxu0 %v9963
      %v10041 = vpop.f32.mrf.mxu0
      %v10042 = vadd.f32 0.0, %v10041
      %v10043 = vpop.f32.mrf.mxu0
      %v10044 = vadd.f32 0.0, %v10043
      %10045 = vdwg.mxu0
      %v10046 = vadd.f32 %v9937, %v10036
      %v10047 = vadd.f32 %v9938, %v10038
      %v10048 = vadd.f32 %v9939, %v10042
      %v10049 = vadd.f32 %v9940, %v10044
      %10050 = vrot.lane.b32.xlu0 %v9301, 99
      %v10051 = vpop.permute.xlu0 %10050
      %10052 = vrot.lane.b32.xlu0 %v9302, 99
      %v10053 = vpop.permute.xlu0 %10052
      %10054 = vrot.lane.b32.xlu0 %v9305, 99
      %v10055 = vpop.permute.xlu0 %10054
      %10056 = vrot.lane.b32.xlu0 %v9303, 99
      %v10057 = vpop.permute.xlu0 %10056
      %10058 = vrot.lane.b32.xlu0 %v9304, 99
      %v10059 = vpop.permute.xlu0 %10058
      %10060 = vrot.lane.b32.xlu0 %v9306, 99
      %v10061 = vpop.permute.xlu0 %10060
      %v10062 = vsel %vm1131, %v10051, %v10053
      %v10063 = vsel %vm1131, %v10053, %v10055
      %v10064 = vsel %vm1131, %v10057, %v10059
      %v10065 = vsel %vm1131, %v10059, %v10061
      %v10069 = vsel %vm1911, %v9293, 0
      %v10072 = vsel %vm1911, %v9294, 0
      %v10074 = vsel %vm1921, %v10064, 0
      %v10076 = vsel %vm1921, %v10065, 0
      %10078 = vmatprep.subr.mxu0 0.0
      %10079 = vmatpush1.msra.mxu0 0.0
      %10080 = vmatprep.subr.mxu0 0.0
      %10081 = vmatpush1.msra.mxu0 0.0
      %10082 = vmatprep.subr.mxu0 0.0
      %10083 = vmatpush1.msra.mxu0 0.0
      %10084 = vmatprep.subr.mxu0 0.0
      %10085 = vmatpush1.msra.mxu0 0.0
      %10086 = vmatprep.subr.mxu0 0.0
      %10087 = vmatpush1.msra.mxu0 0.0
      %10088 = vmatprep.subr.mxu0 0.0
      %10089 = vmatpush1.msra.mxu0 0.0
      %10090 = vmatprep.subr.mxu0 0.0
      %10091 = vmatpush1.msra.mxu0 0.0
      %10092 = vmatprep.subr.mxu0 0.0
      %10093 = vmatpush1.msra.mxu0 0.0
      %10094 = vmatprep.subr.mxu0 0.0
      %10095 = vmatpush1.msra.mxu0 0.0
      %10096 = vmatprep.subr.mxu0 0.0
      %10097 = vmatpush1.msra.mxu0 0.0
      %10098 = vmatprep.subr.mxu0 0.0
      %10099 = vmatpush1.msra.mxu0 0.0
      %10100 = vmatprep.subr.mxu0 0.0
      %10101 = vmatpush1.msra.mxu0 0.0
      %10102 = vmatprep.subr.mxu0 0.0
      %10103 = vmatpush1.msra.mxu0 0.0
      %10104 = vmatprep.subr.mxu0 0.0
      %10105 = vmatpush1.msra.mxu0 0.0
      %10106 = vmatprep.subr.mxu0 %v10076
      %10107 = vmatpush1.msra.mxu0 %v10074
      %10108 = vmatprep.subr.mxu0 %v10063
      %10109 = vmatpush1.msra.mxu0 %v10062
      %10110 = vmatprep.subr.mxu0 0.0
      %10111 = vmatpush2.msra.mxu0 0.0
      %10112 = vmatprep.subr.mxu0 0.0
      %10113 = vmatpush2.msra.mxu0 0.0
      %10114 = vmatprep.subr.mxu0 0.0
      %10115 = vmatpush2.msra.mxu0 0.0
      %10116 = vmatprep.subr.mxu0 0.0
      %10117 = vmatpush2.msra.mxu0 0.0
      %10118 = vmatprep.subr.mxu0 0.0
      %10119 = vmatpush2.msra.mxu0 0.0
      %10120 = vmatprep.subr.mxu0 0.0
      %10121 = vmatpush2.msra.mxu0 0.0
      %10122 = vmatprep.subr.mxu0 0.0
      %10123 = vmatpush2.msra.mxu0 0.0
      %10124 = vmatprep.subr.mxu0 0.0
      %10125 = vmatpush2.msra.mxu0 0.0
      %10126 = vmatprep.subr.mxu0 0.0
      %10127 = vmatpush2.msra.mxu0 0.0
      %10128 = vmatprep.subr.mxu0 0.0
      %10129 = vmatpush2.msra.mxu0 0.0
      %10130 = vmatprep.subr.mxu0 0.0
      %10131 = vmatpush2.msra.mxu0 0.0
      %10132 = vmatprep.subr.mxu0 0.0
      %10133 = vmatpush2.msra.mxu0 0.0
      %10134 = vmatprep.subr.mxu0 0.0
      %10135 = vmatpush2.msra.mxu0 0.0
      %10136 = vmatprep.subr.mxu0 0.0
      %10137 = vmatpush2.msra.mxu0 0.0
      %10138 = vmatprep.subr.mxu0 0.0
      %10139 = vmatpush2.msra.mxu0 0.0
      %10140 = vmatprep.subr.mxu0 0.0
      %10141 = vmatpush2.msra.mxu0 0.0
      %10142 = vmatprep.mubr.f32.mxu0 0.0
      %10143 = vmatmul.mubr.f32.gmra.mxu0 %v10069
      %v10144 = vpop.f32.mrf.mxu0
      %v10145 = vadd.f32 0.0, %v10144
      %v10146 = vpop.f32.mrf.mxu0
      %v10147 = vadd.f32 0.0, %v10146
      %10148 = vmatprep.mubr.f32.mxu0 0.0
      %10149 = vmatmul.mubr.f32.gmra.mxu0 %v10072
      %v10150 = vpop.f32.mrf.mxu0
      %v10151 = vadd.f32 0.0, %v10150
      %v10152 = vpop.f32.mrf.mxu0
      %v10153 = vadd.f32 0.0, %v10152
      %10154 = vdwg.mxu0
      %v10155 = vadd.f32 %v10046, %v10145
      %v10156 = vadd.f32 %v10047, %v10147
      %v10157 = vadd.f32 %v10048, %v10151
      %v10158 = vadd.f32 %v10049, %v10153
      %10159 = vrot.lane.b32.xlu0 %v9301, 98
      %v10160 = vpop.permute.xlu0 %10159
      %10161 = vrot.lane.b32.xlu0 %v9302, 98
      %v10162 = vpop.permute.xlu0 %10161
      %10163 = vrot.lane.b32.xlu0 %v9305, 98
      %v10164 = vpop.permute.xlu0 %10163
      %10165 = vrot.lane.b32.xlu0 %v9303, 98
      %v10166 = vpop.permute.xlu0 %10165
      %10167 = vrot.lane.b32.xlu0 %v9304, 98
      %v10168 = vpop.permute.xlu0 %10167
      %10169 = vrot.lane.b32.xlu0 %v9306, 98
      %v10170 = vpop.permute.xlu0 %10169
      %v10171 = vsel %vm1262, %v10160, %v10162
      %v10172 = vsel %vm1262, %v10162, %v10164
      %v10173 = vsel %vm1262, %v10166, %v10168
      %v10174 = vsel %vm1262, %v10168, %v10170
      %v10178 = vsel %vm1911, %v9295, 0
      %v10181 = vsel %vm1911, %v9296, 0
      %v10183 = vsel %vm1921, %v10173, 0
      %v10185 = vsel %vm1921, %v10174, 0
      %10187 = vmatprep.subr.mxu0 0.0
      %10188 = vmatpush1.msra.mxu0 0.0
      %10189 = vmatprep.subr.mxu0 0.0
      %10190 = vmatpush1.msra.mxu0 0.0
      %10191 = vmatprep.subr.mxu0 0.0
      %10192 = vmatpush1.msra.mxu0 0.0
      %10193 = vmatprep.subr.mxu0 0.0
      %10194 = vmatpush1.msra.mxu0 0.0
      %10195 = vmatprep.subr.mxu0 0.0
      %10196 = vmatpush1.msra.mxu0 0.0
      %10197 = vmatprep.subr.mxu0 0.0
      %10198 = vmatpush1.msra.mxu0 0.0
      %10199 = vmatprep.subr.mxu0 0.0
      %10200 = vmatpush1.msra.mxu0 0.0
      %10201 = vmatprep.subr.mxu0 0.0
      %10202 = vmatpush1.msra.mxu0 0.0
      %10203 = vmatprep.subr.mxu0 0.0
      %10204 = vmatpush1.msra.mxu0 0.0
      %10205 = vmatprep.subr.mxu0 0.0
      %10206 = vmatpush1.msra.mxu0 0.0
      %10207 = vmatprep.subr.mxu0 0.0
      %10208 = vmatpush1.msra.mxu0 0.0
      %10209 = vmatprep.subr.mxu0 0.0
      %10210 = vmatpush1.msra.mxu0 0.0
      %10211 = vmatprep.subr.mxu0 0.0
      %10212 = vmatpush1.msra.mxu0 0.0
      %10213 = vmatprep.subr.mxu0 0.0
      %10214 = vmatpush1.msra.mxu0 0.0
      %10215 = vmatprep.subr.mxu0 %v10185
      %10216 = vmatpush1.msra.mxu0 %v10183
      %10217 = vmatprep.subr.mxu0 %v10172
      %10218 = vmatpush1.msra.mxu0 %v10171
      %10219 = vmatprep.subr.mxu0 0.0
      %10220 = vmatpush2.msra.mxu0 0.0
      %10221 = vmatprep.subr.mxu0 0.0
      %10222 = vmatpush2.msra.mxu0 0.0
      %10223 = vmatprep.subr.mxu0 0.0
      %10224 = vmatpush2.msra.mxu0 0.0
      %10225 = vmatprep.subr.mxu0 0.0
      %10226 = vmatpush2.msra.mxu0 0.0
      %10227 = vmatprep.subr.mxu0 0.0
      %10228 = vmatpush2.msra.mxu0 0.0
      %10229 = vmatprep.subr.mxu0 0.0
      %10230 = vmatpush2.msra.mxu0 0.0
      %10231 = vmatprep.subr.mxu0 0.0
      %10232 = vmatpush2.msra.mxu0 0.0
      %10233 = vmatprep.subr.mxu0 0.0
      %10234 = vmatpush2.msra.mxu0 0.0
      %10235 = vmatprep.subr.mxu0 0.0
      %10236 = vmatpush2.msra.mxu0 0.0
      %10237 = vmatprep.subr.mxu0 0.0
      %10238 = vmatpush2.msra.mxu0 0.0
      %10239 = vmatprep.subr.mxu0 0.0
      %10240 = vmatpush2.msra.mxu0 0.0
      %10241 = vmatprep.subr.mxu0 0.0
      %10242 = vmatpush2.msra.mxu0 0.0
      %10243 = vmatprep.subr.mxu0 0.0
      %10244 = vmatpush2.msra.mxu0 0.0
      %10245 = vmatprep.subr.mxu0 0.0
      %10246 = vmatpush2.msra.mxu0 0.0
      %10247 = vmatprep.subr.mxu0 0.0
      %10248 = vmatpush2.msra.mxu0 0.0
      %10249 = vmatprep.subr.mxu0 0.0
      %10250 = vmatpush2.msra.mxu0 0.0
      %10251 = vmatprep.mubr.f32.mxu0 0.0
      %10252 = vmatmul.mubr.f32.gmra.mxu0 %v10178
      %v10253 = vpop.f32.mrf.mxu0
      %v10254 = vadd.f32 0.0, %v10253
      %v10255 = vpop.f32.mrf.mxu0
      %v10256 = vadd.f32 0.0, %v10255
      %10257 = vmatprep.mubr.f32.mxu0 0.0
      %10258 = vmatmul.mubr.f32.gmra.mxu0 %v10181
      %v10259 = vpop.f32.mrf.mxu0
      %v10260 = vadd.f32 0.0, %v10259
      %v10261 = vpop.f32.mrf.mxu0
      %v10262 = vadd.f32 0.0, %v10261
      %10263 = vdwg.mxu0
      %v10264 = vadd.f32 %v10155, %v10254
      %v10265 = vadd.f32 %v10156, %v10256
      %v10266 = vadd.f32 %v10157, %v10260
      %v10267 = vadd.f32 %v10158, %v10262
      %v10268 = vmax.f32 %v10264, 0.0
      %v10269 = vmax.f32 %v10265, 0.0
      %v10270 = vmax.f32 %v10266, 0.0
      %v10271 = vmax.f32 %v10267, 0.0
      %10273 = vset.pattern.permute.xlu0 0
      %10274 = vperm.xlu0 %10273, %v448
      %v10275 = vpop.permute.xlu0 %10274
      %10278 = vset.pattern.permute.xlu0 0
      %10279 = vperm.xlu0 %10278, %v449
      %v10280 = vpop.permute.xlu0 %10279
      %v10282 = vmul.f32 %v10268, %v10275
      %v10283 = vmul.f32 %v10269, %v10275
      %v10284 = vmul.f32 %v10270, %v10280
      %v10285 = vmul.f32 %v10271, %v10280
      %10287 = vset.pattern.permute.xlu0 0
      %10288 = vperm.xlu0 %10287, %v462
      %v10289 = vpop.permute.xlu0 %10288
      %10292 = vset.pattern.permute.xlu0 0
      %10293 = vperm.xlu0 %10292, %v463
      %v10294 = vpop.permute.xlu0 %10293
      %v10296 = vadd.f32 %v10282, %v10289
      %v10297 = vadd.f32 %v10283, %v10289
      %v10298 = vadd.f32 %v10284, %v10294
      %v10299 = vadd.f32 %v10285, %v10294
      %v10300 = vld [vmem:[%s10] sm:$0x3]
      %v10302 = vlaneseq
      %v10303 = vshrl.u32 %v10302, 7
      %v10304 = vsub.s32 0, %v10303
      %v10305 = vrot.slane %v10300, %v10304
      %v10306 = vlaneseq
      %v10307 = vshrl.u32 %v10306, 7
      %v10308 = vsub.s32 1, %v10307
      %v10309 = vrot.slane %v10300, %v10308
      %v10312 = vmul.f32 %v10296, %v10305
      %v10313 = vmul.f32 %v10297, %v10309
      %v10314 = vmul.f32 %v10298, %v10305
      %v10315 = vmul.f32 %v10299, %v10309
      %v10316 = vld [vmem:[%s7] sm:$0xff]
      %v10317 = vld [vmem:[%s7 + $0x8] sm:$0x3]
      %v10318 = vld [vmem:[%s7 + $0x10] sm:$0xff]
      %v10319 = vld [vmem:[%s7 + $0x18] sm:$0x3]
      %v10320 = vld [vmem:[%s7 + $0x20] sm:$0xff]
      %v10321 = vld [vmem:[%s7 + $0x28] sm:$0x3]
      %v10322 = vld [vmem:[%s7 + $0x30] sm:$0xff]
      %v10323 = vld [vmem:[%s7 + $0x38] sm:$0x3]
      %v10324 = vld [vmem:[%s7 + $0x40] sm:$0xff]
      %v10325 = vld [vmem:[%s7 + $0x48] sm:$0x3]
      %v10326 = vld [vmem:[%s7 + $0x50] sm:$0xff]
      %v10327 = vld [vmem:[%s7 + $0x58] sm:$0x3]
      %v10328 = vld [vmem:[%s7 + $0x60] sm:$0xff]
      %v10329 = vld [vmem:[%s7 + $0x68] sm:$0x3]
      %v10330 = vld [vmem:[%s7 + $0x70] sm:$0xff]
      %v10331 = vld [vmem:[%s7 + $0x78] sm:$0x3]
      %v10332 = vld [vmem:[%s7 + $0x80] sm:$0xff]
      %v10333 = vld [vmem:[%s7 + $0x88] sm:$0x3]
      %10334 = vst [vmem:[#allocation2 + $0x8] sm:$0xff] %v10312
      %10335 = vst [vmem:[#allocation2 + $0x10] sm:$0xff] %v10313
      %10336 = vst [vmem:[#allocation2 + $0x58] sm:$0x3] %v10314
      %10337 = vst [vmem:[#allocation2 + $0x60] sm:$0x3] %v10315
      %v10338 = vld [vmem:[#allocation2] sm:$0xff]
      %v10339 = vld [vmem:[#allocation2 + $0x8] sm:$0xff]
      %v10340 = vld [vmem:[#allocation2 + $0x10] sm:$0xff]
      %v10341 = vld [vmem:[#allocation2 + $0x50] sm:$0x3]
      %v10342 = vld [vmem:[#allocation2 + $0x58] sm:$0x3]
      %v10343 = vld [vmem:[#allocation2 + $0x60] sm:$0x3]
      %10350 = vrot.lane.b32.xlu0 %v10338, 14
      %v10351 = vpop.permute.xlu0 %10350
      %10352 = vrot.lane.b32.xlu0 %v10339, 14
      %v10353 = vpop.permute.xlu0 %10352
      %10354 = vrot.lane.b32.xlu0 %v10340, 14
      %v10355 = vpop.permute.xlu0 %10354
      %10356 = vrot.lane.b32.xlu0 %v10341, 14
      %v10357 = vpop.permute.xlu0 %10356
      %10358 = vrot.lane.b32.xlu0 %v10342, 14
      %v10359 = vpop.permute.xlu0 %10358
      %10360 = vrot.lane.b32.xlu0 %v10343, 14
      %v10361 = vpop.permute.xlu0 %10360
      %vm10362 = vcmask 113664
      %v10363 = vsel %vm10362, %v10351, %v10353
      %v10364 = vsel %vm10362, %v10353, %v10355
      %v10365 = vsel %vm10362, %v10357, %v10359
      %v10366 = vsel %vm10362, %v10359, %v10361
      %v10370 = vsel %vm1911, %v10318, 0
      %v10373 = vsel %vm1911, %v10319, 0
      %v10375 = vsel %vm1921, %v10365, 0
      %v10377 = vsel %vm1921, %v10366, 0
      %10379 = vmatprep.subr.mxu0 0.0
      %10380 = vmatpush1.msra.mxu0 0.0
      %10381 = vmatprep.subr.mxu0 0.0
      %10382 = vmatpush1.msra.mxu0 0.0
      %10383 = vmatprep.subr.mxu0 0.0
      %10384 = vmatpush1.msra.mxu0 0.0
      %10385 = vmatprep.subr.mxu0 0.0
      %10386 = vmatpush1.msra.mxu0 0.0
      %10387 = vmatprep.subr.mxu0 0.0
      %10388 = vmatpush1.msra.mxu0 0.0
      %10389 = vmatprep.subr.mxu0 0.0
      %10390 = vmatpush1.msra.mxu0 0.0
      %10391 = vmatprep.subr.mxu0 0.0
      %10392 = vmatpush1.msra.mxu0 0.0
      %10393 = vmatprep.subr.mxu0 0.0
      %10394 = vmatpush1.msra.mxu0 0.0
      %10395 = vmatprep.subr.mxu0 0.0
      %10396 = vmatpush1.msra.mxu0 0.0
      %10397 = vmatprep.subr.mxu0 0.0
      %10398 = vmatpush1.msra.mxu0 0.0
      %10399 = vmatprep.subr.mxu0 0.0
      %10400 = vmatpush1.msra.mxu0 0.0
      %10401 = vmatprep.subr.mxu0 0.0
      %10402 = vmatpush1.msra.mxu0 0.0
      %10403 = vmatprep.subr.mxu0 0.0
      %10404 = vmatpush1.msra.mxu0 0.0
      %10405 = vmatprep.subr.mxu0 0.0
      %10406 = vmatpush1.msra.mxu0 0.0
      %10407 = vmatprep.subr.mxu0 %v10377
      %10408 = vmatpush1.msra.mxu0 %v10375
      %10409 = vmatprep.subr.mxu0 %v10364
      %10410 = vmatpush1.msra.mxu0 %v10363
      %10411 = vmatprep.subr.mxu0 0.0
      %10412 = vmatpush2.msra.mxu0 0.0
      %10413 = vmatprep.subr.mxu0 0.0
      %10414 = vmatpush2.msra.mxu0 0.0
      %10415 = vmatprep.subr.mxu0 0.0
      %10416 = vmatpush2.msra.mxu0 0.0
      %10417 = vmatprep.subr.mxu0 0.0
      %10418 = vmatpush2.msra.mxu0 0.0
      %10419 = vmatprep.subr.mxu0 0.0
      %10420 = vmatpush2.msra.mxu0 0.0
      %10421 = vmatprep.subr.mxu0 0.0
      %10422 = vmatpush2.msra.mxu0 0.0
      %10423 = vmatprep.subr.mxu0 0.0
      %10424 = vmatpush2.msra.mxu0 0.0
      %10425 = vmatprep.subr.mxu0 0.0
      %10426 = vmatpush2.msra.mxu0 0.0
      %10427 = vmatprep.subr.mxu0 0.0
      %10428 = vmatpush2.msra.mxu0 0.0
      %10429 = vmatprep.subr.mxu0 0.0
      %10430 = vmatpush2.msra.mxu0 0.0
      %10431 = vmatprep.subr.mxu0 0.0
      %10432 = vmatpush2.msra.mxu0 0.0
      %10433 = vmatprep.subr.mxu0 0.0
      %10434 = vmatpush2.msra.mxu0 0.0
      %10435 = vmatprep.subr.mxu0 0.0
      %10436 = vmatpush2.msra.mxu0 0.0
      %10437 = vmatprep.subr.mxu0 0.0
      %10438 = vmatpush2.msra.mxu0 0.0
      %10439 = vmatprep.subr.mxu0 0.0
      %10440 = vmatpush2.msra.mxu0 0.0
      %10441 = vmatprep.subr.mxu0 0.0
      %10442 = vmatpush2.msra.mxu0 0.0
      %10443 = vmatprep.mubr.f32.mxu0 0.0
      %10444 = vmatmul.mubr.f32.gmra.mxu0 %v10370
      %v10445 = vpop.f32.mrf.mxu0
      %v10446 = vadd.f32 0.0, %v10445
      %v10447 = vpop.f32.mrf.mxu0
      %v10448 = vadd.f32 0.0, %v10447
      %10449 = vmatprep.mubr.f32.mxu0 0.0
      %10450 = vmatmul.mubr.f32.gmra.mxu0 %v10373
      %v10451 = vpop.f32.mrf.mxu0
      %v10452 = vadd.f32 0.0, %v10451
      %v10453 = vpop.f32.mrf.mxu0
      %v10454 = vadd.f32 0.0, %v10453
      %10455 = vdwg.mxu0
      %10456 = vrot.lane.b32.xlu0 %v10338, 15
      %v10457 = vpop.permute.xlu0 %10456
      %10458 = vrot.lane.b32.xlu0 %v10339, 15
      %v10459 = vpop.permute.xlu0 %10458
      %10460 = vrot.lane.b32.xlu0 %v10340, 15
      %v10461 = vpop.permute.xlu0 %10460
      %10462 = vrot.lane.b32.xlu0 %v10341, 15
      %v10463 = vpop.permute.xlu0 %10462
      %10464 = vrot.lane.b32.xlu0 %v10342, 15
      %v10465 = vpop.permute.xlu0 %10464
      %10466 = vrot.lane.b32.xlu0 %v10343, 15
      %v10467 = vpop.permute.xlu0 %10466
      %vm10468 = vcmask 121856
      %v10469 = vsel %vm10468, %v10457, %v10459
      %v10470 = vsel %vm10468, %v10459, %v10461
      %v10471 = vsel %vm10468, %v10463, %v10465
      %v10472 = vsel %vm10468, %v10465, %v10467
      %v10476 = vsel %vm1911, %v10316, 0
      %v10479 = vsel %vm1911, %v10317, 0
      %v10481 = vsel %vm1921, %v10471, 0
      %v10483 = vsel %vm1921, %v10472, 0
      %10485 = vmatprep.subr.mxu0 0.0
      %10486 = vmatpush1.msra.mxu0 0.0
      %10487 = vmatprep.subr.mxu0 0.0
      %10488 = vmatpush1.msra.mxu0 0.0
      %10489 = vmatprep.subr.mxu0 0.0
      %10490 = vmatpush1.msra.mxu0 0.0
      %10491 = vmatprep.subr.mxu0 0.0
      %10492 = vmatpush1.msra.mxu0 0.0
      %10493 = vmatprep.subr.mxu0 0.0
      %10494 = vmatpush1.msra.mxu0 0.0
      %10495 = vmatprep.subr.mxu0 0.0
      %10496 = vmatpush1.msra.mxu0 0.0
      %10497 = vmatprep.subr.mxu0 0.0
      %10498 = vmatpush1.msra.mxu0 0.0
      %10499 = vmatprep.subr.mxu0 0.0
      %10500 = vmatpush1.msra.mxu0 0.0
      %10501 = vmatprep.subr.mxu0 0.0
      %10502 = vmatpush1.msra.mxu0 0.0
      %10503 = vmatprep.subr.mxu0 0.0
      %10504 = vmatpush1.msra.mxu0 0.0
      %10505 = vmatprep.subr.mxu0 0.0
      %10506 = vmatpush1.msra.mxu0 0.0
      %10507 = vmatprep.subr.mxu0 0.0
      %10508 = vmatpush1.msra.mxu0 0.0
      %10509 = vmatprep.subr.mxu0 0.0
      %10510 = vmatpush1.msra.mxu0 0.0
      %10511 = vmatprep.subr.mxu0 0.0
      %10512 = vmatpush1.msra.mxu0 0.0
      %10513 = vmatprep.subr.mxu0 %v10483
      %10514 = vmatpush1.msra.mxu0 %v10481
      %10515 = vmatprep.subr.mxu0 %v10470
      %10516 = vmatpush1.msra.mxu0 %v10469
      %10517 = vmatprep.subr.mxu0 0.0
      %10518 = vmatpush2.msra.mxu0 0.0
      %10519 = vmatprep.subr.mxu0 0.0
      %10520 = vmatpush2.msra.mxu0 0.0
      %10521 = vmatprep.subr.mxu0 0.0
      %10522 = vmatpush2.msra.mxu0 0.0
      %10523 = vmatprep.subr.mxu0 0.0
      %10524 = vmatpush2.msra.mxu0 0.0
      %10525 = vmatprep.subr.mxu0 0.0
      %10526 = vmatpush2.msra.mxu0 0.0
      %10527 = vmatprep.subr.mxu0 0.0
      %10528 = vmatpush2.msra.mxu0 0.0
      %10529 = vmatprep.subr.mxu0 0.0
      %10530 = vmatpush2.msra.mxu0 0.0
      %10531 = vmatprep.subr.mxu0 0.0
      %10532 = vmatpush2.msra.mxu0 0.0
      %10533 = vmatprep.subr.mxu0 0.0
      %10534 = vmatpush2.msra.mxu0 0.0
      %10535 = vmatprep.subr.mxu0 0.0
      %10536 = vmatpush2.msra.mxu0 0.0
      %10537 = vmatprep.subr.mxu0 0.0
      %10538 = vmatpush2.msra.mxu0 0.0
      %10539 = vmatprep.subr.mxu0 0.0
      %10540 = vmatpush2.msra.mxu0 0.0
      %10541 = vmatprep.subr.mxu0 0.0
      %10542 = vmatpush2.msra.mxu0 0.0
      %10543 = vmatprep.subr.mxu0 0.0
      %10544 = vmatpush2.msra.mxu0 0.0
      %10545 = vmatprep.subr.mxu0 0.0
      %10546 = vmatpush2.msra.mxu0 0.0
      %10547 = vmatprep.subr.mxu0 0.0
      %10548 = vmatpush2.msra.mxu0 0.0
      %10549 = vmatprep.mubr.f32.mxu0 0.0
      %10550 = vmatmul.mubr.f32.gmra.mxu0 %v10476
      %v10551 = vpop.f32.mrf.mxu0
      %v10552 = vadd.f32 %v10446, %v10551
      %v10553 = vpop.f32.mrf.mxu0
      %v10554 = vadd.f32 %v10448, %v10553
      %10555 = vmatprep.mubr.f32.mxu0 0.0
      %10556 = vmatmul.mubr.f32.gmra.mxu0 %v10479
      %v10557 = vpop.f32.mrf.mxu0
      %v10558 = vadd.f32 %v10452, %v10557
      %v10559 = vpop.f32.mrf.mxu0
      %v10560 = vadd.f32 %v10454, %v10559
      %10561 = vdwg.mxu0
      %10562 = vrot.lane.b32.xlu0 %v10338, 13
      %v10563 = vpop.permute.xlu0 %10562
      %10564 = vrot.lane.b32.xlu0 %v10339, 13
      %v10565 = vpop.permute.xlu0 %10564
      %10566 = vrot.lane.b32.xlu0 %v10340, 13
      %v10567 = vpop.permute.xlu0 %10566
      %10568 = vrot.lane.b32.xlu0 %v10341, 13
      %v10569 = vpop.permute.xlu0 %10568
      %10570 = vrot.lane.b32.xlu0 %v10342, 13
      %v10571 = vpop.permute.xlu0 %10570
      %10572 = vrot.lane.b32.xlu0 %v10343, 13
      %v10573 = vpop.permute.xlu0 %10572
      %vm10574 = vcmask 105472
      %v10575 = vsel %vm10574, %v10563, %v10565
      %v10576 = vsel %vm10574, %v10565, %v10567
      %v10577 = vsel %vm10574, %v10569, %v10571
      %v10578 = vsel %vm10574, %v10571, %v10573
      %v10582 = vsel %vm1911, %v10320, 0
      %v10585 = vsel %vm1911, %v10321, 0
      %v10587 = vsel %vm1921, %v10577, 0
      %v10589 = vsel %vm1921, %v10578, 0
      %10591 = vmatprep.subr.mxu0 0.0
      %10592 = vmatpush1.msra.mxu0 0.0
      %10593 = vmatprep.subr.mxu0 0.0
      %10594 = vmatpush1.msra.mxu0 0.0
      %10595 = vmatprep.subr.mxu0 0.0
      %10596 = vmatpush1.msra.mxu0 0.0
      %10597 = vmatprep.subr.mxu0 0.0
      %10598 = vmatpush1.msra.mxu0 0.0
      %10599 = vmatprep.subr.mxu0 0.0
      %10600 = vmatpush1.msra.mxu0 0.0
      %10601 = vmatprep.subr.mxu0 0.0
      %10602 = vmatpush1.msra.mxu0 0.0
      %10603 = vmatprep.subr.mxu0 0.0
      %10604 = vmatpush1.msra.mxu0 0.0
      %10605 = vmatprep.subr.mxu0 0.0
      %10606 = vmatpush1.msra.mxu0 0.0
      %10607 = vmatprep.subr.mxu0 0.0
      %10608 = vmatpush1.msra.mxu0 0.0
      %10609 = vmatprep.subr.mxu0 0.0
      %10610 = vmatpush1.msra.mxu0 0.0
      %10611 = vmatprep.subr.mxu0 0.0
      %10612 = vmatpush1.msra.mxu0 0.0
      %10613 = vmatprep.subr.mxu0 0.0
      %10614 = vmatpush1.msra.mxu0 0.0
      %10615 = vmatprep.subr.mxu0 0.0
      %10616 = vmatpush1.msra.mxu0 0.0
      %10617 = vmatprep.subr.mxu0 0.0
      %10618 = vmatpush1.msra.mxu0 0.0
      %10619 = vmatprep.subr.mxu0 %v10589
      %10620 = vmatpush1.msra.mxu0 %v10587
      %10621 = vmatprep.subr.mxu0 %v10576
      %10622 = vmatpush1.msra.mxu0 %v10575
      %10623 = vmatprep.subr.mxu0 0.0
      %10624 = vmatpush2.msra.mxu0 0.0
      %10625 = vmatprep.subr.mxu0 0.0
      %10626 = vmatpush2.msra.mxu0 0.0
      %10627 = vmatprep.subr.mxu0 0.0
      %10628 = vmatpush2.msra.mxu0 0.0
      %10629 = vmatprep.subr.mxu0 0.0
      %10630 = vmatpush2.msra.mxu0 0.0
      %10631 = vmatprep.subr.mxu0 0.0
      %10632 = vmatpush2.msra.mxu0 0.0
      %10633 = vmatprep.subr.mxu0 0.0
      %10634 = vmatpush2.msra.mxu0 0.0
      %10635 = vmatprep.subr.mxu0 0.0
      %10636 = vmatpush2.msra.mxu0 0.0
      %10637 = vmatprep.subr.mxu0 0.0
      %10638 = vmatpush2.msra.mxu0 0.0
      %10639 = vmatprep.subr.mxu0 0.0
      %10640 = vmatpush2.msra.mxu0 0.0
      %10641 = vmatprep.subr.mxu0 0.0
      %10642 = vmatpush2.msra.mxu0 0.0
      %10643 = vmatprep.subr.mxu0 0.0
      %10644 = vmatpush2.msra.mxu0 0.0
      %10645 = vmatprep.subr.mxu0 0.0
      %10646 = vmatpush2.msra.mxu0 0.0
      %10647 = vmatprep.subr.mxu0 0.0
      %10648 = vmatpush2.msra.mxu0 0.0
      %10649 = vmatprep.subr.mxu0 0.0
      %10650 = vmatpush2.msra.mxu0 0.0
      %10651 = vmatprep.subr.mxu0 0.0
      %10652 = vmatpush2.msra.mxu0 0.0
      %10653 = vmatprep.subr.mxu0 0.0
      %10654 = vmatpush2.msra.mxu0 0.0
      %10655 = vmatprep.mubr.f32.mxu0 0.0
      %10656 = vmatmul.mubr.f32.gmra.mxu0 %v10582
      %v10657 = vpop.f32.mrf.mxu0
      %v10658 = vadd.f32 0.0, %v10657
      %v10659 = vpop.f32.mrf.mxu0
      %v10660 = vadd.f32 0.0, %v10659
      %10661 = vmatprep.mubr.f32.mxu0 0.0
      %10662 = vmatmul.mubr.f32.gmra.mxu0 %v10585
      %v10663 = vpop.f32.mrf.mxu0
      %v10664 = vadd.f32 0.0, %v10663
      %v10665 = vpop.f32.mrf.mxu0
      %v10666 = vadd.f32 0.0, %v10665
      %10667 = vdwg.mxu0
      %v10668 = vadd.f32 %v10552, %v10658
      %v10669 = vadd.f32 %v10554, %v10660
      %v10670 = vadd.f32 %v10558, %v10664
      %v10671 = vadd.f32 %v10560, %v10666
      %10672 = vrot.lane.b32.xlu0 %v10338, 1
      %v10673 = vpop.permute.xlu0 %10672
      %10674 = vrot.lane.b32.xlu0 %v10339, 1
      %v10675 = vpop.permute.xlu0 %10674
      %10676 = vrot.lane.b32.xlu0 %v10340, 1
      %v10677 = vpop.permute.xlu0 %10676
      %10678 = vrot.lane.b32.xlu0 %v10341, 1
      %v10679 = vpop.permute.xlu0 %10678
      %10680 = vrot.lane.b32.xlu0 %v10342, 1
      %v10681 = vpop.permute.xlu0 %10680
      %10682 = vrot.lane.b32.xlu0 %v10343, 1
      %v10683 = vpop.permute.xlu0 %10682
      %vm10684 = vcmask 7168
      %v10685 = vsel %vm10684, %v10673, %v10675
      %v10686 = vsel %vm10684, %v10675, %v10677
      %v10687 = vsel %vm10684, %v10679, %v10681
      %v10688 = vsel %vm10684, %v10681, %v10683
      %v10692 = vsel %vm1911, %v10322, 0
      %v10695 = vsel %vm1911, %v10323, 0
      %v10697 = vsel %vm1921, %v10687, 0
      %v10699 = vsel %vm1921, %v10688, 0
      %10701 = vmatprep.subr.mxu0 0.0
      %10702 = vmatpush1.msra.mxu0 0.0
      %10703 = vmatprep.subr.mxu0 0.0
      %10704 = vmatpush1.msra.mxu0 0.0
      %10705 = vmatprep.subr.mxu0 0.0
      %10706 = vmatpush1.msra.mxu0 0.0
      %10707 = vmatprep.subr.mxu0 0.0
      %10708 = vmatpush1.msra.mxu0 0.0
      %10709 = vmatprep.subr.mxu0 0.0
      %10710 = vmatpush1.msra.mxu0 0.0
      %10711 = vmatprep.subr.mxu0 0.0
      %10712 = vmatpush1.msra.mxu0 0.0
      %10713 = vmatprep.subr.mxu0 0.0
      %10714 = vmatpush1.msra.mxu0 0.0
      %10715 = vmatprep.subr.mxu0 0.0
      %10716 = vmatpush1.msra.mxu0 0.0
      %10717 = vmatprep.subr.mxu0 0.0
      %10718 = vmatpush1.msra.mxu0 0.0
      %10719 = vmatprep.subr.mxu0 0.0
      %10720 = vmatpush1.msra.mxu0 0.0
      %10721 = vmatprep.subr.mxu0 0.0
      %10722 = vmatpush1.msra.mxu0 0.0
      %10723 = vmatprep.subr.mxu0 0.0
      %10724 = vmatpush1.msra.mxu0 0.0
      %10725 = vmatprep.subr.mxu0 0.0
      %10726 = vmatpush1.msra.mxu0 0.0
      %10727 = vmatprep.subr.mxu0 0.0
      %10728 = vmatpush1.msra.mxu0 0.0
      %10729 = vmatprep.subr.mxu0 %v10699
      %10730 = vmatpush1.msra.mxu0 %v10697
      %10731 = vmatprep.subr.mxu0 %v10686
      %10732 = vmatpush1.msra.mxu0 %v10685
      %10733 = vmatprep.subr.mxu0 0.0
      %10734 = vmatpush2.msra.mxu0 0.0
      %10735 = vmatprep.subr.mxu0 0.0
      %10736 = vmatpush2.msra.mxu0 0.0
      %10737 = vmatprep.subr.mxu0 0.0
      %10738 = vmatpush2.msra.mxu0 0.0
      %10739 = vmatprep.subr.mxu0 0.0
      %10740 = vmatpush2.msra.mxu0 0.0
      %10741 = vmatprep.subr.mxu0 0.0
      %10742 = vmatpush2.msra.mxu0 0.0
      %10743 = vmatprep.subr.mxu0 0.0
      %10744 = vmatpush2.msra.mxu0 0.0
      %10745 = vmatprep.subr.mxu0 0.0
      %10746 = vmatpush2.msra.mxu0 0.0
      %10747 = vmatprep.subr.mxu0 0.0
      %10748 = vmatpush2.msra.mxu0 0.0
      %10749 = vmatprep.subr.mxu0 0.0
      %10750 = vmatpush2.msra.mxu0 0.0
      %10751 = vmatprep.subr.mxu0 0.0
      %10752 = vmatpush2.msra.mxu0 0.0
      %10753 = vmatprep.subr.mxu0 0.0
      %10754 = vmatpush2.msra.mxu0 0.0
      %10755 = vmatprep.subr.mxu0 0.0
      %10756 = vmatpush2.msra.mxu0 0.0
      %10757 = vmatprep.subr.mxu0 0.0
      %10758 = vmatpush2.msra.mxu0 0.0
      %10759 = vmatprep.subr.mxu0 0.0
      %10760 = vmatpush2.msra.mxu0 0.0
      %10761 = vmatprep.subr.mxu0 0.0
      %10762 = vmatpush2.msra.mxu0 0.0
      %10763 = vmatprep.subr.mxu0 0.0
      %10764 = vmatpush2.msra.mxu0 0.0
      %10765 = vmatprep.mubr.f32.mxu0 0.0
      %10766 = vmatmul.mubr.f32.gmra.mxu0 %v10692
      %v10767 = vpop.f32.mrf.mxu0
      %v10768 = vadd.f32 0.0, %v10767
      %v10769 = vpop.f32.mrf.mxu0
      %v10770 = vadd.f32 0.0, %v10769
      %10771 = vmatprep.mubr.f32.mxu0 0.0
      %10772 = vmatmul.mubr.f32.gmra.mxu0 %v10695
      %v10773 = vpop.f32.mrf.mxu0
      %v10774 = vadd.f32 0.0, %v10773
      %v10775 = vpop.f32.mrf.mxu0
      %v10776 = vadd.f32 0.0, %v10775
      %10777 = vdwg.mxu0
      %v10778 = vadd.f32 %v10668, %v10768
      %v10779 = vadd.f32 %v10669, %v10770
      %v10780 = vadd.f32 %v10670, %v10774
      %v10781 = vadd.f32 %v10671, %v10776
      %v10783 = vsel %vm1911, %v10324, 0
      %v10786 = vsel %vm1911, %v10325, 0
      %v10788 = vsel %vm1921, %v10342, 0
      %v10790 = vsel %vm1921, %v10343, 0
      %10792 = vmatprep.subr.mxu0 0.0
      %10793 = vmatpush1.msra.mxu0 0.0
      %10794 = vmatprep.subr.mxu0 0.0
      %10795 = vmatpush1.msra.mxu0 0.0
      %10796 = vmatprep.subr.mxu0 0.0
      %10797 = vmatpush1.msra.mxu0 0.0
      %10798 = vmatprep.subr.mxu0 0.0
      %10799 = vmatpush1.msra.mxu0 0.0
      %10800 = vmatprep.subr.mxu0 0.0
      %10801 = vmatpush1.msra.mxu0 0.0
      %10802 = vmatprep.subr.mxu0 0.0
      %10803 = vmatpush1.msra.mxu0 0.0
      %10804 = vmatprep.subr.mxu0 0.0
      %10805 = vmatpush1.msra.mxu0 0.0
      %10806 = vmatprep.subr.mxu0 0.0
      %10807 = vmatpush1.msra.mxu0 0.0
      %10808 = vmatprep.subr.mxu0 0.0
      %10809 = vmatpush1.msra.mxu0 0.0
      %10810 = vmatprep.subr.mxu0 0.0
      %10811 = vmatpush1.msra.mxu0 0.0
      %10812 = vmatprep.subr.mxu0 0.0
      %10813 = vmatpush1.msra.mxu0 0.0
      %10814 = vmatprep.subr.mxu0 0.0
      %10815 = vmatpush1.msra.mxu0 0.0
      %10816 = vmatprep.subr.mxu0 0.0
      %10817 = vmatpush1.msra.mxu0 0.0
      %10818 = vmatprep.subr.mxu0 0.0
      %10819 = vmatpush1.msra.mxu0 0.0
      %10820 = vmatprep.subr.mxu0 %v10790
      %10821 = vmatpush1.msra.mxu0 %v10788
      %10822 = vmatprep.subr.mxu0 %v10340
      %10823 = vmatpush1.msra.mxu0 %v10339
      %10824 = vmatprep.subr.mxu0 0.0
      %10825 = vmatpush2.msra.mxu0 0.0
      %10826 = vmatprep.subr.mxu0 0.0
      %10827 = vmatpush2.msra.mxu0 0.0
      %10828 = vmatprep.subr.mxu0 0.0
      %10829 = vmatpush2.msra.mxu0 0.0
      %10830 = vmatprep.subr.mxu0 0.0
      %10831 = vmatpush2.msra.mxu0 0.0
      %10832 = vmatprep.subr.mxu0 0.0
      %10833 = vmatpush2.msra.mxu0 0.0
      %10834 = vmatprep.subr.mxu0 0.0
      %10835 = vmatpush2.msra.mxu0 0.0
      %10836 = vmatprep.subr.mxu0 0.0
      %10837 = vmatpush2.msra.mxu0 0.0
      %10838 = vmatprep.subr.mxu0 0.0
      %10839 = vmatpush2.msra.mxu0 0.0
      %10840 = vmatprep.subr.mxu0 0.0
      %10841 = vmatpush2.msra.mxu0 0.0
      %10842 = vmatprep.subr.mxu0 0.0
      %10843 = vmatpush2.msra.mxu0 0.0
      %10844 = vmatprep.subr.mxu0 0.0
      %10845 = vmatpush2.msra.mxu0 0.0
      %10846 = vmatprep.subr.mxu0 0.0
      %10847 = vmatpush2.msra.mxu0 0.0
      %10848 = vmatprep.subr.mxu0 0.0
      %10849 = vmatpush2.msra.mxu0 0.0
      %10850 = vmatprep.subr.mxu0 0.0
      %10851 = vmatpush2.msra.mxu0 0.0
      %10852 = vmatprep.subr.mxu0 0.0
      %10853 = vmatpush2.msra.mxu0 0.0
      %10854 = vmatprep.subr.mxu0 0.0
      %10855 = vmatpush2.msra.mxu0 0.0
      %10856 = vmatprep.mubr.f32.mxu0 0.0
      %10857 = vmatmul.mubr.f32.gmra.mxu0 %v10783
      %v10858 = vpop.f32.mrf.mxu0
      %v10859 = vadd.f32 0.0, %v10858
      %v10860 = vpop.f32.mrf.mxu0
      %v10861 = vadd.f32 0.0, %v10860
      %10862 = vmatprep.mubr.f32.mxu0 0.0
      %10863 = vmatmul.mubr.f32.gmra.mxu0 %v10786
      %v10864 = vpop.f32.mrf.mxu0
      %v10865 = vadd.f32 0.0, %v10864
      %v10866 = vpop.f32.mrf.mxu0
      %v10867 = vadd.f32 0.0, %v10866
      %10868 = vdwg.mxu0
      %v10869 = vadd.f32 %v10778, %v10859
      %v10870 = vadd.f32 %v10779, %v10861
      %v10871 = vadd.f32 %v10780, %v10865
      %v10872 = vadd.f32 %v10781, %v10867
      %v10873 = vld [vmem:[#allocation2 + $0x8] sm:$0xff]
      %v10874 = vld [vmem:[#allocation2 + $0x10] sm:$0xff]
      %v10875 = vld [vmem:[#allocation2 + $0x18] sm:$0xff]
      %v10876 = vld [vmem:[#allocation2 + $0x58] sm:$0x3]
      %v10877 = vld [vmem:[#allocation2 + $0x60] sm:$0x3]
      %v10878 = vld [vmem:[#allocation2 + $0x68] sm:$0x3]
      %10885 = vrot.lane.b32.xlu0 %v10873, 127
      %v10886 = vpop.permute.xlu0 %10885
      %10887 = vrot.lane.b32.xlu0 %v10874, 127
      %v10888 = vpop.permute.xlu0 %10887
      %10889 = vrot.lane.b32.xlu0 %v10875, 127
      %v10890 = vpop.permute.xlu0 %10889
      %10891 = vrot.lane.b32.xlu0 %v10876, 127
      %v10892 = vpop.permute.xlu0 %10891
      %10893 = vrot.lane.b32.xlu0 %v10877, 127
      %v10894 = vpop.permute.xlu0 %10893
      %10895 = vrot.lane.b32.xlu0 %v10878, 127
      %v10896 = vpop.permute.xlu0 %10895
      %v10897 = vsel %vm738, %v10886, %v10888
      %v10898 = vsel %vm738, %v10888, %v10890
      %v10899 = vsel %vm738, %v10892, %v10894
      %v10900 = vsel %vm738, %v10894, %v10896
      %v10904 = vsel %vm1911, %v10326, 0
      %v10907 = vsel %vm1911, %v10327, 0
      %v10909 = vsel %vm1921, %v10899, 0
      %v10911 = vsel %vm1921, %v10900, 0
      %10913 = vmatprep.subr.mxu0 0.0
      %10914 = vmatpush1.msra.mxu0 0.0
      %10915 = vmatprep.subr.mxu0 0.0
      %10916 = vmatpush1.msra.mxu0 0.0
      %10917 = vmatprep.subr.mxu0 0.0
      %10918 = vmatpush1.msra.mxu0 0.0
      %10919 = vmatprep.subr.mxu0 0.0
      %10920 = vmatpush1.msra.mxu0 0.0
      %10921 = vmatprep.subr.mxu0 0.0
      %10922 = vmatpush1.msra.mxu0 0.0
      %10923 = vmatprep.subr.mxu0 0.0
      %10924 = vmatpush1.msra.mxu0 0.0
      %10925 = vmatprep.subr.mxu0 0.0
      %10926 = vmatpush1.msra.mxu0 0.0
      %10927 = vmatprep.subr.mxu0 0.0
      %10928 = vmatpush1.msra.mxu0 0.0
      %10929 = vmatprep.subr.mxu0 0.0
      %10930 = vmatpush1.msra.mxu0 0.0
      %10931 = vmatprep.subr.mxu0 0.0
      %10932 = vmatpush1.msra.mxu0 0.0
      %10933 = vmatprep.subr.mxu0 0.0
      %10934 = vmatpush1.msra.mxu0 0.0
      %10935 = vmatprep.subr.mxu0 0.0
      %10936 = vmatpush1.msra.mxu0 0.0
      %10937 = vmatprep.subr.mxu0 0.0
      %10938 = vmatpush1.msra.mxu0 0.0
      %10939 = vmatprep.subr.mxu0 0.0
      %10940 = vmatpush1.msra.mxu0 0.0
      %10941 = vmatprep.subr.mxu0 %v10911
      %10942 = vmatpush1.msra.mxu0 %v10909
      %10943 = vmatprep.subr.mxu0 %v10898
      %10944 = vmatpush1.msra.mxu0 %v10897
      %10945 = vmatprep.subr.mxu0 0.0
      %10946 = vmatpush2.msra.mxu0 0.0
      %10947 = vmatprep.subr.mxu0 0.0
      %10948 = vmatpush2.msra.mxu0 0.0
      %10949 = vmatprep.subr.mxu0 0.0
      %10950 = vmatpush2.msra.mxu0 0.0
      %10951 = vmatprep.subr.mxu0 0.0
      %10952 = vmatpush2.msra.mxu0 0.0
      %10953 = vmatprep.subr.mxu0 0.0
      %10954 = vmatpush2.msra.mxu0 0.0
      %10955 = vmatprep.subr.mxu0 0.0
      %10956 = vmatpush2.msra.mxu0 0.0
      %10957 = vmatprep.subr.mxu0 0.0
      %10958 = vmatpush2.msra.mxu0 0.0
      %10959 = vmatprep.subr.mxu0 0.0
      %10960 = vmatpush2.msra.mxu0 0.0
      %10961 = vmatprep.subr.mxu0 0.0
      %10962 = vmatpush2.msra.mxu0 0.0
      %10963 = vmatprep.subr.mxu0 0.0
      %10964 = vmatpush2.msra.mxu0 0.0
      %10965 = vmatprep.subr.mxu0 0.0
      %10966 = vmatpush2.msra.mxu0 0.0
      %10967 = vmatprep.subr.mxu0 0.0
      %10968 = vmatpush2.msra.mxu0 0.0
      %10969 = vmatprep.subr.mxu0 0.0
      %10970 = vmatpush2.msra.mxu0 0.0
      %10971 = vmatprep.subr.mxu0 0.0
      %10972 = vmatpush2.msra.mxu0 0.0
      %10973 = vmatprep.subr.mxu0 0.0
      %10974 = vmatpush2.msra.mxu0 0.0
      %10975 = vmatprep.subr.mxu0 0.0
      %10976 = vmatpush2.msra.mxu0 0.0
      %10977 = vmatprep.mubr.f32.mxu0 0.0
      %10978 = vmatmul.mubr.f32.gmra.mxu0 %v10904
      %v10979 = vpop.f32.mrf.mxu0
      %v10980 = vadd.f32 0.0, %v10979
      %v10981 = vpop.f32.mrf.mxu0
      %v10982 = vadd.f32 0.0, %v10981
      %10983 = vmatprep.mubr.f32.mxu0 0.0
      %10984 = vmatmul.mubr.f32.gmra.mxu0 %v10907
      %v10985 = vpop.f32.mrf.mxu0
      %v10986 = vadd.f32 0.0, %v10985
      %v10987 = vpop.f32.mrf.mxu0
      %v10988 = vadd.f32 0.0, %v10987
      %10989 = vdwg.mxu0
      %v10990 = vadd.f32 %v10869, %v10980
      %v10991 = vadd.f32 %v10870, %v10982
      %v10992 = vadd.f32 %v10871, %v10986
      %v10993 = vadd.f32 %v10872, %v10988
      %10994 = vrot.lane.b32.xlu0 %v10873, 115
      %v10995 = vpop.permute.xlu0 %10994
      %10996 = vrot.lane.b32.xlu0 %v10874, 115
      %v10997 = vpop.permute.xlu0 %10996
      %10998 = vrot.lane.b32.xlu0 %v10875, 115
      %v10999 = vpop.permute.xlu0 %10998
      %11000 = vrot.lane.b32.xlu0 %v10876, 115
      %v11001 = vpop.permute.xlu0 %11000
      %11002 = vrot.lane.b32.xlu0 %v10877, 115
      %v11003 = vpop.permute.xlu0 %11002
      %11004 = vrot.lane.b32.xlu0 %v10878, 115
      %v11005 = vpop.permute.xlu0 %11004
      %vm11006 = vcmask 941056
      %v11007 = vsel %vm11006, %v10995, %v10997
      %v11008 = vsel %vm11006, %v10997, %v10999
      %v11009 = vsel %vm11006, %v11001, %v11003
      %v11010 = vsel %vm11006, %v11003, %v11005
      %v11014 = vsel %vm1911, %v10328, 0
      %v11017 = vsel %vm1911, %v10329, 0
      %v11019 = vsel %vm1921, %v11009, 0
      %v11021 = vsel %vm1921, %v11010, 0
      %11023 = vmatprep.subr.mxu0 0.0
      %11024 = vmatpush1.msra.mxu0 0.0
      %11025 = vmatprep.subr.mxu0 0.0
      %11026 = vmatpush1.msra.mxu0 0.0
      %11027 = vmatprep.subr.mxu0 0.0
      %11028 = vmatpush1.msra.mxu0 0.0
      %11029 = vmatprep.subr.mxu0 0.0
      %11030 = vmatpush1.msra.mxu0 0.0
      %11031 = vmatprep.subr.mxu0 0.0
      %11032 = vmatpush1.msra.mxu0 0.0
      %11033 = vmatprep.subr.mxu0 0.0
      %11034 = vmatpush1.msra.mxu0 0.0
      %11035 = vmatprep.subr.mxu0 0.0
      %11036 = vmatpush1.msra.mxu0 0.0
      %11037 = vmatprep.subr.mxu0 0.0
      %11038 = vmatpush1.msra.mxu0 0.0
      %11039 = vmatprep.subr.mxu0 0.0
      %11040 = vmatpush1.msra.mxu0 0.0
      %11041 = vmatprep.subr.mxu0 0.0
      %11042 = vmatpush1.msra.mxu0 0.0
      %11043 = vmatprep.subr.mxu0 0.0
      %11044 = vmatpush1.msra.mxu0 0.0
      %11045 = vmatprep.subr.mxu0 0.0
      %11046 = vmatpush1.msra.mxu0 0.0
      %11047 = vmatprep.subr.mxu0 0.0
      %11048 = vmatpush1.msra.mxu0 0.0
      %11049 = vmatprep.subr.mxu0 0.0
      %11050 = vmatpush1.msra.mxu0 0.0
      %11051 = vmatprep.subr.mxu0 %v11021
      %11052 = vmatpush1.msra.mxu0 %v11019
      %11053 = vmatprep.subr.mxu0 %v11008
      %11054 = vmatpush1.msra.mxu0 %v11007
      %11055 = vmatprep.subr.mxu0 0.0
      %11056 = vmatpush2.msra.mxu0 0.0
      %11057 = vmatprep.subr.mxu0 0.0
      %11058 = vmatpush2.msra.mxu0 0.0
      %11059 = vmatprep.subr.mxu0 0.0
      %11060 = vmatpush2.msra.mxu0 0.0
      %11061 = vmatprep.subr.mxu0 0.0
      %11062 = vmatpush2.msra.mxu0 0.0
      %11063 = vmatprep.subr.mxu0 0.0
      %11064 = vmatpush2.msra.mxu0 0.0
      %11065 = vmatprep.subr.mxu0 0.0
      %11066 = vmatpush2.msra.mxu0 0.0
      %11067 = vmatprep.subr.mxu0 0.0
      %11068 = vmatpush2.msra.mxu0 0.0
      %11069 = vmatprep.subr.mxu0 0.0
      %11070 = vmatpush2.msra.mxu0 0.0
      %11071 = vmatprep.subr.mxu0 0.0
      %11072 = vmatpush2.msra.mxu0 0.0
      %11073 = vmatprep.subr.mxu0 0.0
      %11074 = vmatpush2.msra.mxu0 0.0
      %11075 = vmatprep.subr.mxu0 0.0
      %11076 = vmatpush2.msra.mxu0 0.0
      %11077 = vmatprep.subr.mxu0 0.0
      %11078 = vmatpush2.msra.mxu0 0.0
      %11079 = vmatprep.subr.mxu0 0.0
      %11080 = vmatpush2.msra.mxu0 0.0
      %11081 = vmatprep.subr.mxu0 0.0
      %11082 = vmatpush2.msra.mxu0 0.0
      %11083 = vmatprep.subr.mxu0 0.0
      %11084 = vmatpush2.msra.mxu0 0.0
      %11085 = vmatprep.subr.mxu0 0.0
      %11086 = vmatpush2.msra.mxu0 0.0
      %11087 = vmatprep.mubr.f32.mxu0 0.0
      %11088 = vmatmul.mubr.f32.gmra.mxu0 %v11014
      %v11089 = vpop.f32.mrf.mxu0
      %v11090 = vadd.f32 0.0, %v11089
      %v11091 = vpop.f32.mrf.mxu0
      %v11092 = vadd.f32 0.0, %v11091
      %11093 = vmatprep.mubr.f32.mxu0 0.0
      %11094 = vmatmul.mubr.f32.gmra.mxu0 %v11017
      %v11095 = vpop.f32.mrf.mxu0
      %v11096 = vadd.f32 0.0, %v11095
      %v11097 = vpop.f32.mrf.mxu0
      %v11098 = vadd.f32 0.0, %v11097
      %11099 = vdwg.mxu0
      %v11100 = vadd.f32 %v10990, %v11090
      %v11101 = vadd.f32 %v10991, %v11092
      %v11102 = vadd.f32 %v10992, %v11096
      %v11103 = vadd.f32 %v10993, %v11098
      %11104 = vrot.lane.b32.xlu0 %v10873, 114
      %v11105 = vpop.permute.xlu0 %11104
      %11106 = vrot.lane.b32.xlu0 %v10874, 114
      %v11107 = vpop.permute.xlu0 %11106
      %11108 = vrot.lane.b32.xlu0 %v10875, 114
      %v11109 = vpop.permute.xlu0 %11108
      %11110 = vrot.lane.b32.xlu0 %v10876, 114
      %v11111 = vpop.permute.xlu0 %11110
      %11112 = vrot.lane.b32.xlu0 %v10877, 114
      %v11113 = vpop.permute.xlu0 %11112
      %11114 = vrot.lane.b32.xlu0 %v10878, 114
      %v11115 = vpop.permute.xlu0 %11114
      %v11116 = vsel %vm7411, %v11105, %v11107
      %v11117 = vsel %vm7411, %v11107, %v11109
      %v11118 = vsel %vm7411, %v11111, %v11113
      %v11119 = vsel %vm7411, %v11113, %v11115
      %v11123 = vsel %vm1911, %v10330, 0
      %v11126 = vsel %vm1911, %v10331, 0
      %v11128 = vsel %vm1921, %v11118, 0
      %v11130 = vsel %vm1921, %v11119, 0
      %11132 = vmatprep.subr.mxu0 0.0
      %11133 = vmatpush1.msra.mxu0 0.0
      %11134 = vmatprep.subr.mxu0 0.0
      %11135 = vmatpush1.msra.mxu0 0.0
      %11136 = vmatprep.subr.mxu0 0.0
      %11137 = vmatpush1.msra.mxu0 0.0
      %11138 = vmatprep.subr.mxu0 0.0
      %11139 = vmatpush1.msra.mxu0 0.0
      %11140 = vmatprep.subr.mxu0 0.0
      %11141 = vmatpush1.msra.mxu0 0.0
      %11142 = vmatprep.subr.mxu0 0.0
      %11143 = vmatpush1.msra.mxu0 0.0
      %11144 = vmatprep.subr.mxu0 0.0
      %11145 = vmatpush1.msra.mxu0 0.0
      %11146 = vmatprep.subr.mxu0 0.0
      %11147 = vmatpush1.msra.mxu0 0.0
      %11148 = vmatprep.subr.mxu0 0.0
      %11149 = vmatpush1.msra.mxu0 0.0
      %11150 = vmatprep.subr.mxu0 0.0
      %11151 = vmatpush1.msra.mxu0 0.0
      %11152 = vmatprep.subr.mxu0 0.0
      %11153 = vmatpush1.msra.mxu0 0.0
      %11154 = vmatprep.subr.mxu0 0.0
      %11155 = vmatpush1.msra.mxu0 0.0
      %11156 = vmatprep.subr.mxu0 0.0
      %11157 = vmatpush1.msra.mxu0 0.0
      %11158 = vmatprep.subr.mxu0 0.0
      %11159 = vmatpush1.msra.mxu0 0.0
      %11160 = vmatprep.subr.mxu0 %v11130
      %11161 = vmatpush1.msra.mxu0 %v11128
      %11162 = vmatprep.subr.mxu0 %v11117
      %11163 = vmatpush1.msra.mxu0 %v11116
      %11164 = vmatprep.subr.mxu0 0.0
      %11165 = vmatpush2.msra.mxu0 0.0
      %11166 = vmatprep.subr.mxu0 0.0
      %11167 = vmatpush2.msra.mxu0 0.0
      %11168 = vmatprep.subr.mxu0 0.0
      %11169 = vmatpush2.msra.mxu0 0.0
      %11170 = vmatprep.subr.mxu0 0.0
      %11171 = vmatpush2.msra.mxu0 0.0
      %11172 = vmatprep.subr.mxu0 0.0
      %11173 = vmatpush2.msra.mxu0 0.0
      %11174 = vmatprep.subr.mxu0 0.0
      %11175 = vmatpush2.msra.mxu0 0.0
      %11176 = vmatprep.subr.mxu0 0.0
      %11177 = vmatpush2.msra.mxu0 0.0
      %11178 = vmatprep.subr.mxu0 0.0
      %11179 = vmatpush2.msra.mxu0 0.0
      %11180 = vmatprep.subr.mxu0 0.0
      %11181 = vmatpush2.msra.mxu0 0.0
      %11182 = vmatprep.subr.mxu0 0.0
      %11183 = vmatpush2.msra.mxu0 0.0
      %11184 = vmatprep.subr.mxu0 0.0
      %11185 = vmatpush2.msra.mxu0 0.0
      %11186 = vmatprep.subr.mxu0 0.0
      %11187 = vmatpush2.msra.mxu0 0.0
      %11188 = vmatprep.subr.mxu0 0.0
      %11189 = vmatpush2.msra.mxu0 0.0
      %11190 = vmatprep.subr.mxu0 0.0
      %11191 = vmatpush2.msra.mxu0 0.0
      %11192 = vmatprep.subr.mxu0 0.0
      %11193 = vmatpush2.msra.mxu0 0.0
      %11194 = vmatprep.subr.mxu0 0.0
      %11195 = vmatpush2.msra.mxu0 0.0
      %11196 = vmatprep.mubr.f32.mxu0 0.0
      %11197 = vmatmul.mubr.f32.gmra.mxu0 %v11123
      %v11198 = vpop.f32.mrf.mxu0
      %v11199 = vadd.f32 0.0, %v11198
      %v11200 = vpop.f32.mrf.mxu0
      %v11201 = vadd.f32 0.0, %v11200
      %11202 = vmatprep.mubr.f32.mxu0 0.0
      %11203 = vmatmul.mubr.f32.gmra.mxu0 %v11126
      %v11204 = vpop.f32.mrf.mxu0
      %v11205 = vadd.f32 0.0, %v11204
      %v11206 = vpop.f32.mrf.mxu0
      %v11207 = vadd.f32 0.0, %v11206
      %11208 = vdwg.mxu0
      %v11209 = vadd.f32 %v11100, %v11199
      %v11210 = vadd.f32 %v11101, %v11201
      %v11211 = vadd.f32 %v11102, %v11205
      %v11212 = vadd.f32 %v11103, %v11207
      %11213 = vrot.lane.b32.xlu0 %v10873, 113
      %v11214 = vpop.permute.xlu0 %11213
      %11215 = vrot.lane.b32.xlu0 %v10874, 113
      %v11216 = vpop.permute.xlu0 %11215
      %11217 = vrot.lane.b32.xlu0 %v10875, 113
      %v11218 = vpop.permute.xlu0 %11217
      %11219 = vrot.lane.b32.xlu0 %v10876, 113
      %v11220 = vpop.permute.xlu0 %11219
      %11221 = vrot.lane.b32.xlu0 %v10877, 113
      %v11222 = vpop.permute.xlu0 %11221
      %11223 = vrot.lane.b32.xlu0 %v10878, 113
      %v11224 = vpop.permute.xlu0 %11223
      %v11225 = vsel %vm7532, %v11214, %v11216
      %v11226 = vsel %vm7532, %v11216, %v11218
      %v11227 = vsel %vm7532, %v11220, %v11222
      %v11228 = vsel %vm7532, %v11222, %v11224
      %v11232 = vsel %vm1911, %v10332, 0
      %v11235 = vsel %vm1911, %v10333, 0
      %v11237 = vsel %vm1921, %v11227, 0
      %v11239 = vsel %vm1921, %v11228, 0
      %11241 = vmatprep.subr.mxu0 0.0
      %11242 = vmatpush1.msra.mxu0 0.0
      %11243 = vmatprep.subr.mxu0 0.0
      %11244 = vmatpush1.msra.mxu0 0.0
      %11245 = vmatprep.subr.mxu0 0.0
      %11246 = vmatpush1.msra.mxu0 0.0
      %11247 = vmatprep.subr.mxu0 0.0
      %11248 = vmatpush1.msra.mxu0 0.0
      %11249 = vmatprep.subr.mxu0 0.0
      %11250 = vmatpush1.msra.mxu0 0.0
      %11251 = vmatprep.subr.mxu0 0.0
      %11252 = vmatpush1.msra.mxu0 0.0
      %11253 = vmatprep.subr.mxu0 0.0
      %11254 = vmatpush1.msra.mxu0 0.0
      %11255 = vmatprep.subr.mxu0 0.0
      %11256 = vmatpush1.msra.mxu0 0.0
      %11257 = vmatprep.subr.mxu0 0.0
      %11258 = vmatpush1.msra.mxu0 0.0
      %11259 = vmatprep.subr.mxu0 0.0
      %11260 = vmatpush1.msra.mxu0 0.0
      %11261 = vmatprep.subr.mxu0 0.0
      %11262 = vmatpush1.msra.mxu0 0.0
      %11263 = vmatprep.subr.mxu0 0.0
      %11264 = vmatpush1.msra.mxu0 0.0
      %11265 = vmatprep.subr.mxu0 0.0
      %11266 = vmatpush1.msra.mxu0 0.0
      %11267 = vmatprep.subr.mxu0 0.0
      %11268 = vmatpush1.msra.mxu0 0.0
      %11269 = vmatprep.subr.mxu0 %v11239
      %11270 = vmatpush1.msra.mxu0 %v11237
      %11271 = vmatprep.subr.mxu0 %v11226
      %11272 = vmatpush1.msra.mxu0 %v11225
      %11273 = vmatprep.subr.mxu0 0.0
      %11274 = vmatpush2.msra.mxu0 0.0
      %11275 = vmatprep.subr.mxu0 0.0
      %11276 = vmatpush2.msra.mxu0 0.0
      %11277 = vmatprep.subr.mxu0 0.0
      %11278 = vmatpush2.msra.mxu0 0.0
      %11279 = vmatprep.subr.mxu0 0.0
      %11280 = vmatpush2.msra.mxu0 0.0
      %11281 = vmatprep.subr.mxu0 0.0
      %11282 = vmatpush2.msra.mxu0 0.0
      %11283 = vmatprep.subr.mxu0 0.0
      %11284 = vmatpush2.msra.mxu0 0.0
      %11285 = vmatprep.subr.mxu0 0.0
      %11286 = vmatpush2.msra.mxu0 0.0
      %11287 = vmatprep.subr.mxu0 0.0
      %11288 = vmatpush2.msra.mxu0 0.0
      %11289 = vmatprep.subr.mxu0 0.0
      %11290 = vmatpush2.msra.mxu0 0.0
      %11291 = vmatprep.subr.mxu0 0.0
      %11292 = vmatpush2.msra.mxu0 0.0
      %11293 = vmatprep.subr.mxu0 0.0
      %11294 = vmatpush2.msra.mxu0 0.0
      %11295 = vmatprep.subr.mxu0 0.0
      %11296 = vmatpush2.msra.mxu0 0.0
      %11297 = vmatprep.subr.mxu0 0.0
      %11298 = vmatpush2.msra.mxu0 0.0
      %11299 = vmatprep.subr.mxu0 0.0
      %11300 = vmatpush2.msra.mxu0 0.0
      %11301 = vmatprep.subr.mxu0 0.0
      %11302 = vmatpush2.msra.mxu0 0.0
      %11303 = vmatprep.subr.mxu0 0.0
      %11304 = vmatpush2.msra.mxu0 0.0
      %11305 = vmatprep.mubr.f32.mxu0 0.0
      %11306 = vmatmul.mubr.f32.gmra.mxu0 %v11232
      %v11307 = vpop.f32.mrf.mxu0
      %v11308 = vadd.f32 0.0, %v11307
      %v11309 = vpop.f32.mrf.mxu0
      %v11310 = vadd.f32 0.0, %v11309
      %11311 = vmatprep.mubr.f32.mxu0 0.0
      %11312 = vmatmul.mubr.f32.gmra.mxu0 %v11235
      %v11313 = vpop.f32.mrf.mxu0
      %v11314 = vadd.f32 0.0, %v11313
      %v11315 = vpop.f32.mrf.mxu0
      %v11316 = vadd.f32 0.0, %v11315
      %11317 = vdwg.mxu0
      %v11318 = vadd.f32 %v11209, %v11308
      %v11319 = vadd.f32 %v11210, %v11310
      %v11320 = vadd.f32 %v11211, %v11314
      %v11321 = vadd.f32 %v11212, %v11316
      %v11322 = vmax.f32 %v11318, 0.0
      %v11323 = vmax.f32 %v11319, 0.0
      %v11324 = vmax.f32 %v11320, 0.0
      %v11325 = vmax.f32 %v11321, 0.0
      %11327 = vset.pattern.permute.xlu0 0
      %11328 = vperm.xlu0 %11327, %v450
      %v11329 = vpop.permute.xlu0 %11328
      %11332 = vset.pattern.permute.xlu0 0
      %11333 = vperm.xlu0 %11332, %v451
      %v11334 = vpop.permute.xlu0 %11333
      %v11336 = vmul.f32 %v11322, %v11329
      %v11337 = vmul.f32 %v11323, %v11329
      %v11338 = vmul.f32 %v11324, %v11334
      %v11339 = vmul.f32 %v11325, %v11334
      %11341 = vset.pattern.permute.xlu0 0
      %11342 = vperm.xlu0 %11341, %v464
      %v11343 = vpop.permute.xlu0 %11342
      %11346 = vset.pattern.permute.xlu0 0
      %11347 = vperm.xlu0 %11346, %v465
      %v11348 = vpop.permute.xlu0 %11347
      %v11350 = vadd.f32 %v11336, %v11343
      %v11351 = vadd.f32 %v11337, %v11343
      %v11352 = vadd.f32 %v11338, %v11348
      %v11353 = vadd.f32 %v11339, %v11348
      %v11354 = vld [vmem:[%s8] sm:$0xff]
      %v11355 = vld [vmem:[%s8 + $0x8] sm:$0x3]
      %v11357 = vsel %vm1911, %v11354, 0
      %v11360 = vsel %vm1911, %v11355, 0
      %v11363 = vsel %vm1921, %v11352, 0
      %v11366 = vsel %vm1921, %v11353, 0
      %11368 = vmatprep.subr.mxu0 0.0
      %11369 = vmatpush1.msra.mxu0 0.0
      %11370 = vmatprep.subr.mxu0 0.0
      %11371 = vmatpush1.msra.mxu0 0.0
      %11372 = vmatprep.subr.mxu0 0.0
      %11373 = vmatpush1.msra.mxu0 0.0
      %11374 = vmatprep.subr.mxu0 0.0
      %11375 = vmatpush1.msra.mxu0 0.0
      %11376 = vmatprep.subr.mxu0 0.0
      %11377 = vmatpush1.msra.mxu0 0.0
      %11378 = vmatprep.subr.mxu0 0.0
      %11379 = vmatpush1.msra.mxu0 0.0
      %11380 = vmatprep.subr.mxu0 0.0
      %11381 = vmatpush1.msra.mxu0 0.0
      %11382 = vmatprep.subr.mxu0 0.0
      %11383 = vmatpush1.msra.mxu0 0.0
      %11384 = vmatprep.subr.mxu0 0.0
      %11385 = vmatpush1.msra.mxu0 0.0
      %11386 = vmatprep.subr.mxu0 0.0
      %11387 = vmatpush1.msra.mxu0 0.0
      %11388 = vmatprep.subr.mxu0 0.0
      %11389 = vmatpush1.msra.mxu0 0.0
      %11390 = vmatprep.subr.mxu0 0.0
      %11391 = vmatpush1.msra.mxu0 0.0
      %11392 = vmatprep.subr.mxu0 0.0
      %11393 = vmatpush1.msra.mxu0 0.0
      %11394 = vmatprep.subr.mxu0 0.0
      %11395 = vmatpush1.msra.mxu0 0.0
      %11396 = vmatprep.subr.mxu0 %v11366
      %11397 = vmatpush1.msra.mxu0 %v11363
      %11398 = vmatprep.subr.mxu0 %v11351
      %11399 = vmatpush1.msra.mxu0 %v11350
      %11400 = vmatprep.subr.mxu0 0.0
      %11401 = vmatpush2.msra.mxu0 0.0
      %11402 = vmatprep.subr.mxu0 0.0
      %11403 = vmatpush2.msra.mxu0 0.0
      %11404 = vmatprep.subr.mxu0 0.0
      %11405 = vmatpush2.msra.mxu0 0.0
      %11406 = vmatprep.subr.mxu0 0.0
      %11407 = vmatpush2.msra.mxu0 0.0
      %11408 = vmatprep.subr.mxu0 0.0
      %11409 = vmatpush2.msra.mxu0 0.0
      %11410 = vmatprep.subr.mxu0 0.0
      %11411 = vmatpush2.msra.mxu0 0.0
      %11412 = vmatprep.subr.mxu0 0.0
      %11413 = vmatpush2.msra.mxu0 0.0
      %11414 = vmatprep.subr.mxu0 0.0
      %11415 = vmatpush2.msra.mxu0 0.0
      %11416 = vmatprep.subr.mxu0 0.0
      %11417 = vmatpush2.msra.mxu0 0.0
      %11418 = vmatprep.subr.mxu0 0.0
      %11419 = vmatpush2.msra.mxu0 0.0
      %11420 = vmatprep.subr.mxu0 0.0
      %11421 = vmatpush2.msra.mxu0 0.0
      %11422 = vmatprep.subr.mxu0 0.0
      %11423 = vmatpush2.msra.mxu0 0.0
      %11424 = vmatprep.subr.mxu0 0.0
      %11425 = vmatpush2.msra.mxu0 0.0
      %11426 = vmatprep.subr.mxu0 0.0
      %11427 = vmatpush2.msra.mxu0 0.0
      %11428 = vmatprep.subr.mxu0 0.0
      %11429 = vmatpush2.msra.mxu0 0.0
      %11430 = vmatprep.subr.mxu0 0.0
      %11431 = vmatpush2.msra.mxu0 0.0
      %11432 = vmatprep.mubr.f32.mxu0 0.0
      %11433 = vmatmul.mubr.f32.gmra.mxu0 %v11357
      %v11434 = vpop.f32.mrf.mxu0
      %v11435 = vadd.f32 0.0, %v11434
      %v11436 = vpop.f32.mrf.mxu0
      %v11437 = vadd.f32 0.0, %v11436
      %11438 = vmatprep.mubr.f32.mxu0 0.0
      %11439 = vmatmul.mubr.f32.gmra.mxu0 %v11360
      %v11440 = vpop.f32.mrf.mxu0
      %v11441 = vadd.f32 0.0, %v11440
      %v11442 = vpop.f32.mrf.mxu0
      %v11443 = vadd.f32 0.0, %v11442
      %11444 = vdwg.mxu0
      %v11445 = vmul.f32 %v10300, 0.027777778
      %v11447 = vlaneseq
      %v11448 = vshrl.u32 %v11447, 7
      %v11449 = vsub.s32 0, %v11448
      %v11450 = vrot.slane %v11445, %v11449
      %v11451 = vlaneseq
      %v11452 = vshrl.u32 %v11451, 7
      %v11453 = vsub.s32 1, %v11452
      %v11454 = vrot.slane %v11445, %v11453
      %v11457 = vmul.f32 %v11435, %v11450
      %v11458 = vmul.f32 %v11437, %v11454
      %v11459 = vmul.f32 %v11441, %v11450
      %v11460 = vmul.f32 %v11443, %v11454
      %v11461 = vadd.f32 %v11457, %v11458
      %11462 = vadd.xlane.f32.xlu0 %v11461
      %v11463 = vpop.xlane.xlu0 %11462
      %v11464 = vsel %vm1921, %v11459, 0.0
      %v11465 = vsel %vm1921, %v11460, 0.0
      %v11466 = vadd.f32 %v11464, %v11465
      %11467 = vadd.xlane.f32.xlu0 %v11466
      %v11468 = vpop.xlane.xlu0 %11467
      %v11469 = vsel %vm1921, %v11468, -inf
      %v11470 = vmax.f32 %v11463, %v11469
      %v11471 = vrot.slane %v11470, 4
      %v11472 = vmax.f32 %v11470, %v11471
      %v11473 = vrot.slane %v11472, 2
      %v11474 = vmax.f32 %v11472, %v11473
      %v11475 = vrot.slane %v11474, 1
      %v11476 = vmax.f32 %v11474, %v11475
      %v11477 = vsub.f32 %v11463, %v11476
      %v11478 = vsub.f32 %v11468, %v11476
      %v11479 = vmul.f32 %v11477, 1.442695
      %v11480 = vpow.pop %v11479
      %v11481 = vmul.f32 %v11478, 1.442695
      %v11482 = vpow.pop %v11481
      %v11483 = vsel %vm1921, %v11482, 0.0
      %v11484 = vadd.f32 %v11480, %v11483
      %v11485 = vrot.slane %v11484, 4
      %v11486 = vadd.f32 %v11484, %v11485
      %v11487 = vrot.slane %v11486, 2
      %v11488 = vadd.f32 %v11486, %v11487
      %v11489 = vrot.slane %v11488, 1
      %v11490 = vadd.f32 %v11488, %v11489
      %v11491 = vlog2.pop %v11490
      %v11492 = vmul.f32 %v11491, 0.6931472
      %v11493 = vsub.f32 %v11477, %v11492
      %v11494 = vsub.f32 %v11478, %v11492
      %11495 = vst.msk [vmem:[%s437] sm:$0xff] %vm10684, %v11493
      %vm11496 = vcmask 1024
      %11497 = vst.msk [vmem:[%s437 + $0x8] sm:$0x3] %vm11496, %v11494
      %p11498 = scmp.lt.s32.totalorder %s24, 1
      %s11499 = scalar_select %p11498, %s24, 1
      %s11500 = smul.addr %s11499, 2
      %s11501 = smul.addr %s11500, 8
      %s11502 = scalar_lea.vmem %s13, %s11501
      // Predicated region
      $region73: #{model_forward.1} parent=71 // pred_check
        %p11503 = pneg %p320
      $region74: #{model_forward.1} parent=71 // pred_check_branch
        %11505 = sbr.rel (%p11503) target = $region76
      $region75: #{model_forward.1} parent=71 // pred_region
        _
      $region76: #{model_forward.1} parent=71 // pred_fallthru
        _
    $region72: #{model_forward.1} parent=5 // pred_fallthru
      _
    %p11506 = scmp.le.s32.totalorder 2, %s19
    // Predicated region
    $region77: #{model_forward.1} parent=5 // pred_check
      %p11507 = pneg %p11506
    $region78: #{model_forward.1} parent=5 // pred_check_branch
      %11509 = sbr.rel (%p11507) target = $region80
    $region79: #{model_forward.1} parent=5 // pred_region
      %s11510 = ssub.s32 %s19, 2
      // Predicated region
      $region81: #{model_forward.1} parent=79 // pred_check
        %p11511 = pneg %p326
      $region82: #{model_forward.1} parent=79 // pred_check_branch
        %11513 = sbr.rel (%p11511) target = $region84
      $region83: #{model_forward.1} parent=79 // pred_region
        %p11514 = scmp.lt.s32.totalorder %s25, 1
        %s11515 = scalar_select %p11514, %s25, 1
        %s11516 = smul.addr %s11515, 2
        %s11517 = smul.addr %s11516, 8
        %s11518 = scalar_lea.vmem %s13, %s11517
      $region84: #{model_forward.1} parent=79 // pred_fallthru
        _
    $region80: #{model_forward.1} parent=5 // pred_fallthru
      _
  $region6: #{model_forward.1} parent=0 // loop_footer
    %s23 = sadd.s32 1, %s19
  $region7: #{model_forward.1} parent=0 // loop_footer_branch
    %18 = sbr.rel target = $region3
  $region8: #{model_forward.1} parent=0 // loop_exit
    _

</llo_original>
